<compile_context>
chip_gen: v7x
topology: tpu7x:2x2x1
jax: 0.10.0
libtpu: 0.0.40
codegen_flags: <defaults>
</compile_context>

<pallas_src>
import math
import functools

import jax
import jax.numpy as jnp
from jax import lax
from jax.experimental import pallas as pl
from jax.experimental.pallas import tpu as pltpu


_NEG = -1e30  # finite "-inf": exp() underflows to exactly 0, no NaN on all-masked rows
_VMEM_LIMIT = 64 * 1024 * 1024  # explicit scoped-VMEM cap, valid on v5e/v6e/v7x


# ----------------------------------------------------------------------------
# In-kernel building blocks (traced inside the Pallas kernels)
# ----------------------------------------------------------------------------
def _ln(x, g, b):
    mu = jnp.mean(x, axis=-1, keepdims=True)
    var = jnp.mean((x - mu) ** 2, axis=-1, keepdims=True)
    return (x - mu) * lax.rsqrt(var + 1e-5) * g + b


def _gelu_tanh(x):
    c = math.sqrt(2.0 / math.pi)
    return 0.5 * x * (1.0 + jnp.tanh(c * (x + 0.044715 * x * x * x)))


def _mlp(xn, w1, b1, w2, b2):
    h = jnp.dot(xn.astype(jnp.bfloat16), w1, preferred_element_type=jnp.float32) + b1
    h = _gelu_tanh(h)
    return jnp.dot(h.astype(jnp.bfloat16), w2, preferred_element_type=jnp.float32) + b2


def _mha_to_scratch(q, k, v, ctx_ref, bias_for_batch, *, bb, sq, skv,
                    n_head, head_dim):
    """q:(bb*sq,E) k,v:(bb*skv,E) bf16. Writes per-head context into ctx_ref (f32).

    Scores are computed per (sequence, head) with contraction on the feature axis
    (no transpose); probs and v are fed to the MXU in bf16 with f32 accumulation.
    """
    scale = 1.0 / math.sqrt(head_dim)
    for bi in range(bb):
        qrows = slice(bi * sq, (bi + 1) * sq)
        krows = slice(bi * skv, (bi + 1) * skv)
        bias = bias_for_batch(bi)                      # broadcastable to (sq, skv)
        qb, kb, vb = q[qrows], k[krows], v[krows]
        for h in range(n_head):
            cols = slice(h * head_dim, (h + 1) * head_dim)
            s = lax.dot_general(qb[:, cols], kb[:, cols],
                                (((1,), (1,)), ((), ())),
                                preferred_element_type=jnp.float32)
            s = s * scale + bias
            m = jnp.max(s, axis=-1, keepdims=True)
            p = jnp.exp(s - m)
            p = p * pl.reciprocal(jnp.sum(p, axis=-1, keepdims=True), approx=True)
            oh = jnp.dot(p.astype(jnp.bfloat16), vb[:, cols],
                         preferred_element_type=jnp.float32)
            ctx_ref[qrows, cols] = oh


# ----------------------------------------------------------------------------
# Kernels
# ----------------------------------------------------------------------------
def _encoder_stack_kernel(x0_ref, sb_ref, ln1g, ln1b, wqkv, wo, ln2g, ln2b,
                          w1, b1, w2, b2, o_ref, ctx_ref,
                          *, n_head, head_dim, bb, seq):
    l = pl.program_id(1)
    E = n_head * head_dim

    @pl.when(l == 0)
    def _():
        # Output blocks are not prefetched from HBM, so the residual stream must be
        # seeded from the (aliased) x0 input block once per batch block.
        o_ref[...] = x0_ref[...]

    x = o_ref[...].reshape(bb * seq, E)                # residual stream, flattened

    # ---- self attention (fused QKV, single output projection) ----
    xn = _ln(x, ln1g[0], ln1b[0])
    qkv = jnp.dot(xn.astype(jnp.bfloat16), wqkv[0],
                  preferred_element_type=jnp.float32)
    q = qkv[:, :E].astype(jnp.bfloat16)
    k = qkv[:, E:2 * E].astype(jnp.bfloat16)
    v = qkv[:, 2 * E:].astype(jnp.bfloat16)
    _mha_to_scratch(q, k, v, ctx_ref, lambda bi: sb_ref[bi],
                    bb=bb, sq=seq, skv=seq, n_head=n_head, head_dim=head_dim)
    x = x + jnp.dot(ctx_ref[...].astype(jnp.bfloat16), wo[0],
                    preferred_element_type=jnp.float32)

    # ---- MLP ----
    xn = _ln(x, ln2g[0], ln2b[0])
    x = x + _mlp(xn, w1[0], b1[0], w2[0], b2[0])

    o_ref[...] = x.reshape(bb, seq, E)


def _decoder_stack_kernel(x0_ref, enc_ref, tb_ref, sb_ref,
                          ln1g, ln1b, wqkv1, wo1, ln2g, ln2b, wq2, wkv2, wo2,
                          ln3g, ln3b, w1, b1, w2, b2, o_ref, ctx_ref,
                          *, n_head, head_dim, bb, st, ss):
    l = pl.program_id(1)
    E = n_head * head_dim

    @pl.when(l == 0)
    def _():
        o_ref[...] = x0_ref[...]

    x = o_ref[...].reshape(bb * st, E)
    enc = enc_ref[...].reshape(bb * ss, E)

    # ---- causal self attention (bias = causal + pad, precomputed outside) ----
    xn = _ln(x, ln1g[0], ln1b[0])
    qkv = jnp.dot(xn.astype(jnp.bfloat16), wqkv1[0],
                  preferred_element_type=jnp.float32)
    q = qkv[:, :E].astype(jnp.bfloat16)
    k = qkv[:, E:2 * E].astype(jnp.bfloat16)
    v = qkv[:, 2 * E:].astype(jnp.bfloat16)
    _mha_to_scratch(q, k, v, ctx_ref, lambda bi: tb_ref[bi],
                    bb=bb, sq=st, skv=st, n_head=n_head, head_dim=head_dim)
    x = x + jnp.dot(ctx_ref[...].astype(jnp.bfloat16), wo1[0],
                    preferred_element_type=jnp.float32)

    # ---- cross attention ----
    xn = _ln(x, ln2g[0], ln2b[0])
    q = jnp.dot(xn.astype(jnp.bfloat16), wq2[0],
                preferred_element_type=jnp.float32).astype(jnp.bfloat16)
    kv = jnp.dot(enc.astype(jnp.bfloat16), wkv2[0],
                 preferred_element_type=jnp.float32)
    k = kv[:, :E].astype(jnp.bfloat16)
    v = kv[:, E:].astype(jnp.bfloat16)
    _mha_to_scratch(q, k, v, ctx_ref, lambda bi: sb_ref[bi],
                    bb=bb, sq=st, skv=ss, n_head=n_head, head_dim=head_dim)
    x = x + jnp.dot(ctx_ref[...].astype(jnp.bfloat16), wo2[0],
                    preferred_element_type=jnp.float32)

    # ---- MLP ----
    xn = _ln(x, ln3g[0], ln3b[0])
    x = x + _mlp(xn, w1[0], b1[0], w2[0], b2[0])

    o_ref[...] = x.reshape(bb, st, E)


def _head_kernel(x_ref, g_ref, b_ref, w_ref, bo_ref, o_ref):
    xn = _ln(x_ref[...], g_ref[...], b_ref[...])
    o_ref[...] = (jnp.dot(xn.astype(jnp.bfloat16), w_ref[...],
                          preferred_element_type=jnp.float32) + bo_ref[...])


# ----------------------------------------------------------------------------
# Pallas wrappers
# ----------------------------------------------------------------------------
def encoder_stack(x0, src_bias, ew, *, n_head, batch_block):
    B, S, E = x0.shape
    L = ew["wqkv"].shape[0]
    H = ew["w1"].shape[2]
    head_dim = E // n_head
    Bb = batch_block

    act = lambda i, l: (i, 0, 0)        # activations: one block per batch-block
    wmap = lambda i, l: (l, 0, 0)       # weights: one block per layer

    kernel = functools.partial(_encoder_stack_kernel, n_head=n_head,
                               head_dim=head_dim, bb=Bb, seq=S)
    return pl.pallas_call(
        kernel,
        out_shape=jax.ShapeDtypeStruct((B, S, E), jnp.float32),
        grid=(B // Bb, L),
        in_specs=[
            pl.BlockSpec((Bb, S, E), act),           # x0 (aliased with output)
            pl.BlockSpec((Bb, 1, S), act),           # src pad bias
            pl.BlockSpec((1, 1, E), wmap),           # ln1_g
            pl.BlockSpec((1, 1, E), wmap),           # ln1_b
            pl.BlockSpec((1, E, 3 * E), wmap),       # wqkv (bf16)
            pl.BlockSpec((1, E, E), wmap),           # wo   (bf16)
            pl.BlockSpec((1, 1, E), wmap),           # ln2_g
            pl.BlockSpec((1, 1, E), wmap),           # ln2_b
            pl.BlockSpec((1, E, H), wmap),           # w1 (bf16)
            pl.BlockSpec((1, 1, H), wmap),           # b1
            pl.BlockSpec((1, H, E), wmap),           # w2 (bf16)
            pl.BlockSpec((1, 1, E), wmap),           # b2
        ],
        out_specs=pl.BlockSpec((Bb, S, E), act),
        scratch_shapes=[pltpu.VMEM((Bb * S, E), jnp.float32)],   # head-context scratch
        input_output_aliases={0: 0},
        compiler_params=pltpu.CompilerParams(
            dimension_semantics=("parallel", "arbitrary"),
            vmem_limit_bytes=_VMEM_LIMIT),
    )(x0, src_bias, ew["ln1_g"], ew["ln1_b"], ew["wqkv"], ew["wo"],
      ew["ln2_g"], ew["ln2_b"], ew["w1"], ew["b1"], ew["w2"], ew["b2"])


def decoder_stack(x0, enc_out, trg_bias_full, src_bias, dw, *, n_head, batch_block):
    B, St, E = x0.shape
    Ss = enc_out.shape[1]
    L = dw["wqkv1"].shape[0]
    H = dw["w1"].shape[2]
    head_dim = E // n_head
    Bb = batch_block

    act = lambda i, l: (i, 0, 0)
    wmap = lambda i, l: (l, 0, 0)

    kernel = functools.partial(_decoder_stack_kernel, n_head=n_head,
                               head_dim=head_dim, bb=Bb, st=St, ss=Ss)
    # TODO(synk): at realistic E/H on v7x (64 MiB VMEM) the per-layer decoder weight set
    #             may need pl.Buffered(1) on w1/w2 or an extra grid axis over H.
    return pl.pallas_call(
        kernel,
        out_shape=jax.ShapeDtypeStruct((B, St, E), jnp.float32),
        grid=(B // Bb, L),
        in_specs=[
            pl.BlockSpec((Bb, St, E), act),          # x0 (aliased with output)
            pl.BlockSpec((Bb, Ss, E), act),          # enc_out
            pl.BlockSpec((Bb, St, St), act),         # causal+pad trg bias
            pl.BlockSpec((Bb, 1, Ss), act),          # src pad bias
            pl.BlockSpec((1, 1, E), wmap),           # ln1_g
            pl.BlockSpec((1, 1, E), wmap),           # ln1_b
            pl.BlockSpec((1, E, 3 * E), wmap),       # wqkv1 (bf16)
            pl.BlockSpec((1, E, E), wmap),           # wo1   (bf16)
            pl.BlockSpec((1, 1, E), wmap),           # ln2_g
            pl.BlockSpec((1, 1, E), wmap),           # ln2_b
            pl.BlockSpec((1, E, E), wmap),           # wq2   (bf16)
            pl.BlockSpec((1, E, 2 * E), wmap),       # wkv2  (bf16)
            pl.BlockSpec((1, E, E), wmap),           # wo2   (bf16)
            pl.BlockSpec((1, 1, E), wmap),           # ln3_g
            pl.BlockSpec((1, 1, E), wmap),           # ln3_b
            pl.BlockSpec((1, E, H), wmap),           # w1 (bf16)
            pl.BlockSpec((1, 1, H), wmap),           # b1
            pl.BlockSpec((1, H, E), wmap),           # w2 (bf16)
            pl.BlockSpec((1, 1, E), wmap),           # b2
        ],
        out_specs=pl.BlockSpec((Bb, St, E), act),
        scratch_shapes=[pltpu.VMEM((Bb * St, E), jnp.float32)],
        input_output_aliases={0: 0},
        compiler_params=pltpu.CompilerParams(
            dimension_semantics=("parallel", "arbitrary"),
            vmem_limit_bytes=_VMEM_LIMIT),
    )(x0, enc_out, trg_bias_full, src_bias,
      dw["ln1_g"], dw["ln1_b"], dw["wqkv1"], dw["wo1"],
      dw["ln2_g"], dw["ln2_b"], dw["wq2"], dw["wkv2"], dw["wo2"],
      dw["ln3_g"], dw["ln3_b"], dw["w1"], dw["b1"], dw["w2"], dw["b2"])


def output_head(x, hw, *, row_block=256, vocab_block=2048):
    """Final LayerNorm + vocab projection, tiled over (rows, vocab)."""
    B, S, E = x.shape
    V = hw["w_out"].shape[1]
    M = B * S
    x2 = x.reshape(M, E)

    TM = M if M <= row_block else row_block
    TV = V if V <= vocab_block else vocab_block
    grid = (pl.cdiv(M, TM), pl.cdiv(V, TV))

    out = pl.pallas_call(
        _head_kernel,
        out_shape=jax.ShapeDtypeStruct((M, V), jnp.float32),
        grid=grid,
        in_specs=[
            pl.BlockSpec((TM, E), lambda i, j: (i, 0)),
            pl.BlockSpec((1, E), lambda i, j: (0, 0)),
            pl.BlockSpec((1, E), lambda i, j: (0, 0)),
            pl.BlockSpec((E, TV), lambda i, j: (0, j)),
            pl.BlockSpec((1, TV), lambda i, j: (0, j)),
        ],
        out_specs=pl.BlockSpec((TM, TV), lambda i, j: (i, j)),
        compiler_params=pltpu.CompilerParams(
            dimension_semantics=("parallel", "parallel"),
            vmem_limit_bytes=_VMEM_LIMIT),
    )(x2, hw["norm_g"].reshape(1, E), hw["norm_b"].reshape(1, E),
      hw["w_out"], hw["b_out"].reshape(1, V))
    return out.reshape(B, S, V)


# ----------------------------------------------------------------------------
# Transformer forward (glue in plain JAX; hot paths in 3 Pallas calls)
# ----------------------------------------------------------------------------
def _pick_batch_block(B):
    for bb in (8, 4, 2, 1):
        if B % bb == 0:
            return bb


def transformer_forward(src, trg, params, *, n_head, pad_idx=0):
    B, _ = src.shape
    St = trg.shape[1]
    Bb = _pick_batch_block(B)

    src_bias = jnp.where(src != pad_idx, 0.0, _NEG).astype(jnp.float32)[:, None, :]
    trg_pad = jnp.where(trg != pad_idx, 0.0, _NEG).astype(jnp.float32)      # (B, St)
    row = jnp.arange(St)[:, None]
    col = jnp.arange(St)[None, :]
    causal = jnp.where(col <= row, 0.0, _NEG).astype(jnp.float32)           # (St, St)
    trg_bias_full = causal[None, :, :] + trg_pad[:, None, :]                # (B, St, St)

    # Faithful to the PyTorch module: pe[:x.size(0)] indexes the *batch* dimension.
    x_enc = params["enc_embed"][src] + params["pe"][:B]
    enc_out = encoder_stack(x_enc, src_bias, params["enc"],
                            n_head=n_head, batch_block=Bb)

    x_dec = params["dec_embed"][trg] + params["pe"][:B]
    dec_out = decoder_stack(x_dec, enc_out, trg_bias_full, src_bias, params["dec"],
                            n_head=n_head, batch_block=Bb)

    return output_head(dec_out, params["head"])


# ----------------------------------------------------------------------------
# Pure-JAX reference (same bf16 operand casts; exact softmax)
# ----------------------------------------------------------------------------
def _ref_bdot(x, w):
    return jnp.dot(x.astype(jnp.bfloat16), w, preferred_element_type=jnp.float32)


def _ref_mha(q, k, v, wo, bias, n_head, hd):
    scale = 1.0 / math.sqrt(hd)
    qb, kb, vb = (t.astype(jnp.bfloat16) for t in (q, k, v))
    heads = []
    for h in range(n_head):
        sl = slice(h * hd, (h + 1) * hd)
        s = jnp.dot(qb[:, sl], kb[:, sl].T,
                    preferred_element_type=jnp.float32) * scale + bias
        p = jax.nn.softmax(s, axis=-1)
        heads.append(jnp.dot(p.astype(jnp.bfloat16), vb[:, sl],
                             preferred_element_type=jnp.float32))
    ctx = jnp.concatenate(heads, axis=-1)
    return _ref_bdot(ctx, wo)


def _ref_mlp(xn, w1, b1, w2, b2):
    h = _gelu_tanh(_ref_bdot(xn, w1) + b1)
    return _ref_bdot(h, w2) + b2


def ref_transformer_forward(src, trg, params, *, n_head, pad_idx=0):
    B, Ss = src.shape
    _, St = trg.shape
    E = params["enc_embed"].shape[1]
    hd = E // n_head
    src_bias = jnp.where(src != pad_idx, 0.0, _NEG).astype(jnp.float32)
    trg_bias = jnp.where(trg != pad_idx, 0.0, _NEG).astype(jnp.float32)
    ew, dw, hw = params["enc"], params["dec"], params["head"]
    L = ew["wqkv"].shape[0]

    x_enc = params["enc_embed"][src] + params["pe"][:B]
    x_dec0 = params["dec_embed"][trg] + params["pe"][:B]

    row = jnp.arange(St)[:, None]
    col = jnp.arange(St)[None, :]
    causal = jnp.where(col <= row, 0.0, _NEG)

    outs = []
    for b in range(B):
        sb = src_bias[b][None, :]
        tb = trg_bias[b][None, :]
        x = x_enc[b]
        for l in range(L):
            xn = _ln(x, ew["ln1_g"][l], ew["ln1_b"][l])
            qkv = _ref_bdot(xn, ew["wqkv"][l])
            x = x + _ref_mha(qkv[:, :E], qkv[:, E:2 * E], qkv[:, 2 * E:],
                             ew["wo"][l], sb, n_head, hd)
            xn = _ln(x, ew["ln2_g"][l], ew["ln2_b"][l])
            x = x + _ref_mlp(xn, ew["w1"][l], ew["b1"][l], ew["w2"][l], ew["b2"][l])
        enc = x

        x = x_dec0[b]
        for l in range(L):
            xn = _ln(x, dw["ln1_g"][l], dw["ln1_b"][l])
            qkv = _ref_bdot(xn, dw["wqkv1"][l])
            x = x + _ref_mha(qkv[:, :E], qkv[:, E:2 * E], qkv[:, 2 * E:],
                             dw["wo1"][l], causal + tb, n_head, hd)
            xn = _ln(x, dw["ln2_g"][l], dw["ln2_b"][l])
            q = _ref_bdot(xn, dw["wq2"][l])
            kv = _ref_bdot(enc, dw["wkv2"][l])
            x = x + _ref_mha(q, kv[:, :E], kv[:, E:], dw["wo2"][l], sb, n_head, hd)
            xn = _ln(x, dw["ln3_g"][l], dw["ln3_b"][l])
            x = x + _ref_mlp(xn, dw["w1"][l], dw["b1"][l], dw["w2"][l], dw["b2"][l])

        xn = _ln(x, hw["norm_g"], hw["norm_b"])
        outs.append(_ref_bdot(xn, hw["w_out"]) + hw["b_out"])
    return jnp.stack(outs)


# ----------------------------------------------------------------------------
# Parameter init (deterministic, synthetic; nn.Linear stored as (in, out))
# ----------------------------------------------------------------------------
def build_positional_encoding(max_len, d_model):
    position = jnp.arange(max_len, dtype=jnp.float32)[:, None]
    div_term = jnp.exp(jnp.arange(0, d_model, 2, dtype=jnp.float32)
                       * (-math.log(10000.0) / d_model))
    pe = jnp.zeros((max_len, 1, d_model), jnp.float32)
    pe = pe.at[:, 0, 0::2].set(jnp.sin(position * div_term))
    pe = pe.at[:, 0, 1::2].set(jnp.cos(position * div_term))
    return pe


def init_params(key, *, n_embed, n_head, n_hidden, n_layers, vocab_size, max_len):
    kit = iter(jax.random.split(key, 128))

    def nrm(shape, scale=0.02):
        return scale * jax.random.normal(next(kit), shape, jnp.float32)

    def enc_layer():
        wq, wk, wv = (nrm((n_embed, n_embed)) for _ in range(3))
        return dict(
            ln1_g=1.0 + nrm((1, n_embed), 0.05), ln1_b=nrm((1, n_embed), 0.05),
            wqkv=jnp.concatenate([wq, wk, wv], axis=1).astype(jnp.bfloat16),
            wo=nrm((n_embed, n_embed)).astype(jnp.bfloat16),
            ln2_g=1.0 + nrm((1, n_embed), 0.05), ln2_b=nrm((1, n_embed), 0.05),
            w1=nrm((n_embed, n_hidden)).astype(jnp.bfloat16), b1=nrm((1, n_hidden), 0.02),
            w2=nrm((n_hidden, n_embed)).astype(jnp.bfloat16), b2=nrm((1, n_embed), 0.02),
        )

    def dec_layer():
        wq1, wk1, wv1 = (nrm((n_embed, n_embed)) for _ in range(3))
        wk2, wv2 = nrm((n_embed, n_embed)), nrm((n_embed, n_embed))
        return dict(
            ln1_g=1.0 + nrm((1, n_embed), 0.05), ln1_b=nrm((1, n_embed), 0.05),
            wqkv1=jnp.concatenate([wq1, wk1, wv1], axis=1).astype(jnp.bfloat16),
            wo1=nrm((n_embed, n_embed)).astype(jnp.bfloat16),
            ln2_g=1.0 + nrm((1, n_embed), 0.05), ln2_b=nrm((1, n_embed), 0.05),
            wq2=nrm((n_embed, n_embed)).astype(jnp.bfloat16),
            wkv2=jnp.concatenate([wk2, wv2], axis=1).astype(jnp.bfloat16),
            wo2=nrm((n_embed, n_embed)).astype(jnp.bfloat16),
            ln3_g=1.0 + nrm((1, n_embed), 0.05), ln3_b=nrm((1, n_embed), 0.05),
            w1=nrm((n_embed, n_hidden)).astype(jnp.bfloat16), b1=nrm((1, n_hidden), 0.02),
            w2=nrm((n_hidden, n_embed)).astype(jnp.bfloat16), b2=nrm((1, n_embed), 0.02),
        )

    def stack(layer_list):
        return {k: jnp.stack([ld[k] for ld in layer_list]) for k in layer_list[0]}

    enc = stack([enc_layer() for _ in range(n_layers)])
    dec = stack([dec_layer() for _ in range(n_layers)])
    head = dict(norm_g=1.0 + nrm((n_embed,), 0.05), norm_b=nrm((n_embed,), 0.05),
                w_out=nrm((n_embed, vocab_size)).astype(jnp.bfloat16),
                b_out=nrm((vocab_size,), 0.02))
    enc_embed = nrm((vocab_size, n_embed), 0.1)
    dec_embed = nrm((vocab_size, n_embed), 0.1)
    pe = build_positional_encoding(max_len, n_embed)
    return dict(enc=enc, dec=dec, head=head,
                enc_embed=enc_embed, dec_embed=dec_embed, pe=pe)


# ----------------------------------------------------------------------------
if __name__ == "__main__":
    B, S_SRC, S_TRG = 2, 8, 8
    N_EMBED, N_HEAD, N_HIDDEN, N_LAYERS = 32, 4, 64, 2
    VOCAB, MAX_LEN, PAD = 50, 16, 0

    key = jax.random.PRNGKey(0)
    k_par, k_src, k_trg = jax.random.split(key, 3)

    params = init_params(k_par, n_embed=N_EMBED, n_head=N_HEAD, n_hidden=N_HIDDEN,
                         n_layers=N_LAYERS, vocab_size=VOCAB, max_len=MAX_LEN)

    src = jax.random.randint(k_src, (B, S_SRC), 1, VOCAB)
    trg = jax.random.randint(k_trg, (B, S_TRG), 1, VOCAB)
    # Introduce a padding token per row to exercise the pad masks (never a full row).
    src = src.at[:, -1].set(PAD)
    trg = trg.at[:, -1].set(PAD)

    fwd = jax.jit(functools.partial(transformer_forward, n_head=N_HEAD, pad_idx=PAD))
    out = jax.block_until_ready(fwd(src, trg, params))

    ref_fwd = jax.jit(functools.partial(ref_transformer_forward, n_head=N_HEAD,
                                        pad_idx=PAD))
    ref = jax.block_until_ready(ref_fwd(src, trg, params))

    assert out.shape == (B, S_TRG, VOCAB), out.shape
    max_err = float(jnp.max(jnp.abs(out - ref)))
    assert max_err < 1e-2, f"mismatch vs reference: max_err={max_err}"
    print("KERNEL_OK")
</pallas_src>

<mosaic_0001>
module attributes {stable_mosaic.version = 11 : i64} {
  func.func @_encoder_stack_kernel(%arg0: i32, %arg1: i32, %arg2: memref<2x8x32xf32, #tpu.memory_space<vmem>>, %arg3: memref<2x1x8xf32, #tpu.memory_space<vmem>>, %arg4: memref<1x1x32xf32, #tpu.memory_space<vmem>>, %arg5: memref<1x1x32xf32, #tpu.memory_space<vmem>>, %arg6: memref<1x32x96xbf16, #tpu.memory_space<vmem>>, %arg7: memref<1x32x32xbf16, #tpu.memory_space<vmem>>, %arg8: memref<1x1x32xf32, #tpu.memory_space<vmem>>, %arg9: memref<1x1x32xf32, #tpu.memory_space<vmem>>, %arg10: memref<1x32x64xbf16, #tpu.memory_space<vmem>>, %arg11: memref<1x1x64xf32, #tpu.memory_space<vmem>>, %arg12: memref<1x64x32xbf16, #tpu.memory_space<vmem>>, %arg13: memref<1x1x32xf32, #tpu.memory_space<vmem>>, %arg14: memref<2x8x32xf32, #tpu.memory_space<vmem>>, %arg15: memref<16x32xf32, #tpu.memory_space<vmem>>) attributes {dimension_semantics = [#tpu.dimension_semantics<parallel>, #tpu.dimension_semantics<arbitrary>], iteration_bounds = array<i64: 1, 2>, scalar_prefetch = 0 : i64, scratch_operands = 1 : i64, tpu.core_type = #tpu.core_type<tc>, window_params = [{transform_indices = @transform_0, window_bounds = array<i64: 2, 8, 32>}, {transform_indices = @transform_1, window_bounds = array<i64: 2, 1, 8>}, {transform_indices = @transform_2, window_bounds = array<i64: 1, 1, 32>}, {transform_indices = @transform_3, window_bounds = array<i64: 1, 1, 32>}, {transform_indices = @transform_4, window_bounds = array<i64: 1, 32, 96>}, {transform_indices = @transform_5, window_bounds = array<i64: 1, 32, 32>}, {transform_indices = @transform_6, window_bounds = array<i64: 1, 1, 32>}, {transform_indices = @transform_7, window_bounds = array<i64: 1, 1, 32>}, {transform_indices = @transform_8, window_bounds = array<i64: 1, 32, 64>}, {transform_indices = @transform_9, window_bounds = array<i64: 1, 1, 64>}, {transform_indices = @transform_10, window_bounds = array<i64: 1, 64, 32>}, {transform_indices = @transform_11, window_bounds = array<i64: 1, 1, 32>}, {transform_indices = @transform_12, window_bounds = array<i64: 2, 8, 32>}]} {
    %c0_i32 = arith.constant 0 : i32
    %0 = arith.cmpi eq, %arg1, %c0_i32 : i32
    %1 = arith.extui %0 : i1 to i32
    %c0_i32_0 = arith.constant 0 : i32
    %2 = arith.cmpi ne, %1, %c0_i32_0 : i32
    scf.if %2 {
      %c0_113 = arith.constant 0 : index
      %c0_114 = arith.constant 0 : index
      %c0_115 = arith.constant 0 : index
      %283 = vector.load %arg2[%c0_113, %c0_114, %c0_115] : memref<2x8x32xf32, #tpu.memory_space<vmem>>, vector<2x8x32xf32>
      %c0_116 = arith.constant 0 : index
      %c0_117 = arith.constant 0 : index
      %c0_118 = arith.constant 0 : index
      %284 = vector.load %arg14[%c0_116, %c0_117, %c0_118] : memref<2x8x32xf32, #tpu.memory_space<vmem>>, vector<2x8x32xf32>
      tpu.vector_store %arg14[%c0_116, %c0_117, %c0_118], %283 {strides = array<i32>} : memref<2x8x32xf32, #tpu.memory_space<vmem>>, vector<2x8x32xf32>,
    } else {
    }
    %c0 = arith.constant 0 : index
    %c0_1 = arith.constant 0 : index
    %c0_2 = arith.constant 0 : index
    %3 = vector.load %arg14[%c0, %c0_1, %c0_2] : memref<2x8x32xf32, #tpu.memory_space<vmem>>, vector<2x8x32xf32>
    %4 = vector.shape_cast %3 : vector<2x8x32xf32> to vector<16x32xf32>
    %c0_3 = arith.constant 0 : index
    %c0_4 = arith.constant 0 : index
    %c0_5 = arith.constant 0 : index
    %5 = vector.load %arg4[%c0_3, %c0_4, %c0_5] : memref<1x1x32xf32, #tpu.memory_space<vmem>>, vector<1x1x32xf32>
    %6 = vector.shape_cast %5 : vector<1x1x32xf32> to vector<1x32xf32>
    %c0_6 = arith.constant 0 : index
    %c0_7 = arith.constant 0 : index
    %c0_8 = arith.constant 0 : index
    %7 = vector.load %arg5[%c0_6, %c0_7, %c0_8] : memref<1x1x32xf32, #tpu.memory_space<vmem>>, vector<1x1x32xf32>
    %8 = vector.shape_cast %7 : vector<1x1x32xf32> to vector<1x32xf32>
    %cst = arith.constant dense<0.000000e+00> : vector<16xf32>
    %9 = vector.multi_reduction <add>, %4, %cst [1] : vector<16x32xf32> to vector<16xf32>
    %10 = vector.shape_cast %9 : vector<16xf32> to vector<16x1xf32>
    %cst_9 = arith.constant 3.200000e+01 : f32
    %11 = vector.broadcast %cst_9 : f32 to vector<16x1xf32>
    %12 = arith.divf %10, %11 : vector<16x1xf32>
    %13 = vector.broadcast %12 : vector<16x1xf32> to vector<16x32xf32>
    %14 = arith.subf %4, %13 : vector<16x32xf32>
    %15 = arith.mulf %14, %14 : vector<16x32xf32>
    %cst_10 = arith.constant dense<0.000000e+00> : vector<16xf32>
    %16 = vector.multi_reduction <add>, %15, %cst_10 [1] : vector<16x32xf32> to vector<16xf32>
    %17 = vector.shape_cast %16 : vector<16xf32> to vector<16x1xf32>
    %cst_11 = arith.constant 3.200000e+01 : f32
    %18 = vector.broadcast %cst_11 : f32 to vector<16x1xf32>
    %19 = arith.divf %17, %18 : vector<16x1xf32>
    %20 = vector.broadcast %12 : vector<16x1xf32> to vector<16x32xf32>
    %21 = arith.subf %4, %20 : vector<16x32xf32>
    %cst_12 = arith.constant 9.99999974E-6 : f32
    %22 = vector.broadcast %cst_12 : f32 to vector<16x1xf32>
    %23 = arith.addf %19, %22 : vector<16x1xf32>
    %24 = math.rsqrt %23 : vector<16x1xf32>
    %25 = vector.broadcast %24 : vector<16x1xf32> to vector<16x32xf32>
    %26 = arith.mulf %21, %25 : vector<16x32xf32>
    %27 = vector.broadcast %6 : vector<1x32xf32> to vector<16x32xf32>
    %28 = arith.mulf %26, %27 : vector<16x32xf32>
    %29 = vector.broadcast %8 : vector<1x32xf32> to vector<16x32xf32>
    %30 = arith.addf %28, %29 : vector<16x32xf32>
    %31 = arith.truncf %30 : vector<16x32xf32> to vector<16x32xbf16>
    %c0_13 = arith.constant 0 : index
    %c0_14 = arith.constant 0 : index
    %c0_15 = arith.constant 0 : index
    %32 = vector.load %arg6[%c0_13, %c0_14, %c0_15] : memref<1x32x96xbf16, #tpu.memory_space<vmem>>, vector<1x32x96xbf16>
    %33 = vector.shape_cast %32 : vector<1x32x96xbf16> to vector<32x96xbf16>
    %cst_16 = arith.constant dense<0.000000e+00> : vector<16x96xf32>
    %34 = tpu.matmul %31, %33, %cst_16 {dimension_numbers = #tpu.dot_dimension_numbers<[1], [0], [0], [1], [0, 0, 1, 1], [], []>} : vector<16x32xbf16>, vector<32x96xbf16>, vector<16x96xf32> -> vector<16x96xf32>
    %35 = vector.extract_strided_slice %34 {offsets = [0, 0], sizes = [16, 32], strides = [1, 1]} : vector<16x96xf32> to vector<16x32xf32>
    %36 = arith.truncf %35 : vector<16x32xf32> to vector<16x32xbf16>
    %37 = vector.extract_strided_slice %34 {offsets = [0, 32], sizes = [16, 32], strides = [1, 1]} : vector<16x96xf32> to vector<16x32xf32>
    %38 = arith.truncf %37 : vector<16x32xf32> to vector<16x32xbf16>
    %39 = vector.extract_strided_slice %34 {offsets = [0, 64], sizes = [16, 32], strides = [1, 1]} : vector<16x96xf32> to vector<16x32xf32>
    %40 = arith.truncf %39 : vector<16x32xf32> to vector<16x32xbf16>
    %c0_17 = arith.constant 0 : index
    %c0_18 = arith.constant 0 : index
    %c0_19 = arith.constant 0 : index
    %41 = vector.load %arg3[%c0_17, %c0_18, %c0_19] : memref<2x1x8xf32, #tpu.memory_space<vmem>>, vector<1x1x8xf32>
    %42 = vector.shape_cast %41 : vector<1x1x8xf32> to vector<1x8xf32>
    %43 = vector.extract_strided_slice %36 {offsets = [0, 0], sizes = [8, 32], strides = [1, 1]} : vector<16x32xbf16> to vector<8x32xbf16>
    %44 = vector.extract_strided_slice %38 {offsets = [0, 0], sizes = [8, 32], strides = [1, 1]} : vector<16x32xbf16> to vector<8x32xbf16>
    %45 = vector.extract_strided_slice %40 {offsets = [0, 0], sizes = [8, 32], strides = [1, 1]} : vector<16x32xbf16> to vector<8x32xbf16>
    %46 = vector.extract_strided_slice %43 {offsets = [0, 0], sizes = [8, 8], strides = [1, 1]} : vector<8x32xbf16> to vector<8x8xbf16>
    %47 = vector.extract_strided_slice %44 {offsets = [0, 0], sizes = [8, 8], strides = [1, 1]} : vector<8x32xbf16> to vector<8x8xbf16>
    %cst_20 = arith.constant dense<0.000000e+00> : vector<8x8xf32>
    %48 = tpu.matmul %46, %47, %cst_20 {dimension_numbers = #tpu.dot_dimension_numbers<[1], [1], [0], [0], [0, 0, 1, 0], [], []>} : vector<8x8xbf16>, vector<8x8xbf16>, vector<8x8xf32> -> vector<8x8xf32>
    %cst_21 = arith.constant 0.353553385 : f32
    %49 = vector.broadcast %cst_21 : f32 to vector<8x8xf32>
    %50 = arith.mulf %48, %49 : vector<8x8xf32>
    %51 = vector.broadcast %42 : vector<1x8xf32> to vector<8x8xf32>
    %52 = arith.addf %50, %51 : vector<8x8xf32>
    %cst_22 = arith.constant dense<0xFF800000> : vector<8xf32>
    %53 = vector.multi_reduction <maximumf>, %52, %cst_22 [1] : vector<8x8xf32> to vector<8xf32>
    %54 = vector.shape_cast %53 : vector<8xf32> to vector<8x1xf32>
    %55 = vector.broadcast %54 : vector<8x1xf32> to vector<8x8xf32>
    %56 = arith.subf %52, %55 : vector<8x8xf32>
    %57 = math.exp %56 : vector<8x8xf32>
    %cst_23 = arith.constant dense<0.000000e+00> : vector<8xf32>
    %58 = vector.multi_reduction <add>, %57, %cst_23 [1] : vector<8x8xf32> to vector<8xf32>
    %59 = vector.shape_cast %58 : vector<8xf32> to vector<8x1xf32>
    %60 = tpu.reciprocal %59 {approx = true} : vector<8x1xf32> -> vector<8x1xf32>
    %61 = vector.broadcast %60 : vector<8x1xf32> to vector<8x8xf32>
    %62 = arith.mulf %57, %61 : vector<8x8xf32>
    %63 = arith.truncf %62 : vector<8x8xf32> to vector<8x8xbf16>
    %64 = vector.extract_strided_slice %45 {offsets = [0, 0], sizes = [8, 8], strides = [1, 1]} : vector<8x32xbf16> to vector<8x8xbf16>
    %cst_24 = arith.constant dense<0.000000e+00> : vector<8x8xf32>
    %65 = tpu.matmul %63, %64, %cst_24 {dimension_numbers = #tpu.dot_dimension_numbers<[1], [0], [0], [1], [0, 0, 1, 1], [], []>} : vector<8x8xbf16>, vector<8x8xbf16>, vector<8x8xf32> -> vector<8x8xf32>
    %c0_25 = arith.constant 0 : index
    %c0_26 = arith.constant 0 : index
    %66 = vector.load %arg15[%c0_25, %c0_26] : memref<16x32xf32, #tpu.memory_space<vmem>>, vector<8x8xf32>
    tpu.vector_store %arg15[%c0_25, %c0_26], %65 {strides = array<i32>} : memref<16x32xf32, #tpu.memory_space<vmem>>, vector<8x8xf32>,
    %67 = vector.extract_strided_slice %43 {offsets = [0, 8], sizes = [8, 8], strides = [1, 1]} : vector<8x32xbf16> to vector<8x8xbf16>
    %68 = vector.extract_strided_slice %44 {offsets = [0, 8], sizes = [8, 8], strides = [1, 1]} : vector<8x32xbf16> to vector<8x8xbf16>
    %cst_27 = arith.constant dense<0.000000e+00> : vector<8x8xf32>
    %69 = tpu.matmul %67, %68, %cst_27 {dimension_numbers = #tpu.dot_dimension_numbers<[1], [1], [0], [0], [0, 0, 1, 0], [], []>} : vector<8x8xbf16>, vector<8x8xbf16>, vector<8x8xf32> -> vector<8x8xf32>
    %cst_28 = arith.constant 0.353553385 : f32
    %70 = vector.broadcast %cst_28 : f32 to vector<8x8xf32>
    %71 = arith.mulf %69, %70 : vector<8x8xf32>
    %72 = vector.broadcast %42 : vector<1x8xf32> to vector<8x8xf32>
    %73 = arith.addf %71, %72 : vector<8x8xf32>
    %cst_29 = arith.constant dense<0xFF800000> : vector<8xf32>
    %74 = vector.multi_reduction <maximumf>, %73, %cst_29 [1] : vector<8x8xf32> to vector<8xf32>
    %75 = vector.shape_cast %74 : vector<8xf32> to vector<8x1xf32>
    %76 = vector.broadcast %75 : vector<8x1xf32> to vector<8x8xf32>
    %77 = arith.subf %73, %76 : vector<8x8xf32>
    %78 = math.exp %77 : vector<8x8xf32>
    %cst_30 = arith.constant dense<0.000000e+00> : vector<8xf32>
    %79 = vector.multi_reduction <add>, %78, %cst_30 [1] : vector<8x8xf32> to vector<8xf32>
    %80 = vector.shape_cast %79 : vector<8xf32> to vector<8x1xf32>
    %81 = tpu.reciprocal %80 {approx = true} : vector<8x1xf32> -> vector<8x1xf32>
    %82 = vector.broadcast %81 : vector<8x1xf32> to vector<8x8xf32>
    %83 = arith.mulf %78, %82 : vector<8x8xf32>
    %84 = arith.truncf %83 : vector<8x8xf32> to vector<8x8xbf16>
    %85 = vector.extract_strided_slice %45 {offsets = [0, 8], sizes = [8, 8], strides = [1, 1]} : vector<8x32xbf16> to vector<8x8xbf16>
    %cst_31 = arith.constant dense<0.000000e+00> : vector<8x8xf32>
    %86 = tpu.matmul %84, %85, %cst_31 {dimension_numbers = #tpu.dot_dimension_numbers<[1], [0], [0], [1], [0, 0, 1, 1], [], []>} : vector<8x8xbf16>, vector<8x8xbf16>, vector<8x8xf32> -> vector<8x8xf32>
    %c0_32 = arith.constant 0 : index
    %c8 = arith.constant 8 : index
    %87 = vector.load %arg15[%c0_32, %c8] : memref<16x32xf32, #tpu.memory_space<vmem>>, vector<8x8xf32>
    tpu.vector_store %arg15[%c0_32, %c8], %86 {strides = array<i32>} : memref<16x32xf32, #tpu.memory_space<vmem>>, vector<8x8xf32>,
    %88 = vector.extract_strided_slice %43 {offsets = [0, 16], sizes = [8, 8], strides = [1, 1]} : vector<8x32xbf16> to vector<8x8xbf16>
    %89 = vector.extract_strided_slice %44 {offsets = [0, 16], sizes = [8, 8], strides = [1, 1]} : vector<8x32xbf16> to vector<8x8xbf16>
    %cst_33 = arith.constant dense<0.000000e+00> : vector<8x8xf32>
    %90 = tpu.matmul %88, %89, %cst_33 {dimension_numbers = #tpu.dot_dimension_numbers<[1], [1], [0], [0], [0, 0, 1, 0], [], []>} : vector<8x8xbf16>, vector<8x8xbf16>, vector<8x8xf32> -> vector<8x8xf32>
    %cst_34 = arith.constant 0.353553385 : f32
    %91 = vector.broadcast %cst_34 : f32 to vector<8x8xf32>
    %92 = arith.mulf %90, %91 : vector<8x8xf32>
    %93 = vector.broadcast %42 : vector<1x8xf32> to vector<8x8xf32>
    %94 = arith.addf %92, %93 : vector<8x8xf32>
    %cst_35 = arith.constant dense<0xFF800000> : vector<8xf32>
    %95 = vector.multi_reduction <maximumf>, %94, %cst_35 [1] : vector<8x8xf32> to vector<8xf32>
    %96 = vector.shape_cast %95 : vector<8xf32> to vector<8x1xf32>
    %97 = vector.broadcast %96 : vector<8x1xf32> to vector<8x8xf32>
    %98 = arith.subf %94, %97 : vector<8x8xf32>
    %99 = math.exp %98 : vector<8x8xf32>
    %cst_36 = arith.constant dense<0.000000e+00> : vector<8xf32>
    %100 = vector.multi_reduction <add>, %99, %cst_36 [1] : vector<8x8xf32> to vector<8xf32>
    %101 = vector.shape_cast %100 : vector<8xf32> to vector<8x1xf32>
    %102 = tpu.reciprocal %101 {approx = true} : vector<8x1xf32> -> vector<8x1xf32>
    %103 = vector.broadcast %102 : vector<8x1xf32> to vector<8x8xf32>
    %104 = arith.mulf %99, %103 : vector<8x8xf32>
    %105 = arith.truncf %104 : vector<8x8xf32> to vector<8x8xbf16>
    %106 = vector.extract_strided_slice %45 {offsets = [0, 16], sizes = [8, 8], strides = [1, 1]} : vector<8x32xbf16> to vector<8x8xbf16>
    %cst_37 = arith.constant dense<0.000000e+00> : vector<8x8xf32>
    %107 = tpu.matmul %105, %106, %cst_37 {dimension_numbers = #tpu.dot_dimension_numbers<[1], [0], [0], [1], [0, 0, 1, 1], [], []>} : vector<8x8xbf16>, vector<8x8xbf16>, vector<8x8xf32> -> vector<8x8xf32>
    %c0_38 = arith.constant 0 : index
    %c16 = arith.constant 16 : index
    %108 = vector.load %arg15[%c0_38, %c16] : memref<16x32xf32, #tpu.memory_space<vmem>>, vector<8x8xf32>
    tpu.vector_store %arg15[%c0_38, %c16], %107 {strides = array<i32>} : memref<16x32xf32, #tpu.memory_space<vmem>>, vector<8x8xf32>,
    %109 = vector.extract_strided_slice %43 {offsets = [0, 24], sizes = [8, 8], strides = [1, 1]} : vector<8x32xbf16> to vector<8x8xbf16>
    %110 = vector.extract_strided_slice %44 {offsets = [0, 24], sizes = [8, 8], strides = [1, 1]} : vector<8x32xbf16> to vector<8x8xbf16>
    %cst_39 = arith.constant dense<0.000000e+00> : vector<8x8xf32>
    %111 = tpu.matmul %109, %110, %cst_39 {dimension_numbers = #tpu.dot_dimension_numbers<[1], [1], [0], [0], [0, 0, 1, 0], [], []>} : vector<8x8xbf16>, vector<8x8xbf16>, vector<8x8xf32> -> vector<8x8xf32>
    %cst_40 = arith.constant 0.353553385 : f32
    %112 = vector.broadcast %cst_40 : f32 to vector<8x8xf32>
    %113 = arith.mulf %111, %112 : vector<8x8xf32>
    %114 = vector.broadcast %42 : vector<1x8xf32> to vector<8x8xf32>
    %115 = arith.addf %113, %114 : vector<8x8xf32>
    %cst_41 = arith.constant dense<0xFF800000> : vector<8xf32>
    %116 = vector.multi_reduction <maximumf>, %115, %cst_41 [1] : vector<8x8xf32> to vector<8xf32>
    %117 = vector.shape_cast %116 : vector<8xf32> to vector<8x1xf32>
    %118 = vector.broadcast %117 : vector<8x1xf32> to vector<8x8xf32>
    %119 = arith.subf %115, %118 : vector<8x8xf32>
    %120 = math.exp %119 : vector<8x8xf32>
    %cst_42 = arith.constant dense<0.000000e+00> : vector<8xf32>
    %121 = vector.multi_reduction <add>, %120, %cst_42 [1] : vector<8x8xf32> to vector<8xf32>
    %122 = vector.shape_cast %121 : vector<8xf32> to vector<8x1xf32>
    %123 = tpu.reciprocal %122 {approx = true} : vector<8x1xf32> -> vector<8x1xf32>
    %124 = vector.broadcast %123 : vector<8x1xf32> to vector<8x8xf32>
    %125 = arith.mulf %120, %124 : vector<8x8xf32>
    %126 = arith.truncf %125 : vector<8x8xf32> to vector<8x8xbf16>
    %127 = vector.extract_strided_slice %45 {offsets = [0, 24], sizes = [8, 8], strides = [1, 1]} : vector<8x32xbf16> to vector<8x8xbf16>
    %cst_43 = arith.constant dense<0.000000e+00> : vector<8x8xf32>
    %128 = tpu.matmul %126, %127, %cst_43 {dimension_numbers = #tpu.dot_dimension_numbers<[1], [0], [0], [1], [0, 0, 1, 1], [], []>} : vector<8x8xbf16>, vector<8x8xbf16>, vector<8x8xf32> -> vector<8x8xf32>
    %c0_44 = arith.constant 0 : index
    %c24 = arith.constant 24 : index
    %129 = vector.load %arg15[%c0_44, %c24] : memref<16x32xf32, #tpu.memory_space<vmem>>, vector<8x8xf32>
    tpu.vector_store %arg15[%c0_44, %c24], %128 {strides = array<i32>} : memref<16x32xf32, #tpu.memory_space<vmem>>, vector<8x8xf32>,
    %c1 = arith.constant 1 : index
    %c0_45 = arith.constant 0 : index
    %c0_46 = arith.constant 0 : index
    %130 = vector.load %arg3[%c1, %c0_45, %c0_46] : memref<2x1x8xf32, #tpu.memory_space<vmem>>, vector<1x1x8xf32>
    %131 = vector.shape_cast %130 : vector<1x1x8xf32> to vector<1x8xf32>
    %132 = vector.extract_strided_slice %36 {offsets = [8, 0], sizes = [8, 32], strides = [1, 1]} : vector<16x32xbf16> to vector<8x32xbf16>
    %133 = vector.extract_strided_slice %38 {offsets = [8, 0], sizes = [8, 32], strides = [1, 1]} : vector<16x32xbf16> to vector<8x32xbf16>
    %134 = vector.extract_strided_slice %40 {offsets = [8, 0], sizes = [8, 32], strides = [1, 1]} : vector<16x32xbf16> to vector<8x32xbf16>
    %135 = vector.extract_strided_slice %132 {offsets = [0, 0], sizes = [8, 8], strides = [1, 1]} : vector<8x32xbf16> to vector<8x8xbf16>
    %136 = vector.extract_strided_slice %133 {offsets = [0, 0], sizes = [8, 8], strides = [1, 1]} : vector<8x32xbf16> to vector<8x8xbf16>
    %cst_47 = arith.constant dense<0.000000e+00> : vector<8x8xf32>
    %137 = tpu.matmul %135, %136, %cst_47 {dimension_numbers = #tpu.dot_dimension_numbers<[1], [1], [0], [0], [0, 0, 1, 0], [], []>} : vector<8x8xbf16>, vector<8x8xbf16>, vector<8x8xf32> -> vector<8x8xf32>
    %cst_48 = arith.constant 0.353553385 : f32
    %138 = vector.broadcast %cst_48 : f32 to vector<8x8xf32>
    %139 = arith.mulf %137, %138 : vector<8x8xf32>
    %140 = vector.broadcast %131 : vector<1x8xf32> to vector<8x8xf32>
    %141 = arith.addf %139, %140 : vector<8x8xf32>
    %cst_49 = arith.constant dense<0xFF800000> : vector<8xf32>
    %142 = vector.multi_reduction <maximumf>, %141, %cst_49 [1] : vector<8x8xf32> to vector<8xf32>
    %143 = vector.shape_cast %142 : vector<8xf32> to vector<8x1xf32>
    %144 = vector.broadcast %143 : vector<8x1xf32> to vector<8x8xf32>
    %145 = arith.subf %141, %144 : vector<8x8xf32>
    %146 = math.exp %145 : vector<8x8xf32>
    %cst_50 = arith.constant dense<0.000000e+00> : vector<8xf32>
    %147 = vector.multi_reduction <add>, %146, %cst_50 [1] : vector<8x8xf32> to vector<8xf32>
    %148 = vector.shape_cast %147 : vector<8xf32> to vector<8x1xf32>
    %149 = tpu.reciprocal %148 {approx = true} : vector<8x1xf32> -> vector<8x1xf32>
    %150 = vector.broadcast %149 : vector<8x1xf32> to vector<8x8xf32>
    %151 = arith.mulf %146, %150 : vector<8x8xf32>
    %152 = arith.truncf %151 : vector<8x8xf32> to vector<8x8xbf16>
    %153 = vector.extract_strided_slice %134 {offsets = [0, 0], sizes = [8, 8], strides = [1, 1]} : vector<8x32xbf16> to vector<8x8xbf16>
    %cst_51 = arith.constant dense<0.000000e+00> : vector<8x8xf32>
    %154 = tpu.matmul %152, %153, %cst_51 {dimension_numbers = #tpu.dot_dimension_numbers<[1], [0], [0], [1], [0, 0, 1, 1], [], []>} : vector<8x8xbf16>, vector<8x8xbf16>, vector<8x8xf32> -> vector<8x8xf32>
    %c8_52 = arith.constant 8 : index
    %c0_53 = arith.constant 0 : index
    %155 = vector.load %arg15[%c8_52, %c0_53] : memref<16x32xf32, #tpu.memory_space<vmem>>, vector<8x8xf32>
    tpu.vector_store %arg15[%c8_52, %c0_53], %154 {strides = array<i32>} : memref<16x32xf32, #tpu.memory_space<vmem>>, vector<8x8xf32>,
    %156 = vector.extract_strided_slice %132 {offsets = [0, 8], sizes = [8, 8], strides = [1, 1]} : vector<8x32xbf16> to vector<8x8xbf16>
    %157 = vector.extract_strided_slice %133 {offsets = [0, 8], sizes = [8, 8], strides = [1, 1]} : vector<8x32xbf16> to vector<8x8xbf16>
    %cst_54 = arith.constant dense<0.000000e+00> : vector<8x8xf32>
    %158 = tpu.matmul %156, %157, %cst_54 {dimension_numbers = #tpu.dot_dimension_numbers<[1], [1], [0], [0], [0, 0, 1, 0], [], []>} : vector<8x8xbf16>, vector<8x8xbf16>, vector<8x8xf32> -> vector<8x8xf32>
    %cst_55 = arith.constant 0.353553385 : f32
    %159 = vector.broadcast %cst_55 : f32 to vector<8x8xf32>
    %160 = arith.mulf %158, %159 : vector<8x8xf32>
    %161 = vector.broadcast %131 : vector<1x8xf32> to vector<8x8xf32>
    %162 = arith.addf %160, %161 : vector<8x8xf32>
    %cst_56 = arith.constant dense<0xFF800000> : vector<8xf32>
    %163 = vector.multi_reduction <maximumf>, %162, %cst_56 [1] : vector<8x8xf32> to vector<8xf32>
    %164 = vector.shape_cast %163 : vector<8xf32> to vector<8x1xf32>
    %165 = vector.broadcast %164 : vector<8x1xf32> to vector<8x8xf32>
    %166 = arith.subf %162, %165 : vector<8x8xf32>
    %167 = math.exp %166 : vector<8x8xf32>
    %cst_57 = arith.constant dense<0.000000e+00> : vector<8xf32>
    %168 = vector.multi_reduction <add>, %167, %cst_57 [1] : vector<8x8xf32> to vector<8xf32>
    %169 = vector.shape_cast %168 : vector<8xf32> to vector<8x1xf32>
    %170 = tpu.reciprocal %169 {approx = true} : vector<8x1xf32> -> vector<8x1xf32>
    %171 = vector.broadcast %170 : vector<8x1xf32> to vector<8x8xf32>
    %172 = arith.mulf %167, %171 : vector<8x8xf32>
    %173 = arith.truncf %172 : vector<8x8xf32> to vector<8x8xbf16>
    %174 = vector.extract_strided_slice %134 {offsets = [0, 8], sizes = [8, 8], strides = [1, 1]} : vector<8x32xbf16> to vector<8x8xbf16>
    %cst_58 = arith.constant dense<0.000000e+00> : vector<8x8xf32>
    %175 = tpu.matmul %173, %174, %cst_58 {dimension_numbers = #tpu.dot_dimension_numbers<[1], [0], [0], [1], [0, 0, 1, 1], [], []>} : vector<8x8xbf16>, vector<8x8xbf16>, vector<8x8xf32> -> vector<8x8xf32>
    %c8_59 = arith.constant 8 : index
    %c8_60 = arith.constant 8 : index
    %176 = vector.load %arg15[%c8_59, %c8_60] : memref<16x32xf32, #tpu.memory_space<vmem>>, vector<8x8xf32>
    tpu.vector_store %arg15[%c8_59, %c8_60], %175 {strides = array<i32>} : memref<16x32xf32, #tpu.memory_space<vmem>>, vector<8x8xf32>,
    %177 = vector.extract_strided_slice %132 {offsets = [0, 16], sizes = [8, 8], strides = [1, 1]} : vector<8x32xbf16> to vector<8x8xbf16>
    %178 = vector.extract_strided_slice %133 {offsets = [0, 16], sizes = [8, 8], strides = [1, 1]} : vector<8x32xbf16> to vector<8x8xbf16>
    %cst_61 = arith.constant dense<0.000000e+00> : vector<8x8xf32>
    %179 = tpu.matmul %177, %178, %cst_61 {dimension_numbers = #tpu.dot_dimension_numbers<[1], [1], [0], [0], [0, 0, 1, 0], [], []>} : vector<8x8xbf16>, vector<8x8xbf16>, vector<8x8xf32> -> vector<8x8xf32>
    %cst_62 = arith.constant 0.353553385 : f32
    %180 = vector.broadcast %cst_62 : f32 to vector<8x8xf32>
    %181 = arith.mulf %179, %180 : vector<8x8xf32>
    %182 = vector.broadcast %131 : vector<1x8xf32> to vector<8x8xf32>
    %183 = arith.addf %181, %182 : vector<8x8xf32>
    %cst_63 = arith.constant dense<0xFF800000> : vector<8xf32>
    %184 = vector.multi_reduction <maximumf>, %183, %cst_63 [1] : vector<8x8xf32> to vector<8xf32>
    %185 = vector.shape_cast %184 : vector<8xf32> to vector<8x1xf32>
    %186 = vector.broadcast %185 : vector<8x1xf32> to vector<8x8xf32>
    %187 = arith.subf %183, %186 : vector<8x8xf32>
    %188 = math.exp %187 : vector<8x8xf32>
    %cst_64 = arith.constant dense<0.000000e+00> : vector<8xf32>
    %189 = vector.multi_reduction <add>, %188, %cst_64 [1] : vector<8x8xf32> to vector<8xf32>
    %190 = vector.shape_cast %189 : vector<8xf32> to vector<8x1xf32>
    %191 = tpu.reciprocal %190 {approx = true} : vector<8x1xf32> -> vector<8x1xf32>
    %192 = vector.broadcast %191 : vector<8x1xf32> to vector<8x8xf32>
    %193 = arith.mulf %188, %192 : vector<8x8xf32>
    %194 = arith.truncf %193 : vector<8x8xf32> to vector<8x8xbf16>
    %195 = vector.extract_strided_slice %134 {offsets = [0, 16], sizes = [8, 8], strides = [1, 1]} : vector<8x32xbf16> to vector<8x8xbf16>
    %cst_65 = arith.constant dense<0.000000e+00> : vector<8x8xf32>
    %196 = tpu.matmul %194, %195, %cst_65 {dimension_numbers = #tpu.dot_dimension_numbers<[1], [0], [0], [1], [0, 0, 1, 1], [], []>} : vector<8x8xbf16>, vector<8x8xbf16>, vector<8x8xf32> -> vector<8x8xf32>
    %c8_66 = arith.constant 8 : index
    %c16_67 = arith.constant 16 : index
    %197 = vector.load %arg15[%c8_66, %c16_67] : memref<16x32xf32, #tpu.memory_space<vmem>>, vector<8x8xf32>
    tpu.vector_store %arg15[%c8_66, %c16_67], %196 {strides = array<i32>} : memref<16x32xf32, #tpu.memory_space<vmem>>, vector<8x8xf32>,
    %198 = vector.extract_strided_slice %132 {offsets = [0, 24], sizes = [8, 8], strides = [1, 1]} : vector<8x32xbf16> to vector<8x8xbf16>
    %199 = vector.extract_strided_slice %133 {offsets = [0, 24], sizes = [8, 8], strides = [1, 1]} : vector<8x32xbf16> to vector<8x8xbf16>
    %cst_68 = arith.constant dense<0.000000e+00> : vector<8x8xf32>
    %200 = tpu.matmul %198, %199, %cst_68 {dimension_numbers = #tpu.dot_dimension_numbers<[1], [1], [0], [0], [0, 0, 1, 0], [], []>} : vector<8x8xbf16>, vector<8x8xbf16>, vector<8x8xf32> -> vector<8x8xf32>
    %cst_69 = arith.constant 0.353553385 : f32
    %201 = vector.broadcast %cst_69 : f32 to vector<8x8xf32>
    %202 = arith.mulf %200, %201 : vector<8x8xf32>
    %203 = vector.broadcast %131 : vector<1x8xf32> to vector<8x8xf32>
    %204 = arith.addf %202, %203 : vector<8x8xf32>
    %cst_70 = arith.constant dense<0xFF800000> : vector<8xf32>
    %205 = vector.multi_reduction <maximumf>, %204, %cst_70 [1] : vector<8x8xf32> to vector<8xf32>
    %206 = vector.shape_cast %205 : vector<8xf32> to vector<8x1xf32>
    %207 = vector.broadcast %206 : vector<8x1xf32> to vector<8x8xf32>
    %208 = arith.subf %204, %207 : vector<8x8xf32>
    %209 = math.exp %208 : vector<8x8xf32>
    %cst_71 = arith.constant dense<0.000000e+00> : vector<8xf32>
    %210 = vector.multi_reduction <add>, %209, %cst_71 [1] : vector<8x8xf32> to vector<8xf32>
    %211 = vector.shape_cast %210 : vector<8xf32> to vector<8x1xf32>
    %212 = tpu.reciprocal %211 {approx = true} : vector<8x1xf32> -> vector<8x1xf32>
    %213 = vector.broadcast %212 : vector<8x1xf32> to vector<8x8xf32>
    %214 = arith.mulf %209, %213 : vector<8x8xf32>
    %215 = arith.truncf %214 : vector<8x8xf32> to vector<8x8xbf16>
    %216 = vector.extract_strided_slice %134 {offsets = [0, 24], sizes = [8, 8], strides = [1, 1]} : vector<8x32xbf16> to vector<8x8xbf16>
    %cst_72 = arith.constant dense<0.000000e+00> : vector<8x8xf32>
    %217 = tpu.matmul %215, %216, %cst_72 {dimension_numbers = #tpu.dot_dimension_numbers<[1], [0], [0], [1], [0, 0, 1, 1], [], []>} : vector<8x8xbf16>, vector<8x8xbf16>, vector<8x8xf32> -> vector<8x8xf32>
    %c8_73 = arith.constant 8 : index
    %c24_74 = arith.constant 24 : index
    %218 = vector.load %arg15[%c8_73, %c24_74] : memref<16x32xf32, #tpu.memory_space<vmem>>, vector<8x8xf32>
    tpu.vector_store %arg15[%c8_73, %c24_74], %217 {strides = array<i32>} : memref<16x32xf32, #tpu.memory_space<vmem>>, vector<8x8xf32>,
    %c0_75 = arith.constant 0 : index
    %c0_76 = arith.constant 0 : index
    %219 = vector.load %arg15[%c0_75, %c0_76] : memref<16x32xf32, #tpu.memory_space<vmem>>, vector<16x32xf32>
    %220 = arith.truncf %219 : vector<16x32xf32> to vector<16x32xbf16>
    %c0_77 = arith.constant 0 : index
    %c0_78 = arith.constant 0 : index
    %c0_79 = arith.constant 0 : index
    %221 = vector.load %arg7[%c0_77, %c0_78, %c0_79] : memref<1x32x32xbf16, #tpu.memory_space<vmem>>, vector<1x32x32xbf16>
    %222 = vector.shape_cast %221 : vector<1x32x32xbf16> to vector<32x32xbf16>
    %cst_80 = arith.constant dense<0.000000e+00> : vector<16x32xf32>
    %223 = tpu.matmul %220, %222, %cst_80 {dimension_numbers = #tpu.dot_dimension_numbers<[1], [0], [0], [1], [0, 0, 1, 1], [], []>} : vector<16x32xbf16>, vector<32x32xbf16>, vector<16x32xf32> -> vector<16x32xf32>
    %224 = arith.addf %4, %223 : vector<16x32xf32>
    %c0_81 = arith.constant 0 : index
    %c0_82 = arith.constant 0 : index
    %c0_83 = arith.constant 0 : index
    %225 = vector.load %arg8[%c0_81, %c0_82, %c0_83] : memref<1x1x32xf32, #tpu.memory_space<vmem>>, vector<1x1x32xf32>
    %226 = vector.shape_cast %225 : vector<1x1x32xf32> to vector<1x32xf32>
    %c0_84 = arith.constant 0 : index
    %c0_85 = arith.constant 0 : index
    %c0_86 = arith.constant 0 : index
    %227 = vector.load %arg9[%c0_84, %c0_85, %c0_86] : memref<1x1x32xf32, #tpu.memory_space<vmem>>, vector<1x1x32xf32>
    %228 = vector.shape_cast %227 : vector<1x1x32xf32> to vector<1x32xf32>
    %cst_87 = arith.constant dense<0.000000e+00> : vector<16xf32>
    %229 = vector.multi_reduction <add>, %224, %cst_87 [1] : vector<16x32xf32> to vector<16xf32>
    %230 = vector.shape_cast %229 : vector<16xf32> to vector<16x1xf32>
    %cst_88 = arith.constant 3.200000e+01 : f32
    %231 = vector.broadcast %cst_88 : f32 to vector<16x1xf32>
    %232 = arith.divf %230, %231 : vector<16x1xf32>
    %233 = vector.broadcast %232 : vector<16x1xf32> to vector<16x32xf32>
    %234 = arith.subf %224, %233 : vector<16x32xf32>
    %235 = arith.mulf %234, %234 : vector<16x32xf32>
    %cst_89 = arith.constant dense<0.000000e+00> : vector<16xf32>
    %236 = vector.multi_reduction <add>, %235, %cst_89 [1] : vector<16x32xf32> to vector<16xf32>
    %237 = vector.shape_cast %236 : vector<16xf32> to vector<16x1xf32>
    %cst_90 = arith.constant 3.200000e+01 : f32
    %238 = vector.broadcast %cst_90 : f32 to vector<16x1xf32>
    %239 = arith.divf %237, %238 : vector<16x1xf32>
    %240 = vector.broadcast %232 : vector<16x1xf32> to vector<16x32xf32>
    %241 = arith.subf %224, %240 : vector<16x32xf32>
    %cst_91 = arith.constant 9.99999974E-6 : f32
    %242 = vector.broadcast %cst_91 : f32 to vector<16x1xf32>
    %243 = arith.addf %239, %242 : vector<16x1xf32>
    %244 = math.rsqrt %243 : vector<16x1xf32>
    %245 = vector.broadcast %244 : vector<16x1xf32> to vector<16x32xf32>
    %246 = arith.mulf %241, %245 : vector<16x32xf32>
    %247 = vector.broadcast %226 : vector<1x32xf32> to vector<16x32xf32>
    %248 = arith.mulf %246, %247 : vector<16x32xf32>
    %249 = vector.broadcast %228 : vector<1x32xf32> to vector<16x32xf32>
    %250 = arith.addf %248, %249 : vector<16x32xf32>
    %c0_92 = arith.constant 0 : index
    %c0_93 = arith.constant 0 : index
    %c0_94 = arith.constant 0 : index
    %251 = vector.load %arg10[%c0_92, %c0_93, %c0_94] : memref<1x32x64xbf16, #tpu.memory_space<vmem>>, vector<1x32x64xbf16>
    %252 = vector.shape_cast %251 : vector<1x32x64xbf16> to vector<32x64xbf16>
    %c0_95 = arith.constant 0 : index
    %c0_96 = arith.constant 0 : index
    %c0_97 = arith.constant 0 : index
    %253 = vector.load %arg11[%c0_95, %c0_96, %c0_97] : memref<1x1x64xf32, #tpu.memory_space<vmem>>, vector<1x1x64xf32>
    %254 = vector.shape_cast %253 : vector<1x1x64xf32> to vector<1x64xf32>
    %c0_98 = arith.constant 0 : index
    %c0_99 = arith.constant 0 : index
    %c0_100 = arith.constant 0 : index
    %255 = vector.load %arg12[%c0_98, %c0_99, %c0_100] : memref<1x64x32xbf16, #tpu.memory_space<vmem>>, vector<1x64x32xbf16>
    %256 = vector.shape_cast %255 : vector<1x64x32xbf16> to vector<64x32xbf16>
    %c0_101 = arith.constant 0 : index
    %c0_102 = arith.constant 0 : index
    %c0_103 = arith.constant 0 : index
    %257 = vector.load %arg13[%c0_101, %c0_102, %c0_103] : memref<1x1x32xf32, #tpu.memory_space<vmem>>, vector<1x1x32xf32>
    %258 = vector.shape_cast %257 : vector<1x1x32xf32> to vector<1x32xf32>
    %259 = arith.truncf %250 : vector<16x32xf32> to vector<16x32xbf16>
    %cst_104 = arith.constant dense<0.000000e+00> : vector<16x64xf32>
    %260 = tpu.matmul %259, %252, %cst_104 {dimension_numbers = #tpu.dot_dimension_numbers<[1], [0], [0], [1], [0, 0, 1, 1], [], []>} : vector<16x32xbf16>, vector<32x64xbf16>, vector<16x64xf32> -> vector<16x64xf32>
    %261 = vector.broadcast %254 : vector<1x64xf32> to vector<16x64xf32>
    %262 = arith.addf %260, %261 : vector<16x64xf32>
    %cst_105 = arith.constant 5.000000e-01 : f32
    %263 = vector.broadcast %cst_105 : f32 to vector<16x64xf32>
    %264 = arith.mulf %263, %262 : vector<16x64xf32>
    %cst_106 = arith.constant 4.471500e-02 : f32
    %265 = vector.broadcast %cst_106 : f32 to vector<16x64xf32>
    %266 = arith.mulf %265, %262 : vector<16x64xf32>
    %267 = arith.mulf %266, %262 : vector<16x64xf32>
    %268 = arith.mulf %267, %262 : vector<16x64xf32>
    %269 = arith.addf %262, %268 : vector<16x64xf32>
    %cst_107 = arith.constant 0.797884583 : f32
    %270 = vector.broadcast %cst_107 : f32 to vector<16x64xf32>
    %271 = arith.mulf %270, %269 : vector<16x64xf32>
    %272 = math.tanh %271 : vector<16x64xf32>
    %cst_108 = arith.constant 1.000000e+00 : f32
    %273 = vector.broadcast %cst_108 : f32 to vector<16x64xf32>
    %274 = arith.addf %273, %272 : vector<16x64xf32>
    %275 = arith.mulf %264, %274 : vector<16x64xf32>
    %276 = arith.truncf %275 : vector<16x64xf32> to vector<16x64xbf16>
    %cst_109 = arith.constant dense<0.000000e+00> : vector<16x32xf32>
    %277 = tpu.matmul %276, %256, %cst_109 {dimension_numbers = #tpu.dot_dimension_numbers<[1], [0], [0], [1], [0, 0, 1, 1], [], []>} : vector<16x64xbf16>, vector<64x32xbf16>, vector<16x32xf32> -> vector<16x32xf32>
    %278 = vector.broadcast %258 : vector<1x32xf32> to vector<16x32xf32>
    %279 = arith.addf %277, %278 : vector<16x32xf32>
    %280 = arith.addf %224, %279 : vector<16x32xf32>
    %281 = vector.shape_cast %280 : vector<16x32xf32> to vector<2x8x32xf32>
    %c0_110 = arith.constant 0 : index
    %c0_111 = arith.constant 0 : index
    %c0_112 = arith.constant 0 : index
    %282 = vector.load %arg14[%c0_110, %c0_111, %c0_112] : memref<2x8x32xf32, #tpu.memory_space<vmem>>, vector<2x8x32xf32>
    tpu.vector_store %arg14[%c0_110, %c0_111, %c0_112], %281 {strides = array<i32>} : memref<2x8x32xf32, #tpu.memory_space<vmem>>, vector<2x8x32xf32>,
    return
  }
  func.func @transform_0(%arg0: i32, %arg1: i32) -> (i32, i32, i32) {
    %c0_i32 = arith.constant 0 : i32
    %c0_i32_0 = arith.constant 0 : i32
    %c0_i32_1 = arith.constant 0 : i32
    return %arg0, %c0_i32, %c0_i32_0 : i32, i32, i32
  }
  func.func @transform_1(%arg0: i32, %arg1: i32) -> (i32, i32, i32) {
    %c0_i32 = arith.constant 0 : i32
    %c0_i32_0 = arith.constant 0 : i32
    %c0_i32_1 = arith.constant 0 : i32
    return %arg0, %c0_i32, %c0_i32_0 : i32, i32, i32
  }
  func.func @transform_2(%arg0: i32, %arg1: i32) -> (i32, i32, i32) {
    %c0_i32 = arith.constant 0 : i32
    %c0_i32_0 = arith.constant 0 : i32
    %c0_i32_1 = arith.constant 0 : i32
    return %arg1, %c0_i32, %c0_i32_0 : i32, i32, i32
  }
  func.func @transform_3(%arg0: i32, %arg1: i32) -> (i32, i32, i32) {
    %c0_i32 = arith.constant 0 : i32
    %c0_i32_0 = arith.constant 0 : i32
    %c0_i32_1 = arith.constant 0 : i32
    return %arg1, %c0_i32, %c0_i32_0 : i32, i32, i32
  }
  func.func @transform_4(%arg0: i32, %arg1: i32) -> (i32, i32, i32) {
    %c0_i32 = arith.constant 0 : i32
    %c0_i32_0 = arith.constant 0 : i32
    %c0_i32_1 = arith.constant 0 : i32
    return %arg1, %c0_i32, %c0_i32_0 : i32, i32, i32
  }
  func.func @transform_5(%arg0: i32, %arg1: i32) -> (i32, i32, i32) {
    %c0_i32 = arith.constant 0 : i32
    %c0_i32_0 = arith.constant 0 : i32
    %c0_i32_1 = arith.constant 0 : i32
    return %arg1, %c0_i32, %c0_i32_0 : i32, i32, i32
  }
  func.func @transform_6(%arg0: i32, %arg1: i32) -> (i32, i32, i32) {
    %c0_i32 = arith.constant 0 : i32
    %c0_i32_0 = arith.constant 0 : i32
    %c0_i32_1 = arith.constant 0 : i32
    return %arg1, %c0_i32, %c0_i32_0 : i32, i32, i32
  }
  func.func @transform_7(%arg0: i32, %arg1: i32) -> (i32, i32, i32) {
    %c0_i32 = arith.constant 0 : i32
    %c0_i32_0 = arith.constant 0 : i32
    %c0_i32_1 = arith.constant 0 : i32
    return %arg1, %c0_i32, %c0_i32_0 : i32, i32, i32
  }
  func.func @transform_8(%arg0: i32, %arg1: i32) -> (i32, i32, i32) {
    %c0_i32 = arith.constant 0 : i32
    %c0_i32_0 = arith.constant 0 : i32
    %c0_i32_1 = arith.constant 0 : i32
    return %arg1, %c0_i32, %c0_i32_0 : i32, i32, i32
  }
  func.func @transform_9(%arg0: i32, %arg1: i32) -> (i32, i32, i32) {
    %c0_i32 = arith.constant 0 : i32
    %c0_i32_0 = arith.constant 0 : i32
    %c0_i32_1 = arith.constant 0 : i32
    return %arg1, %c0_i32, %c0_i32_0 : i32, i32, i32
  }
  func.func @transform_10(%arg0: i32, %arg1: i32) -> (i32, i32, i32) {
    %c0_i32 = arith.constant 0 : i32
    %c0_i32_0 = arith.constant 0 : i32
    %c0_i32_1 = arith.constant 0 : i32
    return %arg1, %c0_i32, %c0_i32_0 : i32, i32, i32
  }
  func.func @transform_11(%arg0: i32, %arg1: i32) -> (i32, i32, i32) {
    %c0_i32 = arith.constant 0 : i32
    %c0_i32_0 = arith.constant 0 : i32
    %c0_i32_1 = arith.constant 0 : i32
    return %arg1, %c0_i32, %c0_i32_0 : i32, i32, i32
  }
  func.func @transform_12(%arg0: i32, %arg1: i32) -> (i32, i32, i32) {
    %c0_i32 = arith.constant 0 : i32
    %c0_i32_0 = arith.constant 0 : i32
    %c0_i32_1 = arith.constant 0 : i32
    return %arg0, %c0_i32, %c0_i32_0 : i32, i32, i32
  }
}

module attributes {stable_mosaic.version = 11 : i64} {
  func.func @_head_kernel(%arg0: i32, %arg1: i32, %arg2: memref<16x32xf32, #tpu.memory_space<vmem>>, %arg3: memref<1x32xf32, #tpu.memory_space<vmem>>, %arg4: memref<1x32xf32, #tpu.memory_space<vmem>>, %arg5: memref<32x50xbf16, #tpu.memory_space<vmem>>, %arg6: memref<1x50xf32, #tpu.memory_space<vmem>>, %arg7: memref<16x50xf32, #tpu.memory_space<vmem>>) attributes {dimension_semantics = [#tpu.dimension_semantics<parallel>, #tpu.dimension_semantics<parallel>], iteration_bounds = array<i64: 1, 1>, scalar_prefetch = 0 : i64, scratch_operands = 0 : i64, tpu.core_type = #tpu.core_type<tc>, window_params = [{transform_indices = @transform_0, window_bounds = array<i64: 16, 32>}, {pipeline_mode = #tpu.pipeline_mode<synchronous>, transform_indices = @transform_1, window_bounds = array<i64: 1, 32>}, {pipeline_mode = #tpu.pipeline_mode<synchronous>, transform_indices = @transform_2, window_bounds = array<i64: 1, 32>}, {transform_indices = @transform_3, window_bounds = array<i64: 32, 50>}, {transform_indices = @transform_4, window_bounds = array<i64: 1, 50>}, {transform_indices = @transform_5, window_bounds = array<i64: 16, 50>}]} {
    %c0 = arith.constant 0 : index
    %c0_0 = arith.constant 0 : index
    %0 = vector.load %arg2[%c0, %c0_0] : memref<16x32xf32, #tpu.memory_space<vmem>>, vector<16x32xf32>
    %c0_1 = arith.constant 0 : index
    %c0_2 = arith.constant 0 : index
    %1 = vector.load %arg3[%c0_1, %c0_2] : memref<1x32xf32, #tpu.memory_space<vmem>>, vector<1x32xf32>
    %c0_3 = arith.constant 0 : index
    %c0_4 = arith.constant 0 : index
    %2 = vector.load %arg4[%c0_3, %c0_4] : memref<1x32xf32, #tpu.memory_space<vmem>>, vector<1x32xf32>
    %cst = arith.constant dense<0.000000e+00> : vector<16xf32>
    %3 = vector.multi_reduction <add>, %0, %cst [1] : vector<16x32xf32> to vector<16xf32>
    %4 = vector.shape_cast %3 : vector<16xf32> to vector<16x1xf32>
    %cst_5 = arith.constant 3.200000e+01 : f32
    %5 = vector.broadcast %cst_5 : f32 to vector<16x1xf32>
    %6 = arith.divf %4, %5 : vector<16x1xf32>
    %7 = vector.broadcast %6 : vector<16x1xf32> to vector<16x32xf32>
    %8 = arith.subf %0, %7 : vector<16x32xf32>
    %9 = arith.mulf %8, %8 : vector<16x32xf32>
    %cst_6 = arith.constant dense<0.000000e+00> : vector<16xf32>
    %10 = vector.multi_reduction <add>, %9, %cst_6 [1] : vector<16x32xf32> to vector<16xf32>
    %11 = vector.shape_cast %10 : vector<16xf32> to vector<16x1xf32>
    %cst_7 = arith.constant 3.200000e+01 : f32
    %12 = vector.broadcast %cst_7 : f32 to vector<16x1xf32>
    %13 = arith.divf %11, %12 : vector<16x1xf32>
    %14 = vector.broadcast %6 : vector<16x1xf32> to vector<16x32xf32>
    %15 = arith.subf %0, %14 : vector<16x32xf32>
    %cst_8 = arith.constant 9.99999974E-6 : f32
    %16 = vector.broadcast %cst_8 : f32 to vector<16x1xf32>
    %17 = arith.addf %13, %16 : vector<16x1xf32>
    %18 = math.rsqrt %17 : vector<16x1xf32>
    %19 = vector.broadcast %18 : vector<16x1xf32> to vector<16x32xf32>
    %20 = arith.mulf %15, %19 : vector<16x32xf32>
    %21 = vector.broadcast %1 : vector<1x32xf32> to vector<16x32xf32>
    %22 = arith.mulf %20, %21 : vector<16x32xf32>
    %23 = vector.broadcast %2 : vector<1x32xf32> to vector<16x32xf32>
    %24 = arith.addf %22, %23 : vector<16x32xf32>
    %25 = arith.truncf %24 : vector<16x32xf32> to vector<16x32xbf16>
    %c0_9 = arith.constant 0 : index
    %c0_10 = arith.constant 0 : index
    %26 = vector.load %arg5[%c0_9, %c0_10] : memref<32x50xbf16, #tpu.memory_space<vmem>>, vector<32x50xbf16>
    %cst_11 = arith.constant dense<0.000000e+00> : vector<16x50xf32>
    %27 = tpu.matmul %25, %26, %cst_11 {dimension_numbers = #tpu.dot_dimension_numbers<[1], [0], [0], [1], [0, 0, 1, 1], [], []>} : vector<16x32xbf16>, vector<32x50xbf16>, vector<16x50xf32> -> vector<16x50xf32>
    %c0_12 = arith.constant 0 : index
    %c0_13 = arith.constant 0 : index
    %28 = vector.load %arg6[%c0_12, %c0_13] : memref<1x50xf32, #tpu.memory_space<vmem>>, vector<1x50xf32>
    %29 = vector.broadcast %28 : vector<1x50xf32> to vector<16x50xf32>
    %30 = arith.addf %27, %29 : vector<16x50xf32>
    %c0_14 = arith.constant 0 : index
    %c0_15 = arith.constant 0 : index
    %31 = vector.load %arg7[%c0_14, %c0_15] : memref<16x50xf32, #tpu.memory_space<vmem>>, vector<16x50xf32>
    tpu.vector_store %arg7[%c0_14, %c0_15], %30 {strides = array<i32>} : memref<16x50xf32, #tpu.memory_space<vmem>>, vector<16x50xf32>,
    return
  }
  func.func @transform_0(%arg0: i32, %arg1: i32) -> (i32, i32) {
    %c0_i32 = arith.constant 0 : i32
    %c0_i32_0 = arith.constant 0 : i32
    return %arg0, %c0_i32 : i32, i32
  }
  func.func @transform_1(%arg0: i32, %arg1: i32) -> (i32, i32) {
    %c0_i32 = arith.constant 0 : i32
    %c0_i32_0 = arith.constant 0 : i32
    %c0_i32_1 = arith.constant 0 : i32
    return %c0_i32, %c0_i32_0 : i32, i32
  }
  func.func @transform_2(%arg0: i32, %arg1: i32) -> (i32, i32) {
    %c0_i32 = arith.constant 0 : i32
    %c0_i32_0 = arith.constant 0 : i32
    %c0_i32_1 = arith.constant 0 : i32
    return %c0_i32, %c0_i32_0 : i32, i32
  }
  func.func @transform_3(%arg0: i32, %arg1: i32) -> (i32, i32) {
    %c0_i32 = arith.constant 0 : i32
    %c0_i32_0 = arith.constant 0 : i32
    return %c0_i32, %arg1 : i32, i32
  }
  func.func @transform_4(%arg0: i32, %arg1: i32) -> (i32, i32) {
    %c0_i32 = arith.constant 0 : i32
    %c0_i32_0 = arith.constant 0 : i32
    return %c0_i32, %arg1 : i32, i32
  }
  func.func @transform_5(%arg0: i32, %arg1: i32) -> (i32, i32) {
    %c0_i32 = arith.constant 0 : i32
    return %arg0, %arg1 : i32, i32
  }
}

module attributes {stable_mosaic.version = 11 : i64} {
  func.func @_decoder_stack_kernel(%arg0: i32, %arg1: i32, %arg2: memref<2x8x32xf32, #tpu.memory_space<vmem>>, %arg3: memref<2x8x32xf32, #tpu.memory_space<vmem>>, %arg4: memref<2x8x8xf32, #tpu.memory_space<vmem>>, %arg5: memref<2x1x8xf32, #tpu.memory_space<vmem>>, %arg6: memref<1x1x32xf32, #tpu.memory_space<vmem>>, %arg7: memref<1x1x32xf32, #tpu.memory_space<vmem>>, %arg8: memref<1x32x96xbf16, #tpu.memory_space<vmem>>, %arg9: memref<1x32x32xbf16, #tpu.memory_space<vmem>>, %arg10: memref<1x1x32xf32, #tpu.memory_space<vmem>>, %arg11: memref<1x1x32xf32, #tpu.memory_space<vmem>>, %arg12: memref<1x32x32xbf16, #tpu.memory_space<vmem>>, %arg13: memref<1x32x64xbf16, #tpu.memory_space<vmem>>, %arg14: memref<1x32x32xbf16, #tpu.memory_space<vmem>>, %arg15: memref<1x1x32xf32, #tpu.memory_space<vmem>>, %arg16: memref<1x1x32xf32, #tpu.memory_space<vmem>>, %arg17: memref<1x32x64xbf16, #tpu.memory_space<vmem>>, %arg18: memref<1x1x64xf32, #tpu.memory_space<vmem>>, %arg19: memref<1x64x32xbf16, #tpu.memory_space<vmem>>, %arg20: memref<1x1x32xf32, #tpu.memory_space<vmem>>, %arg21: memref<2x8x32xf32, #tpu.memory_space<vmem>>, %arg22: memref<16x32xf32, #tpu.memory_space<vmem>>) attributes {dimension_semantics = [#tpu.dimension_semantics<parallel>, #tpu.dimension_semantics<arbitrary>], iteration_bounds = array<i64: 1, 2>, scalar_prefetch = 0 : i64, scratch_operands = 1 : i64, tpu.core_type = #tpu.core_type<tc>, window_params = [{transform_indices = @transform_0, window_bounds = array<i64: 2, 8, 32>}, {transform_indices = @transform_1, window_bounds = array<i64: 2, 8, 32>}, {transform_indices = @transform_2, window_bounds = array<i64: 2, 8, 8>}, {transform_indices = @transform_3, window_bounds = array<i64: 2, 1, 8>}, {transform_indices = @transform_4, window_bounds = array<i64: 1, 1, 32>}, {transform_indices = @transform_5, window_bounds = array<i64: 1, 1, 32>}, {transform_indices = @transform_6, window_bounds = array<i64: 1, 32, 96>}, {transform_indices = @transform_7, window_bounds = array<i64: 1, 32, 32>}, {transform_indices = @transform_8, window_bounds = array<i64: 1, 1, 32>}, {transform_indices = @transform_9, window_bounds = array<i64: 1, 1, 32>}, {transform_indices = @transform_10, window_bounds = array<i64: 1, 32, 32>}, {transform_indices = @transform_11, window_bounds = array<i64: 1, 32, 64>}, {transform_indices = @transform_12, window_bounds = array<i64: 1, 32, 32>}, {transform_indices = @transform_13, window_bounds = array<i64: 1, 1, 32>}, {transform_indices = @transform_14, window_bounds = array<i64: 1, 1, 32>}, {transform_indices = @transform_15, window_bounds = array<i64: 1, 32, 64>}, {transform_indices = @transform_16, window_bounds = array<i64: 1, 1, 64>}, {transform_indices = @transform_17, window_bounds = array<i64: 1, 64, 32>}, {transform_indices = @transform_18, window_bounds = array<i64: 1, 1, 32>}, {transform_indices = @transform_19, window_bounds = array<i64: 2, 8, 32>}]} {
    %c0_i32 = arith.constant 0 : i32
    %0 = arith.cmpi eq, %arg1, %c0_i32 : i32
    %1 = arith.extui %0 : i1 to i32
    %c0_i32_0 = arith.constant 0 : i32
    %2 = arith.cmpi ne, %1, %c0_i32_0 : i32
    scf.if %2 {
      %c0_203 = arith.constant 0 : index
      %c0_204 = arith.constant 0 : index
      %c0_205 = arith.constant 0 : index
      %500 = vector.load %arg2[%c0_203, %c0_204, %c0_205] : memref<2x8x32xf32, #tpu.memory_space<vmem>>, vector<2x8x32xf32>
      %c0_206 = arith.constant 0 : index
      %c0_207 = arith.constant 0 : index
      %c0_208 = arith.constant 0 : index
      %501 = vector.load %arg21[%c0_206, %c0_207, %c0_208] : memref<2x8x32xf32, #tpu.memory_space<vmem>>, vector<2x8x32xf32>
      tpu.vector_store %arg21[%c0_206, %c0_207, %c0_208], %500 {strides = array<i32>} : memref<2x8x32xf32, #tpu.memory_space<vmem>>, vector<2x8x32xf32>,
    } else {
    }
    %c0 = arith.constant 0 : index
    %c0_1 = arith.constant 0 : index
    %c0_2 = arith.constant 0 : index
    %3 = vector.load %arg21[%c0, %c0_1, %c0_2] : memref<2x8x32xf32, #tpu.memory_space<vmem>>, vector<2x8x32xf32>
    %4 = vector.shape_cast %3 : vector<2x8x32xf32> to vector<16x32xf32>
    %c0_3 = arith.constant 0 : index
    %c0_4 = arith.constant 0 : index
    %c0_5 = arith.constant 0 : index
    %5 = vector.load %arg3[%c0_3, %c0_4, %c0_5] : memref<2x8x32xf32, #tpu.memory_space<vmem>>, vector<2x8x32xf32>
    %6 = vector.shape_cast %5 : vector<2x8x32xf32> to vector<16x32xf32>
    %c0_6 = arith.constant 0 : index
    %c0_7 = arith.constant 0 : index
    %c0_8 = arith.constant 0 : index
    %7 = vector.load %arg6[%c0_6, %c0_7, %c0_8] : memref<1x1x32xf32, #tpu.memory_space<vmem>>, vector<1x1x32xf32>
    %8 = vector.shape_cast %7 : vector<1x1x32xf32> to vector<1x32xf32>
    %c0_9 = arith.constant 0 : index
    %c0_10 = arith.constant 0 : index
    %c0_11 = arith.constant 0 : index
    %9 = vector.load %arg7[%c0_9, %c0_10, %c0_11] : memref<1x1x32xf32, #tpu.memory_space<vmem>>, vector<1x1x32xf32>
    %10 = vector.shape_cast %9 : vector<1x1x32xf32> to vector<1x32xf32>
    %cst = arith.constant dense<0.000000e+00> : vector<16xf32>
    %11 = vector.multi_reduction <add>, %4, %cst [1] : vector<16x32xf32> to vector<16xf32>
    %12 = vector.shape_cast %11 : vector<16xf32> to vector<16x1xf32>
    %cst_12 = arith.constant 3.200000e+01 : f32
    %13 = vector.broadcast %cst_12 : f32 to vector<16x1xf32>
    %14 = arith.divf %12, %13 : vector<16x1xf32>
    %15 = vector.broadcast %14 : vector<16x1xf32> to vector<16x32xf32>
    %16 = arith.subf %4, %15 : vector<16x32xf32>
    %17 = arith.mulf %16, %16 : vector<16x32xf32>
    %cst_13 = arith.constant dense<0.000000e+00> : vector<16xf32>
    %18 = vector.multi_reduction <add>, %17, %cst_13 [1] : vector<16x32xf32> to vector<16xf32>
    %19 = vector.shape_cast %18 : vector<16xf32> to vector<16x1xf32>
    %cst_14 = arith.constant 3.200000e+01 : f32
    %20 = vector.broadcast %cst_14 : f32 to vector<16x1xf32>
    %21 = arith.divf %19, %20 : vector<16x1xf32>
    %22 = vector.broadcast %14 : vector<16x1xf32> to vector<16x32xf32>
    %23 = arith.subf %4, %22 : vector<16x32xf32>
    %cst_15 = arith.constant 9.99999974E-6 : f32
    %24 = vector.broadcast %cst_15 : f32 to vector<16x1xf32>
    %25 = arith.addf %21, %24 : vector<16x1xf32>
    %26 = math.rsqrt %25 : vector<16x1xf32>
    %27 = vector.broadcast %26 : vector<16x1xf32> to vector<16x32xf32>
    %28 = arith.mulf %23, %27 : vector<16x32xf32>
    %29 = vector.broadcast %8 : vector<1x32xf32> to vector<16x32xf32>
    %30 = arith.mulf %28, %29 : vector<16x32xf32>
    %31 = vector.broadcast %10 : vector<1x32xf32> to vector<16x32xf32>
    %32 = arith.addf %30, %31 : vector<16x32xf32>
    %33 = arith.truncf %32 : vector<16x32xf32> to vector<16x32xbf16>
    %c0_16 = arith.constant 0 : index
    %c0_17 = arith.constant 0 : index
    %c0_18 = arith.constant 0 : index
    %34 = vector.load %arg8[%c0_16, %c0_17, %c0_18] : memref<1x32x96xbf16, #tpu.memory_space<vmem>>, vector<1x32x96xbf16>
    %35 = vector.shape_cast %34 : vector<1x32x96xbf16> to vector<32x96xbf16>
    %cst_19 = arith.constant dense<0.000000e+00> : vector<16x96xf32>
    %36 = tpu.matmul %33, %35, %cst_19 {dimension_numbers = #tpu.dot_dimension_numbers<[1], [0], [0], [1], [0, 0, 1, 1], [], []>} : vector<16x32xbf16>, vector<32x96xbf16>, vector<16x96xf32> -> vector<16x96xf32>
    %37 = vector.extract_strided_slice %36 {offsets = [0, 0], sizes = [16, 32], strides = [1, 1]} : vector<16x96xf32> to vector<16x32xf32>
    %38 = arith.truncf %37 : vector<16x32xf32> to vector<16x32xbf16>
    %39 = vector.extract_strided_slice %36 {offsets = [0, 32], sizes = [16, 32], strides = [1, 1]} : vector<16x96xf32> to vector<16x32xf32>
    %40 = arith.truncf %39 : vector<16x32xf32> to vector<16x32xbf16>
    %41 = vector.extract_strided_slice %36 {offsets = [0, 64], sizes = [16, 32], strides = [1, 1]} : vector<16x96xf32> to vector<16x32xf32>
    %42 = arith.truncf %41 : vector<16x32xf32> to vector<16x32xbf16>
    %c0_20 = arith.constant 0 : index
    %c0_21 = arith.constant 0 : index
    %c0_22 = arith.constant 0 : index
    %43 = vector.load %arg4[%c0_20, %c0_21, %c0_22] : memref<2x8x8xf32, #tpu.memory_space<vmem>>, vector<1x8x8xf32>
    %44 = vector.shape_cast %43 : vector<1x8x8xf32> to vector<8x8xf32>
    %45 = vector.extract_strided_slice %38 {offsets = [0, 0], sizes = [8, 32], strides = [1, 1]} : vector<16x32xbf16> to vector<8x32xbf16>
    %46 = vector.extract_strided_slice %40 {offsets = [0, 0], sizes = [8, 32], strides = [1, 1]} : vector<16x32xbf16> to vector<8x32xbf16>
    %47 = vector.extract_strided_slice %42 {offsets = [0, 0], sizes = [8, 32], strides = [1, 1]} : vector<16x32xbf16> to vector<8x32xbf16>
    %48 = vector.extract_strided_slice %45 {offsets = [0, 0], sizes = [8, 8], strides = [1, 1]} : vector<8x32xbf16> to vector<8x8xbf16>
    %49 = vector.extract_strided_slice %46 {offsets = [0, 0], sizes = [8, 8], strides = [1, 1]} : vector<8x32xbf16> to vector<8x8xbf16>
    %cst_23 = arith.constant dense<0.000000e+00> : vector<8x8xf32>
    %50 = tpu.matmul %48, %49, %cst_23 {dimension_numbers = #tpu.dot_dimension_numbers<[1], [1], [0], [0], [0, 0, 1, 0], [], []>} : vector<8x8xbf16>, vector<8x8xbf16>, vector<8x8xf32> -> vector<8x8xf32>
    %cst_24 = arith.constant 0.353553385 : f32
    %51 = vector.broadcast %cst_24 : f32 to vector<8x8xf32>
    %52 = arith.mulf %50, %51 : vector<8x8xf32>
    %53 = arith.addf %52, %44 : vector<8x8xf32>
    %cst_25 = arith.constant dense<0xFF800000> : vector<8xf32>
    %54 = vector.multi_reduction <maximumf>, %53, %cst_25 [1] : vector<8x8xf32> to vector<8xf32>
    %55 = vector.shape_cast %54 : vector<8xf32> to vector<8x1xf32>
    %56 = vector.broadcast %55 : vector<8x1xf32> to vector<8x8xf32>
    %57 = arith.subf %53, %56 : vector<8x8xf32>
    %58 = math.exp %57 : vector<8x8xf32>
    %cst_26 = arith.constant dense<0.000000e+00> : vector<8xf32>
    %59 = vector.multi_reduction <add>, %58, %cst_26 [1] : vector<8x8xf32> to vector<8xf32>
    %60 = vector.shape_cast %59 : vector<8xf32> to vector<8x1xf32>
    %61 = tpu.reciprocal %60 {approx = true} : vector<8x1xf32> -> vector<8x1xf32>
    %62 = vector.broadcast %61 : vector<8x1xf32> to vector<8x8xf32>
    %63 = arith.mulf %58, %62 : vector<8x8xf32>
    %64 = arith.truncf %63 : vector<8x8xf32> to vector<8x8xbf16>
    %65 = vector.extract_strided_slice %47 {offsets = [0, 0], sizes = [8, 8], strides = [1, 1]} : vector<8x32xbf16> to vector<8x8xbf16>
    %cst_27 = arith.constant dense<0.000000e+00> : vector<8x8xf32>
    %66 = tpu.matmul %64, %65, %cst_27 {dimension_numbers = #tpu.dot_dimension_numbers<[1], [0], [0], [1], [0, 0, 1, 1], [], []>} : vector<8x8xbf16>, vector<8x8xbf16>, vector<8x8xf32> -> vector<8x8xf32>
    %c0_28 = arith.constant 0 : index
    %c0_29 = arith.constant 0 : index
    %67 = vector.load %arg22[%c0_28, %c0_29] : memref<16x32xf32, #tpu.memory_space<vmem>>, vector<8x8xf32>
    tpu.vector_store %arg22[%c0_28, %c0_29], %66 {strides = array<i32>} : memref<16x32xf32, #tpu.memory_space<vmem>>, vector<8x8xf32>,
    %68 = vector.extract_strided_slice %45 {offsets = [0, 8], sizes = [8, 8], strides = [1, 1]} : vector<8x32xbf16> to vector<8x8xbf16>
    %69 = vector.extract_strided_slice %46 {offsets = [0, 8], sizes = [8, 8], strides = [1, 1]} : vector<8x32xbf16> to vector<8x8xbf16>
    %cst_30 = arith.constant dense<0.000000e+00> : vector<8x8xf32>
    %70 = tpu.matmul %68, %69, %cst_30 {dimension_numbers = #tpu.dot_dimension_numbers<[1], [1], [0], [0], [0, 0, 1, 0], [], []>} : vector<8x8xbf16>, vector<8x8xbf16>, vector<8x8xf32> -> vector<8x8xf32>
    %cst_31 = arith.constant 0.353553385 : f32
    %71 = vector.broadcast %cst_31 : f32 to vector<8x8xf32>
    %72 = arith.mulf %70, %71 : vector<8x8xf32>
    %73 = arith.addf %72, %44 : vector<8x8xf32>
    %cst_32 = arith.constant dense<0xFF800000> : vector<8xf32>
    %74 = vector.multi_reduction <maximumf>, %73, %cst_32 [1] : vector<8x8xf32> to vector<8xf32>
    %75 = vector.shape_cast %74 : vector<8xf32> to vector<8x1xf32>
    %76 = vector.broadcast %75 : vector<8x1xf32> to vector<8x8xf32>
    %77 = arith.subf %73, %76 : vector<8x8xf32>
    %78 = math.exp %77 : vector<8x8xf32>
    %cst_33 = arith.constant dense<0.000000e+00> : vector<8xf32>
    %79 = vector.multi_reduction <add>, %78, %cst_33 [1] : vector<8x8xf32> to vector<8xf32>
    %80 = vector.shape_cast %79 : vector<8xf32> to vector<8x1xf32>
    %81 = tpu.reciprocal %80 {approx = true} : vector<8x1xf32> -> vector<8x1xf32>
    %82 = vector.broadcast %81 : vector<8x1xf32> to vector<8x8xf32>
    %83 = arith.mulf %78, %82 : vector<8x8xf32>
    %84 = arith.truncf %83 : vector<8x8xf32> to vector<8x8xbf16>
    %85 = vector.extract_strided_slice %47 {offsets = [0, 8], sizes = [8, 8], strides = [1, 1]} : vector<8x32xbf16> to vector<8x8xbf16>
    %cst_34 = arith.constant dense<0.000000e+00> : vector<8x8xf32>
    %86 = tpu.matmul %84, %85, %cst_34 {dimension_numbers = #tpu.dot_dimension_numbers<[1], [0], [0], [1], [0, 0, 1, 1], [], []>} : vector<8x8xbf16>, vector<8x8xbf16>, vector<8x8xf32> -> vector<8x8xf32>
    %c0_35 = arith.constant 0 : index
    %c8 = arith.constant 8 : index
    %87 = vector.load %arg22[%c0_35, %c8] : memref<16x32xf32, #tpu.memory_space<vmem>>, vector<8x8xf32>
    tpu.vector_store %arg22[%c0_35, %c8], %86 {strides = array<i32>} : memref<16x32xf32, #tpu.memory_space<vmem>>, vector<8x8xf32>,
    %88 = vector.extract_strided_slice %45 {offsets = [0, 16], sizes = [8, 8], strides = [1, 1]} : vector<8x32xbf16> to vector<8x8xbf16>
    %89 = vector.extract_strided_slice %46 {offsets = [0, 16], sizes = [8, 8], strides = [1, 1]} : vector<8x32xbf16> to vector<8x8xbf16>
    %cst_36 = arith.constant dense<0.000000e+00> : vector<8x8xf32>
    %90 = tpu.matmul %88, %89, %cst_36 {dimension_numbers = #tpu.dot_dimension_numbers<[1], [1], [0], [0], [0, 0, 1, 0], [], []>} : vector<8x8xbf16>, vector<8x8xbf16>, vector<8x8xf32> -> vector<8x8xf32>
    %cst_37 = arith.constant 0.353553385 : f32
    %91 = vector.broadcast %cst_37 : f32 to vector<8x8xf32>
    %92 = arith.mulf %90, %91 : vector<8x8xf32>
    %93 = arith.addf %92, %44 : vector<8x8xf32>
    %cst_38 = arith.constant dense<0xFF800000> : vector<8xf32>
    %94 = vector.multi_reduction <maximumf>, %93, %cst_38 [1] : vector<8x8xf32> to vector<8xf32>
    %95 = vector.shape_cast %94 : vector<8xf32> to vector<8x1xf32>
    %96 = vector.broadcast %95 : vector<8x1xf32> to vector<8x8xf32>
    %97 = arith.subf %93, %96 : vector<8x8xf32>
    %98 = math.exp %97 : vector<8x8xf32>
    %cst_39 = arith.constant dense<0.000000e+00> : vector<8xf32>
    %99 = vector.multi_reduction <add>, %98, %cst_39 [1] : vector<8x8xf32> to vector<8xf32>
    %100 = vector.shape_cast %99 : vector<8xf32> to vector<8x1xf32>
    %101 = tpu.reciprocal %100 {approx = true} : vector<8x1xf32> -> vector<8x1xf32>
    %102 = vector.broadcast %101 : vector<8x1xf32> to vector<8x8xf32>
    %103 = arith.mulf %98, %102 : vector<8x8xf32>
    %104 = arith.truncf %103 : vector<8x8xf32> to vector<8x8xbf16>
    %105 = vector.extract_strided_slice %47 {offsets = [0, 16], sizes = [8, 8], strides = [1, 1]} : vector<8x32xbf16> to vector<8x8xbf16>
    %cst_40 = arith.constant dense<0.000000e+00> : vector<8x8xf32>
    %106 = tpu.matmul %104, %105, %cst_40 {dimension_numbers = #tpu.dot_dimension_numbers<[1], [0], [0], [1], [0, 0, 1, 1], [], []>} : vector<8x8xbf16>, vector<8x8xbf16>, vector<8x8xf32> -> vector<8x8xf32>
    %c0_41 = arith.constant 0 : index
    %c16 = arith.constant 16 : index
    %107 = vector.load %arg22[%c0_41, %c16] : memref<16x32xf32, #tpu.memory_space<vmem>>, vector<8x8xf32>
    tpu.vector_store %arg22[%c0_41, %c16], %106 {strides = array<i32>} : memref<16x32xf32, #tpu.memory_space<vmem>>, vector<8x8xf32>,
    %108 = vector.extract_strided_slice %45 {offsets = [0, 24], sizes = [8, 8], strides = [1, 1]} : vector<8x32xbf16> to vector<8x8xbf16>
    %109 = vector.extract_strided_slice %46 {offsets = [0, 24], sizes = [8, 8], strides = [1, 1]} : vector<8x32xbf16> to vector<8x8xbf16>
    %cst_42 = arith.constant dense<0.000000e+00> : vector<8x8xf32>
    %110 = tpu.matmul %108, %109, %cst_42 {dimension_numbers = #tpu.dot_dimension_numbers<[1], [1], [0], [0], [0, 0, 1, 0], [], []>} : vector<8x8xbf16>, vector<8x8xbf16>, vector<8x8xf32> -> vector<8x8xf32>
    %cst_43 = arith.constant 0.353553385 : f32
    %111 = vector.broadcast %cst_43 : f32 to vector<8x8xf32>
    %112 = arith.mulf %110, %111 : vector<8x8xf32>
    %113 = arith.addf %112, %44 : vector<8x8xf32>
    %cst_44 = arith.constant dense<0xFF800000> : vector<8xf32>
    %114 = vector.multi_reduction <maximumf>, %113, %cst_44 [1] : vector<8x8xf32> to vector<8xf32>
    %115 = vector.shape_cast %114 : vector<8xf32> to vector<8x1xf32>
    %116 = vector.broadcast %115 : vector<8x1xf32> to vector<8x8xf32>
    %117 = arith.subf %113, %116 : vector<8x8xf32>
    %118 = math.exp %117 : vector<8x8xf32>
    %cst_45 = arith.constant dense<0.000000e+00> : vector<8xf32>
    %119 = vector.multi_reduction <add>, %118, %cst_45 [1] : vector<8x8xf32> to vector<8xf32>
    %120 = vector.shape_cast %119 : vector<8xf32> to vector<8x1xf32>
    %121 = tpu.reciprocal %120 {approx = true} : vector<8x1xf32> -> vector<8x1xf32>
    %122 = vector.broadcast %121 : vector<8x1xf32> to vector<8x8xf32>
    %123 = arith.mulf %118, %122 : vector<8x8xf32>
    %124 = arith.truncf %123 : vector<8x8xf32> to vector<8x8xbf16>
    %125 = vector.extract_strided_slice %47 {offsets = [0, 24], sizes = [8, 8], strides = [1, 1]} : vector<8x32xbf16> to vector<8x8xbf16>
    %cst_46 = arith.constant dense<0.000000e+00> : vector<8x8xf32>
    %126 = tpu.matmul %124, %125, %cst_46 {dimension_numbers = #tpu.dot_dimension_numbers<[1], [0], [0], [1], [0, 0, 1, 1], [], []>} : vector<8x8xbf16>, vector<8x8xbf16>, vector<8x8xf32> -> vector<8x8xf32>
    %c0_47 = arith.constant 0 : index
    %c24 = arith.constant 24 : index
    %127 = vector.load %arg22[%c0_47, %c24] : memref<16x32xf32, #tpu.memory_space<vmem>>, vector<8x8xf32>
    tpu.vector_store %arg22[%c0_47, %c24], %126 {strides = array<i32>} : memref<16x32xf32, #tpu.memory_space<vmem>>, vector<8x8xf32>,
    %c1 = arith.constant 1 : index
    %c0_48 = arith.constant 0 : index
    %c0_49 = arith.constant 0 : index
    %128 = vector.load %arg4[%c1, %c0_48, %c0_49] : memref<2x8x8xf32, #tpu.memory_space<vmem>>, vector<1x8x8xf32>
    %129 = vector.shape_cast %128 : vector<1x8x8xf32> to vector<8x8xf32>
    %130 = vector.extract_strided_slice %38 {offsets = [8, 0], sizes = [8, 32], strides = [1, 1]} : vector<16x32xbf16> to vector<8x32xbf16>
    %131 = vector.extract_strided_slice %40 {offsets = [8, 0], sizes = [8, 32], strides = [1, 1]} : vector<16x32xbf16> to vector<8x32xbf16>
    %132 = vector.extract_strided_slice %42 {offsets = [8, 0], sizes = [8, 32], strides = [1, 1]} : vector<16x32xbf16> to vector<8x32xbf16>
    %133 = vector.extract_strided_slice %130 {offsets = [0, 0], sizes = [8, 8], strides = [1, 1]} : vector<8x32xbf16> to vector<8x8xbf16>
    %134 = vector.extract_strided_slice %131 {offsets = [0, 0], sizes = [8, 8], strides = [1, 1]} : vector<8x32xbf16> to vector<8x8xbf16>
    %cst_50 = arith.constant dense<0.000000e+00> : vector<8x8xf32>
    %135 = tpu.matmul %133, %134, %cst_50 {dimension_numbers = #tpu.dot_dimension_numbers<[1], [1], [0], [0], [0, 0, 1, 0], [], []>} : vector<8x8xbf16>, vector<8x8xbf16>, vector<8x8xf32> -> vector<8x8xf32>
    %cst_51 = arith.constant 0.353553385 : f32
    %136 = vector.broadcast %cst_51 : f32 to vector<8x8xf32>
    %137 = arith.mulf %135, %136 : vector<8x8xf32>
    %138 = arith.addf %137, %129 : vector<8x8xf32>
    %cst_52 = arith.constant dense<0xFF800000> : vector<8xf32>
    %139 = vector.multi_reduction <maximumf>, %138, %cst_52 [1] : vector<8x8xf32> to vector<8xf32>
    %140 = vector.shape_cast %139 : vector<8xf32> to vector<8x1xf32>
    %141 = vector.broadcast %140 : vector<8x1xf32> to vector<8x8xf32>
    %142 = arith.subf %138, %141 : vector<8x8xf32>
    %143 = math.exp %142 : vector<8x8xf32>
    %cst_53 = arith.constant dense<0.000000e+00> : vector<8xf32>
    %144 = vector.multi_reduction <add>, %143, %cst_53 [1] : vector<8x8xf32> to vector<8xf32>
    %145 = vector.shape_cast %144 : vector<8xf32> to vector<8x1xf32>
    %146 = tpu.reciprocal %145 {approx = true} : vector<8x1xf32> -> vector<8x1xf32>
    %147 = vector.broadcast %146 : vector<8x1xf32> to vector<8x8xf32>
    %148 = arith.mulf %143, %147 : vector<8x8xf32>
    %149 = arith.truncf %148 : vector<8x8xf32> to vector<8x8xbf16>
    %150 = vector.extract_strided_slice %132 {offsets = [0, 0], sizes = [8, 8], strides = [1, 1]} : vector<8x32xbf16> to vector<8x8xbf16>
    %cst_54 = arith.constant dense<0.000000e+00> : vector<8x8xf32>
    %151 = tpu.matmul %149, %150, %cst_54 {dimension_numbers = #tpu.dot_dimension_numbers<[1], [0], [0], [1], [0, 0, 1, 1], [], []>} : vector<8x8xbf16>, vector<8x8xbf16>, vector<8x8xf32> -> vector<8x8xf32>
    %c8_55 = arith.constant 8 : index
    %c0_56 = arith.constant 0 : index
    %152 = vector.load %arg22[%c8_55, %c0_56] : memref<16x32xf32, #tpu.memory_space<vmem>>, vector<8x8xf32>
    tpu.vector_store %arg22[%c8_55, %c0_56], %151 {strides = array<i32>} : memref<16x32xf32, #tpu.memory_space<vmem>>, vector<8x8xf32>,
    %153 = vector.extract_strided_slice %130 {offsets = [0, 8], sizes = [8, 8], strides = [1, 1]} : vector<8x32xbf16> to vector<8x8xbf16>
    %154 = vector.extract_strided_slice %131 {offsets = [0, 8], sizes = [8, 8], strides = [1, 1]} : vector<8x32xbf16> to vector<8x8xbf16>
    %cst_57 = arith.constant dense<0.000000e+00> : vector<8x8xf32>
    %155 = tpu.matmul %153, %154, %cst_57 {dimension_numbers = #tpu.dot_dimension_numbers<[1], [1], [0], [0], [0, 0, 1, 0], [], []>} : vector<8x8xbf16>, vector<8x8xbf16>, vector<8x8xf32> -> vector<8x8xf32>
    %cst_58 = arith.constant 0.353553385 : f32
    %156 = vector.broadcast %cst_58 : f32 to vector<8x8xf32>
    %157 = arith.mulf %155, %156 : vector<8x8xf32>
    %158 = arith.addf %157, %129 : vector<8x8xf32>
    %cst_59 = arith.constant dense<0xFF800000> : vector<8xf32>
    %159 = vector.multi_reduction <maximumf>, %158, %cst_59 [1] : vector<8x8xf32> to vector<8xf32>
    %160 = vector.shape_cast %159 : vector<8xf32> to vector<8x1xf32>
    %161 = vector.broadcast %160 : vector<8x1xf32> to vector<8x8xf32>
    %162 = arith.subf %158, %161 : vector<8x8xf32>
    %163 = math.exp %162 : vector<8x8xf32>
    %cst_60 = arith.constant dense<0.000000e+00> : vector<8xf32>
    %164 = vector.multi_reduction <add>, %163, %cst_60 [1] : vector<8x8xf32> to vector<8xf32>
    %165 = vector.shape_cast %164 : vector<8xf32> to vector<8x1xf32>
    %166 = tpu.reciprocal %165 {approx = true} : vector<8x1xf32> -> vector<8x1xf32>
    %167 = vector.broadcast %166 : vector<8x1xf32> to vector<8x8xf32>
    %168 = arith.mulf %163, %167 : vector<8x8xf32>
    %169 = arith.truncf %168 : vector<8x8xf32> to vector<8x8xbf16>
    %170 = vector.extract_strided_slice %132 {offsets = [0, 8], sizes = [8, 8], strides = [1, 1]} : vector<8x32xbf16> to vector<8x8xbf16>
    %cst_61 = arith.constant dense<0.000000e+00> : vector<8x8xf32>
    %171 = tpu.matmul %169, %170, %cst_61 {dimension_numbers = #tpu.dot_dimension_numbers<[1], [0], [0], [1], [0, 0, 1, 1], [], []>} : vector<8x8xbf16>, vector<8x8xbf16>, vector<8x8xf32> -> vector<8x8xf32>
    %c8_62 = arith.constant 8 : index
    %c8_63 = arith.constant 8 : index
    %172 = vector.load %arg22[%c8_62, %c8_63] : memref<16x32xf32, #tpu.memory_space<vmem>>, vector<8x8xf32>
    tpu.vector_store %arg22[%c8_62, %c8_63], %171 {strides = array<i32>} : memref<16x32xf32, #tpu.memory_space<vmem>>, vector<8x8xf32>,
    %173 = vector.extract_strided_slice %130 {offsets = [0, 16], sizes = [8, 8], strides = [1, 1]} : vector<8x32xbf16> to vector<8x8xbf16>
    %174 = vector.extract_strided_slice %131 {offsets = [0, 16], sizes = [8, 8], strides = [1, 1]} : vector<8x32xbf16> to vector<8x8xbf16>
    %cst_64 = arith.constant dense<0.000000e+00> : vector<8x8xf32>
    %175 = tpu.matmul %173, %174, %cst_64 {dimension_numbers = #tpu.dot_dimension_numbers<[1], [1], [0], [0], [0, 0, 1, 0], [], []>} : vector<8x8xbf16>, vector<8x8xbf16>, vector<8x8xf32> -> vector<8x8xf32>
    %cst_65 = arith.constant 0.353553385 : f32
    %176 = vector.broadcast %cst_65 : f32 to vector<8x8xf32>
    %177 = arith.mulf %175, %176 : vector<8x8xf32>
    %178 = arith.addf %177, %129 : vector<8x8xf32>
    %cst_66 = arith.constant dense<0xFF800000> : vector<8xf32>
    %179 = vector.multi_reduction <maximumf>, %178, %cst_66 [1] : vector<8x8xf32> to vector<8xf32>
    %180 = vector.shape_cast %179 : vector<8xf32> to vector<8x1xf32>
    %181 = vector.broadcast %180 : vector<8x1xf32> to vector<8x8xf32>
    %182 = arith.subf %178, %181 : vector<8x8xf32>
    %183 = math.exp %182 : vector<8x8xf32>
    %cst_67 = arith.constant dense<0.000000e+00> : vector<8xf32>
    %184 = vector.multi_reduction <add>, %183, %cst_67 [1] : vector<8x8xf32> to vector<8xf32>
    %185 = vector.shape_cast %184 : vector<8xf32> to vector<8x1xf32>
    %186 = tpu.reciprocal %185 {approx = true} : vector<8x1xf32> -> vector<8x1xf32>
    %187 = vector.broadcast %186 : vector<8x1xf32> to vector<8x8xf32>
    %188 = arith.mulf %183, %187 : vector<8x8xf32>
    %189 = arith.truncf %188 : vector<8x8xf32> to vector<8x8xbf16>
    %190 = vector.extract_strided_slice %132 {offsets = [0, 16], sizes = [8, 8], strides = [1, 1]} : vector<8x32xbf16> to vector<8x8xbf16>
    %cst_68 = arith.constant dense<0.000000e+00> : vector<8x8xf32>
    %191 = tpu.matmul %189, %190, %cst_68 {dimension_numbers = #tpu.dot_dimension_numbers<[1], [0], [0], [1], [0, 0, 1, 1], [], []>} : vector<8x8xbf16>, vector<8x8xbf16>, vector<8x8xf32> -> vector<8x8xf32>
    %c8_69 = arith.constant 8 : index
    %c16_70 = arith.constant 16 : index
    %192 = vector.load %arg22[%c8_69, %c16_70] : memref<16x32xf32, #tpu.memory_space<vmem>>, vector<8x8xf32>
    tpu.vector_store %arg22[%c8_69, %c16_70], %191 {strides = array<i32>} : memref<16x32xf32, #tpu.memory_space<vmem>>, vector<8x8xf32>,
    %193 = vector.extract_strided_slice %130 {offsets = [0, 24], sizes = [8, 8], strides = [1, 1]} : vector<8x32xbf16> to vector<8x8xbf16>
    %194 = vector.extract_strided_slice %131 {offsets = [0, 24], sizes = [8, 8], strides = [1, 1]} : vector<8x32xbf16> to vector<8x8xbf16>
    %cst_71 = arith.constant dense<0.000000e+00> : vector<8x8xf32>
    %195 = tpu.matmul %193, %194, %cst_71 {dimension_numbers = #tpu.dot_dimension_numbers<[1], [1], [0], [0], [0, 0, 1, 0], [], []>} : vector<8x8xbf16>, vector<8x8xbf16>, vector<8x8xf32> -> vector<8x8xf32>
    %cst_72 = arith.constant 0.353553385 : f32
    %196 = vector.broadcast %cst_72 : f32 to vector<8x8xf32>
    %197 = arith.mulf %195, %196 : vector<8x8xf32>
    %198 = arith.addf %197, %129 : vector<8x8xf32>
    %cst_73 = arith.constant dense<0xFF800000> : vector<8xf32>
    %199 = vector.multi_reduction <maximumf>, %198, %cst_73 [1] : vector<8x8xf32> to vector<8xf32>
    %200 = vector.shape_cast %199 : vector<8xf32> to vector<8x1xf32>
    %201 = vector.broadcast %200 : vector<8x1xf32> to vector<8x8xf32>
    %202 = arith.subf %198, %201 : vector<8x8xf32>
    %203 = math.exp %202 : vector<8x8xf32>
    %cst_74 = arith.constant dense<0.000000e+00> : vector<8xf32>
    %204 = vector.multi_reduction <add>, %203, %cst_74 [1] : vector<8x8xf32> to vector<8xf32>
    %205 = vector.shape_cast %204 : vector<8xf32> to vector<8x1xf32>
    %206 = tpu.reciprocal %205 {approx = true} : vector<8x1xf32> -> vector<8x1xf32>
    %207 = vector.broadcast %206 : vector<8x1xf32> to vector<8x8xf32>
    %208 = arith.mulf %203, %207 : vector<8x8xf32>
    %209 = arith.truncf %208 : vector<8x8xf32> to vector<8x8xbf16>
    %210 = vector.extract_strided_slice %132 {offsets = [0, 24], sizes = [8, 8], strides = [1, 1]} : vector<8x32xbf16> to vector<8x8xbf16>
    %cst_75 = arith.constant dense<0.000000e+00> : vector<8x8xf32>
    %211 = tpu.matmul %209, %210, %cst_75 {dimension_numbers = #tpu.dot_dimension_numbers<[1], [0], [0], [1], [0, 0, 1, 1], [], []>} : vector<8x8xbf16>, vector<8x8xbf16>, vector<8x8xf32> -> vector<8x8xf32>
    %c8_76 = arith.constant 8 : index
    %c24_77 = arith.constant 24 : index
    %212 = vector.load %arg22[%c8_76, %c24_77] : memref<16x32xf32, #tpu.memory_space<vmem>>, vector<8x8xf32>
    tpu.vector_store %arg22[%c8_76, %c24_77], %211 {strides = array<i32>} : memref<16x32xf32, #tpu.memory_space<vmem>>, vector<8x8xf32>,
    %c0_78 = arith.constant 0 : index
    %c0_79 = arith.constant 0 : index
    %213 = vector.load %arg22[%c0_78, %c0_79] : memref<16x32xf32, #tpu.memory_space<vmem>>, vector<16x32xf32>
    %214 = arith.truncf %213 : vector<16x32xf32> to vector<16x32xbf16>
    %c0_80 = arith.constant 0 : index
    %c0_81 = arith.constant 0 : index
    %c0_82 = arith.constant 0 : index
    %215 = vector.load %arg9[%c0_80, %c0_81, %c0_82] : memref<1x32x32xbf16, #tpu.memory_space<vmem>>, vector<1x32x32xbf16>
    %216 = vector.shape_cast %215 : vector<1x32x32xbf16> to vector<32x32xbf16>
    %cst_83 = arith.constant dense<0.000000e+00> : vector<16x32xf32>
    %217 = tpu.matmul %214, %216, %cst_83 {dimension_numbers = #tpu.dot_dimension_numbers<[1], [0], [0], [1], [0, 0, 1, 1], [], []>} : vector<16x32xbf16>, vector<32x32xbf16>, vector<16x32xf32> -> vector<16x32xf32>
    %218 = arith.addf %4, %217 : vector<16x32xf32>
    %c0_84 = arith.constant 0 : index
    %c0_85 = arith.constant 0 : index
    %c0_86 = arith.constant 0 : index
    %219 = vector.load %arg10[%c0_84, %c0_85, %c0_86] : memref<1x1x32xf32, #tpu.memory_space<vmem>>, vector<1x1x32xf32>
    %220 = vector.shape_cast %219 : vector<1x1x32xf32> to vector<1x32xf32>
    %c0_87 = arith.constant 0 : index
    %c0_88 = arith.constant 0 : index
    %c0_89 = arith.constant 0 : index
    %221 = vector.load %arg11[%c0_87, %c0_88, %c0_89] : memref<1x1x32xf32, #tpu.memory_space<vmem>>, vector<1x1x32xf32>
    %222 = vector.shape_cast %221 : vector<1x1x32xf32> to vector<1x32xf32>
    %cst_90 = arith.constant dense<0.000000e+00> : vector<16xf32>
    %223 = vector.multi_reduction <add>, %218, %cst_90 [1] : vector<16x32xf32> to vector<16xf32>
    %224 = vector.shape_cast %223 : vector<16xf32> to vector<16x1xf32>
    %cst_91 = arith.constant 3.200000e+01 : f32
    %225 = vector.broadcast %cst_91 : f32 to vector<16x1xf32>
    %226 = arith.divf %224, %225 : vector<16x1xf32>
    %227 = vector.broadcast %226 : vector<16x1xf32> to vector<16x32xf32>
    %228 = arith.subf %218, %227 : vector<16x32xf32>
    %229 = arith.mulf %228, %228 : vector<16x32xf32>
    %cst_92 = arith.constant dense<0.000000e+00> : vector<16xf32>
    %230 = vector.multi_reduction <add>, %229, %cst_92 [1] : vector<16x32xf32> to vector<16xf32>
    %231 = vector.shape_cast %230 : vector<16xf32> to vector<16x1xf32>
    %cst_93 = arith.constant 3.200000e+01 : f32
    %232 = vector.broadcast %cst_93 : f32 to vector<16x1xf32>
    %233 = arith.divf %231, %232 : vector<16x1xf32>
    %234 = vector.broadcast %226 : vector<16x1xf32> to vector<16x32xf32>
    %235 = arith.subf %218, %234 : vector<16x32xf32>
    %cst_94 = arith.constant 9.99999974E-6 : f32
    %236 = vector.broadcast %cst_94 : f32 to vector<16x1xf32>
    %237 = arith.addf %233, %236 : vector<16x1xf32>
    %238 = math.rsqrt %237 : vector<16x1xf32>
    %239 = vector.broadcast %238 : vector<16x1xf32> to vector<16x32xf32>
    %240 = arith.mulf %235, %239 : vector<16x32xf32>
    %241 = vector.broadcast %220 : vector<1x32xf32> to vector<16x32xf32>
    %242 = arith.mulf %240, %241 : vector<16x32xf32>
    %243 = vector.broadcast %222 : vector<1x32xf32> to vector<16x32xf32>
    %244 = arith.addf %242, %243 : vector<16x32xf32>
    %245 = arith.truncf %244 : vector<16x32xf32> to vector<16x32xbf16>
    %c0_95 = arith.constant 0 : index
    %c0_96 = arith.constant 0 : index
    %c0_97 = arith.constant 0 : index
    %246 = vector.load %arg12[%c0_95, %c0_96, %c0_97] : memref<1x32x32xbf16, #tpu.memory_space<vmem>>, vector<1x32x32xbf16>
    %247 = vector.shape_cast %246 : vector<1x32x32xbf16> to vector<32x32xbf16>
    %cst_98 = arith.constant dense<0.000000e+00> : vector<16x32xf32>
    %248 = tpu.matmul %245, %247, %cst_98 {dimension_numbers = #tpu.dot_dimension_numbers<[1], [0], [0], [1], [0, 0, 1, 1], [], []>} : vector<16x32xbf16>, vector<32x32xbf16>, vector<16x32xf32> -> vector<16x32xf32>
    %249 = arith.truncf %248 : vector<16x32xf32> to vector<16x32xbf16>
    %250 = arith.truncf %6 : vector<16x32xf32> to vector<16x32xbf16>
    %c0_99 = arith.constant 0 : index
    %c0_100 = arith.constant 0 : index
    %c0_101 = arith.constant 0 : index
    %251 = vector.load %arg13[%c0_99, %c0_100, %c0_101] : memref<1x32x64xbf16, #tpu.memory_space<vmem>>, vector<1x32x64xbf16>
    %252 = vector.shape_cast %251 : vector<1x32x64xbf16> to vector<32x64xbf16>
    %cst_102 = arith.constant dense<0.000000e+00> : vector<16x64xf32>
    %253 = tpu.matmul %250, %252, %cst_102 {dimension_numbers = #tpu.dot_dimension_numbers<[1], [0], [0], [1], [0, 0, 1, 1], [], []>} : vector<16x32xbf16>, vector<32x64xbf16>, vector<16x64xf32> -> vector<16x64xf32>
    %254 = vector.extract_strided_slice %253 {offsets = [0, 0], sizes = [16, 32], strides = [1, 1]} : vector<16x64xf32> to vector<16x32xf32>
    %255 = arith.truncf %254 : vector<16x32xf32> to vector<16x32xbf16>
    %256 = vector.extract_strided_slice %253 {offsets = [0, 32], sizes = [16, 32], strides = [1, 1]} : vector<16x64xf32> to vector<16x32xf32>
    %257 = arith.truncf %256 : vector<16x32xf32> to vector<16x32xbf16>
    %c0_103 = arith.constant 0 : index
    %c0_104 = arith.constant 0 : index
    %c0_105 = arith.constant 0 : index
    %258 = vector.load %arg5[%c0_103, %c0_104, %c0_105] : memref<2x1x8xf32, #tpu.memory_space<vmem>>, vector<1x1x8xf32>
    %259 = vector.shape_cast %258 : vector<1x1x8xf32> to vector<1x8xf32>
    %260 = vector.extract_strided_slice %249 {offsets = [0, 0], sizes = [8, 32], strides = [1, 1]} : vector<16x32xbf16> to vector<8x32xbf16>
    %261 = vector.extract_strided_slice %255 {offsets = [0, 0], sizes = [8, 32], strides = [1, 1]} : vector<16x32xbf16> to vector<8x32xbf16>
    %262 = vector.extract_strided_slice %257 {offsets = [0, 0], sizes = [8, 32], strides = [1, 1]} : vector<16x32xbf16> to vector<8x32xbf16>
    %263 = vector.extract_strided_slice %260 {offsets = [0, 0], sizes = [8, 8], strides = [1, 1]} : vector<8x32xbf16> to vector<8x8xbf16>
    %264 = vector.extract_strided_slice %261 {offsets = [0, 0], sizes = [8, 8], strides = [1, 1]} : vector<8x32xbf16> to vector<8x8xbf16>
    %cst_106 = arith.constant dense<0.000000e+00> : vector<8x8xf32>
    %265 = tpu.matmul %263, %264, %cst_106 {dimension_numbers = #tpu.dot_dimension_numbers<[1], [1], [0], [0], [0, 0, 1, 0], [], []>} : vector<8x8xbf16>, vector<8x8xbf16>, vector<8x8xf32> -> vector<8x8xf32>
    %cst_107 = arith.constant 0.353553385 : f32
    %266 = vector.broadcast %cst_107 : f32 to vector<8x8xf32>
    %267 = arith.mulf %265, %266 : vector<8x8xf32>
    %268 = vector.broadcast %259 : vector<1x8xf32> to vector<8x8xf32>
    %269 = arith.addf %267, %268 : vector<8x8xf32>
    %cst_108 = arith.constant dense<0xFF800000> : vector<8xf32>
    %270 = vector.multi_reduction <maximumf>, %269, %cst_108 [1] : vector<8x8xf32> to vector<8xf32>
    %271 = vector.shape_cast %270 : vector<8xf32> to vector<8x1xf32>
    %272 = vector.broadcast %271 : vector<8x1xf32> to vector<8x8xf32>
    %273 = arith.subf %269, %272 : vector<8x8xf32>
    %274 = math.exp %273 : vector<8x8xf32>
    %cst_109 = arith.constant dense<0.000000e+00> : vector<8xf32>
    %275 = vector.multi_reduction <add>, %274, %cst_109 [1] : vector<8x8xf32> to vector<8xf32>
    %276 = vector.shape_cast %275 : vector<8xf32> to vector<8x1xf32>
    %277 = tpu.reciprocal %276 {approx = true} : vector<8x1xf32> -> vector<8x1xf32>
    %278 = vector.broadcast %277 : vector<8x1xf32> to vector<8x8xf32>
    %279 = arith.mulf %274, %278 : vector<8x8xf32>
    %280 = arith.truncf %279 : vector<8x8xf32> to vector<8x8xbf16>
    %281 = vector.extract_strided_slice %262 {offsets = [0, 0], sizes = [8, 8], strides = [1, 1]} : vector<8x32xbf16> to vector<8x8xbf16>
    %cst_110 = arith.constant dense<0.000000e+00> : vector<8x8xf32>
    %282 = tpu.matmul %280, %281, %cst_110 {dimension_numbers = #tpu.dot_dimension_numbers<[1], [0], [0], [1], [0, 0, 1, 1], [], []>} : vector<8x8xbf16>, vector<8x8xbf16>, vector<8x8xf32> -> vector<8x8xf32>
    %c0_111 = arith.constant 0 : index
    %c0_112 = arith.constant 0 : index
    %283 = vector.load %arg22[%c0_111, %c0_112] : memref<16x32xf32, #tpu.memory_space<vmem>>, vector<8x8xf32>
    tpu.vector_store %arg22[%c0_111, %c0_112], %282 {strides = array<i32>} : memref<16x32xf32, #tpu.memory_space<vmem>>, vector<8x8xf32>,
    %284 = vector.extract_strided_slice %260 {offsets = [0, 8], sizes = [8, 8], strides = [1, 1]} : vector<8x32xbf16> to vector<8x8xbf16>
    %285 = vector.extract_strided_slice %261 {offsets = [0, 8], sizes = [8, 8], strides = [1, 1]} : vector<8x32xbf16> to vector<8x8xbf16>
    %cst_113 = arith.constant dense<0.000000e+00> : vector<8x8xf32>
    %286 = tpu.matmul %284, %285, %cst_113 {dimension_numbers = #tpu.dot_dimension_numbers<[1], [1], [0], [0], [0, 0, 1, 0], [], []>} : vector<8x8xbf16>, vector<8x8xbf16>, vector<8x8xf32> -> vector<8x8xf32>
    %cst_114 = arith.constant 0.353553385 : f32
    %287 = vector.broadcast %cst_114 : f32 to vector<8x8xf32>
    %288 = arith.mulf %286, %287 : vector<8x8xf32>
    %289 = vector.broadcast %259 : vector<1x8xf32> to vector<8x8xf32>
    %290 = arith.addf %288, %289 : vector<8x8xf32>
    %cst_115 = arith.constant dense<0xFF800000> : vector<8xf32>
    %291 = vector.multi_reduction <maximumf>, %290, %cst_115 [1] : vector<8x8xf32> to vector<8xf32>
    %292 = vector.shape_cast %291 : vector<8xf32> to vector<8x1xf32>
    %293 = vector.broadcast %292 : vector<8x1xf32> to vector<8x8xf32>
    %294 = arith.subf %290, %293 : vector<8x8xf32>
    %295 = math.exp %294 : vector<8x8xf32>
    %cst_116 = arith.constant dense<0.000000e+00> : vector<8xf32>
    %296 = vector.multi_reduction <add>, %295, %cst_116 [1] : vector<8x8xf32> to vector<8xf32>
    %297 = vector.shape_cast %296 : vector<8xf32> to vector<8x1xf32>
    %298 = tpu.reciprocal %297 {approx = true} : vector<8x1xf32> -> vector<8x1xf32>
    %299 = vector.broadcast %298 : vector<8x1xf32> to vector<8x8xf32>
    %300 = arith.mulf %295, %299 : vector<8x8xf32>
    %301 = arith.truncf %300 : vector<8x8xf32> to vector<8x8xbf16>
    %302 = vector.extract_strided_slice %262 {offsets = [0, 8], sizes = [8, 8], strides = [1, 1]} : vector<8x32xbf16> to vector<8x8xbf16>
    %cst_117 = arith.constant dense<0.000000e+00> : vector<8x8xf32>
    %303 = tpu.matmul %301, %302, %cst_117 {dimension_numbers = #tpu.dot_dimension_numbers<[1], [0], [0], [1], [0, 0, 1, 1], [], []>} : vector<8x8xbf16>, vector<8x8xbf16>, vector<8x8xf32> -> vector<8x8xf32>
    %c0_118 = arith.constant 0 : index
    %c8_119 = arith.constant 8 : index
    %304 = vector.load %arg22[%c0_118, %c8_119] : memref<16x32xf32, #tpu.memory_space<vmem>>, vector<8x8xf32>
    tpu.vector_store %arg22[%c0_118, %c8_119], %303 {strides = array<i32>} : memref<16x32xf32, #tpu.memory_space<vmem>>, vector<8x8xf32>,
    %305 = vector.extract_strided_slice %260 {offsets = [0, 16], sizes = [8, 8], strides = [1, 1]} : vector<8x32xbf16> to vector<8x8xbf16>
    %306 = vector.extract_strided_slice %261 {offsets = [0, 16], sizes = [8, 8], strides = [1, 1]} : vector<8x32xbf16> to vector<8x8xbf16>
    %cst_120 = arith.constant dense<0.000000e+00> : vector<8x8xf32>
    %307 = tpu.matmul %305, %306, %cst_120 {dimension_numbers = #tpu.dot_dimension_numbers<[1], [1], [0], [0], [0, 0, 1, 0], [], []>} : vector<8x8xbf16>, vector<8x8xbf16>, vector<8x8xf32> -> vector<8x8xf32>
    %cst_121 = arith.constant 0.353553385 : f32
    %308 = vector.broadcast %cst_121 : f32 to vector<8x8xf32>
    %309 = arith.mulf %307, %308 : vector<8x8xf32>
    %310 = vector.broadcast %259 : vector<1x8xf32> to vector<8x8xf32>
    %311 = arith.addf %309, %310 : vector<8x8xf32>
    %cst_122 = arith.constant dense<0xFF800000> : vector<8xf32>
    %312 = vector.multi_reduction <maximumf>, %311, %cst_122 [1] : vector<8x8xf32> to vector<8xf32>
    %313 = vector.shape_cast %312 : vector<8xf32> to vector<8x1xf32>
    %314 = vector.broadcast %313 : vector<8x1xf32> to vector<8x8xf32>
    %315 = arith.subf %311, %314 : vector<8x8xf32>
    %316 = math.exp %315 : vector<8x8xf32>
    %cst_123 = arith.constant dense<0.000000e+00> : vector<8xf32>
    %317 = vector.multi_reduction <add>, %316, %cst_123 [1] : vector<8x8xf32> to vector<8xf32>
    %318 = vector.shape_cast %317 : vector<8xf32> to vector<8x1xf32>
    %319 = tpu.reciprocal %318 {approx = true} : vector<8x1xf32> -> vector<8x1xf32>
    %320 = vector.broadcast %319 : vector<8x1xf32> to vector<8x8xf32>
    %321 = arith.mulf %316, %320 : vector<8x8xf32>
    %322 = arith.truncf %321 : vector<8x8xf32> to vector<8x8xbf16>
    %323 = vector.extract_strided_slice %262 {offsets = [0, 16], sizes = [8, 8], strides = [1, 1]} : vector<8x32xbf16> to vector<8x8xbf16>
    %cst_124 = arith.constant dense<0.000000e+00> : vector<8x8xf32>
    %324 = tpu.matmul %322, %323, %cst_124 {dimension_numbers = #tpu.dot_dimension_numbers<[1], [0], [0], [1], [0, 0, 1, 1], [], []>} : vector<8x8xbf16>, vector<8x8xbf16>, vector<8x8xf32> -> vector<8x8xf32>
    %c0_125 = arith.constant 0 : index
    %c16_126 = arith.constant 16 : index
    %325 = vector.load %arg22[%c0_125, %c16_126] : memref<16x32xf32, #tpu.memory_space<vmem>>, vector<8x8xf32>
    tpu.vector_store %arg22[%c0_125, %c16_126], %324 {strides = array<i32>} : memref<16x32xf32, #tpu.memory_space<vmem>>, vector<8x8xf32>,
    %326 = vector.extract_strided_slice %260 {offsets = [0, 24], sizes = [8, 8], strides = [1, 1]} : vector<8x32xbf16> to vector<8x8xbf16>
    %327 = vector.extract_strided_slice %261 {offsets = [0, 24], sizes = [8, 8], strides = [1, 1]} : vector<8x32xbf16> to vector<8x8xbf16>
    %cst_127 = arith.constant dense<0.000000e+00> : vector<8x8xf32>
    %328 = tpu.matmul %326, %327, %cst_127 {dimension_numbers = #tpu.dot_dimension_numbers<[1], [1], [0], [0], [0, 0, 1, 0], [], []>} : vector<8x8xbf16>, vector<8x8xbf16>, vector<8x8xf32> -> vector<8x8xf32>
    %cst_128 = arith.constant 0.353553385 : f32
    %329 = vector.broadcast %cst_128 : f32 to vector<8x8xf32>
    %330 = arith.mulf %328, %329 : vector<8x8xf32>
    %331 = vector.broadcast %259 : vector<1x8xf32> to vector<8x8xf32>
    %332 = arith.addf %330, %331 : vector<8x8xf32>
    %cst_129 = arith.constant dense<0xFF800000> : vector<8xf32>
    %333 = vector.multi_reduction <maximumf>, %332, %cst_129 [1] : vector<8x8xf32> to vector<8xf32>
    %334 = vector.shape_cast %333 : vector<8xf32> to vector<8x1xf32>
    %335 = vector.broadcast %334 : vector<8x1xf32> to vector<8x8xf32>
    %336 = arith.subf %332, %335 : vector<8x8xf32>
    %337 = math.exp %336 : vector<8x8xf32>
    %cst_130 = arith.constant dense<0.000000e+00> : vector<8xf32>
    %338 = vector.multi_reduction <add>, %337, %cst_130 [1] : vector<8x8xf32> to vector<8xf32>
    %339 = vector.shape_cast %338 : vector<8xf32> to vector<8x1xf32>
    %340 = tpu.reciprocal %339 {approx = true} : vector<8x1xf32> -> vector<8x1xf32>
    %341 = vector.broadcast %340 : vector<8x1xf32> to vector<8x8xf32>
    %342 = arith.mulf %337, %341 : vector<8x8xf32>
    %343 = arith.truncf %342 : vector<8x8xf32> to vector<8x8xbf16>
    %344 = vector.extract_strided_slice %262 {offsets = [0, 24], sizes = [8, 8], strides = [1, 1]} : vector<8x32xbf16> to vector<8x8xbf16>
    %cst_131 = arith.constant dense<0.000000e+00> : vector<8x8xf32>
    %345 = tpu.matmul %343, %344, %cst_131 {dimension_numbers = #tpu.dot_dimension_numbers<[1], [0], [0], [1], [0, 0, 1, 1], [], []>} : vector<8x8xbf16>, vector<8x8xbf16>, vector<8x8xf32> -> vector<8x8xf32>
    %c0_132 = arith.constant 0 : index
    %c24_133 = arith.constant 24 : index
    %346 = vector.load %arg22[%c0_132, %c24_133] : memref<16x32xf32, #tpu.memory_space<vmem>>, vector<8x8xf32>
    tpu.vector_store %arg22[%c0_132, %c24_133], %345 {strides = array<i32>} : memref<16x32xf32, #tpu.memory_space<vmem>>, vector<8x8xf32>,
    %c1_134 = arith.constant 1 : index
    %c0_135 = arith.constant 0 : index
    %c0_136 = arith.constant 0 : index
    %347 = vector.load %arg5[%c1_134, %c0_135, %c0_136] : memref<2x1x8xf32, #tpu.memory_space<vmem>>, vector<1x1x8xf32>
    %348 = vector.shape_cast %347 : vector<1x1x8xf32> to vector<1x8xf32>
    %349 = vector.extract_strided_slice %249 {offsets = [8, 0], sizes = [8, 32], strides = [1, 1]} : vector<16x32xbf16> to vector<8x32xbf16>
    %350 = vector.extract_strided_slice %255 {offsets = [8, 0], sizes = [8, 32], strides = [1, 1]} : vector<16x32xbf16> to vector<8x32xbf16>
    %351 = vector.extract_strided_slice %257 {offsets = [8, 0], sizes = [8, 32], strides = [1, 1]} : vector<16x32xbf16> to vector<8x32xbf16>
    %352 = vector.extract_strided_slice %349 {offsets = [0, 0], sizes = [8, 8], strides = [1, 1]} : vector<8x32xbf16> to vector<8x8xbf16>
    %353 = vector.extract_strided_slice %350 {offsets = [0, 0], sizes = [8, 8], strides = [1, 1]} : vector<8x32xbf16> to vector<8x8xbf16>
    %cst_137 = arith.constant dense<0.000000e+00> : vector<8x8xf32>
    %354 = tpu.matmul %352, %353, %cst_137 {dimension_numbers = #tpu.dot_dimension_numbers<[1], [1], [0], [0], [0, 0, 1, 0], [], []>} : vector<8x8xbf16>, vector<8x8xbf16>, vector<8x8xf32> -> vector<8x8xf32>
    %cst_138 = arith.constant 0.353553385 : f32
    %355 = vector.broadcast %cst_138 : f32 to vector<8x8xf32>
    %356 = arith.mulf %354, %355 : vector<8x8xf32>
    %357 = vector.broadcast %348 : vector<1x8xf32> to vector<8x8xf32>
    %358 = arith.addf %356, %357 : vector<8x8xf32>
    %cst_139 = arith.constant dense<0xFF800000> : vector<8xf32>
    %359 = vector.multi_reduction <maximumf>, %358, %cst_139 [1] : vector<8x8xf32> to vector<8xf32>
    %360 = vector.shape_cast %359 : vector<8xf32> to vector<8x1xf32>
    %361 = vector.broadcast %360 : vector<8x1xf32> to vector<8x8xf32>
    %362 = arith.subf %358, %361 : vector<8x8xf32>
    %363 = math.exp %362 : vector<8x8xf32>
    %cst_140 = arith.constant dense<0.000000e+00> : vector<8xf32>
    %364 = vector.multi_reduction <add>, %363, %cst_140 [1] : vector<8x8xf32> to vector<8xf32>
    %365 = vector.shape_cast %364 : vector<8xf32> to vector<8x1xf32>
    %366 = tpu.reciprocal %365 {approx = true} : vector<8x1xf32> -> vector<8x1xf32>
    %367 = vector.broadcast %366 : vector<8x1xf32> to vector<8x8xf32>
    %368 = arith.mulf %363, %367 : vector<8x8xf32>
    %369 = arith.truncf %368 : vector<8x8xf32> to vector<8x8xbf16>
    %370 = vector.extract_strided_slice %351 {offsets = [0, 0], sizes = [8, 8], strides = [1, 1]} : vector<8x32xbf16> to vector<8x8xbf16>
    %cst_141 = arith.constant dense<0.000000e+00> : vector<8x8xf32>
    %371 = tpu.matmul %369, %370, %cst_141 {dimension_numbers = #tpu.dot_dimension_numbers<[1], [0], [0], [1], [0, 0, 1, 1], [], []>} : vector<8x8xbf16>, vector<8x8xbf16>, vector<8x8xf32> -> vector<8x8xf32>
    %c8_142 = arith.constant 8 : index
    %c0_143 = arith.constant 0 : index
    %372 = vector.load %arg22[%c8_142, %c0_143] : memref<16x32xf32, #tpu.memory_space<vmem>>, vector<8x8xf32>
    tpu.vector_store %arg22[%c8_142, %c0_143], %371 {strides = array<i32>} : memref<16x32xf32, #tpu.memory_space<vmem>>, vector<8x8xf32>,
    %373 = vector.extract_strided_slice %349 {offsets = [0, 8], sizes = [8, 8], strides = [1, 1]} : vector<8x32xbf16> to vector<8x8xbf16>
    %374 = vector.extract_strided_slice %350 {offsets = [0, 8], sizes = [8, 8], strides = [1, 1]} : vector<8x32xbf16> to vector<8x8xbf16>
    %cst_144 = arith.constant dense<0.000000e+00> : vector<8x8xf32>
    %375 = tpu.matmul %373, %374, %cst_144 {dimension_numbers = #tpu.dot_dimension_numbers<[1], [1], [0], [0], [0, 0, 1, 0], [], []>} : vector<8x8xbf16>, vector<8x8xbf16>, vector<8x8xf32> -> vector<8x8xf32>
    %cst_145 = arith.constant 0.353553385 : f32
    %376 = vector.broadcast %cst_145 : f32 to vector<8x8xf32>
    %377 = arith.mulf %375, %376 : vector<8x8xf32>
    %378 = vector.broadcast %348 : vector<1x8xf32> to vector<8x8xf32>
    %379 = arith.addf %377, %378 : vector<8x8xf32>
    %cst_146 = arith.constant dense<0xFF800000> : vector<8xf32>
    %380 = vector.multi_reduction <maximumf>, %379, %cst_146 [1] : vector<8x8xf32> to vector<8xf32>
    %381 = vector.shape_cast %380 : vector<8xf32> to vector<8x1xf32>
    %382 = vector.broadcast %381 : vector<8x1xf32> to vector<8x8xf32>
    %383 = arith.subf %379, %382 : vector<8x8xf32>
    %384 = math.exp %383 : vector<8x8xf32>
    %cst_147 = arith.constant dense<0.000000e+00> : vector<8xf32>
    %385 = vector.multi_reduction <add>, %384, %cst_147 [1] : vector<8x8xf32> to vector<8xf32>
    %386 = vector.shape_cast %385 : vector<8xf32> to vector<8x1xf32>
    %387 = tpu.reciprocal %386 {approx = true} : vector<8x1xf32> -> vector<8x1xf32>
    %388 = vector.broadcast %387 : vector<8x1xf32> to vector<8x8xf32>
    %389 = arith.mulf %384, %388 : vector<8x8xf32>
    %390 = arith.truncf %389 : vector<8x8xf32> to vector<8x8xbf16>
    %391 = vector.extract_strided_slice %351 {offsets = [0, 8], sizes = [8, 8], strides = [1, 1]} : vector<8x32xbf16> to vector<8x8xbf16>
    %cst_148 = arith.constant dense<0.000000e+00> : vector<8x8xf32>
    %392 = tpu.matmul %390, %391, %cst_148 {dimension_numbers = #tpu.dot_dimension_numbers<[1], [0], [0], [1], [0, 0, 1, 1], [], []>} : vector<8x8xbf16>, vector<8x8xbf16>, vector<8x8xf32> -> vector<8x8xf32>
    %c8_149 = arith.constant 8 : index
    %c8_150 = arith.constant 8 : index
    %393 = vector.load %arg22[%c8_149, %c8_150] : memref<16x32xf32, #tpu.memory_space<vmem>>, vector<8x8xf32>
    tpu.vector_store %arg22[%c8_149, %c8_150], %392 {strides = array<i32>} : memref<16x32xf32, #tpu.memory_space<vmem>>, vector<8x8xf32>,
    %394 = vector.extract_strided_slice %349 {offsets = [0, 16], sizes = [8, 8], strides = [1, 1]} : vector<8x32xbf16> to vector<8x8xbf16>
    %395 = vector.extract_strided_slice %350 {offsets = [0, 16], sizes = [8, 8], strides = [1, 1]} : vector<8x32xbf16> to vector<8x8xbf16>
    %cst_151 = arith.constant dense<0.000000e+00> : vector<8x8xf32>
    %396 = tpu.matmul %394, %395, %cst_151 {dimension_numbers = #tpu.dot_dimension_numbers<[1], [1], [0], [0], [0, 0, 1, 0], [], []>} : vector<8x8xbf16>, vector<8x8xbf16>, vector<8x8xf32> -> vector<8x8xf32>
    %cst_152 = arith.constant 0.353553385 : f32
    %397 = vector.broadcast %cst_152 : f32 to vector<8x8xf32>
    %398 = arith.mulf %396, %397 : vector<8x8xf32>
    %399 = vector.broadcast %348 : vector<1x8xf32> to vector<8x8xf32>
    %400 = arith.addf %398, %399 : vector<8x8xf32>
    %cst_153 = arith.constant dense<0xFF800000> : vector<8xf32>
    %401 = vector.multi_reduction <maximumf>, %400, %cst_153 [1] : vector<8x8xf32> to vector<8xf32>
    %402 = vector.shape_cast %401 : vector<8xf32> to vector<8x1xf32>
    %403 = vector.broadcast %402 : vector<8x1xf32> to vector<8x8xf32>
    %404 = arith.subf %400, %403 : vector<8x8xf32>
    %405 = math.exp %404 : vector<8x8xf32>
    %cst_154 = arith.constant dense<0.000000e+00> : vector<8xf32>
    %406 = vector.multi_reduction <add>, %405, %cst_154 [1] : vector<8x8xf32> to vector<8xf32>
    %407 = vector.shape_cast %406 : vector<8xf32> to vector<8x1xf32>
    %408 = tpu.reciprocal %407 {approx = true} : vector<8x1xf32> -> vector<8x1xf32>
    %409 = vector.broadcast %408 : vector<8x1xf32> to vector<8x8xf32>
    %410 = arith.mulf %405, %409 : vector<8x8xf32>
    %411 = arith.truncf %410 : vector<8x8xf32> to vector<8x8xbf16>
    %412 = vector.extract_strided_slice %351 {offsets = [0, 16], sizes = [8, 8], strides = [1, 1]} : vector<8x32xbf16> to vector<8x8xbf16>
    %cst_155 = arith.constant dense<0.000000e+00> : vector<8x8xf32>
    %413 = tpu.matmul %411, %412, %cst_155 {dimension_numbers = #tpu.dot_dimension_numbers<[1], [0], [0], [1], [0, 0, 1, 1], [], []>} : vector<8x8xbf16>, vector<8x8xbf16>, vector<8x8xf32> -> vector<8x8xf32>
    %c8_156 = arith.constant 8 : index
    %c16_157 = arith.constant 16 : index
    %414 = vector.load %arg22[%c8_156, %c16_157] : memref<16x32xf32, #tpu.memory_space<vmem>>, vector<8x8xf32>
    tpu.vector_store %arg22[%c8_156, %c16_157], %413 {strides = array<i32>} : memref<16x32xf32, #tpu.memory_space<vmem>>, vector<8x8xf32>,
    %415 = vector.extract_strided_slice %349 {offsets = [0, 24], sizes = [8, 8], strides = [1, 1]} : vector<8x32xbf16> to vector<8x8xbf16>
    %416 = vector.extract_strided_slice %350 {offsets = [0, 24], sizes = [8, 8], strides = [1, 1]} : vector<8x32xbf16> to vector<8x8xbf16>
    %cst_158 = arith.constant dense<0.000000e+00> : vector<8x8xf32>
    %417 = tpu.matmul %415, %416, %cst_158 {dimension_numbers = #tpu.dot_dimension_numbers<[1], [1], [0], [0], [0, 0, 1, 0], [], []>} : vector<8x8xbf16>, vector<8x8xbf16>, vector<8x8xf32> -> vector<8x8xf32>
    %cst_159 = arith.constant 0.353553385 : f32
    %418 = vector.broadcast %cst_159 : f32 to vector<8x8xf32>
    %419 = arith.mulf %417, %418 : vector<8x8xf32>
    %420 = vector.broadcast %348 : vector<1x8xf32> to vector<8x8xf32>
    %421 = arith.addf %419, %420 : vector<8x8xf32>
    %cst_160 = arith.constant dense<0xFF800000> : vector<8xf32>
    %422 = vector.multi_reduction <maximumf>, %421, %cst_160 [1] : vector<8x8xf32> to vector<8xf32>
    %423 = vector.shape_cast %422 : vector<8xf32> to vector<8x1xf32>
    %424 = vector.broadcast %423 : vector<8x1xf32> to vector<8x8xf32>
    %425 = arith.subf %421, %424 : vector<8x8xf32>
    %426 = math.exp %425 : vector<8x8xf32>
    %cst_161 = arith.constant dense<0.000000e+00> : vector<8xf32>
    %427 = vector.multi_reduction <add>, %426, %cst_161 [1] : vector<8x8xf32> to vector<8xf32>
    %428 = vector.shape_cast %427 : vector<8xf32> to vector<8x1xf32>
    %429 = tpu.reciprocal %428 {approx = true} : vector<8x1xf32> -> vector<8x1xf32>
    %430 = vector.broadcast %429 : vector<8x1xf32> to vector<8x8xf32>
    %431 = arith.mulf %426, %430 : vector<8x8xf32>
    %432 = arith.truncf %431 : vector<8x8xf32> to vector<8x8xbf16>
    %433 = vector.extract_strided_slice %351 {offsets = [0, 24], sizes = [8, 8], strides = [1, 1]} : vector<8x32xbf16> to vector<8x8xbf16>
    %cst_162 = arith.constant dense<0.000000e+00> : vector<8x8xf32>
    %434 = tpu.matmul %432, %433, %cst_162 {dimension_numbers = #tpu.dot_dimension_numbers<[1], [0], [0], [1], [0, 0, 1, 1], [], []>} : vector<8x8xbf16>, vector<8x8xbf16>, vector<8x8xf32> -> vector<8x8xf32>
    %c8_163 = arith.constant 8 : index
    %c24_164 = arith.constant 24 : index
    %435 = vector.load %arg22[%c8_163, %c24_164] : memref<16x32xf32, #tpu.memory_space<vmem>>, vector<8x8xf32>
    tpu.vector_store %arg22[%c8_163, %c24_164], %434 {strides = array<i32>} : memref<16x32xf32, #tpu.memory_space<vmem>>, vector<8x8xf32>,
    %c0_165 = arith.constant 0 : index
    %c0_166 = arith.constant 0 : index
    %436 = vector.load %arg22[%c0_165, %c0_166] : memref<16x32xf32, #tpu.memory_space<vmem>>, vector<16x32xf32>
    %437 = arith.truncf %436 : vector<16x32xf32> to vector<16x32xbf16>
    %c0_167 = arith.constant 0 : index
    %c0_168 = arith.constant 0 : index
    %c0_169 = arith.constant 0 : index
    %438 = vector.load %arg14[%c0_167, %c0_168, %c0_169] : memref<1x32x32xbf16, #tpu.memory_space<vmem>>, vector<1x32x32xbf16>
    %439 = vector.shape_cast %438 : vector<1x32x32xbf16> to vector<32x32xbf16>
    %cst_170 = arith.constant dense<0.000000e+00> : vector<16x32xf32>
    %440 = tpu.matmul %437, %439, %cst_170 {dimension_numbers = #tpu.dot_dimension_numbers<[1], [0], [0], [1], [0, 0, 1, 1], [], []>} : vector<16x32xbf16>, vector<32x32xbf16>, vector<16x32xf32> -> vector<16x32xf32>
    %441 = arith.addf %218, %440 : vector<16x32xf32>
    %c0_171 = arith.constant 0 : index
    %c0_172 = arith.constant 0 : index
    %c0_173 = arith.constant 0 : index
    %442 = vector.load %arg15[%c0_171, %c0_172, %c0_173] : memref<1x1x32xf32, #tpu.memory_space<vmem>>, vector<1x1x32xf32>
    %443 = vector.shape_cast %442 : vector<1x1x32xf32> to vector<1x32xf32>
    %c0_174 = arith.constant 0 : index
    %c0_175 = arith.constant 0 : index
    %c0_176 = arith.constant 0 : index
    %444 = vector.load %arg16[%c0_174, %c0_175, %c0_176] : memref<1x1x32xf32, #tpu.memory_space<vmem>>, vector<1x1x32xf32>
    %445 = vector.shape_cast %444 : vector<1x1x32xf32> to vector<1x32xf32>
    %cst_177 = arith.constant dense<0.000000e+00> : vector<16xf32>
    %446 = vector.multi_reduction <add>, %441, %cst_177 [1] : vector<16x32xf32> to vector<16xf32>
    %447 = vector.shape_cast %446 : vector<16xf32> to vector<16x1xf32>
    %cst_178 = arith.constant 3.200000e+01 : f32
    %448 = vector.broadcast %cst_178 : f32 to vector<16x1xf32>
    %449 = arith.divf %447, %448 : vector<16x1xf32>
    %450 = vector.broadcast %449 : vector<16x1xf32> to vector<16x32xf32>
    %451 = arith.subf %441, %450 : vector<16x32xf32>
    %452 = arith.mulf %451, %451 : vector<16x32xf32>
    %cst_179 = arith.constant dense<0.000000e+00> : vector<16xf32>
    %453 = vector.multi_reduction <add>, %452, %cst_179 [1] : vector<16x32xf32> to vector<16xf32>
    %454 = vector.shape_cast %453 : vector<16xf32> to vector<16x1xf32>
    %cst_180 = arith.constant 3.200000e+01 : f32
    %455 = vector.broadcast %cst_180 : f32 to vector<16x1xf32>
    %456 = arith.divf %454, %455 : vector<16x1xf32>
    %457 = vector.broadcast %449 : vector<16x1xf32> to vector<16x32xf32>
    %458 = arith.subf %441, %457 : vector<16x32xf32>
    %cst_181 = arith.constant 9.99999974E-6 : f32
    %459 = vector.broadcast %cst_181 : f32 to vector<16x1xf32>
    %460 = arith.addf %456, %459 : vector<16x1xf32>
    %461 = math.rsqrt %460 : vector<16x1xf32>
    %462 = vector.broadcast %461 : vector<16x1xf32> to vector<16x32xf32>
    %463 = arith.mulf %458, %462 : vector<16x32xf32>
    %464 = vector.broadcast %443 : vector<1x32xf32> to vector<16x32xf32>
    %465 = arith.mulf %463, %464 : vector<16x32xf32>
    %466 = vector.broadcast %445 : vector<1x32xf32> to vector<16x32xf32>
    %467 = arith.addf %465, %466 : vector<16x32xf32>
    %c0_182 = arith.constant 0 : index
    %c0_183 = arith.constant 0 : index
    %c0_184 = arith.constant 0 : index
    %468 = vector.load %arg17[%c0_182, %c0_183, %c0_184] : memref<1x32x64xbf16, #tpu.memory_space<vmem>>, vector<1x32x64xbf16>
    %469 = vector.shape_cast %468 : vector<1x32x64xbf16> to vector<32x64xbf16>
    %c0_185 = arith.constant 0 : index
    %c0_186 = arith.constant 0 : index
    %c0_187 = arith.constant 0 : index
    %470 = vector.load %arg18[%c0_185, %c0_186, %c0_187] : memref<1x1x64xf32, #tpu.memory_space<vmem>>, vector<1x1x64xf32>
    %471 = vector.shape_cast %470 : vector<1x1x64xf32> to vector<1x64xf32>
    %c0_188 = arith.constant 0 : index
    %c0_189 = arith.constant 0 : index
    %c0_190 = arith.constant 0 : index
    %472 = vector.load %arg19[%c0_188, %c0_189, %c0_190] : memref<1x64x32xbf16, #tpu.memory_space<vmem>>, vector<1x64x32xbf16>
    %473 = vector.shape_cast %472 : vector<1x64x32xbf16> to vector<64x32xbf16>
    %c0_191 = arith.constant 0 : index
    %c0_192 = arith.constant 0 : index
    %c0_193 = arith.constant 0 : index
    %474 = vector.load %arg20[%c0_191, %c0_192, %c0_193] : memref<1x1x32xf32, #tpu.memory_space<vmem>>, vector<1x1x32xf32>
    %475 = vector.shape_cast %474 : vector<1x1x32xf32> to vector<1x32xf32>
    %476 = arith.truncf %467 : vector<16x32xf32> to vector<16x32xbf16>
    %cst_194 = arith.constant dense<0.000000e+00> : vector<16x64xf32>
    %477 = tpu.matmul %476, %469, %cst_194 {dimension_numbers = #tpu.dot_dimension_numbers<[1], [0], [0], [1], [0, 0, 1, 1], [], []>} : vector<16x32xbf16>, vector<32x64xbf16>, vector<16x64xf32> -> vector<16x64xf32>
    %478 = vector.broadcast %471 : vector<1x64xf32> to vector<16x64xf32>
    %479 = arith.addf %477, %478 : vector<16x64xf32>
    %cst_195 = arith.constant 5.000000e-01 : f32
    %480 = vector.broadcast %cst_195 : f32 to vector<16x64xf32>
    %481 = arith.mulf %480, %479 : vector<16x64xf32>
    %cst_196 = arith.constant 4.471500e-02 : f32
    %482 = vector.broadcast %cst_196 : f32 to vector<16x64xf32>
    %483 = arith.mulf %482, %479 : vector<16x64xf32>
    %484 = arith.mulf %483, %479 : vector<16x64xf32>
    %485 = arith.mulf %484, %479 : vector<16x64xf32>
    %486 = arith.addf %479, %485 : vector<16x64xf32>
    %cst_197 = arith.constant 0.797884583 : f32
    %487 = vector.broadcast %cst_197 : f32 to vector<16x64xf32>
    %488 = arith.mulf %487, %486 : vector<16x64xf32>
    %489 = math.tanh %488 : vector<16x64xf32>
    %cst_198 = arith.constant 1.000000e+00 : f32
    %490 = vector.broadcast %cst_198 : f32 to vector<16x64xf32>
    %491 = arith.addf %490, %489 : vector<16x64xf32>
    %492 = arith.mulf %481, %491 : vector<16x64xf32>
    %493 = arith.truncf %492 : vector<16x64xf32> to vector<16x64xbf16>
    %cst_199 = arith.constant dense<0.000000e+00> : vector<16x32xf32>
    %494 = tpu.matmul %493, %473, %cst_199 {dimension_numbers = #tpu.dot_dimension_numbers<[1], [0], [0], [1], [0, 0, 1, 1], [], []>} : vector<16x64xbf16>, vector<64x32xbf16>, vector<16x32xf32> -> vector<16x32xf32>
    %495 = vector.broadcast %475 : vector<1x32xf32> to vector<16x32xf32>
    %496 = arith.addf %494, %495 : vector<16x32xf32>
    %497 = arith.addf %441, %496 : vector<16x32xf32>
    %498 = vector.shape_cast %497 : vector<16x32xf32> to vector<2x8x32xf32>
    %c0_200 = arith.constant 0 : index
    %c0_201 = arith.constant 0 : index
    %c0_202 = arith.constant 0 : index
    %499 = vector.load %arg21[%c0_200, %c0_201, %c0_202] : memref<2x8x32xf32, #tpu.memory_space<vmem>>, vector<2x8x32xf32>
    tpu.vector_store %arg21[%c0_200, %c0_201, %c0_202], %498 {strides = array<i32>} : memref<2x8x32xf32, #tpu.memory_space<vmem>>, vector<2x8x32xf32>,
    return
  }
  func.func @transform_0(%arg0: i32, %arg1: i32) -> (i32, i32, i32) {
    %c0_i32 = arith.constant 0 : i32
    %c0_i32_0 = arith.constant 0 : i32
    %c0_i32_1 = arith.constant 0 : i32
    return %arg0, %c0_i32, %c0_i32_0 : i32, i32, i32
  }
  func.func @transform_1(%arg0: i32, %arg1: i32) -> (i32, i32, i32) {
    %c0_i32 = arith.constant 0 : i32
    %c0_i32_0 = arith.constant 0 : i32
    %c0_i32_1 = arith.constant 0 : i32
    return %arg0, %c0_i32, %c0_i32_0 : i32, i32, i32
  }
  func.func @transform_2(%arg0: i32, %arg1: i32) -> (i32, i32, i32) {
    %c0_i32 = arith.constant 0 : i32
    %c0_i32_0 = arith.constant 0 : i32
    %c0_i32_1 = arith.constant 0 : i32
    return %arg0, %c0_i32, %c0_i32_0 : i32, i32, i32
  }
  func.func @transform_3(%arg0: i32, %arg1: i32) -> (i32, i32, i32) {
    %c0_i32 = arith.constant 0 : i32
    %c0_i32_0 = arith.constant 0 : i32
    %c0_i32_1 = arith.constant 0 : i32
    return %arg0, %c0_i32, %c0_i32_0 : i32, i32, i32
  }
  func.func @transform_4(%arg0: i32, %arg1: i32) -> (i32, i32, i32) {
    %c0_i32 = arith.constant 0 : i32
    %c0_i32_0 = arith.constant 0 : i32
    %c0_i32_1 = arith.constant 0 : i32
    return %arg1, %c0_i32, %c0_i32_0 : i32, i32, i32
  }
  func.func @transform_5(%arg0: i32, %arg1: i32) -> (i32, i32, i32) {
    %c0_i32 = arith.constant 0 : i32
    %c0_i32_0 = arith.constant 0 : i32
    %c0_i32_1 = arith.constant 0 : i32
    return %arg1, %c0_i32, %c0_i32_0 : i32, i32, i32
  }
  func.func @transform_6(%arg0: i32, %arg1: i32) -> (i32, i32, i32) {
    %c0_i32 = arith.constant 0 : i32
    %c0_i32_0 = arith.constant 0 : i32
    %c0_i32_1 = arith.constant 0 : i32
    return %arg1, %c0_i32, %c0_i32_0 : i32, i32, i32
  }
  func.func @transform_7(%arg0: i32, %arg1: i32) -> (i32, i32, i32) {
    %c0_i32 = arith.constant 0 : i32
    %c0_i32_0 = arith.constant 0 : i32
    %c0_i32_1 = arith.constant 0 : i32
    return %arg1, %c0_i32, %c0_i32_0 : i32, i32, i32
  }
  func.func @transform_8(%arg0: i32, %arg1: i32) -> (i32, i32, i32) {
    %c0_i32 = arith.constant 0 : i32
    %c0_i32_0 = arith.constant 0 : i32
    %c0_i32_1 = arith.constant 0 : i32
    return %arg1, %c0_i32, %c0_i32_0 : i32, i32, i32
  }
  func.func @transform_9(%arg0: i32, %arg1: i32) -> (i32, i32, i32) {
    %c0_i32 = arith.constant 0 : i32
    %c0_i32_0 = arith.constant 0 : i32
    %c0_i32_1 = arith.constant 0 : i32
    return %arg1, %c0_i32, %c0_i32_0 : i32, i32, i32
  }
  func.func @transform_10(%arg0: i32, %arg1: i32) -> (i32, i32, i32) {
    %c0_i32 = arith.constant 0 : i32
    %c0_i32_0 = arith.constant 0 : i32
    %c0_i32_1 = arith.constant 0 : i32
    return %arg1, %c0_i32, %c0_i32_0 : i32, i32, i32
  }
  func.func @transform_11(%arg0: i32, %arg1: i32) -> (i32, i32, i32) {
    %c0_i32 = arith.constant 0 : i32
    %c0_i32_0 = arith.constant 0 : i32
    %c0_i32_1 = arith.constant 0 : i32
    return %arg1, %c0_i32, %c0_i32_0 : i32, i32, i32
  }
  func.func @transform_12(%arg0: i32, %arg1: i32) -> (i32, i32, i32) {
    %c0_i32 = arith.constant 0 : i32
    %c0_i32_0 = arith.constant 0 : i32
    %c0_i32_1 = arith.constant 0 : i32
    return %arg1, %c0_i32, %c0_i32_0 : i32, i32, i32
  }
  func.func @transform_13(%arg0: i32, %arg1: i32) -> (i32, i32, i32) {
    %c0_i32 = arith.constant 0 : i32
    %c0_i32_0 = arith.constant 0 : i32
    %c0_i32_1 = arith.constant 0 : i32
    return %arg1, %c0_i32, %c0_i32_0 : i32, i32, i32
  }
  func.func @transform_14(%arg0: i32, %arg1: i32) -> (i32, i32, i32) {
    %c0_i32 = arith.constant 0 : i32
    %c0_i32_0 = arith.constant 0 : i32
    %c0_i32_1 = arith.constant 0 : i32
    return %arg1, %c0_i32, %c0_i32_0 : i32, i32, i32
  }
  func.func @transform_15(%arg0: i32, %arg1: i32) -> (i32, i32, i32) {
    %c0_i32 = arith.constant 0 : i32
    %c0_i32_0 = arith.constant 0 : i32
    %c0_i32_1 = arith.constant 0 : i32
    return %arg1, %c0_i32, %c0_i32_0 : i32, i32, i32
  }
  func.func @transform_16(%arg0: i32, %arg1: i32) -> (i32, i32, i32) {
    %c0_i32 = arith.constant 0 : i32
    %c0_i32_0 = arith.constant 0 : i32
    %c0_i32_1 = arith.constant 0 : i32
    return %arg1, %c0_i32, %c0_i32_0 : i32, i32, i32
  }
  func.func @transform_17(%arg0: i32, %arg1: i32) -> (i32, i32, i32) {
    %c0_i32 = arith.constant 0 : i32
    %c0_i32_0 = arith.constant 0 : i32
    %c0_i32_1 = arith.constant 0 : i32
    return %arg1, %c0_i32, %c0_i32_0 : i32, i32, i32
  }
  func.func @transform_18(%arg0: i32, %arg1: i32) -> (i32, i32, i32) {
    %c0_i32 = arith.constant 0 : i32
    %c0_i32_0 = arith.constant 0 : i32
    %c0_i32_1 = arith.constant 0 : i32
    return %arg1, %c0_i32, %c0_i32_0 : i32, i32, i32
  }
  func.func @transform_19(%arg0: i32, %arg1: i32) -> (i32, i32, i32) {
    %c0_i32 = arith.constant 0 : i32
    %c0_i32_0 = arith.constant 0 : i32
    %c0_i32_1 = arith.constant 0 : i32
    return %arg0, %c0_i32, %c0_i32_0 : i32, i32, i32
  }
}

</mosaic_0001>

<llo_original>
// kernel: transformer_forward.5
$region0: #{transformer_forward.5}
  #allocation0 [shape = 'u32[]', space=smem, size = 0x4, offset = 0x4, fixed_abs, tag = 'smem constant byte address 0x4 - core index']
  #allocation1 [shape = 'u32[144,128]{1,0:T(1,128)}', space=vmem, size = 0x12000, scoped, tag = 'internal scratch']
  %s0 = inlined_call_operand.hbm [shape: f32[16,32], index: 0, kind: input, shape index: {}]
  %s1 = inlined_call_operand.hbm [shape: f32[1,32], index: 1, kind: input, shape index: {}]
  %s2 = inlined_call_operand.hbm [shape: f32[1,32], index: 2, kind: input, shape index: {}]
  %s3 = inlined_call_operand.hbm [shape: bf16[32,50], index: 3, kind: input, shape index: {}]
  %s4 = inlined_call_operand.hbm [shape: f32[1,50], index: 4, kind: input, shape index: {}]
  %s5 = inlined_call_operand.hbm [shape: f32[16,50], index: 5, kind: output, shape index: {}]
  %s6 = sld [smem:[#allocation0]]
  $region50: #{transformer_forward.5} parent=0
    _
  %s8 = ssub.s32 1, %s6
  %s9 = scalar_select 0, %s8, %s6
  $region1: #{transformer_forward.5} parent=0
    #allocation2 [shape = 'u8[8192]{0}', space=vmem, size = 0x2000, scoped, tag = 'input window, operand 0, single buffered']
    #allocation3 [shape = 's32[1]{0}', space=sflag, size = 0x4, scoped, tag = 'scoped memory for transformer_forward.5']
    #allocation4 [shape = 's32[1]{0}', space=sflag, size = 0x4, scoped, tag = 'scoped memory for transformer_forward.5']
    #allocation5 [shape = 'u8[512]{0}', space=vmem, size = 0x400, scoped, tag = 'input window, operand 1, single buffered']
    #allocation6 [shape = 's32[1]{0}', space=sflag, size = 0x4, scoped, tag = 'scoped memory for transformer_forward.5']
    #allocation7 [shape = 'u8[512]{0}', space=vmem, size = 0x400, scoped, tag = 'input window, operand 2, single buffered']
    #allocation8 [shape = 'u8[8192]{0}', space=vmem, size = 0x2000, scoped, tag = 'input window, operand 3, single buffered']
    #allocation9 [shape = 's32[1]{0}', space=sflag, size = 0x4, scoped, tag = 'scoped memory for transformer_forward.5']
    #allocation10 [shape = 'u8[512]{0}', space=vmem, size = 0x400, scoped, tag = 'input window, operand 4, single buffered']
    #allocation11 [shape = 'u8[8192]{0}', space=vmem, size = 0x2000, scoped, tag = 'output window, operand 0, single buffered']
    %10 = vsyncpa [#allocation3], 0
    %11 = vsyncpa [#allocation6], 0
    %12 = vsyncpa [#allocation9], 0
    %13 = vsyncpa [#allocation4], 0
    // Predicated region
    $region2: #{transformer_forward.5} parent=1 // pred_check
      _
    $region3: #{transformer_forward.5} parent=1 // pred_check_branch
      %15 = sbr.rel (0) target = $region5
    $region4: #{transformer_forward.5} parent=1 // pred_region
      %s17 = ssub.s32 256, 256
      %18 = vsyncadd [#allocation3], %s17
      %s19 = sshll.u32 [#allocation2], 4
      %s20 = int_to_ptr.vmem [resolvable:$true] %s19
      %25 = dma.hbm_to_vmem [thread:$0]  %s0, 256, %s20, [#allocation3], 128, 128, 8
    $region5: #{transformer_forward.5} parent=1 // pred_fallthru
      _
    // Predicated region
    $region6: #{transformer_forward.5} parent=1 // pred_check
      _
    $region7: #{transformer_forward.5} parent=1 // pred_check_branch
      %27 = sbr.rel (0) target = $region9
    $region8: #{transformer_forward.5} parent=1 // pred_region
      %s29 = ssub.s32 16, 16
      %30 = vsyncadd [#allocation6], %s29
      %s32 = sshll.u32 [#allocation5], 4
      %s33 = int_to_ptr.vmem [resolvable:$true] %s32
      %35 = dma.hbm_to_vmem [thread:$0]  %s1, 16, %s33, [#allocation6]
    $region9: #{transformer_forward.5} parent=1 // pred_fallthru
      _
    // Predicated region
    $region10: #{transformer_forward.5} parent=1 // pred_check
      _
    $region11: #{transformer_forward.5} parent=1 // pred_check_branch
      %37 = sbr.rel (0) target = $region13
    $region12: #{transformer_forward.5} parent=1 // pred_region
      %s39 = ssub.s32 16, 16
      %40 = vsyncadd [#allocation6], %s39
      %s42 = sshll.u32 [#allocation7], 4
      %s43 = int_to_ptr.vmem [resolvable:$true] %s42
      %45 = dma.hbm_to_vmem [thread:$0]  %s2, 16, %s43, [#allocation6]
    $region13: #{transformer_forward.5} parent=1 // pred_fallthru
      _
    // Predicated region
    $region14: #{transformer_forward.5} parent=1 // pred_check
      _
    $region15: #{transformer_forward.5} parent=1 // pred_check_branch
      %47 = sbr.rel (0) target = $region17
    $region16: #{transformer_forward.5} parent=1 // pred_region
      %s49 = ssub.s32 256, 256
      %50 = vsyncadd [#allocation9], %s49
      %s51 = sshll.u32 [#allocation8], 4
      %s52 = int_to_ptr.vmem [resolvable:$true] %s51
      %57 = dma.hbm_to_vmem [thread:$0]  %s3, 256, %s52, [#allocation9], 64, 64, 4
    $region17: #{transformer_forward.5} parent=1 // pred_fallthru
      _
    // Predicated region
    $region18: #{transformer_forward.5} parent=1 // pred_check
      _
    $region19: #{transformer_forward.5} parent=1 // pred_check_branch
      %59 = sbr.rel (0) target = $region21
    $region20: #{transformer_forward.5} parent=1 // pred_region
      %s61 = ssub.s32 16, 16
      %62 = vsyncadd [#allocation9], %s61
      %s64 = sshll.u32 [#allocation10], 4
      %s65 = int_to_ptr.vmem [resolvable:$true] %s64
      %67 = dma.hbm_to_vmem [thread:$0]  %s4, 16, %s65, [#allocation9]
    $region21: #{transformer_forward.5} parent=1 // pred_fallthru
      _
    // Predicated region
    $region22: #{transformer_forward.5} parent=1 // pred_check
      _
    $region23: #{transformer_forward.5} parent=1 // pred_check_branch
      %69 = sbr.rel (0) target = $region25
    $region24: #{transformer_forward.5} parent=1 // pred_region
      %70 = dma.done [#allocation3], 256
    $region25: #{transformer_forward.5} parent=1 // pred_fallthru
      _
    // Predicated region
    $region26: #{transformer_forward.5} parent=1 // pred_check
      _
    $region27: #{transformer_forward.5} parent=1 // pred_check_branch
      %72 = sbr.rel (0) target = $region29
    $region28: #{transformer_forward.5} parent=1 // pred_region
      %73 = dma.done [#allocation6], 16
    $region29: #{transformer_forward.5} parent=1 // pred_fallthru
      _
    // Predicated region
    $region30: #{transformer_forward.5} parent=1 // pred_check
      _
    $region31: #{transformer_forward.5} parent=1 // pred_check_branch
      %75 = sbr.rel (0) target = $region33
    $region32: #{transformer_forward.5} parent=1 // pred_region
      %76 = dma.done [#allocation6], 16
    $region33: #{transformer_forward.5} parent=1 // pred_fallthru
      _
    // Predicated region
    $region34: #{transformer_forward.5} parent=1 // pred_check
      _
    $region35: #{transformer_forward.5} parent=1 // pred_check_branch
      %78 = sbr.rel (0) target = $region37
    $region36: #{transformer_forward.5} parent=1 // pred_region
      %79 = dma.done [#allocation9], 256
    $region37: #{transformer_forward.5} parent=1 // pred_fallthru
      _
    // Predicated region
    $region38: #{transformer_forward.5} parent=1 // pred_check
      _
    $region39: #{transformer_forward.5} parent=1 // pred_check_branch
      %81 = sbr.rel (0) target = $region41
    $region40: #{transformer_forward.5} parent=1 // pred_region
      %82 = dma.done [#allocation9], 16
    $region41: #{transformer_forward.5} parent=1 // pred_fallthru
      _
    %v84 = vld [vmem:[#allocation2] sm:$0xff]
    %v85 = vld [vmem:[#allocation2 + $0x8] sm:$0xff]
    %v86 = vld [vmem:[#allocation5] sm:$0x1]
    %v87 = vld [vmem:[#allocation7] sm:$0x1]
    %vm88 = vcmask 261120
    %v89 = vsel %vm88, %v84, 0.0
    %90 = vadd.xlane.f32.xlu0 %v89
    %v91 = vpop.xlane.xlu0 %90
    %v92 = vsel %vm88, %v85, 0.0
    %93 = vadd.xlane.f32.xlu0 %v92
    %v94 = vpop.xlane.xlu0 %93
    %v95 = vrcp.pop 32.0
    %v96 = vmul.f32 %v91, %v95
    %v97 = vmul.f32 %v94, %v95
    %v98 = vsub.f32 %v84, %v96
    %v99 = vsub.f32 %v85, %v97
    %v100 = vmul.f32 %v98, %v98
    %v101 = vmul.f32 %v99, %v99
    %v102 = vsel %vm88, %v100, 0.0
    %103 = vadd.xlane.f32.xlu0 %v102
    %v104 = vpop.xlane.xlu0 %103
    %v105 = vsel %vm88, %v101, 0.0
    %106 = vadd.xlane.f32.xlu0 %v105
    %v107 = vpop.xlane.xlu0 %106
    %v108 = vmul.f32 %v104, %v95
    %v109 = vmul.f32 %v107, %v95
    %v110 = vadd.f32 %v108, 1e-05
    %v111 = vadd.f32 %v109, 1e-05
    %v112 = vrsqrt.pop %v110
    %v113 = vrsqrt.pop %v111
    %v114 = vmul.f32 %v98, %v112
    %v115 = vmul.f32 %v99, %v113
    %v117 = vlaneseq
    %v118 = vshrl.u32 %v117, 7
    %v119 = vsub.s32 0, %v118
    %v120 = vrot.slane %v86, %v119
    %v122 = vmul.f32 %v114, %v120
    %v123 = vmul.f32 %v115, %v120
    %v125 = vlaneseq
    %v126 = vshrl.u32 %v125, 7
    %v127 = vsub.s32 0, %v126
    %v128 = vrot.slane %v87, %v127
    %v130 = vadd.f32 %v122, %v128
    %v131 = vadd.f32 %v123, %v128
    %v132 = vpack.c.bf16 %v131, %v130
    %v133 = vld [vmem:[#allocation8] sm:$0xf]
    %v134 = vld [vmem:[#allocation8 + $0x4] sm:$0xf]
    %v135 = vld [vmem:[#allocation8 + $0x8] sm:$0xf]
    %v136 = vld [vmem:[#allocation8 + $0xc] sm:$0xf]
    %v137 = vld [vmem:[#allocation10] sm:$0x1]
    %v139 = vlaneseq
    %v140 = vshrl.u32 %v139, 7
    %v141 = vsub.s32 0, %v140
    %v142 = vrot.slane %v137, %v141
    %v148 = vunpack.c.l.b16 %v133
    %v149 = vunpack.c.l.b16 %v134
    %v150 = vunpack.c.l.b16 %v135
    %v151 = vunpack.c.l.b16 %v136
    %v152 = vpack.c.b16 %v149, %v148
    %v153 = vpack.c.b16 %v151, %v150
    %v157 = vsel %vm88, %v132, 0
    %159 = vmatprep.subr.bf16.mxu0 0
    %160 = vmatpush1.bf16.msra.mxu0 %v152
    %161 = vmatprep.subr.bf16.mxu0 0
    %162 = vmatpush1.bf16.msra.mxu0 %v153
    %163 = vmatprep.subr.bf16.mxu0 0
    %164 = vmatpush1.bf16.msra.mxu0 0
    %165 = vmatprep.subr.bf16.mxu0 0
    %166 = vmatpush1.bf16.msra.mxu0 0
    %167 = vmatprep.subr.bf16.mxu0 0
    %168 = vmatpush1.bf16.msra.mxu0 0
    %169 = vmatprep.subr.bf16.mxu0 0
    %170 = vmatpush1.bf16.msra.mxu0 0
    %171 = vmatprep.subr.bf16.mxu0 0
    %172 = vmatpush1.bf16.msra.mxu0 0
    %173 = vmatprep.subr.bf16.mxu0 0
    %174 = vmatpush1.bf16.msra.mxu0 0
    %175 = vmatprep.subr.bf16.mxu0 0
    %176 = vmatpush1.bf16.msra.mxu0 0
    %177 = vmatprep.subr.bf16.mxu0 0
    %178 = vmatpush1.bf16.msra.mxu0 0
    %179 = vmatprep.subr.bf16.mxu0 0
    %180 = vmatpush1.bf16.msra.mxu0 0
    %181 = vmatprep.subr.bf16.mxu0 0
    %182 = vmatpush1.bf16.msra.mxu0 0
    %183 = vmatprep.subr.bf16.mxu0 0
    %184 = vmatpush1.bf16.msra.mxu0 0
    %185 = vmatprep.subr.bf16.mxu0 0
    %186 = vmatpush1.bf16.msra.mxu0 0
    %187 = vmatprep.subr.bf16.mxu0 0
    %188 = vmatpush1.bf16.msra.mxu0 0
    %189 = vmatprep.subr.bf16.mxu0 0
    %190 = vmatpush1.bf16.msra.mxu0 0
    %191 = vmatprep.mubr.bf16.mxu0 0
    %192 = vmatmul.mubr.bf16.gmra.mrb[0].mxu0 %v157
    %v193 = vpop.f32.mrb[0].mxu0
    %v194 = vadd.f32 %v142, %v193
    %v195 = vpop.f32.mrb[0].mxu0
    %v196 = vpop.f32.mrb[0].mxu0
    %v197 = vadd.f32 %v142, %v196
    %v198 = vpop.f32.mrb[0].mxu0
    %199 = vdwg.mxu0
    %vm200 = vcmask 408576
    %201 = vst.msk [vmem:[#allocation11] sm:$0xff] %vm200, %v194
    %202 = vst.msk [vmem:[#allocation11 + $0x8] sm:$0xff] %vm200, %v197
    // Predicated region
    $region42: #{transformer_forward.5} parent=1 // pred_check
      _
    $region43: #{transformer_forward.5} parent=1 // pred_check_branch
      %204 = sbr.rel (0) target = $region45
    $region44: #{transformer_forward.5} parent=1 // pred_region
      %s206 = ssub.s32 256, 256
      %207 = vsyncadd [#allocation4], %s206
      %s208 = sshll.u32 [#allocation11], 4
      %s209 = int_to_ptr.vmem [resolvable:$true] %s208
      %214 = dma.vmem_to_hbm [thread:$0]  %s209, 256, %s5, [#allocation4], 128, 128, 8
    $region45: #{transformer_forward.5} parent=1 // pred_fallthru
      _
    // Predicated region
    $region46: #{transformer_forward.5} parent=1 // pred_check
      _
    $region47: #{transformer_forward.5} parent=1 // pred_check_branch
      %216 = sbr.rel (0) target = $region49
    $region48: #{transformer_forward.5} parent=1 // pred_region
      %217 = dma.done [#allocation4], 256
    $region49: #{transformer_forward.5} parent=1 // pred_fallthru
      _
    %218 = vsyncpa [#allocation3], 1
    %219 = vsyncpa [#allocation6], 1
    %220 = vsyncpa [#allocation9], 1
    %221 = vsyncpa [#allocation4], 1

// kernel: transformer_forward.3
$region0: #{transformer_forward.3}
  #allocation0 [shape = 'u32[]', space=smem, size = 0x4, offset = 0x4, fixed_abs, tag = 'smem constant byte address 0x4 - core index']
  #allocation1 [shape = 'u32[144,128]{1,0:T(1,128)}', space=vmem, size = 0x12000, scoped, tag = 'internal scratch']
  #allocation2 [shape = 'f32[16,32]{1,0:T(8,128)}', space=vmem, size = 0x2000, scoped, tag = 'scratch operand']
  %s0 = inlined_call_operand.hbm [shape: f32[2,8,32], index: 0, kind: input, shape index: {}, may-alias: {0,12}]
  %s1 = inlined_call_operand.hbm [shape: f32[2,1,8], index: 1, kind: input, shape index: {}]
  %s2 = inlined_call_operand.hbm [shape: f32[2,1,32], index: 2, kind: input, shape index: {}]
  %s3 = inlined_call_operand.hbm [shape: f32[2,1,32], index: 3, kind: input, shape index: {}]
  %s4 = inlined_call_operand.hbm [shape: bf16[2,32,96], index: 4, kind: input, shape index: {}]
  %s5 = inlined_call_operand.hbm [shape: bf16[2,32,32], index: 5, kind: input, shape index: {}]
  %s6 = inlined_call_operand.hbm [shape: f32[2,1,32], index: 6, kind: input, shape index: {}]
  %s7 = inlined_call_operand.hbm [shape: f32[2,1,32], index: 7, kind: input, shape index: {}]
  %s8 = inlined_call_operand.hbm [shape: bf16[2,32,64], index: 8, kind: input, shape index: {}]
  %s9 = inlined_call_operand.hbm [shape: f32[2,1,64], index: 9, kind: input, shape index: {}]
  %s10 = inlined_call_operand.hbm [shape: bf16[2,64,32], index: 10, kind: input, shape index: {}]
  %s11 = inlined_call_operand.hbm [shape: f32[2,1,32], index: 11, kind: input, shape index: {}]
  %s12 = inlined_call_operand.hbm [shape: f32[2,8,32], index: 12, kind: output, shape index: {}, may-alias: {0,12}]
  %s13 = sld [smem:[#allocation0]]
  $region133: #{transformer_forward.3} parent=0
    _
  %s15 = ssub.s32 1, %s13
  %s16 = scalar_select 0, %s15, %s13
  $region1: #{transformer_forward.3} parent=0
    #allocation3 [shape = 'u8[8192]{0}', space=vmem, size = 0x2000, scoped, tag = 'input window, operand 0, single buffered']
    #allocation4 [shape = 's32[2]{0}', space=sflag, size = 0x8, scoped, tag = 'scoped memory for transformer_forward.3']
    #allocation5 [shape = 's32[2]{0}', space=sflag, size = 0x8, scoped, tag = 'scoped memory for transformer_forward.3']
    #allocation6 [shape = 'u8[1024]{0}', space=vmem, size = 0x400, scoped, tag = 'input window, operand 1, single buffered']
    #allocation7 [shape = 's32[1]{0}', space=sflag, size = 0x4, scoped, tag = 'scoped memory for transformer_forward.3']
    #allocation8 [shape = 'u8[1024]{0}', space=vmem, size = 0x400, scoped, tag = 'input window, operand 2']
    #allocation9 [shape = 'u8[1024]{0}', space=vmem, size = 0x400, scoped, tag = 'input window, operand 3']
    #allocation10 [shape = 'u8[16384]{0}', space=vmem, size = 0x4000, scoped, tag = 'input window, operand 4']
    #allocation11 [shape = 'u8[16384]{0}', space=vmem, size = 0x4000, scoped, tag = 'input window, operand 5']
    #allocation12 [shape = 'u8[1024]{0}', space=vmem, size = 0x400, scoped, tag = 'input window, operand 6']
    #allocation13 [shape = 'u8[1024]{0}', space=vmem, size = 0x400, scoped, tag = 'input window, operand 7']
    #allocation14 [shape = 'u8[16384]{0}', space=vmem, size = 0x4000, scoped, tag = 'input window, operand 8']
    #allocation15 [shape = 'u8[1024]{0}', space=vmem, size = 0x400, scoped, tag = 'input window, operand 9']
    #allocation16 [shape = 'u8[32768]{0}', space=vmem, size = 0x8000, scoped, tag = 'input window, operand 10']
    #allocation17 [shape = 'u8[1024]{0}', space=vmem, size = 0x400, scoped, tag = 'input window, operand 11']
    #allocation18 [shape = 'u8[8192]{0}', space=vmem, size = 0x2000, scoped, tag = 'output window, operand 0, single buffered']
    %17 = vsyncpa [#allocation4], 0
    %18 = vsyncpa [#allocation7], 0
    %19 = vsyncpa [#allocation5], 0
    loop: start=0, step=1, limit=4
    $region2: #{transformer_forward.3} parent=1 // loop_pre_header
      _
    $region3: #{transformer_forward.3} parent=1 // loop_header
      %s21 = sphi 0, %s25
      %p22 = scmp.ge.s32.totalorder %s21, 4
      %s28 = sphi 0, %s40
      %s29 = sphi 0, %s36
      %s30 = sphi 0, %s28
      %s31 = sphi 0, %s29
      %s32 = sphi 0, %s30
      %s33 = sphi 0, %s31
      %s43 = sphi 0, %s45
      %s46 = sphi 0, %s43
      %s47 = sphi 0, %s46
      %s63 = sphi 0, %s47
      %s69 = sphi 0, %s71
      %s72 = sphi 0, %s69
      %s73 = sphi 0, %s72
      %s89 = sphi 0, %s73
      %s95 = sphi 0, %s97
      %s98 = sphi 0, %s95
      %s99 = sphi 0, %s98
      %s115 = sphi 0, %s99
      %s121 = sphi 0, %s123
      %s124 = sphi 0, %s121
      %s125 = sphi 0, %s124
      %s141 = sphi 0, %s125
      %s147 = sphi 0, %s149
      %s150 = sphi 0, %s147
      %s151 = sphi 0, %s150
      %s167 = sphi 0, %s151
      %s173 = sphi 0, %s175
      %s176 = sphi 0, %s173
      %s177 = sphi 0, %s176
      %s193 = sphi 0, %s177
      %s199 = sphi 0, %s201
      %s202 = sphi 0, %s199
      %s203 = sphi 0, %s202
      %s219 = sphi 0, %s203
      %s225 = sphi 0, %s227
      %s228 = sphi 0, %s225
      %s229 = sphi 0, %s228
      %s245 = sphi 0, %s229
      %s251 = sphi 0, %s253
      %s254 = sphi 0, %s251
      %s255 = sphi 0, %s254
      %s271 = sphi 0, %s255
      %s277 = sphi 0, %s279
      %s280 = sphi 0, %s277
      %s281 = sphi 0, %s280
      %s297 = sphi 0, %s281
      %s303 = sphi 0, %s305
      %s306 = sphi 0, %s303
      %s307 = sphi 0, %s306
      %s323 = sphi 0, %s307
      %s329 = sphi 0, %s331
      %s332 = sphi 0, %s329
      %s333 = sphi 0, %s332
      %s349 = sphi 0, %s333
      %s355 = sphi 0, %s357
      %s358 = sphi 0, %s355
      %s359 = sphi 0, %s358
      %s375 = sphi 0, %s359
    $region4: #{transformer_forward.3} parent=1 // loop_header_branch
      %24 = sbr.rel (%p22) target = $region8
    $region5: #{transformer_forward.3} parent=1 // loop_body
      %s26 = ssub.s32 %s21, 1
      %s27 = ssub.s32 %s21, 2
      %s34 = sadd.s32 1, %s29
      %p35 = scmp.ge.s32.totalorder %s34, 2
      %s36 = scalar_select %p35, 0, %s34
      %s37 = sadd.s32 1, %s28
      %s38 = scalar_select %p35, %s37, %s28
      %p39 = scmp.ge.s32.totalorder %s38, 1
      %s40 = scalar_select %p39, 0, %s38
      %s41 = ssub.s32 %s28, %s40
      %p42 = scmp.eq.s32.totalorder %s41, 0
      %s44 = sadd.s32 %s43, 1
      %s45 = scalar_select %p42, %s43, %s44
      %p48 = pneg %p42
      %p49 = scmp.eq.s32.totalorder %s21, 1
      %p50 = por %p48, %p49
      %p51 = scmp.ne.s32.totalorder %s43, %s46
      %p52 = scmp.eq.s32.totalorder %s21, 0
      %p53 = por %p51, %p52
      %p54 = scmp.ne.s32.totalorder %s43, %s46
      %p55 = scmp.eq.s32.totalorder %s26, 1
      %p56 = por %p54, %p55
      %p57 = scmp.ne.s32.totalorder %s46, %s47
      %p58 = scmp.eq.s32.totalorder %s26, 0
      %p59 = por %p57, %p58
      %p60 = scmp.ne.s32.totalorder %s46, %s47
      %p61 = scmp.eq.s32.totalorder %s27, 1
      %p62 = por %p60, %p61
      %p64 = scmp.ne.s32.totalorder %s47, %s63
      %p65 = scmp.eq.s32.totalorder %s27, 0
      %p66 = por %p64, %p65
      %s67 = ssub.s32 %s28, %s40
      %p68 = scmp.eq.s32.totalorder %s67, 0
      %s70 = sadd.s32 %s69, 1
      %s71 = scalar_select %p68, %s69, %s70
      %p74 = pneg %p68
      %p75 = scmp.eq.s32.totalorder %s21, 1
      %p76 = por %p74, %p75
      %p77 = scmp.ne.s32.totalorder %s69, %s72
      %p78 = scmp.eq.s32.totalorder %s21, 0
      %p79 = por %p77, %p78
      %p80 = scmp.ne.s32.totalorder %s69, %s72
      %p81 = scmp.eq.s32.totalorder %s26, 1
      %p82 = por %p80, %p81
      %p83 = scmp.ne.s32.totalorder %s72, %s73
      %p84 = scmp.eq.s32.totalorder %s26, 0
      %p85 = por %p83, %p84
      %p86 = scmp.ne.s32.totalorder %s72, %s73
      %p87 = scmp.eq.s32.totalorder %s27, 1
      %p88 = por %p86, %p87
      %p90 = scmp.ne.s32.totalorder %s73, %s89
      %p91 = scmp.eq.s32.totalorder %s27, 0
      %p92 = por %p90, %p91
      %s93 = ssub.s32 %s29, %s36
      %p94 = scmp.eq.s32.totalorder %s93, 0
      %s96 = sadd.s32 %s95, 1
      %s97 = scalar_select %p94, %s95, %s96
      %p100 = pneg %p94
      %p101 = scmp.eq.s32.totalorder %s21, 1
      %p102 = por %p100, %p101
      %p103 = scmp.ne.s32.totalorder %s95, %s98
      %p104 = scmp.eq.s32.totalorder %s21, 0
      %p105 = por %p103, %p104
      %p106 = scmp.ne.s32.totalorder %s95, %s98
      %p107 = scmp.eq.s32.totalorder %s26, 1
      %p108 = por %p106, %p107
      %p109 = scmp.ne.s32.totalorder %s98, %s99
      %p110 = scmp.eq.s32.totalorder %s26, 0
      %p111 = por %p109, %p110
      %p112 = scmp.ne.s32.totalorder %s98, %s99
      %p113 = scmp.eq.s32.totalorder %s27, 1
      %p114 = por %p112, %p113
      %p116 = scmp.ne.s32.totalorder %s99, %s115
      %p117 = scmp.eq.s32.totalorder %s27, 0
      %p118 = por %p116, %p117
      %s119 = ssub.s32 %s29, %s36
      %p120 = scmp.eq.s32.totalorder %s119, 0
      %s122 = sadd.s32 %s121, 1
      %s123 = scalar_select %p120, %s121, %s122
      %p126 = pneg %p120
      %p127 = scmp.eq.s32.totalorder %s21, 1
      %p128 = por %p126, %p127
      %p129 = scmp.ne.s32.totalorder %s121, %s124
      %p130 = scmp.eq.s32.totalorder %s21, 0
      %p131 = por %p129, %p130
      %p132 = scmp.ne.s32.totalorder %s121, %s124
      %p133 = scmp.eq.s32.totalorder %s26, 1
      %p134 = por %p132, %p133
      %p135 = scmp.ne.s32.totalorder %s124, %s125
      %p136 = scmp.eq.s32.totalorder %s26, 0
      %p137 = por %p135, %p136
      %p138 = scmp.ne.s32.totalorder %s124, %s125
      %p139 = scmp.eq.s32.totalorder %s27, 1
      %p140 = por %p138, %p139
      %p142 = scmp.ne.s32.totalorder %s125, %s141
      %p143 = scmp.eq.s32.totalorder %s27, 0
      %p144 = por %p142, %p143
      %s145 = ssub.s32 %s29, %s36
      %p146 = scmp.eq.s32.totalorder %s145, 0
      %s148 = sadd.s32 %s147, 1
      %s149 = scalar_select %p146, %s147, %s148
      %p152 = pneg %p146
      %p153 = scmp.eq.s32.totalorder %s21, 1
      %p154 = por %p152, %p153
      %p155 = scmp.ne.s32.totalorder %s147, %s150
      %p156 = scmp.eq.s32.totalorder %s21, 0
      %p157 = por %p155, %p156
      %p158 = scmp.ne.s32.totalorder %s147, %s150
      %p159 = scmp.eq.s32.totalorder %s26, 1
      %p160 = por %p158, %p159
      %p161 = scmp.ne.s32.totalorder %s150, %s151
      %p162 = scmp.eq.s32.totalorder %s26, 0
      %p163 = por %p161, %p162
      %p164 = scmp.ne.s32.totalorder %s150, %s151
      %p165 = scmp.eq.s32.totalorder %s27, 1
      %p166 = por %p164, %p165
      %p168 = scmp.ne.s32.totalorder %s151, %s167
      %p169 = scmp.eq.s32.totalorder %s27, 0
      %p170 = por %p168, %p169
      %s171 = ssub.s32 %s29, %s36
      %p172 = scmp.eq.s32.totalorder %s171, 0
      %s174 = sadd.s32 %s173, 1
      %s175 = scalar_select %p172, %s173, %s174
      %p178 = pneg %p172
      %p179 = scmp.eq.s32.totalorder %s21, 1
      %p180 = por %p178, %p179
      %p181 = scmp.ne.s32.totalorder %s173, %s176
      %p182 = scmp.eq.s32.totalorder %s21, 0
      %p183 = por %p181, %p182
      %p184 = scmp.ne.s32.totalorder %s173, %s176
      %p185 = scmp.eq.s32.totalorder %s26, 1
      %p186 = por %p184, %p185
      %p187 = scmp.ne.s32.totalorder %s176, %s177
      %p188 = scmp.eq.s32.totalorder %s26, 0
      %p189 = por %p187, %p188
      %p190 = scmp.ne.s32.totalorder %s176, %s177
      %p191 = scmp.eq.s32.totalorder %s27, 1
      %p192 = por %p190, %p191
      %p194 = scmp.ne.s32.totalorder %s177, %s193
      %p195 = scmp.eq.s32.totalorder %s27, 0
      %p196 = por %p194, %p195
      %s197 = ssub.s32 %s29, %s36
      %p198 = scmp.eq.s32.totalorder %s197, 0
      %s200 = sadd.s32 %s199, 1
      %s201 = scalar_select %p198, %s199, %s200
      %p204 = pneg %p198
      %p205 = scmp.eq.s32.totalorder %s21, 1
      %p206 = por %p204, %p205
      %p207 = scmp.ne.s32.totalorder %s199, %s202
      %p208 = scmp.eq.s32.totalorder %s21, 0
      %p209 = por %p207, %p208
      %p210 = scmp.ne.s32.totalorder %s199, %s202
      %p211 = scmp.eq.s32.totalorder %s26, 1
      %p212 = por %p210, %p211
      %p213 = scmp.ne.s32.totalorder %s202, %s203
      %p214 = scmp.eq.s32.totalorder %s26, 0
      %p215 = por %p213, %p214
      %p216 = scmp.ne.s32.totalorder %s202, %s203
      %p217 = scmp.eq.s32.totalorder %s27, 1
      %p218 = por %p216, %p217
      %p220 = scmp.ne.s32.totalorder %s203, %s219
      %p221 = scmp.eq.s32.totalorder %s27, 0
      %p222 = por %p220, %p221
      %s223 = ssub.s32 %s29, %s36
      %p224 = scmp.eq.s32.totalorder %s223, 0
      %s226 = sadd.s32 %s225, 1
      %s227 = scalar_select %p224, %s225, %s226
      %p230 = pneg %p224
      %p231 = scmp.eq.s32.totalorder %s21, 1
      %p232 = por %p230, %p231
      %p233 = scmp.ne.s32.totalorder %s225, %s228
      %p234 = scmp.eq.s32.totalorder %s21, 0
      %p235 = por %p233, %p234
      %p236 = scmp.ne.s32.totalorder %s225, %s228
      %p237 = scmp.eq.s32.totalorder %s26, 1
      %p238 = por %p236, %p237
      %p239 = scmp.ne.s32.totalorder %s228, %s229
      %p240 = scmp.eq.s32.totalorder %s26, 0
      %p241 = por %p239, %p240
      %p242 = scmp.ne.s32.totalorder %s228, %s229
      %p243 = scmp.eq.s32.totalorder %s27, 1
      %p244 = por %p242, %p243
      %p246 = scmp.ne.s32.totalorder %s229, %s245
      %p247 = scmp.eq.s32.totalorder %s27, 0
      %p248 = por %p246, %p247
      %s249 = ssub.s32 %s29, %s36
      %p250 = scmp.eq.s32.totalorder %s249, 0
      %s252 = sadd.s32 %s251, 1
      %s253 = scalar_select %p250, %s251, %s252
      %p256 = pneg %p250
      %p257 = scmp.eq.s32.totalorder %s21, 1
      %p258 = por %p256, %p257
      %p259 = scmp.ne.s32.totalorder %s251, %s254
      %p260 = scmp.eq.s32.totalorder %s21, 0
      %p261 = por %p259, %p260
      %p262 = scmp.ne.s32.totalorder %s251, %s254
      %p263 = scmp.eq.s32.totalorder %s26, 1
      %p264 = por %p262, %p263
      %p265 = scmp.ne.s32.totalorder %s254, %s255
      %p266 = scmp.eq.s32.totalorder %s26, 0
      %p267 = por %p265, %p266
      %p268 = scmp.ne.s32.totalorder %s254, %s255
      %p269 = scmp.eq.s32.totalorder %s27, 1
      %p270 = por %p268, %p269
      %p272 = scmp.ne.s32.totalorder %s255, %s271
      %p273 = scmp.eq.s32.totalorder %s27, 0
      %p274 = por %p272, %p273
      %s275 = ssub.s32 %s29, %s36
      %p276 = scmp.eq.s32.totalorder %s275, 0
      %s278 = sadd.s32 %s277, 1
      %s279 = scalar_select %p276, %s277, %s278
      %p282 = pneg %p276
      %p283 = scmp.eq.s32.totalorder %s21, 1
      %p284 = por %p282, %p283
      %p285 = scmp.ne.s32.totalorder %s277, %s280
      %p286 = scmp.eq.s32.totalorder %s21, 0
      %p287 = por %p285, %p286
      %p288 = scmp.ne.s32.totalorder %s277, %s280
      %p289 = scmp.eq.s32.totalorder %s26, 1
      %p290 = por %p288, %p289
      %p291 = scmp.ne.s32.totalorder %s280, %s281
      %p292 = scmp.eq.s32.totalorder %s26, 0
      %p293 = por %p291, %p292
      %p294 = scmp.ne.s32.totalorder %s280, %s281
      %p295 = scmp.eq.s32.totalorder %s27, 1
      %p296 = por %p294, %p295
      %p298 = scmp.ne.s32.totalorder %s281, %s297
      %p299 = scmp.eq.s32.totalorder %s27, 0
      %p300 = por %p298, %p299
      %s301 = ssub.s32 %s29, %s36
      %p302 = scmp.eq.s32.totalorder %s301, 0
      %s304 = sadd.s32 %s303, 1
      %s305 = scalar_select %p302, %s303, %s304
      %p308 = pneg %p302
      %p309 = scmp.eq.s32.totalorder %s21, 1
      %p310 = por %p308, %p309
      %p311 = scmp.ne.s32.totalorder %s303, %s306
      %p312 = scmp.eq.s32.totalorder %s21, 0
      %p313 = por %p311, %p312
      %p314 = scmp.ne.s32.totalorder %s303, %s306
      %p315 = scmp.eq.s32.totalorder %s26, 1
      %p316 = por %p314, %p315
      %p317 = scmp.ne.s32.totalorder %s306, %s307
      %p318 = scmp.eq.s32.totalorder %s26, 0
      %p319 = por %p317, %p318
      %p320 = scmp.ne.s32.totalorder %s306, %s307
      %p321 = scmp.eq.s32.totalorder %s27, 1
      %p322 = por %p320, %p321
      %p324 = scmp.ne.s32.totalorder %s307, %s323
      %p325 = scmp.eq.s32.totalorder %s27, 0
      %p326 = por %p324, %p325
      %s327 = ssub.s32 %s29, %s36
      %p328 = scmp.eq.s32.totalorder %s327, 0
      %s330 = sadd.s32 %s329, 1
      %s331 = scalar_select %p328, %s329, %s330
      %p334 = pneg %p328
      %p335 = scmp.eq.s32.totalorder %s21, 1
      %p336 = por %p334, %p335
      %p337 = scmp.ne.s32.totalorder %s329, %s332
      %p338 = scmp.eq.s32.totalorder %s21, 0
      %p339 = por %p337, %p338
      %p340 = scmp.ne.s32.totalorder %s329, %s332
      %p341 = scmp.eq.s32.totalorder %s26, 1
      %p342 = por %p340, %p341
      %p343 = scmp.ne.s32.totalorder %s332, %s333
      %p344 = scmp.eq.s32.totalorder %s26, 0
      %p345 = por %p343, %p344
      %p346 = scmp.ne.s32.totalorder %s332, %s333
      %p347 = scmp.eq.s32.totalorder %s27, 1
      %p348 = por %p346, %p347
      %p350 = scmp.ne.s32.totalorder %s333, %s349
      %p351 = scmp.eq.s32.totalorder %s27, 0
      %p352 = por %p350, %p351
      %s353 = ssub.s32 %s28, %s40
      %p354 = scmp.eq.s32.totalorder %s353, 0
      %s356 = sadd.s32 %s355, 1
      %s357 = scalar_select %p354, %s355, %s356
      %p360 = pneg %p354
      %p361 = scmp.eq.s32.totalorder %s21, 1
      %p362 = por %p360, %p361
      %p363 = scmp.ne.s32.totalorder %s355, %s358
      %p364 = scmp.eq.s32.totalorder %s21, 0
      %p365 = por %p363, %p364
      %p366 = scmp.ne.s32.totalorder %s355, %s358
      %p367 = scmp.eq.s32.totalorder %s26, 1
      %p368 = por %p366, %p367
      %p369 = scmp.ne.s32.totalorder %s358, %s359
      %p370 = scmp.eq.s32.totalorder %s26, 0
      %p371 = por %p369, %p370
      %p372 = scmp.ne.s32.totalorder %s358, %s359
      %p373 = scmp.eq.s32.totalorder %s27, 1
      %p374 = por %p372, %p373
      %p376 = scmp.ne.s32.totalorder %s359, %s375
      %p377 = scmp.eq.s32.totalorder %s27, 0
      %p378 = por %p376, %p377
      %p379 = scmp.le.s32.totalorder 1, %s21
      %p380 = scmp.lt.s32.totalorder %s21, 3
      %p381 = pnand %p379, %p380
      %p382 = pneg %p381
      // Predicated region
      $region9: #{transformer_forward.3} parent=5 // pred_check
        _
      $region10: #{transformer_forward.3} parent=5 // pred_check_branch
        %384 = sbr.rel (%p381) target = $region12
      $region11: #{transformer_forward.3} parent=5 // pred_region
        %s385 = ssub.s32 %s21, 1
        // Predicated region
        $region13: #{transformer_forward.3} parent=11 // pred_check
          %p386 = pneg %p59
        $region14: #{transformer_forward.3} parent=11 // pred_check_branch
          %388 = sbr.rel (%p386) target = $region16
        $region15: #{transformer_forward.3} parent=11 // pred_region
          %s389 = smul.u32 2, %s30
          %s391 = ssub.s32 256, 256
          %392 = vsyncadd [#allocation4], %s391
          %s393 = smul.addr %s389, 128
          %s394 = scalar_lea.hbm %s0, %s393
          %s395 = sshll.u32 [#allocation3], 4
          %s396 = int_to_ptr.vmem [resolvable:$true] %s395
          %401 = dma.hbm_to_vmem [thread:$0]  %s394, 256, %s396, [#allocation4], 128, 128, 8
        $region16: #{transformer_forward.3} parent=11 // pred_fallthru
          _
        // Predicated region
        $region17: #{transformer_forward.3} parent=11 // pred_check
          %p402 = pneg %p85
        $region18: #{transformer_forward.3} parent=11 // pred_check_branch
          %404 = sbr.rel (%p402) target = $region20
        $region19: #{transformer_forward.3} parent=11 // pred_region
          %s405 = smul.u32 2, %s30
          %s407 = ssub.s32 32, 32
          %408 = vsyncadd [#allocation7], %s407
          %s409 = smul.addr %s405, 16
          %s410 = scalar_lea.hbm %s1, %s409
          %s411 = sshll.u32 [#allocation6], 4
          %s412 = int_to_ptr.vmem [resolvable:$true] %s411
          %417 = dma.hbm_to_vmem [thread:$0]  %s410, 32, %s412, [#allocation7], 16, 16, 1
        $region20: #{transformer_forward.3} parent=11 // pred_fallthru
          _
      $region12: #{transformer_forward.3} parent=5 // pred_fallthru
        _
      %p418 = scmp.lt.s32.totalorder %s21, 2
      // Predicated region
      $region21: #{transformer_forward.3} parent=5 // pred_check
        %p419 = pneg %p418
      $region22: #{transformer_forward.3} parent=5 // pred_check_branch
        %421 = sbr.rel (%p419) target = $region24
      $region23: #{transformer_forward.3} parent=5 // pred_region
        // Predicated region
        $region25: #{transformer_forward.3} parent=23 // pred_check
          %p422 = pneg %p105
        $region26: #{transformer_forward.3} parent=23 // pred_check_branch
          %424 = sbr.rel (%p422) target = $region28
        $region27: #{transformer_forward.3} parent=23 // pred_region
          %s425 = sand.u32 %s21, 1
          %s426 = scalar_lea.sflag [#allocation4], %s425
          %s427 = sand.u32 %s95, 1
          %s428 = scalar_lea.vmem [#allocation8], %s427
          %s430 = ssub.s32 16, 16
          %431 = vsyncadd %s426, %s430
          %s432 = smul.addr %s29, 16
          %s433 = scalar_lea.hbm %s2, %s432
          %s435 = sshll.u32 %s428, 4
          %s436 = int_to_ptr.vmem [resolvable:$true] %s435
          %438 = dma.hbm_to_vmem [thread:$0]  %s433, 16, %s436, %s426
        $region28: #{transformer_forward.3} parent=23 // pred_fallthru
          _
        // Predicated region
        $region29: #{transformer_forward.3} parent=23 // pred_check
          %p439 = pneg %p131
        $region30: #{transformer_forward.3} parent=23 // pred_check_branch
          %441 = sbr.rel (%p439) target = $region32
        $region31: #{transformer_forward.3} parent=23 // pred_region
          %s442 = sand.u32 %s21, 1
          %s443 = scalar_lea.sflag [#allocation4], %s442
          %s444 = sand.u32 %s121, 1
          %s445 = scalar_lea.vmem [#allocation9], %s444
          %s447 = ssub.s32 16, 16
          %448 = vsyncadd %s443, %s447
          %s449 = smul.addr %s29, 16
          %s450 = scalar_lea.hbm %s3, %s449
          %s452 = sshll.u32 %s445, 4
          %s453 = int_to_ptr.vmem [resolvable:$true] %s452
          %455 = dma.hbm_to_vmem [thread:$0]  %s450, 16, %s453, %s443
        $region32: #{transformer_forward.3} parent=23 // pred_fallthru
          _
        // Predicated region
        $region33: #{transformer_forward.3} parent=23 // pred_check
          %p456 = pneg %p157
        $region34: #{transformer_forward.3} parent=23 // pred_check_branch
          %458 = sbr.rel (%p456) target = $region36
        $region35: #{transformer_forward.3} parent=23 // pred_region
          %s459 = sand.u32 %s21, 1
          %s460 = scalar_lea.sflag [#allocation4], %s459
          %s461 = sand.u32 %s147, 1
          %s462 = smul.addr %s461, 16
          %s463 = scalar_lea.vmem [#allocation10], %s462
          %s465 = ssub.s32 256, 256
          %466 = vsyncadd %s460, %s465
          %s467 = smul.addr %s29, 4
          %s468 = smul.addr %s467, 64
          %s469 = scalar_lea.hbm %s4, %s468
          %s470 = sshll.u32 %s463, 4
          %s471 = int_to_ptr.vmem [resolvable:$true] %s470
          %476 = dma.hbm_to_vmem [thread:$0]  %s469, 256, %s471, %s460, 64, 64, 4
        $region36: #{transformer_forward.3} parent=23 // pred_fallthru
          _
        // Predicated region
        $region37: #{transformer_forward.3} parent=23 // pred_check
          %p477 = pneg %p183
        $region38: #{transformer_forward.3} parent=23 // pred_check_branch
          %479 = sbr.rel (%p477) target = $region40
        $region39: #{transformer_forward.3} parent=23 // pred_region
          %s480 = sand.u32 %s21, 1
          %s481 = scalar_lea.sflag [#allocation4], %s480
          %s482 = sand.u32 %s173, 1
          %s483 = smul.addr %s482, 16
          %s484 = scalar_lea.vmem [#allocation11], %s483
          %s486 = ssub.s32 256, 256
          %487 = vsyncadd %s481, %s486
          %s488 = smul.addr %s29, 4
          %s489 = smul.addr %s488, 64
          %s490 = scalar_lea.hbm %s5, %s489
          %s491 = sshll.u32 %s484, 4
          %s492 = int_to_ptr.vmem [resolvable:$true] %s491
          %497 = dma.hbm_to_vmem [thread:$0]  %s490, 256, %s492, %s481, 64, 64, 4
        $region40: #{transformer_forward.3} parent=23 // pred_fallthru
          _
        // Predicated region
        $region41: #{transformer_forward.3} parent=23 // pred_check
          %p498 = pneg %p209
        $region42: #{transformer_forward.3} parent=23 // pred_check_branch
          %500 = sbr.rel (%p498) target = $region44
        $region43: #{transformer_forward.3} parent=23 // pred_region
          %s501 = sand.u32 %s21, 1
          %s502 = scalar_lea.sflag [#allocation4], %s501
          %s503 = sand.u32 %s199, 1
          %s504 = scalar_lea.vmem [#allocation12], %s503
          %s506 = ssub.s32 16, 16
          %507 = vsyncadd %s502, %s506
          %s508 = smul.addr %s29, 16
          %s509 = scalar_lea.hbm %s6, %s508
          %s511 = sshll.u32 %s504, 4
          %s512 = int_to_ptr.vmem [resolvable:$true] %s511
          %514 = dma.hbm_to_vmem [thread:$0]  %s509, 16, %s512, %s502
        $region44: #{transformer_forward.3} parent=23 // pred_fallthru
          _
        // Predicated region
        $region45: #{transformer_forward.3} parent=23 // pred_check
          %p515 = pneg %p235
        $region46: #{transformer_forward.3} parent=23 // pred_check_branch
          %517 = sbr.rel (%p515) target = $region48
        $region47: #{transformer_forward.3} parent=23 // pred_region
          %s518 = sand.u32 %s21, 1
          %s519 = scalar_lea.sflag [#allocation4], %s518
          %s520 = sand.u32 %s225, 1
          %s521 = scalar_lea.vmem [#allocation13], %s520
          %s523 = ssub.s32 16, 16
          %524 = vsyncadd %s519, %s523
          %s525 = smul.addr %s29, 16
          %s526 = scalar_lea.hbm %s7, %s525
          %s528 = sshll.u32 %s521, 4
          %s529 = int_to_ptr.vmem [resolvable:$true] %s528
          %531 = dma.hbm_to_vmem [thread:$0]  %s526, 16, %s529, %s519
        $region48: #{transformer_forward.3} parent=23 // pred_fallthru
          _
        // Predicated region
        $region49: #{transformer_forward.3} parent=23 // pred_check
          %p532 = pneg %p261
        $region50: #{transformer_forward.3} parent=23 // pred_check_branch
          %534 = sbr.rel (%p532) target = $region52
        $region51: #{transformer_forward.3} parent=23 // pred_region
          %s535 = sand.u32 %s21, 1
          %s536 = scalar_lea.sflag [#allocation4], %s535
          %s537 = sand.u32 %s251, 1
          %s538 = smul.addr %s537, 16
          %s539 = scalar_lea.vmem [#allocation14], %s538
          %s541 = ssub.s32 256, 256
          %542 = vsyncadd %s536, %s541
          %s543 = smul.addr %s29, 4
          %s544 = smul.addr %s543, 64
          %s545 = scalar_lea.hbm %s8, %s544
          %s546 = sshll.u32 %s539, 4
          %s547 = int_to_ptr.vmem [resolvable:$true] %s546
          %552 = dma.hbm_to_vmem [thread:$0]  %s545, 256, %s547, %s536, 64, 64, 4
        $region52: #{transformer_forward.3} parent=23 // pred_fallthru
          _
        // Predicated region
        $region53: #{transformer_forward.3} parent=23 // pred_check
          %p553 = pneg %p287
        $region54: #{transformer_forward.3} parent=23 // pred_check_branch
          %555 = sbr.rel (%p553) target = $region56
        $region55: #{transformer_forward.3} parent=23 // pred_region
          %s556 = sand.u32 %s21, 1
          %s557 = scalar_lea.sflag [#allocation4], %s556
          %s558 = sand.u32 %s277, 1
          %s559 = scalar_lea.vmem [#allocation15], %s558
          %s561 = ssub.s32 16, 16
          %562 = vsyncadd %s557, %s561
          %s563 = smul.addr %s29, 16
          %s564 = scalar_lea.hbm %s9, %s563
          %s566 = sshll.u32 %s559, 4
          %s567 = int_to_ptr.vmem [resolvable:$true] %s566
          %569 = dma.hbm_to_vmem [thread:$0]  %s564, 16, %s567, %s557
        $region56: #{transformer_forward.3} parent=23 // pred_fallthru
          _
        // Predicated region
        $region57: #{transformer_forward.3} parent=23 // pred_check
          %p570 = pneg %p313
        $region58: #{transformer_forward.3} parent=23 // pred_check_branch
          %572 = sbr.rel (%p570) target = $region60
        $region59: #{transformer_forward.3} parent=23 // pred_region
          %s573 = sand.u32 %s21, 1
          %s574 = scalar_lea.sflag [#allocation4], %s573
          %s575 = sand.u32 %s303, 1
          %s576 = smul.addr %s575, 32
          %s577 = scalar_lea.vmem [#allocation16], %s576
          %s579 = ssub.s32 512, 512
          %580 = vsyncadd %s574, %s579
          %s581 = smul.addr %s29, 8
          %s582 = smul.addr %s581, 64
          %s583 = scalar_lea.hbm %s10, %s582
          %s584 = sshll.u32 %s577, 4
          %s585 = int_to_ptr.vmem [resolvable:$true] %s584
          %590 = dma.hbm_to_vmem [thread:$0]  %s583, 512, %s585, %s574, 64, 64, 4
        $region60: #{transformer_forward.3} parent=23 // pred_fallthru
          _
        // Predicated region
        $region61: #{transformer_forward.3} parent=23 // pred_check
          %p591 = pneg %p339
        $region62: #{transformer_forward.3} parent=23 // pred_check_branch
          %593 = sbr.rel (%p591) target = $region64
        $region63: #{transformer_forward.3} parent=23 // pred_region
          %s594 = sand.u32 %s21, 1
          %s595 = scalar_lea.sflag [#allocation4], %s594
          %s596 = sand.u32 %s329, 1
          %s597 = scalar_lea.vmem [#allocation17], %s596
          %s599 = ssub.s32 16, 16
          %600 = vsyncadd %s595, %s599
          %s601 = smul.addr %s29, 16
          %s602 = scalar_lea.hbm %s11, %s601
          %s604 = sshll.u32 %s597, 4
          %s605 = int_to_ptr.vmem [resolvable:$true] %s604
          %607 = dma.hbm_to_vmem [thread:$0]  %s602, 16, %s605, %s595
        $region64: #{transformer_forward.3} parent=23 // pred_fallthru
          _
      $region24: #{transformer_forward.3} parent=5 // pred_fallthru
        _
      %p608 = scmp.le.s32.totalorder 1, %s21
      %p609 = scmp.lt.s32.totalorder %s21, 3
      %p610 = pnand %p608, %p609
      %p611 = pneg %p610
      // Predicated region
      $region65: #{transformer_forward.3} parent=5 // pred_check
        _
      $region66: #{transformer_forward.3} parent=5 // pred_check_branch
        %613 = sbr.rel (%p610) target = $region68
      $region67: #{transformer_forward.3} parent=5 // pred_region
        %s614 = ssub.s32 %s21, 1
        // Predicated region
        $region69: #{transformer_forward.3} parent=67 // pred_check
          %p615 = pneg %p59
        $region70: #{transformer_forward.3} parent=67 // pred_check_branch
          %617 = sbr.rel (%p615) target = $region72
        $region71: #{transformer_forward.3} parent=67 // pred_region
          %618 = dma.done [#allocation4], 256
        $region72: #{transformer_forward.3} parent=67 // pred_fallthru
          _
        // Predicated region
        $region73: #{transformer_forward.3} parent=67 // pred_check
          %p619 = pneg %p85
        $region74: #{transformer_forward.3} parent=67 // pred_check_branch
          %621 = sbr.rel (%p619) target = $region76
        $region75: #{transformer_forward.3} parent=67 // pred_region
          %622 = dma.done [#allocation7], 32
        $region76: #{transformer_forward.3} parent=67 // pred_fallthru
          _
        %s623 = sand.u32 %s26, 1
        %s624 = scalar_lea.sflag [#allocation4], %s623
        %s625 = sand.u32 %s98, 1
        %s626 = scalar_lea.vmem [#allocation8], %s625
        // Predicated region
        $region77: #{transformer_forward.3} parent=67 // pred_check
          %p627 = pneg %p111
        $region78: #{transformer_forward.3} parent=67 // pred_check_branch
          %629 = sbr.rel (%p627) target = $region80
        $region79: #{transformer_forward.3} parent=67 // pred_region
          %630 = dma.done %s624, 16
        $region80: #{transformer_forward.3} parent=67 // pred_fallthru
          _
        %s631 = sand.u32 %s26, 1
        %s632 = scalar_lea.sflag [#allocation4], %s631
        %s633 = sand.u32 %s124, 1
        %s634 = scalar_lea.vmem [#allocation9], %s633
        // Predicated region
        $region81: #{transformer_forward.3} parent=67 // pred_check
          %p635 = pneg %p137
        $region82: #{transformer_forward.3} parent=67 // pred_check_branch
          %637 = sbr.rel (%p635) target = $region84
        $region83: #{transformer_forward.3} parent=67 // pred_region
          %638 = dma.done %s632, 16
        $region84: #{transformer_forward.3} parent=67 // pred_fallthru
          _
        %s639 = sand.u32 %s26, 1
        %s640 = scalar_lea.sflag [#allocation4], %s639
        %s641 = sand.u32 %s150, 1
        %s642 = smul.addr %s641, 16
        %s643 = scalar_lea.vmem [#allocation10], %s642
        // Predicated region
        $region85: #{transformer_forward.3} parent=67 // pred_check
          %p644 = pneg %p163
        $region86: #{transformer_forward.3} parent=67 // pred_check_branch
          %646 = sbr.rel (%p644) target = $region88
        $region87: #{transformer_forward.3} parent=67 // pred_region
          %647 = dma.done %s640, 256
        $region88: #{transformer_forward.3} parent=67 // pred_fallthru
          _
        %s648 = sand.u32 %s26, 1
        %s649 = scalar_lea.sflag [#allocation4], %s648
        %s650 = sand.u32 %s176, 1
        %s651 = smul.addr %s650, 16
        %s652 = scalar_lea.vmem [#allocation11], %s651
        // Predicated region
        $region89: #{transformer_forward.3} parent=67 // pred_check
          %p653 = pneg %p189
        $region90: #{transformer_forward.3} parent=67 // pred_check_branch
          %655 = sbr.rel (%p653) target = $region92
        $region91: #{transformer_forward.3} parent=67 // pred_region
          %656 = dma.done %s649, 256
        $region92: #{transformer_forward.3} parent=67 // pred_fallthru
          _
        %s657 = sand.u32 %s26, 1
        %s658 = scalar_lea.sflag [#allocation4], %s657
        %s659 = sand.u32 %s202, 1
        %s660 = scalar_lea.vmem [#allocation12], %s659
        // Predicated region
        $region93: #{transformer_forward.3} parent=67 // pred_check
          %p661 = pneg %p215
        $region94: #{transformer_forward.3} parent=67 // pred_check_branch
          %663 = sbr.rel (%p661) target = $region96
        $region95: #{transformer_forward.3} parent=67 // pred_region
          %664 = dma.done %s658, 16
        $region96: #{transformer_forward.3} parent=67 // pred_fallthru
          _
        %s665 = sand.u32 %s26, 1
        %s666 = scalar_lea.sflag [#allocation4], %s665
        %s667 = sand.u32 %s228, 1
        %s668 = scalar_lea.vmem [#allocation13], %s667
        // Predicated region
        $region97: #{transformer_forward.3} parent=67 // pred_check
          %p669 = pneg %p241
        $region98: #{transformer_forward.3} parent=67 // pred_check_branch
          %671 = sbr.rel (%p669) target = $region100
        $region99: #{transformer_forward.3} parent=67 // pred_region
          %672 = dma.done %s666, 16
        $region100: #{transformer_forward.3} parent=67 // pred_fallthru
          _
        %s673 = sand.u32 %s26, 1
        %s674 = scalar_lea.sflag [#allocation4], %s673
        %s675 = sand.u32 %s254, 1
        %s676 = smul.addr %s675, 16
        %s677 = scalar_lea.vmem [#allocation14], %s676
        // Predicated region
        $region101: #{transformer_forward.3} parent=67 // pred_check
          %p678 = pneg %p267
        $region102: #{transformer_forward.3} parent=67 // pred_check_branch
          %680 = sbr.rel (%p678) target = $region104
        $region103: #{transformer_forward.3} parent=67 // pred_region
          %681 = dma.done %s674, 256
        $region104: #{transformer_forward.3} parent=67 // pred_fallthru
          _
        %s682 = sand.u32 %s26, 1
        %s683 = scalar_lea.sflag [#allocation4], %s682
        %s684 = sand.u32 %s280, 1
        %s685 = scalar_lea.vmem [#allocation15], %s684
        // Predicated region
        $region105: #{transformer_forward.3} parent=67 // pred_check
          %p686 = pneg %p293
        $region106: #{transformer_forward.3} parent=67 // pred_check_branch
          %688 = sbr.rel (%p686) target = $region108
        $region107: #{transformer_forward.3} parent=67 // pred_region
          %689 = dma.done %s683, 16
        $region108: #{transformer_forward.3} parent=67 // pred_fallthru
          _
        %s690 = sand.u32 %s26, 1
        %s691 = scalar_lea.sflag [#allocation4], %s690
        %s692 = sand.u32 %s306, 1
        %s693 = smul.addr %s692, 32
        %s694 = scalar_lea.vmem [#allocation16], %s693
        // Predicated region
        $region109: #{transformer_forward.3} parent=67 // pred_check
          %p695 = pneg %p319
        $region110: #{transformer_forward.3} parent=67 // pred_check_branch
          %697 = sbr.rel (%p695) target = $region112
        $region111: #{transformer_forward.3} parent=67 // pred_region
          %698 = dma.done %s691, 512
        $region112: #{transformer_forward.3} parent=67 // pred_fallthru
          _
        %s699 = sand.u32 %s26, 1
        %s700 = scalar_lea.sflag [#allocation4], %s699
        %s701 = sand.u32 %s332, 1
        %s702 = scalar_lea.vmem [#allocation17], %s701
        // Predicated region
        $region113: #{transformer_forward.3} parent=67 // pred_check
          %p703 = pneg %p345
        $region114: #{transformer_forward.3} parent=67 // pred_check_branch
          %705 = sbr.rel (%p703) target = $region116
        $region115: #{transformer_forward.3} parent=67 // pred_region
          %706 = dma.done %s700, 16
        $region116: #{transformer_forward.3} parent=67 // pred_fallthru
          _
        %p707 = pneg %p59
        %p708 = pneg %p56
        %p709 = pneg %p85
        %p710 = pneg %p82
        %s711 = sand.u32 %s26, 1
        %s712 = scalar_lea.sflag [#allocation4], %s711
        %s713 = sand.u32 %s98, 1
        %s714 = scalar_lea.vmem [#allocation8], %s713
        %p715 = pneg %p111
        %p716 = pneg %p108
        %s717 = sand.u32 %s26, 1
        %s718 = scalar_lea.sflag [#allocation4], %s717
        %s719 = sand.u32 %s124, 1
        %s720 = scalar_lea.vmem [#allocation9], %s719
        %p721 = pneg %p137
        %p722 = pneg %p134
        %s723 = sand.u32 %s26, 1
        %s724 = scalar_lea.sflag [#allocation4], %s723
        %s725 = sand.u32 %s150, 1
        %s726 = smul.addr %s725, 16
        %s727 = scalar_lea.vmem [#allocation10], %s726
        %p728 = pneg %p163
        %p729 = pneg %p160
        %s730 = sand.u32 %s26, 1
        %s731 = scalar_lea.sflag [#allocation4], %s730
        %s732 = sand.u32 %s176, 1
        %s733 = smul.addr %s732, 16
        %s734 = scalar_lea.vmem [#allocation11], %s733
        %p735 = pneg %p189
        %p736 = pneg %p186
        %s737 = sand.u32 %s26, 1
        %s738 = scalar_lea.sflag [#allocation4], %s737
        %s739 = sand.u32 %s202, 1
        %s740 = scalar_lea.vmem [#allocation12], %s739
        %p741 = pneg %p215
        %p742 = pneg %p212
        %s743 = sand.u32 %s26, 1
        %s744 = scalar_lea.sflag [#allocation4], %s743
        %s745 = sand.u32 %s228, 1
        %s746 = scalar_lea.vmem [#allocation13], %s745
        %p747 = pneg %p241
        %p748 = pneg %p238
        %s749 = sand.u32 %s26, 1
        %s750 = scalar_lea.sflag [#allocation4], %s749
        %s751 = sand.u32 %s254, 1
        %s752 = smul.addr %s751, 16
        %s753 = scalar_lea.vmem [#allocation14], %s752
        %p754 = pneg %p267
        %p755 = pneg %p264
        %s756 = sand.u32 %s26, 1
        %s757 = scalar_lea.sflag [#allocation4], %s756
        %s758 = sand.u32 %s280, 1
        %s759 = scalar_lea.vmem [#allocation15], %s758
        %p760 = pneg %p293
        %p761 = pneg %p290
        %s762 = sand.u32 %s26, 1
        %s763 = scalar_lea.sflag [#allocation4], %s762
        %s764 = sand.u32 %s306, 1
        %s765 = smul.addr %s764, 32
        %s766 = scalar_lea.vmem [#allocation16], %s765
        %p767 = pneg %p319
        %p768 = pneg %p316
        %s769 = sand.u32 %s26, 1
        %s770 = scalar_lea.sflag [#allocation4], %s769
        %s771 = sand.u32 %s332, 1
        %s772 = scalar_lea.vmem [#allocation17], %s771
        %p773 = pneg %p345
        %p774 = pneg %p342
        %p775 = pneg %p371
        %p776 = pneg %p368
        %s777 = smul.u32 2, %s30
        %s778 = smul.u32 2, %s30
        %s779 = smul.u32 2, %s30
        %p781 = scmp.eq.s32.totalorder %s31, 0
        // Predicated region
        $region117: #{transformer_forward.3} parent=67 // pred_check
          %p782 = pneg %p781
        $region118: #{transformer_forward.3} parent=67 // pred_check_branch
          %784 = sbr.rel (%p782) target = $region120
        $region119: #{transformer_forward.3} parent=67 // pred_region
          %v785 = vld [vmem:[#allocation3] sm:$0xff]
          %v786 = vld [vmem:[#allocation3 + $0x8] sm:$0xff]
          %vm787 = vcmask 261120
          %788 = vst.msk [vmem:[#allocation18] sm:$0xff] %vm787, %v785
          %789 = vst.msk [vmem:[#allocation18 + $0x8] sm:$0xff] %vm787, %v786
        $region120: #{transformer_forward.3} parent=67 // pred_fallthru
          _
        %v790 = vld [vmem:[#allocation18] sm:$0xff]
        %v791 = vld [vmem:[#allocation18 + $0x8] sm:$0xff]
        %v792 = vld [vmem:[%s626] sm:$0x1]
        %v793 = vld [vmem:[%s634] sm:$0x1]
        %vm794 = vcmask 261120
        %v795 = vsel %vm794, %v790, 0.0
        %796 = vadd.xlane.f32.xlu0 %v795
        %v797 = vpop.xlane.xlu0 %796
        %v798 = vsel %vm794, %v791, 0.0
        %799 = vadd.xlane.f32.xlu0 %v798
        %v800 = vpop.xlane.xlu0 %799
        %v801 = vrcp.pop 32.0
        %v802 = vmul.f32 %v797, %v801
        %v803 = vmul.f32 %v800, %v801
        %v804 = vsub.f32 %v790, %v802
        %v805 = vsub.f32 %v791, %v803
        %v806 = vmul.f32 %v804, %v804
        %v807 = vmul.f32 %v805, %v805
        %v808 = vsel %vm794, %v806, 0.0
        %809 = vadd.xlane.f32.xlu0 %v808
        %v810 = vpop.xlane.xlu0 %809
        %v811 = vsel %vm794, %v807, 0.0
        %812 = vadd.xlane.f32.xlu0 %v811
        %v813 = vpop.xlane.xlu0 %812
        %v814 = vmul.f32 %v810, %v801
        %v815 = vmul.f32 %v813, %v801
        %v816 = vadd.f32 %v814, 1e-05
        %v817 = vadd.f32 %v815, 1e-05
        %v818 = vrsqrt.pop %v816
        %v819 = vrsqrt.pop %v817
        %v820 = vmul.f32 %v804, %v818
        %v821 = vmul.f32 %v805, %v819
        %v823 = vlaneseq
        %v824 = vshrl.u32 %v823, 7
        %v825 = vsub.s32 0, %v824
        %v826 = vrot.slane %v792, %v825
        %v828 = vmul.f32 %v820, %v826
        %v829 = vmul.f32 %v821, %v826
        %v831 = vlaneseq
        %v832 = vshrl.u32 %v831, 7
        %v833 = vsub.s32 0, %v832
        %v834 = vrot.slane %v793, %v833
        %v836 = vadd.f32 %v828, %v834
        %v837 = vadd.f32 %v829, %v834
        %v838 = vpack.c.bf16 %v837, %v836
        %v839 = vld [vmem:[%s643] sm:$0xf]
        %v840 = vld [vmem:[%s643 + $0x4] sm:$0xf]
        %v841 = vld [vmem:[%s643 + $0x8] sm:$0xf]
        %v842 = vld [vmem:[%s643 + $0xc] sm:$0xf]
        %v847 = vunpack.c.l.b16 %v839
        %v848 = vunpack.c.l.b16 %v840
        %v849 = vunpack.c.l.b16 %v841
        %v850 = vunpack.c.l.b16 %v842
        %v851 = vpack.c.b16 %v848, %v847
        %v852 = vpack.c.b16 %v850, %v849
        %v856 = vsel %vm794, %v838, 0
        %858 = vmatprep.subr.bf16.mxu0 0
        %859 = vmatpush1.bf16.msra.mxu0 %v851
        %860 = vmatprep.subr.bf16.mxu0 0
        %861 = vmatpush1.bf16.msra.mxu0 %v852
        %862 = vmatprep.subr.bf16.mxu0 0
        %863 = vmatpush1.bf16.msra.mxu0 0
        %864 = vmatprep.subr.bf16.mxu0 0
        %865 = vmatpush1.bf16.msra.mxu0 0
        %866 = vmatprep.subr.bf16.mxu0 0
        %867 = vmatpush1.bf16.msra.mxu0 0
        %868 = vmatprep.subr.bf16.mxu0 0
        %869 = vmatpush1.bf16.msra.mxu0 0
        %870 = vmatprep.subr.bf16.mxu0 0
        %871 = vmatpush1.bf16.msra.mxu0 0
        %872 = vmatprep.subr.bf16.mxu0 0
        %873 = vmatpush1.bf16.msra.mxu0 0
        %874 = vmatprep.subr.bf16.mxu0 0
        %875 = vmatpush1.bf16.msra.mxu0 0
        %876 = vmatprep.subr.bf16.mxu0 0
        %877 = vmatpush1.bf16.msra.mxu0 0
        %878 = vmatprep.subr.bf16.mxu0 0
        %879 = vmatpush1.bf16.msra.mxu0 0
        %880 = vmatprep.subr.bf16.mxu0 0
        %881 = vmatpush1.bf16.msra.mxu0 0
        %882 = vmatprep.subr.bf16.mxu0 0
        %883 = vmatpush1.bf16.msra.mxu0 0
        %884 = vmatprep.subr.bf16.mxu0 0
        %885 = vmatpush1.bf16.msra.mxu0 0
        %886 = vmatprep.subr.bf16.mxu0 0
        %887 = vmatpush1.bf16.msra.mxu0 0
        %888 = vmatprep.subr.bf16.mxu0 0
        %889 = vmatpush1.bf16.msra.mxu0 0
        %890 = vmatprep.mubr.bf16.mxu0 0
        %891 = vmatmul.mubr.bf16.gmra.mrb[0].mxu0 %v856
        %v892 = vpop.f32.mrb[0].mxu0
        %v893 = vadd.f32 0.0, %v892
        %v894 = vpop.f32.mrb[0].mxu0
        %v895 = vpop.f32.mrb[0].mxu0
        %v896 = vadd.f32 0.0, %v895
        %v897 = vpop.f32.mrb[0].mxu0
        %898 = vdwg.mxu0
        %v899 = vpack.c.bf16 %v896, %v893
        %v900 = vld [vmem:[#allocation6] sm:$0x1]
        %902 = vrot.lane.b32.xlu0 %v899, 96
        %v903 = vpop.permute.xlu0 %902
        %vm904 = vcmask 64512
        %v906 = vsel %vm904, %v899, 0
        %v909 = vsel %vm904, %v903, 0
        %911 = vmatprep.subr.bf16.mxu0 0
        %912 = vmatpush1.bf16.xpose.msra.mxu0 %v909
        %913 = vmatprep.subr.bf16.mxu0 0
        %914 = vmatpush1.bf16.xpose.msra.mxu0 0
        %915 = vmatprep.subr.bf16.mxu0 0
        %916 = vmatpush1.bf16.xpose.msra.mxu0 0
        %917 = vmatprep.subr.bf16.mxu0 0
        %918 = vmatpush1.bf16.xpose.msra.mxu0 0
        %919 = vmatprep.subr.bf16.mxu0 0
        %920 = vmatpush1.bf16.xpose.msra.mxu0 0
        %921 = vmatprep.subr.bf16.mxu0 0
        %922 = vmatpush1.bf16.xpose.msra.mxu0 0
        %923 = vmatprep.subr.bf16.mxu0 0
        %924 = vmatpush1.bf16.xpose.msra.mxu0 0
        %925 = vmatprep.subr.bf16.mxu0 0
        %926 = vmatpush1.bf16.xpose.msra.mxu0 0
        %927 = vmatprep.subr.bf16.mxu0 0
        %928 = vmatpush1.bf16.xpose.msra.mxu0 0
        %929 = vmatprep.subr.bf16.mxu0 0
        %930 = vmatpush1.bf16.xpose.msra.mxu0 0
        %931 = vmatprep.subr.bf16.mxu0 0
        %932 = vmatpush1.bf16.xpose.msra.mxu0 0
        %933 = vmatprep.subr.bf16.mxu0 0
        %934 = vmatpush1.bf16.xpose.msra.mxu0 0
        %935 = vmatprep.subr.bf16.mxu0 0
        %936 = vmatpush1.bf16.xpose.msra.mxu0 0
        %937 = vmatprep.subr.bf16.mxu0 0
        %938 = vmatpush1.bf16.xpose.msra.mxu0 0
        %939 = vmatprep.subr.bf16.mxu0 0
        %940 = vmatpush1.bf16.xpose.msra.mxu0 0
        %941 = vmatprep.subr.bf16.mxu0 0
        %942 = vmatpush1.bf16.xpose.msra.mxu0 0
        %943 = vmatprep.mubr.bf16.mxu0 0
        %944 = vmatmul.mubr.bf16.gmra.mrb[0].mxu0 %v906
        %v945 = vpop.f32.mrb[0].mxu0
        %v946 = vadd.f32 0.0, %v945
        %v947 = vpop.f32.mrb[0].mxu0
        %v948 = vpop.f32.mrb[0].mxu0
        %v949 = vpop.f32.mrb[0].mxu0
        %950 = vdwg.mxu0
        %v951 = vmul.f32 %v946, 0.35355338
        %v953 = vlaneseq
        %v954 = vshrl.u32 %v953, 7
        %v955 = vsub.s32 0, %v954
        %v956 = vrot.slane %v900, %v955
        %v958 = vadd.f32 %v951, %v956
        %v959 = vsel %vm904, %v958, -inf
        %960 = vmax.xlane.f32.xlu0 %v959
        %v961 = vpop.xlane.xlu0 %960
        %v962 = vsub.f32 %v958, %v961
        %v963 = vmul.f32 %v962, 1.442695
        %v964 = vpow.pop %v963
        %v965 = vsel %vm904, %v964, 0.0
        %966 = vadd.xlane.f32.xlu0 %v965
        %v967 = vpop.xlane.xlu0 %966
        %v968 = vrcp.pop %v967
        %v969 = vmul.f32 %v964, %v968
        %v970 = vpack.c.bf16 %v969, %v969
        %971 = vrot.lane.b32.xlu0 %v899, 64
        %v972 = vpop.permute.xlu0 %971
        %v974 = vsel %vm904, %v970, 0
        %vm976 = vcmask 1043456
        %v978 = vsel %vm976, %v972, 0
        %980 = vmatprep.subr.bf16.mxu0 0
        %981 = vmatpush1.bf16.msra.mxu0 %v978
        %982 = vmatprep.subr.bf16.mxu0 0
        %983 = vmatpush1.bf16.msra.mxu0 0
        %984 = vmatprep.subr.bf16.mxu0 0
        %985 = vmatpush1.bf16.msra.mxu0 0
        %986 = vmatprep.subr.bf16.mxu0 0
        %987 = vmatpush1.bf16.msra.mxu0 0
        %988 = vmatprep.subr.bf16.mxu0 0
        %989 = vmatpush1.bf16.msra.mxu0 0
        %990 = vmatprep.subr.bf16.mxu0 0
        %991 = vmatpush1.bf16.msra.mxu0 0
        %992 = vmatprep.subr.bf16.mxu0 0
        %993 = vmatpush1.bf16.msra.mxu0 0
        %994 = vmatprep.subr.bf16.mxu0 0
        %995 = vmatpush1.bf16.msra.mxu0 0
        %996 = vmatprep.subr.bf16.mxu0 0
        %997 = vmatpush1.bf16.msra.mxu0 0
        %998 = vmatprep.subr.bf16.mxu0 0
        %999 = vmatpush1.bf16.msra.mxu0 0
        %1000 = vmatprep.subr.bf16.mxu0 0
        %1001 = vmatpush1.bf16.msra.mxu0 0
        %1002 = vmatprep.subr.bf16.mxu0 0
        %1003 = vmatpush1.bf16.msra.mxu0 0
        %1004 = vmatprep.subr.bf16.mxu0 0
        %1005 = vmatpush1.bf16.msra.mxu0 0
        %1006 = vmatprep.subr.bf16.mxu0 0
        %1007 = vmatpush1.bf16.msra.mxu0 0
        %1008 = vmatprep.subr.bf16.mxu0 0
        %1009 = vmatpush1.bf16.msra.mxu0 0
        %1010 = vmatprep.subr.bf16.mxu0 0
        %1011 = vmatpush1.bf16.msra.mxu0 0
        %1012 = vmatprep.mubr.bf16.mxu0 0
        %1013 = vmatmul.mubr.bf16.gmra.mrb[0].mxu0 %v974
        %v1014 = vpop.f32.mrb[0].mxu0
        %v1015 = vadd.f32 0.0, %v1014
        %v1016 = vpop.f32.mrb[0].mxu0
        %v1017 = vpop.f32.mrb[0].mxu0
        %v1018 = vpop.f32.mrb[0].mxu0
        %1019 = vdwg.mxu0
        %1020 = vst.msk [vmem:[#allocation2] sm:$0xff] %vm904, %v1015
        %1021 = vrot.lane.b32.xlu0 %v899, 120
        %v1022 = vpop.permute.xlu0 %1021
        %1023 = vrot.lane.b32.xlu0 %v899, 88
        %v1024 = vpop.permute.xlu0 %1023
        %v1026 = vsel %vm904, %v1022, 0
        %v1029 = vsel %vm904, %v1024, 0
        %1031 = vmatprep.subr.bf16.mxu0 0
        %1032 = vmatpush1.bf16.xpose.msra.mxu0 %v1029
        %1033 = vmatprep.subr.bf16.mxu0 0
        %1034 = vmatpush1.bf16.xpose.msra.mxu0 0
        %1035 = vmatprep.subr.bf16.mxu0 0
        %1036 = vmatpush1.bf16.xpose.msra.mxu0 0
        %1037 = vmatprep.subr.bf16.mxu0 0
        %1038 = vmatpush1.bf16.xpose.msra.mxu0 0
        %1039 = vmatprep.subr.bf16.mxu0 0
        %1040 = vmatpush1.bf16.xpose.msra.mxu0 0
        %1041 = vmatprep.subr.bf16.mxu0 0
        %1042 = vmatpush1.bf16.xpose.msra.mxu0 0
        %1043 = vmatprep.subr.bf16.mxu0 0
        %1044 = vmatpush1.bf16.xpose.msra.mxu0 0
        %1045 = vmatprep.subr.bf16.mxu0 0
        %1046 = vmatpush1.bf16.xpose.msra.mxu0 0
        %1047 = vmatprep.subr.bf16.mxu0 0
        %1048 = vmatpush1.bf16.xpose.msra.mxu0 0
        %1049 = vmatprep.subr.bf16.mxu0 0
        %1050 = vmatpush1.bf16.xpose.msra.mxu0 0
        %1051 = vmatprep.subr.bf16.mxu0 0
        %1052 = vmatpush1.bf16.xpose.msra.mxu0 0
        %1053 = vmatprep.subr.bf16.mxu0 0
        %1054 = vmatpush1.bf16.xpose.msra.mxu0 0
        %1055 = vmatprep.subr.bf16.mxu0 0
        %1056 = vmatpush1.bf16.xpose.msra.mxu0 0
        %1057 = vmatprep.subr.bf16.mxu0 0
        %1058 = vmatpush1.bf16.xpose.msra.mxu0 0
        %1059 = vmatprep.subr.bf16.mxu0 0
        %1060 = vmatpush1.bf16.xpose.msra.mxu0 0
        %1061 = vmatprep.subr.bf16.mxu0 0
        %1062 = vmatpush1.bf16.xpose.msra.mxu0 0
        %1063 = vmatprep.mubr.bf16.mxu0 0
        %1064 = vmatmul.mubr.bf16.gmra.mrb[0].mxu0 %v1026
        %v1065 = vpop.f32.mrb[0].mxu0
        %v1066 = vadd.f32 0.0, %v1065
        %v1067 = vpop.f32.mrb[0].mxu0
        %v1068 = vpop.f32.mrb[0].mxu0
        %v1069 = vpop.f32.mrb[0].mxu0
        %1070 = vdwg.mxu0
        %v1071 = vmul.f32 %v1066, 0.35355338
        %v1072 = vadd.f32 %v1071, %v956
        %v1073 = vsel %vm904, %v1072, -inf
        %1074 = vmax.xlane.f32.xlu0 %v1073
        %v1075 = vpop.xlane.xlu0 %1074
        %v1076 = vsub.f32 %v1072, %v1075
        %v1077 = vmul.f32 %v1076, 1.442695
        %v1078 = vpow.pop %v1077
        %v1079 = vsel %vm904, %v1078, 0.0
        %1080 = vadd.xlane.f32.xlu0 %v1079
        %v1081 = vpop.xlane.xlu0 %1080
        %v1082 = vrcp.pop %v1081
        %v1083 = vmul.f32 %v1078, %v1082
        %v1084 = vpack.c.bf16 %v1083, %v1083
        %1085 = vrot.lane.b32.xlu0 %v899, 56
        %v1086 = vpop.permute.xlu0 %1085
        %v1088 = vsel %vm904, %v1084, 0
        %v1091 = vsel %vm976, %v1086, 0
        %1093 = vmatprep.subr.bf16.mxu0 0
        %1094 = vmatpush1.bf16.msra.mxu0 %v1091
        %1095 = vmatprep.subr.bf16.mxu0 0
        %1096 = vmatpush1.bf16.msra.mxu0 0
        %1097 = vmatprep.subr.bf16.mxu0 0
        %1098 = vmatpush1.bf16.msra.mxu0 0
        %1099 = vmatprep.subr.bf16.mxu0 0
        %1100 = vmatpush1.bf16.msra.mxu0 0
        %1101 = vmatprep.subr.bf16.mxu0 0
        %1102 = vmatpush1.bf16.msra.mxu0 0
        %1103 = vmatprep.subr.bf16.mxu0 0
        %1104 = vmatpush1.bf16.msra.mxu0 0
        %1105 = vmatprep.subr.bf16.mxu0 0
        %1106 = vmatpush1.bf16.msra.mxu0 0
        %1107 = vmatprep.subr.bf16.mxu0 0
        %1108 = vmatpush1.bf16.msra.mxu0 0
        %1109 = vmatprep.subr.bf16.mxu0 0
        %1110 = vmatpush1.bf16.msra.mxu0 0
        %1111 = vmatprep.subr.bf16.mxu0 0
        %1112 = vmatpush1.bf16.msra.mxu0 0
        %1113 = vmatprep.subr.bf16.mxu0 0
        %1114 = vmatpush1.bf16.msra.mxu0 0
        %1115 = vmatprep.subr.bf16.mxu0 0
        %1116 = vmatpush1.bf16.msra.mxu0 0
        %1117 = vmatprep.subr.bf16.mxu0 0
        %1118 = vmatpush1.bf16.msra.mxu0 0
        %1119 = vmatprep.subr.bf16.mxu0 0
        %1120 = vmatpush1.bf16.msra.mxu0 0
        %1121 = vmatprep.subr.bf16.mxu0 0
        %1122 = vmatpush1.bf16.msra.mxu0 0
        %1123 = vmatprep.subr.bf16.mxu0 0
        %1124 = vmatpush1.bf16.msra.mxu0 0
        %1125 = vmatprep.mubr.bf16.mxu0 0
        %1126 = vmatmul.mubr.bf16.gmra.mrb[0].mxu0 %v1088
        %v1127 = vpop.f32.mrb[0].mxu0
        %v1128 = vadd.f32 0.0, %v1127
        %v1129 = vpop.f32.mrb[0].mxu0
        %v1130 = vpop.f32.mrb[0].mxu0
        %v1131 = vpop.f32.mrb[0].mxu0
        %1132 = vdwg.mxu0
        %1134 = vrot.lane.b32.xlu0 %v1128, 8
        %v1135 = vpop.permute.xlu0 %1134
        %vm1137 = vcmask 130112
        %1138 = vst.msk [vmem:[#allocation2] sm:$0xff] %vm1137, %v1135
        %1139 = vrot.lane.b32.xlu0 %v899, 112
        %v1140 = vpop.permute.xlu0 %1139
        %1141 = vrot.lane.b32.xlu0 %v899, 80
        %v1142 = vpop.permute.xlu0 %1141
        %v1144 = vsel %vm904, %v1140, 0
        %v1147 = vsel %vm904, %v1142, 0
        %1149 = vmatprep.subr.bf16.mxu0 0
        %1150 = vmatpush1.bf16.xpose.msra.mxu0 %v1147
        %1151 = vmatprep.subr.bf16.mxu0 0
        %1152 = vmatpush1.bf16.xpose.msra.mxu0 0
        %1153 = vmatprep.subr.bf16.mxu0 0
        %1154 = vmatpush1.bf16.xpose.msra.mxu0 0
        %1155 = vmatprep.subr.bf16.mxu0 0
        %1156 = vmatpush1.bf16.xpose.msra.mxu0 0
        %1157 = vmatprep.subr.bf16.mxu0 0
        %1158 = vmatpush1.bf16.xpose.msra.mxu0 0
        %1159 = vmatprep.subr.bf16.mxu0 0
        %1160 = vmatpush1.bf16.xpose.msra.mxu0 0
        %1161 = vmatprep.subr.bf16.mxu0 0
        %1162 = vmatpush1.bf16.xpose.msra.mxu0 0
        %1163 = vmatprep.subr.bf16.mxu0 0
        %1164 = vmatpush1.bf16.xpose.msra.mxu0 0
        %1165 = vmatprep.subr.bf16.mxu0 0
        %1166 = vmatpush1.bf16.xpose.msra.mxu0 0
        %1167 = vmatprep.subr.bf16.mxu0 0
        %1168 = vmatpush1.bf16.xpose.msra.mxu0 0
        %1169 = vmatprep.subr.bf16.mxu0 0
        %1170 = vmatpush1.bf16.xpose.msra.mxu0 0
        %1171 = vmatprep.subr.bf16.mxu0 0
        %1172 = vmatpush1.bf16.xpose.msra.mxu0 0
        %1173 = vmatprep.subr.bf16.mxu0 0
        %1174 = vmatpush1.bf16.xpose.msra.mxu0 0
        %1175 = vmatprep.subr.bf16.mxu0 0
        %1176 = vmatpush1.bf16.xpose.msra.mxu0 0
        %1177 = vmatprep.subr.bf16.mxu0 0
        %1178 = vmatpush1.bf16.xpose.msra.mxu0 0
        %1179 = vmatprep.subr.bf16.mxu0 0
        %1180 = vmatpush1.bf16.xpose.msra.mxu0 0
        %1181 = vmatprep.mubr.bf16.mxu0 0
        %1182 = vmatmul.mubr.bf16.gmra.mrb[0].mxu0 %v1144
        %v1183 = vpop.f32.mrb[0].mxu0
        %v1184 = vadd.f32 0.0, %v1183
        %v1185 = vpop.f32.mrb[0].mxu0
        %v1186 = vpop.f32.mrb[0].mxu0
        %v1187 = vpop.f32.mrb[0].mxu0
        %1188 = vdwg.mxu0
        %v1189 = vmul.f32 %v1184, 0.35355338
        %v1190 = vadd.f32 %v1189, %v956
        %v1191 = vsel %vm904, %v1190, -inf
        %1192 = vmax.xlane.f32.xlu0 %v1191
        %v1193 = vpop.xlane.xlu0 %1192
        %v1194 = vsub.f32 %v1190, %v1193
        %v1195 = vmul.f32 %v1194, 1.442695
        %v1196 = vpow.pop %v1195
        %v1197 = vsel %vm904, %v1196, 0.0
        %1198 = vadd.xlane.f32.xlu0 %v1197
        %v1199 = vpop.xlane.xlu0 %1198
        %v1200 = vrcp.pop %v1199
        %v1201 = vmul.f32 %v1196, %v1200
        %v1202 = vpack.c.bf16 %v1201, %v1201
        %1203 = vrot.lane.b32.xlu0 %v899, 48
        %v1204 = vpop.permute.xlu0 %1203
        %v1206 = vsel %vm904, %v1202, 0
        %v1209 = vsel %vm976, %v1204, 0
        %1211 = vmatprep.subr.bf16.mxu0 0
        %1212 = vmatpush1.bf16.msra.mxu0 %v1209
        %1213 = vmatprep.subr.bf16.mxu0 0
        %1214 = vmatpush1.bf16.msra.mxu0 0
        %1215 = vmatprep.subr.bf16.mxu0 0
        %1216 = vmatpush1.bf16.msra.mxu0 0
        %1217 = vmatprep.subr.bf16.mxu0 0
        %1218 = vmatpush1.bf16.msra.mxu0 0
        %1219 = vmatprep.subr.bf16.mxu0 0
        %1220 = vmatpush1.bf16.msra.mxu0 0
        %1221 = vmatprep.subr.bf16.mxu0 0
        %1222 = vmatpush1.bf16.msra.mxu0 0
        %1223 = vmatprep.subr.bf16.mxu0 0
        %1224 = vmatpush1.bf16.msra.mxu0 0
        %1225 = vmatprep.subr.bf16.mxu0 0
        %1226 = vmatpush1.bf16.msra.mxu0 0
        %1227 = vmatprep.subr.bf16.mxu0 0
        %1228 = vmatpush1.bf16.msra.mxu0 0
        %1229 = vmatprep.subr.bf16.mxu0 0
        %1230 = vmatpush1.bf16.msra.mxu0 0
        %1231 = vmatprep.subr.bf16.mxu0 0
        %1232 = vmatpush1.bf16.msra.mxu0 0
        %1233 = vmatprep.subr.bf16.mxu0 0
        %1234 = vmatpush1.bf16.msra.mxu0 0
        %1235 = vmatprep.subr.bf16.mxu0 0
        %1236 = vmatpush1.bf16.msra.mxu0 0
        %1237 = vmatprep.subr.bf16.mxu0 0
        %1238 = vmatpush1.bf16.msra.mxu0 0
        %1239 = vmatprep.subr.bf16.mxu0 0
        %1240 = vmatpush1.bf16.msra.mxu0 0
        %1241 = vmatprep.subr.bf16.mxu0 0
        %1242 = vmatpush1.bf16.msra.mxu0 0
        %1243 = vmatprep.mubr.bf16.mxu0 0
        %1244 = vmatmul.mubr.bf16.gmra.mrb[0].mxu0 %v1206
        %v1245 = vpop.f32.mrb[0].mxu0
        %v1246 = vadd.f32 0.0, %v1245
        %v1247 = vpop.f32.mrb[0].mxu0
        %v1248 = vpop.f32.mrb[0].mxu0
        %v1249 = vpop.f32.mrb[0].mxu0
        %1250 = vdwg.mxu0
        %1252 = vrot.lane.b32.xlu0 %v1246, 16
        %v1253 = vpop.permute.xlu0 %1252
        %vm1255 = vcmask 195712
        %1256 = vst.msk [vmem:[#allocation2] sm:$0xff] %vm1255, %v1253
        %1257 = vrot.lane.b32.xlu0 %v899, 104
        %v1258 = vpop.permute.xlu0 %1257
        %1259 = vrot.lane.b32.xlu0 %v899, 72
        %v1260 = vpop.permute.xlu0 %1259
        %v1262 = vsel %vm904, %v1258, 0
        %v1265 = vsel %vm904, %v1260, 0
        %1267 = vmatprep.subr.bf16.mxu0 0
        %1268 = vmatpush1.bf16.xpose.msra.mxu0 %v1265
        %1269 = vmatprep.subr.bf16.mxu0 0
        %1270 = vmatpush1.bf16.xpose.msra.mxu0 0
        %1271 = vmatprep.subr.bf16.mxu0 0
        %1272 = vmatpush1.bf16.xpose.msra.mxu0 0
        %1273 = vmatprep.subr.bf16.mxu0 0
        %1274 = vmatpush1.bf16.xpose.msra.mxu0 0
        %1275 = vmatprep.subr.bf16.mxu0 0
        %1276 = vmatpush1.bf16.xpose.msra.mxu0 0
        %1277 = vmatprep.subr.bf16.mxu0 0
        %1278 = vmatpush1.bf16.xpose.msra.mxu0 0
        %1279 = vmatprep.subr.bf16.mxu0 0
        %1280 = vmatpush1.bf16.xpose.msra.mxu0 0
        %1281 = vmatprep.subr.bf16.mxu0 0
        %1282 = vmatpush1.bf16.xpose.msra.mxu0 0
        %1283 = vmatprep.subr.bf16.mxu0 0
        %1284 = vmatpush1.bf16.xpose.msra.mxu0 0
        %1285 = vmatprep.subr.bf16.mxu0 0
        %1286 = vmatpush1.bf16.xpose.msra.mxu0 0
        %1287 = vmatprep.subr.bf16.mxu0 0
        %1288 = vmatpush1.bf16.xpose.msra.mxu0 0
        %1289 = vmatprep.subr.bf16.mxu0 0
        %1290 = vmatpush1.bf16.xpose.msra.mxu0 0
        %1291 = vmatprep.subr.bf16.mxu0 0
        %1292 = vmatpush1.bf16.xpose.msra.mxu0 0
        %1293 = vmatprep.subr.bf16.mxu0 0
        %1294 = vmatpush1.bf16.xpose.msra.mxu0 0
        %1295 = vmatprep.subr.bf16.mxu0 0
        %1296 = vmatpush1.bf16.xpose.msra.mxu0 0
        %1297 = vmatprep.subr.bf16.mxu0 0
        %1298 = vmatpush1.bf16.xpose.msra.mxu0 0
        %1299 = vmatprep.mubr.bf16.mxu0 0
        %1300 = vmatmul.mubr.bf16.gmra.mrb[0].mxu0 %v1262
        %v1301 = vpop.f32.mrb[0].mxu0
        %v1302 = vadd.f32 0.0, %v1301
        %v1303 = vpop.f32.mrb[0].mxu0
        %v1304 = vpop.f32.mrb[0].mxu0
        %v1305 = vpop.f32.mrb[0].mxu0
        %1306 = vdwg.mxu0
        %v1307 = vmul.f32 %v1302, 0.35355338
        %v1308 = vadd.f32 %v1307, %v956
        %v1309 = vsel %vm904, %v1308, -inf
        %1310 = vmax.xlane.f32.xlu0 %v1309
        %v1311 = vpop.xlane.xlu0 %1310
        %v1312 = vsub.f32 %v1308, %v1311
        %v1313 = vmul.f32 %v1312, 1.442695
        %v1314 = vpow.pop %v1313
        %v1315 = vsel %vm904, %v1314, 0.0
        %1316 = vadd.xlane.f32.xlu0 %v1315
        %v1317 = vpop.xlane.xlu0 %1316
        %v1318 = vrcp.pop %v1317
        %v1319 = vmul.f32 %v1314, %v1318
        %v1320 = vpack.c.bf16 %v1319, %v1319
        %1321 = vrot.lane.b32.xlu0 %v899, 40
        %v1322 = vpop.permute.xlu0 %1321
        %v1324 = vsel %vm904, %v1320, 0
        %v1327 = vsel %vm976, %v1322, 0
        %1329 = vmatprep.subr.bf16.mxu0 0
        %1330 = vmatpush1.bf16.msra.mxu0 %v1327
        %1331 = vmatprep.subr.bf16.mxu0 0
        %1332 = vmatpush1.bf16.msra.mxu0 0
        %1333 = vmatprep.subr.bf16.mxu0 0
        %1334 = vmatpush1.bf16.msra.mxu0 0
        %1335 = vmatprep.subr.bf16.mxu0 0
        %1336 = vmatpush1.bf16.msra.mxu0 0
        %1337 = vmatprep.subr.bf16.mxu0 0
        %1338 = vmatpush1.bf16.msra.mxu0 0
        %1339 = vmatprep.subr.bf16.mxu0 0
        %1340 = vmatpush1.bf16.msra.mxu0 0
        %1341 = vmatprep.subr.bf16.mxu0 0
        %1342 = vmatpush1.bf16.msra.mxu0 0
        %1343 = vmatprep.subr.bf16.mxu0 0
        %1344 = vmatpush1.bf16.msra.mxu0 0
        %1345 = vmatprep.subr.bf16.mxu0 0
        %1346 = vmatpush1.bf16.msra.mxu0 0
        %1347 = vmatprep.subr.bf16.mxu0 0
        %1348 = vmatpush1.bf16.msra.mxu0 0
        %1349 = vmatprep.subr.bf16.mxu0 0
        %1350 = vmatpush1.bf16.msra.mxu0 0
        %1351 = vmatprep.subr.bf16.mxu0 0
        %1352 = vmatpush1.bf16.msra.mxu0 0
        %1353 = vmatprep.subr.bf16.mxu0 0
        %1354 = vmatpush1.bf16.msra.mxu0 0
        %1355 = vmatprep.subr.bf16.mxu0 0
        %1356 = vmatpush1.bf16.msra.mxu0 0
        %1357 = vmatprep.subr.bf16.mxu0 0
        %1358 = vmatpush1.bf16.msra.mxu0 0
        %1359 = vmatprep.subr.bf16.mxu0 0
        %1360 = vmatpush1.bf16.msra.mxu0 0
        %1361 = vmatprep.mubr.bf16.mxu0 0
        %1362 = vmatmul.mubr.bf16.gmra.mrb[0].mxu0 %v1324
        %v1363 = vpop.f32.mrb[0].mxu0
        %v1364 = vadd.f32 0.0, %v1363
        %v1365 = vpop.f32.mrb[0].mxu0
        %v1366 = vpop.f32.mrb[0].mxu0
        %v1367 = vpop.f32.mrb[0].mxu0
        %1368 = vdwg.mxu0
        %1370 = vrot.lane.b32.xlu0 %v1364, 24
        %v1371 = vpop.permute.xlu0 %1370
        %vm1373 = vcmask 261312
        %1374 = vst.msk [vmem:[#allocation2] sm:$0xff] %vm1373, %v1371
        %s1375 = scalar_lea.vmem [#allocation6], 1
        %v1376 = vld [vmem:[%s1375] sm:$0x1]
        %v1377 = vrot.slane %v899, 4
        %1378 = vrot.lane.b32.xlu0 %v1377, 96
        %v1379 = vpop.permute.xlu0 %1378
        %v1381 = vsel %vm904, %v1377, 0
        %v1384 = vsel %vm904, %v1379, 0
        %1386 = vmatprep.subr.bf16.mxu0 0
        %1387 = vmatpush1.bf16.xpose.msra.mxu0 %v1384
        %1388 = vmatprep.subr.bf16.mxu0 0
        %1389 = vmatpush1.bf16.xpose.msra.mxu0 0
        %1390 = vmatprep.subr.bf16.mxu0 0
        %1391 = vmatpush1.bf16.xpose.msra.mxu0 0
        %1392 = vmatprep.subr.bf16.mxu0 0
        %1393 = vmatpush1.bf16.xpose.msra.mxu0 0
        %1394 = vmatprep.subr.bf16.mxu0 0
        %1395 = vmatpush1.bf16.xpose.msra.mxu0 0
        %1396 = vmatprep.subr.bf16.mxu0 0
        %1397 = vmatpush1.bf16.xpose.msra.mxu0 0
        %1398 = vmatprep.subr.bf16.mxu0 0
        %1399 = vmatpush1.bf16.xpose.msra.mxu0 0
        %1400 = vmatprep.subr.bf16.mxu0 0
        %1401 = vmatpush1.bf16.xpose.msra.mxu0 0
        %1402 = vmatprep.subr.bf16.mxu0 0
        %1403 = vmatpush1.bf16.xpose.msra.mxu0 0
        %1404 = vmatprep.subr.bf16.mxu0 0
        %1405 = vmatpush1.bf16.xpose.msra.mxu0 0
        %1406 = vmatprep.subr.bf16.mxu0 0
        %1407 = vmatpush1.bf16.xpose.msra.mxu0 0
        %1408 = vmatprep.subr.bf16.mxu0 0
        %1409 = vmatpush1.bf16.xpose.msra.mxu0 0
        %1410 = vmatprep.subr.bf16.mxu0 0
        %1411 = vmatpush1.bf16.xpose.msra.mxu0 0
        %1412 = vmatprep.subr.bf16.mxu0 0
        %1413 = vmatpush1.bf16.xpose.msra.mxu0 0
        %1414 = vmatprep.subr.bf16.mxu0 0
        %1415 = vmatpush1.bf16.xpose.msra.mxu0 0
        %1416 = vmatprep.subr.bf16.mxu0 0
        %1417 = vmatpush1.bf16.xpose.msra.mxu0 0
        %1418 = vmatprep.mubr.bf16.mxu0 0
        %1419 = vmatmul.mubr.bf16.gmra.mrb[0].mxu0 %v1381
        %v1420 = vpop.f32.mrb[0].mxu0
        %v1421 = vadd.f32 0.0, %v1420
        %v1422 = vpop.f32.mrb[0].mxu0
        %v1423 = vpop.f32.mrb[0].mxu0
        %v1424 = vpop.f32.mrb[0].mxu0
        %1425 = vdwg.mxu0
        %v1426 = vmul.f32 %v1421, 0.35355338
        %v1428 = vlaneseq
        %v1429 = vshrl.u32 %v1428, 7
        %v1430 = vsub.s32 0, %v1429
        %v1431 = vrot.slane %v1376, %v1430
        %v1433 = vadd.f32 %v1426, %v1431
        %v1434 = vsel %vm904, %v1433, -inf
        %1435 = vmax.xlane.f32.xlu0 %v1434
        %v1436 = vpop.xlane.xlu0 %1435
        %v1437 = vsub.f32 %v1433, %v1436
        %v1438 = vmul.f32 %v1437, 1.442695
        %v1439 = vpow.pop %v1438
        %v1440 = vsel %vm904, %v1439, 0.0
        %1441 = vadd.xlane.f32.xlu0 %v1440
        %v1442 = vpop.xlane.xlu0 %1441
        %v1443 = vrcp.pop %v1442
        %v1444 = vmul.f32 %v1439, %v1443
        %v1445 = vpack.c.bf16 %v1444, %v1444
        %1446 = vrot.lane.b32.xlu0 %v1377, 64
        %v1447 = vpop.permute.xlu0 %1446
        %v1449 = vsel %vm904, %v1445, 0
        %v1452 = vsel %vm976, %v1447, 0
        %1454 = vmatprep.subr.bf16.mxu0 0
        %1455 = vmatpush1.bf16.msra.mxu0 %v1452
        %1456 = vmatprep.subr.bf16.mxu0 0
        %1457 = vmatpush1.bf16.msra.mxu0 0
        %1458 = vmatprep.subr.bf16.mxu0 0
        %1459 = vmatpush1.bf16.msra.mxu0 0
        %1460 = vmatprep.subr.bf16.mxu0 0
        %1461 = vmatpush1.bf16.msra.mxu0 0
        %1462 = vmatprep.subr.bf16.mxu0 0
        %1463 = vmatpush1.bf16.msra.mxu0 0
        %1464 = vmatprep.subr.bf16.mxu0 0
        %1465 = vmatpush1.bf16.msra.mxu0 0
        %1466 = vmatprep.subr.bf16.mxu0 0
        %1467 = vmatpush1.bf16.msra.mxu0 0
        %1468 = vmatprep.subr.bf16.mxu0 0
        %1469 = vmatpush1.bf16.msra.mxu0 0
        %1470 = vmatprep.subr.bf16.mxu0 0
        %1471 = vmatpush1.bf16.msra.mxu0 0
        %1472 = vmatprep.subr.bf16.mxu0 0
        %1473 = vmatpush1.bf16.msra.mxu0 0
        %1474 = vmatprep.subr.bf16.mxu0 0
        %1475 = vmatpush1.bf16.msra.mxu0 0
        %1476 = vmatprep.subr.bf16.mxu0 0
        %1477 = vmatpush1.bf16.msra.mxu0 0
        %1478 = vmatprep.subr.bf16.mxu0 0
        %1479 = vmatpush1.bf16.msra.mxu0 0
        %1480 = vmatprep.subr.bf16.mxu0 0
        %1481 = vmatpush1.bf16.msra.mxu0 0
        %1482 = vmatprep.subr.bf16.mxu0 0
        %1483 = vmatpush1.bf16.msra.mxu0 0
        %1484 = vmatprep.subr.bf16.mxu0 0
        %1485 = vmatpush1.bf16.msra.mxu0 0
        %1486 = vmatprep.mubr.bf16.mxu0 0
        %1487 = vmatmul.mubr.bf16.gmra.mrb[0].mxu0 %v1449
        %v1488 = vpop.f32.mrb[0].mxu0
        %v1489 = vadd.f32 0.0, %v1488
        %v1490 = vpop.f32.mrb[0].mxu0
        %v1491 = vpop.f32.mrb[0].mxu0
        %v1492 = vpop.f32.mrb[0].mxu0
        %1493 = vdwg.mxu0
        %1494 = vst.msk [vmem:[#allocation2 + $0x8] sm:$0xff] %vm904, %v1489
        %1495 = vrot.lane.b32.xlu0 %v1377, 120
        %v1496 = vpop.permute.xlu0 %1495
        %1497 = vrot.lane.b32.xlu0 %v1377, 88
        %v1498 = vpop.permute.xlu0 %1497
        %v1500 = vsel %vm904, %v1496, 0
        %v1503 = vsel %vm904, %v1498, 0
        %1505 = vmatprep.subr.bf16.mxu0 0
        %1506 = vmatpush1.bf16.xpose.msra.mxu0 %v1503
        %1507 = vmatprep.subr.bf16.mxu0 0
        %1508 = vmatpush1.bf16.xpose.msra.mxu0 0
        %1509 = vmatprep.subr.bf16.mxu0 0
        %1510 = vmatpush1.bf16.xpose.msra.mxu0 0
        %1511 = vmatprep.subr.bf16.mxu0 0
        %1512 = vmatpush1.bf16.xpose.msra.mxu0 0
        %1513 = vmatprep.subr.bf16.mxu0 0
        %1514 = vmatpush1.bf16.xpose.msra.mxu0 0
        %1515 = vmatprep.subr.bf16.mxu0 0
        %1516 = vmatpush1.bf16.xpose.msra.mxu0 0
        %1517 = vmatprep.subr.bf16.mxu0 0
        %1518 = vmatpush1.bf16.xpose.msra.mxu0 0
        %1519 = vmatprep.subr.bf16.mxu0 0
        %1520 = vmatpush1.bf16.xpose.msra.mxu0 0
        %1521 = vmatprep.subr.bf16.mxu0 0
        %1522 = vmatpush1.bf16.xpose.msra.mxu0 0
        %1523 = vmatprep.subr.bf16.mxu0 0
        %1524 = vmatpush1.bf16.xpose.msra.mxu0 0
        %1525 = vmatprep.subr.bf16.mxu0 0
        %1526 = vmatpush1.bf16.xpose.msra.mxu0 0
        %1527 = vmatprep.subr.bf16.mxu0 0
        %1528 = vmatpush1.bf16.xpose.msra.mxu0 0
        %1529 = vmatprep.subr.bf16.mxu0 0
        %1530 = vmatpush1.bf16.xpose.msra.mxu0 0
        %1531 = vmatprep.subr.bf16.mxu0 0
        %1532 = vmatpush1.bf16.xpose.msra.mxu0 0
        %1533 = vmatprep.subr.bf16.mxu0 0
        %1534 = vmatpush1.bf16.xpose.msra.mxu0 0
        %1535 = vmatprep.subr.bf16.mxu0 0
        %1536 = vmatpush1.bf16.xpose.msra.mxu0 0
        %1537 = vmatprep.mubr.bf16.mxu0 0
        %1538 = vmatmul.mubr.bf16.gmra.mrb[0].mxu0 %v1500
        %v1539 = vpop.f32.mrb[0].mxu0
        %v1540 = vadd.f32 0.0, %v1539
        %v1541 = vpop.f32.mrb[0].mxu0
        %v1542 = vpop.f32.mrb[0].mxu0
        %v1543 = vpop.f32.mrb[0].mxu0
        %1544 = vdwg.mxu0
        %v1545 = vmul.f32 %v1540, 0.35355338
        %v1546 = vadd.f32 %v1545, %v1431
        %v1547 = vsel %vm904, %v1546, -inf
        %1548 = vmax.xlane.f32.xlu0 %v1547
        %v1549 = vpop.xlane.xlu0 %1548
        %v1550 = vsub.f32 %v1546, %v1549
        %v1551 = vmul.f32 %v1550, 1.442695
        %v1552 = vpow.pop %v1551
        %v1553 = vsel %vm904, %v1552, 0.0
        %1554 = vadd.xlane.f32.xlu0 %v1553
        %v1555 = vpop.xlane.xlu0 %1554
        %v1556 = vrcp.pop %v1555
        %v1557 = vmul.f32 %v1552, %v1556
        %v1558 = vpack.c.bf16 %v1557, %v1557
        %1559 = vrot.lane.b32.xlu0 %v1377, 56
        %v1560 = vpop.permute.xlu0 %1559
        %v1562 = vsel %vm904, %v1558, 0
        %v1565 = vsel %vm976, %v1560, 0
        %1567 = vmatprep.subr.bf16.mxu0 0
        %1568 = vmatpush1.bf16.msra.mxu0 %v1565
        %1569 = vmatprep.subr.bf16.mxu0 0
        %1570 = vmatpush1.bf16.msra.mxu0 0
        %1571 = vmatprep.subr.bf16.mxu0 0
        %1572 = vmatpush1.bf16.msra.mxu0 0
        %1573 = vmatprep.subr.bf16.mxu0 0
        %1574 = vmatpush1.bf16.msra.mxu0 0
        %1575 = vmatprep.subr.bf16.mxu0 0
        %1576 = vmatpush1.bf16.msra.mxu0 0
        %1577 = vmatprep.subr.bf16.mxu0 0
        %1578 = vmatpush1.bf16.msra.mxu0 0
        %1579 = vmatprep.subr.bf16.mxu0 0
        %1580 = vmatpush1.bf16.msra.mxu0 0
        %1581 = vmatprep.subr.bf16.mxu0 0
        %1582 = vmatpush1.bf16.msra.mxu0 0
        %1583 = vmatprep.subr.bf16.mxu0 0
        %1584 = vmatpush1.bf16.msra.mxu0 0
        %1585 = vmatprep.subr.bf16.mxu0 0
        %1586 = vmatpush1.bf16.msra.mxu0 0
        %1587 = vmatprep.subr.bf16.mxu0 0
        %1588 = vmatpush1.bf16.msra.mxu0 0
        %1589 = vmatprep.subr.bf16.mxu0 0
        %1590 = vmatpush1.bf16.msra.mxu0 0
        %1591 = vmatprep.subr.bf16.mxu0 0
        %1592 = vmatpush1.bf16.msra.mxu0 0
        %1593 = vmatprep.subr.bf16.mxu0 0
        %1594 = vmatpush1.bf16.msra.mxu0 0
        %1595 = vmatprep.subr.bf16.mxu0 0
        %1596 = vmatpush1.bf16.msra.mxu0 0
        %1597 = vmatprep.subr.bf16.mxu0 0
        %1598 = vmatpush1.bf16.msra.mxu0 0
        %1599 = vmatprep.mubr.bf16.mxu0 0
        %1600 = vmatmul.mubr.bf16.gmra.mrb[0].mxu0 %v1562
        %v1601 = vpop.f32.mrb[0].mxu0
        %v1602 = vadd.f32 0.0, %v1601
        %v1603 = vpop.f32.mrb[0].mxu0
        %v1604 = vpop.f32.mrb[0].mxu0
        %v1605 = vpop.f32.mrb[0].mxu0
        %1606 = vdwg.mxu0
        %1608 = vrot.lane.b32.xlu0 %v1602, 8
        %v1609 = vpop.permute.xlu0 %1608
        %1611 = vst.msk [vmem:[#allocation2 + $0x8] sm:$0xff] %vm1137, %v1609
        %1612 = vrot.lane.b32.xlu0 %v1377, 112
        %v1613 = vpop.permute.xlu0 %1612
        %1614 = vrot.lane.b32.xlu0 %v1377, 80
        %v1615 = vpop.permute.xlu0 %1614
        %v1617 = vsel %vm904, %v1613, 0
        %v1620 = vsel %vm904, %v1615, 0
        %1622 = vmatprep.subr.bf16.mxu0 0
        %1623 = vmatpush1.bf16.xpose.msra.mxu0 %v1620
        %1624 = vmatprep.subr.bf16.mxu0 0
        %1625 = vmatpush1.bf16.xpose.msra.mxu0 0
        %1626 = vmatprep.subr.bf16.mxu0 0
        %1627 = vmatpush1.bf16.xpose.msra.mxu0 0
        %1628 = vmatprep.subr.bf16.mxu0 0
        %1629 = vmatpush1.bf16.xpose.msra.mxu0 0
        %1630 = vmatprep.subr.bf16.mxu0 0
        %1631 = vmatpush1.bf16.xpose.msra.mxu0 0
        %1632 = vmatprep.subr.bf16.mxu0 0
        %1633 = vmatpush1.bf16.xpose.msra.mxu0 0
        %1634 = vmatprep.subr.bf16.mxu0 0
        %1635 = vmatpush1.bf16.xpose.msra.mxu0 0
        %1636 = vmatprep.subr.bf16.mxu0 0
        %1637 = vmatpush1.bf16.xpose.msra.mxu0 0
        %1638 = vmatprep.subr.bf16.mxu0 0
        %1639 = vmatpush1.bf16.xpose.msra.mxu0 0
        %1640 = vmatprep.subr.bf16.mxu0 0
        %1641 = vmatpush1.bf16.xpose.msra.mxu0 0
        %1642 = vmatprep.subr.bf16.mxu0 0
        %1643 = vmatpush1.bf16.xpose.msra.mxu0 0
        %1644 = vmatprep.subr.bf16.mxu0 0
        %1645 = vmatpush1.bf16.xpose.msra.mxu0 0
        %1646 = vmatprep.subr.bf16.mxu0 0
        %1647 = vmatpush1.bf16.xpose.msra.mxu0 0
        %1648 = vmatprep.subr.bf16.mxu0 0
        %1649 = vmatpush1.bf16.xpose.msra.mxu0 0
        %1650 = vmatprep.subr.bf16.mxu0 0
        %1651 = vmatpush1.bf16.xpose.msra.mxu0 0
        %1652 = vmatprep.subr.bf16.mxu0 0
        %1653 = vmatpush1.bf16.xpose.msra.mxu0 0
        %1654 = vmatprep.mubr.bf16.mxu0 0
        %1655 = vmatmul.mubr.bf16.gmra.mrb[0].mxu0 %v1617
        %v1656 = vpop.f32.mrb[0].mxu0
        %v1657 = vadd.f32 0.0, %v1656
        %v1658 = vpop.f32.mrb[0].mxu0
        %v1659 = vpop.f32.mrb[0].mxu0
        %v1660 = vpop.f32.mrb[0].mxu0
        %1661 = vdwg.mxu0
        %v1662 = vmul.f32 %v1657, 0.35355338
        %v1663 = vadd.f32 %v1662, %v1431
        %v1664 = vsel %vm904, %v1663, -inf
        %1665 = vmax.xlane.f32.xlu0 %v1664
        %v1666 = vpop.xlane.xlu0 %1665
        %v1667 = vsub.f32 %v1663, %v1666
        %v1668 = vmul.f32 %v1667, 1.442695
        %v1669 = vpow.pop %v1668
        %v1670 = vsel %vm904, %v1669, 0.0
        %1671 = vadd.xlane.f32.xlu0 %v1670
        %v1672 = vpop.xlane.xlu0 %1671
        %v1673 = vrcp.pop %v1672
        %v1674 = vmul.f32 %v1669, %v1673
        %v1675 = vpack.c.bf16 %v1674, %v1674
        %1676 = vrot.lane.b32.xlu0 %v1377, 48
        %v1677 = vpop.permute.xlu0 %1676
        %v1679 = vsel %vm904, %v1675, 0
        %v1682 = vsel %vm976, %v1677, 0
        %1684 = vmatprep.subr.bf16.mxu0 0
        %1685 = vmatpush1.bf16.msra.mxu0 %v1682
        %1686 = vmatprep.subr.bf16.mxu0 0
        %1687 = vmatpush1.bf16.msra.mxu0 0
        %1688 = vmatprep.subr.bf16.mxu0 0
        %1689 = vmatpush1.bf16.msra.mxu0 0
        %1690 = vmatprep.subr.bf16.mxu0 0
        %1691 = vmatpush1.bf16.msra.mxu0 0
        %1692 = vmatprep.subr.bf16.mxu0 0
        %1693 = vmatpush1.bf16.msra.mxu0 0
        %1694 = vmatprep.subr.bf16.mxu0 0
        %1695 = vmatpush1.bf16.msra.mxu0 0
        %1696 = vmatprep.subr.bf16.mxu0 0
        %1697 = vmatpush1.bf16.msra.mxu0 0
        %1698 = vmatprep.subr.bf16.mxu0 0
        %1699 = vmatpush1.bf16.msra.mxu0 0
        %1700 = vmatprep.subr.bf16.mxu0 0
        %1701 = vmatpush1.bf16.msra.mxu0 0
        %1702 = vmatprep.subr.bf16.mxu0 0
        %1703 = vmatpush1.bf16.msra.mxu0 0
        %1704 = vmatprep.subr.bf16.mxu0 0
        %1705 = vmatpush1.bf16.msra.mxu0 0
        %1706 = vmatprep.subr.bf16.mxu0 0
        %1707 = vmatpush1.bf16.msra.mxu0 0
        %1708 = vmatprep.subr.bf16.mxu0 0
        %1709 = vmatpush1.bf16.msra.mxu0 0
        %1710 = vmatprep.subr.bf16.mxu0 0
        %1711 = vmatpush1.bf16.msra.mxu0 0
        %1712 = vmatprep.subr.bf16.mxu0 0
        %1713 = vmatpush1.bf16.msra.mxu0 0
        %1714 = vmatprep.subr.bf16.mxu0 0
        %1715 = vmatpush1.bf16.msra.mxu0 0
        %1716 = vmatprep.mubr.bf16.mxu0 0
        %1717 = vmatmul.mubr.bf16.gmra.mrb[0].mxu0 %v1679
        %v1718 = vpop.f32.mrb[0].mxu0
        %v1719 = vadd.f32 0.0, %v1718
        %v1720 = vpop.f32.mrb[0].mxu0
        %v1721 = vpop.f32.mrb[0].mxu0
        %v1722 = vpop.f32.mrb[0].mxu0
        %1723 = vdwg.mxu0
        %1725 = vrot.lane.b32.xlu0 %v1719, 16
        %v1726 = vpop.permute.xlu0 %1725
        %1728 = vst.msk [vmem:[#allocation2 + $0x8] sm:$0xff] %vm1255, %v1726
        %1729 = vrot.lane.b32.xlu0 %v1377, 104
        %v1730 = vpop.permute.xlu0 %1729
        %1731 = vrot.lane.b32.xlu0 %v1377, 72
        %v1732 = vpop.permute.xlu0 %1731
        %v1734 = vsel %vm904, %v1730, 0
        %v1737 = vsel %vm904, %v1732, 0
        %1739 = vmatprep.subr.bf16.mxu0 0
        %1740 = vmatpush1.bf16.xpose.msra.mxu0 %v1737
        %1741 = vmatprep.subr.bf16.mxu0 0
        %1742 = vmatpush1.bf16.xpose.msra.mxu0 0
        %1743 = vmatprep.subr.bf16.mxu0 0
        %1744 = vmatpush1.bf16.xpose.msra.mxu0 0
        %1745 = vmatprep.subr.bf16.mxu0 0
        %1746 = vmatpush1.bf16.xpose.msra.mxu0 0
        %1747 = vmatprep.subr.bf16.mxu0 0
        %1748 = vmatpush1.bf16.xpose.msra.mxu0 0
        %1749 = vmatprep.subr.bf16.mxu0 0
        %1750 = vmatpush1.bf16.xpose.msra.mxu0 0
        %1751 = vmatprep.subr.bf16.mxu0 0
        %1752 = vmatpush1.bf16.xpose.msra.mxu0 0
        %1753 = vmatprep.subr.bf16.mxu0 0
        %1754 = vmatpush1.bf16.xpose.msra.mxu0 0
        %1755 = vmatprep.subr.bf16.mxu0 0
        %1756 = vmatpush1.bf16.xpose.msra.mxu0 0
        %1757 = vmatprep.subr.bf16.mxu0 0
        %1758 = vmatpush1.bf16.xpose.msra.mxu0 0
        %1759 = vmatprep.subr.bf16.mxu0 0
        %1760 = vmatpush1.bf16.xpose.msra.mxu0 0
        %1761 = vmatprep.subr.bf16.mxu0 0
        %1762 = vmatpush1.bf16.xpose.msra.mxu0 0
        %1763 = vmatprep.subr.bf16.mxu0 0
        %1764 = vmatpush1.bf16.xpose.msra.mxu0 0
        %1765 = vmatprep.subr.bf16.mxu0 0
        %1766 = vmatpush1.bf16.xpose.msra.mxu0 0
        %1767 = vmatprep.subr.bf16.mxu0 0
        %1768 = vmatpush1.bf16.xpose.msra.mxu0 0
        %1769 = vmatprep.subr.bf16.mxu0 0
        %1770 = vmatpush1.bf16.xpose.msra.mxu0 0
        %1771 = vmatprep.mubr.bf16.mxu0 0
        %1772 = vmatmul.mubr.bf16.gmra.mrb[0].mxu0 %v1734
        %v1773 = vpop.f32.mrb[0].mxu0
        %v1774 = vadd.f32 0.0, %v1773
        %v1775 = vpop.f32.mrb[0].mxu0
        %v1776 = vpop.f32.mrb[0].mxu0
        %v1777 = vpop.f32.mrb[0].mxu0
        %1778 = vdwg.mxu0
        %v1779 = vmul.f32 %v1774, 0.35355338
        %v1780 = vadd.f32 %v1779, %v1431
        %v1781 = vsel %vm904, %v1780, -inf
        %1782 = vmax.xlane.f32.xlu0 %v1781
        %v1783 = vpop.xlane.xlu0 %1782
        %v1784 = vsub.f32 %v1780, %v1783
        %v1785 = vmul.f32 %v1784, 1.442695
        %v1786 = vpow.pop %v1785
        %v1787 = vsel %vm904, %v1786, 0.0
        %1788 = vadd.xlane.f32.xlu0 %v1787
        %v1789 = vpop.xlane.xlu0 %1788
        %v1790 = vrcp.pop %v1789
        %v1791 = vmul.f32 %v1786, %v1790
        %v1792 = vpack.c.bf16 %v1791, %v1791
        %1793 = vrot.lane.b32.xlu0 %v1377, 40
        %v1794 = vpop.permute.xlu0 %1793
        %v1796 = vsel %vm904, %v1792, 0
        %v1799 = vsel %vm976, %v1794, 0
        %1801 = vmatprep.subr.bf16.mxu0 0
        %1802 = vmatpush1.bf16.msra.mxu0 %v1799
        %1803 = vmatprep.subr.bf16.mxu0 0
        %1804 = vmatpush1.bf16.msra.mxu0 0
        %1805 = vmatprep.subr.bf16.mxu0 0
        %1806 = vmatpush1.bf16.msra.mxu0 0
        %1807 = vmatprep.subr.bf16.mxu0 0
        %1808 = vmatpush1.bf16.msra.mxu0 0
        %1809 = vmatprep.subr.bf16.mxu0 0
        %1810 = vmatpush1.bf16.msra.mxu0 0
        %1811 = vmatprep.subr.bf16.mxu0 0
        %1812 = vmatpush1.bf16.msra.mxu0 0
        %1813 = vmatprep.subr.bf16.mxu0 0
        %1814 = vmatpush1.bf16.msra.mxu0 0
        %1815 = vmatprep.subr.bf16.mxu0 0
        %1816 = vmatpush1.bf16.msra.mxu0 0
        %1817 = vmatprep.subr.bf16.mxu0 0
        %1818 = vmatpush1.bf16.msra.mxu0 0
        %1819 = vmatprep.subr.bf16.mxu0 0
        %1820 = vmatpush1.bf16.msra.mxu0 0
        %1821 = vmatprep.subr.bf16.mxu0 0
        %1822 = vmatpush1.bf16.msra.mxu0 0
        %1823 = vmatprep.subr.bf16.mxu0 0
        %1824 = vmatpush1.bf16.msra.mxu0 0
        %1825 = vmatprep.subr.bf16.mxu0 0
        %1826 = vmatpush1.bf16.msra.mxu0 0
        %1827 = vmatprep.subr.bf16.mxu0 0
        %1828 = vmatpush1.bf16.msra.mxu0 0
        %1829 = vmatprep.subr.bf16.mxu0 0
        %1830 = vmatpush1.bf16.msra.mxu0 0
        %1831 = vmatprep.subr.bf16.mxu0 0
        %1832 = vmatpush1.bf16.msra.mxu0 0
        %1833 = vmatprep.mubr.bf16.mxu0 0
        %1834 = vmatmul.mubr.bf16.gmra.mrb[0].mxu0 %v1796
        %v1835 = vpop.f32.mrb[0].mxu0
        %v1836 = vadd.f32 0.0, %v1835
        %v1837 = vpop.f32.mrb[0].mxu0
        %v1838 = vpop.f32.mrb[0].mxu0
        %v1839 = vpop.f32.mrb[0].mxu0
        %1840 = vdwg.mxu0
        %1842 = vrot.lane.b32.xlu0 %v1836, 24
        %v1843 = vpop.permute.xlu0 %1842
        %1845 = vst.msk [vmem:[#allocation2 + $0x8] sm:$0xff] %vm1373, %v1843
        %v1846 = vld [vmem:[#allocation2] sm:$0xff]
        %v1847 = vld [vmem:[#allocation2 + $0x8] sm:$0xff]
        %v1848 = vpack.c.bf16 %v1847, %v1846
        %v1849 = vld [vmem:[%s652] sm:$0xf]
        %v1850 = vld [vmem:[%s652 + $0x4] sm:$0xf]
        %v1851 = vld [vmem:[%s652 + $0x8] sm:$0xf]
        %v1852 = vld [vmem:[%s652 + $0xc] sm:$0xf]
        %v1857 = vunpack.c.l.b16 %v1849
        %v1858 = vunpack.c.l.b16 %v1850
        %v1859 = vunpack.c.l.b16 %v1851
        %v1860 = vunpack.c.l.b16 %v1852
        %v1861 = vpack.c.b16 %v1858, %v1857
        %v1862 = vpack.c.b16 %v1860, %v1859
        %v1866 = vsel %vm794, %v1848, 0
        %1868 = vmatprep.subr.bf16.mxu0 0
        %1869 = vmatpush1.bf16.msra.mxu0 %v1861
        %1870 = vmatprep.subr.bf16.mxu0 0
        %1871 = vmatpush1.bf16.msra.mxu0 %v1862
        %1872 = vmatprep.subr.bf16.mxu0 0
        %1873 = vmatpush1.bf16.msra.mxu0 0
        %1874 = vmatprep.subr.bf16.mxu0 0
        %1875 = vmatpush1.bf16.msra.mxu0 0
        %1876 = vmatprep.subr.bf16.mxu0 0
        %1877 = vmatpush1.bf16.msra.mxu0 0
        %1878 = vmatprep.subr.bf16.mxu0 0
        %1879 = vmatpush1.bf16.msra.mxu0 0
        %1880 = vmatprep.subr.bf16.mxu0 0
        %1881 = vmatpush1.bf16.msra.mxu0 0
        %1882 = vmatprep.subr.bf16.mxu0 0
        %1883 = vmatpush1.bf16.msra.mxu0 0
        %1884 = vmatprep.subr.bf16.mxu0 0
        %1885 = vmatpush1.bf16.msra.mxu0 0
        %1886 = vmatprep.subr.bf16.mxu0 0
        %1887 = vmatpush1.bf16.msra.mxu0 0
        %1888 = vmatprep.subr.bf16.mxu0 0
        %1889 = vmatpush1.bf16.msra.mxu0 0
        %1890 = vmatprep.subr.bf16.mxu0 0
        %1891 = vmatpush1.bf16.msra.mxu0 0
        %1892 = vmatprep.subr.bf16.mxu0 0
        %1893 = vmatpush1.bf16.msra.mxu0 0
        %1894 = vmatprep.subr.bf16.mxu0 0
        %1895 = vmatpush1.bf16.msra.mxu0 0
        %1896 = vmatprep.subr.bf16.mxu0 0
        %1897 = vmatpush1.bf16.msra.mxu0 0
        %1898 = vmatprep.subr.bf16.mxu0 0
        %1899 = vmatpush1.bf16.msra.mxu0 0
        %1900 = vmatprep.mubr.bf16.mxu0 0
        %1901 = vmatmul.mubr.bf16.gmra.mrb[0].mxu0 %v1866
        %v1902 = vpop.f32.mrb[0].mxu0
        %v1903 = vadd.f32 0.0, %v1902
        %v1904 = vpop.f32.mrb[0].mxu0
        %v1905 = vpop.f32.mrb[0].mxu0
        %v1906 = vadd.f32 0.0, %v1905
        %v1907 = vpop.f32.mrb[0].mxu0
        %1908 = vdwg.mxu0
        %v1909 = vadd.f32 %v790, %v1903
        %v1910 = vadd.f32 %v791, %v1906
        %v1911 = vld [vmem:[%s660] sm:$0x1]
        %v1912 = vld [vmem:[%s668] sm:$0x1]
        %v1913 = vsel %vm794, %v1909, 0.0
        %1914 = vadd.xlane.f32.xlu0 %v1913
        %v1915 = vpop.xlane.xlu0 %1914
        %v1916 = vsel %vm794, %v1910, 0.0
        %1917 = vadd.xlane.f32.xlu0 %v1916
        %v1918 = vpop.xlane.xlu0 %1917
        %v1919 = vmul.f32 %v1915, %v801
        %v1920 = vmul.f32 %v1918, %v801
        %v1921 = vsub.f32 %v1909, %v1919
        %v1922 = vsub.f32 %v1910, %v1920
        %v1923 = vmul.f32 %v1921, %v1921
        %v1924 = vmul.f32 %v1922, %v1922
        %v1925 = vsel %vm794, %v1923, 0.0
        %1926 = vadd.xlane.f32.xlu0 %v1925
        %v1927 = vpop.xlane.xlu0 %1926
        %v1928 = vsel %vm794, %v1924, 0.0
        %1929 = vadd.xlane.f32.xlu0 %v1928
        %v1930 = vpop.xlane.xlu0 %1929
        %v1931 = vmul.f32 %v1927, %v801
        %v1932 = vmul.f32 %v1930, %v801
        %v1933 = vadd.f32 %v1931, 1e-05
        %v1934 = vadd.f32 %v1932, 1e-05
        %v1935 = vrsqrt.pop %v1933
        %v1936 = vrsqrt.pop %v1934
        %v1937 = vmul.f32 %v1921, %v1935
        %v1938 = vmul.f32 %v1922, %v1936
        %v1940 = vlaneseq
        %v1941 = vshrl.u32 %v1940, 7
        %v1942 = vsub.s32 0, %v1941
        %v1943 = vrot.slane %v1911, %v1942
        %v1945 = vmul.f32 %v1937, %v1943
        %v1946 = vmul.f32 %v1938, %v1943
        %v1948 = vlaneseq
        %v1949 = vshrl.u32 %v1948, 7
        %v1950 = vsub.s32 0, %v1949
        %v1951 = vrot.slane %v1912, %v1950
        %v1953 = vadd.f32 %v1945, %v1951
        %v1954 = vadd.f32 %v1946, %v1951
        %v1955 = vld [vmem:[%s677] sm:$0xf]
        %v1956 = vld [vmem:[%s677 + $0x4] sm:$0xf]
        %v1957 = vld [vmem:[%s677 + $0x8] sm:$0xf]
        %v1958 = vld [vmem:[%s677 + $0xc] sm:$0xf]
        %v1959 = vld [vmem:[%s685] sm:$0x1]
        %v1960 = vld [vmem:[%s694] sm:$0xf]
        %v1961 = vld [vmem:[%s694 + $0x4] sm:$0xf]
        %v1962 = vld [vmem:[%s694 + $0x8] sm:$0xf]
        %v1963 = vld [vmem:[%s694 + $0xc] sm:$0xf]
        %v1964 = vld [vmem:[%s694 + $0x10] sm:$0xf]
        %v1965 = vld [vmem:[%s694 + $0x14] sm:$0xf]
        %v1966 = vld [vmem:[%s694 + $0x18] sm:$0xf]
        %v1967 = vld [vmem:[%s694 + $0x1c] sm:$0xf]
        %v1968 = vld [vmem:[%s702] sm:$0x1]
        %v1969 = vpack.c.bf16 %v1954, %v1953
        %v1971 = vlaneseq
        %v1972 = vshrl.u32 %v1971, 7
        %v1973 = vsub.s32 0, %v1972
        %v1974 = vrot.slane %v1959, %v1973
        %v1980 = vunpack.c.l.b16 %v1955
        %v1981 = vunpack.c.l.b16 %v1956
        %v1982 = vunpack.c.l.b16 %v1957
        %v1983 = vunpack.c.l.b16 %v1958
        %v1984 = vpack.c.b16 %v1981, %v1980
        %v1985 = vpack.c.b16 %v1983, %v1982
        %v1989 = vsel %vm794, %v1969, 0
        %1991 = vmatprep.subr.bf16.mxu0 0
        %1992 = vmatpush1.bf16.msra.mxu0 %v1984
        %1993 = vmatprep.subr.bf16.mxu0 0
        %1994 = vmatpush1.bf16.msra.mxu0 %v1985
        %1995 = vmatprep.subr.bf16.mxu0 0
        %1996 = vmatpush1.bf16.msra.mxu0 0
        %1997 = vmatprep.subr.bf16.mxu0 0
        %1998 = vmatpush1.bf16.msra.mxu0 0
        %1999 = vmatprep.subr.bf16.mxu0 0
        %2000 = vmatpush1.bf16.msra.mxu0 0
        %2001 = vmatprep.subr.bf16.mxu0 0
        %2002 = vmatpush1.bf16.msra.mxu0 0
        %2003 = vmatprep.subr.bf16.mxu0 0
        %2004 = vmatpush1.bf16.msra.mxu0 0
        %2005 = vmatprep.subr.bf16.mxu0 0
        %2006 = vmatpush1.bf16.msra.mxu0 0
        %2007 = vmatprep.subr.bf16.mxu0 0
        %2008 = vmatpush1.bf16.msra.mxu0 0
        %2009 = vmatprep.subr.bf16.mxu0 0
        %2010 = vmatpush1.bf16.msra.mxu0 0
        %2011 = vmatprep.subr.bf16.mxu0 0
        %2012 = vmatpush1.bf16.msra.mxu0 0
        %2013 = vmatprep.subr.bf16.mxu0 0
        %2014 = vmatpush1.bf16.msra.mxu0 0
        %2015 = vmatprep.subr.bf16.mxu0 0
        %2016 = vmatpush1.bf16.msra.mxu0 0
        %2017 = vmatprep.subr.bf16.mxu0 0
        %2018 = vmatpush1.bf16.msra.mxu0 0
        %2019 = vmatprep.subr.bf16.mxu0 0
        %2020 = vmatpush1.bf16.msra.mxu0 0
        %2021 = vmatprep.subr.bf16.mxu0 0
        %2022 = vmatpush1.bf16.msra.mxu0 0
        %2023 = vmatprep.mubr.bf16.mxu0 0
        %2024 = vmatmul.mubr.bf16.gmra.mrb[0].mxu0 %v1989
        %v2025 = vpop.f32.mrb[0].mxu0
        %v2026 = vadd.f32 %v1974, %v2025
        %v2027 = vpop.f32.mrb[0].mxu0
        %v2028 = vpop.f32.mrb[0].mxu0
        %v2029 = vadd.f32 %v1974, %v2028
        %v2030 = vpop.f32.mrb[0].mxu0
        %2031 = vdwg.mxu0
        %v2032 = vmul.f32 %v2026, 0.5
        %v2033 = vmul.f32 %v2029, 0.5
        %v2034 = vmul.f32 %v2026, 0.044715
        %v2035 = vmul.f32 %v2029, 0.044715
        %v2036 = vmul.f32 %v2034, %v2026
        %v2037 = vmul.f32 %v2035, %v2029
        %v2038 = vmul.f32 %v2036, %v2026
        %v2039 = vmul.f32 %v2037, %v2029
        %v2040 = vadd.f32 %v2026, %v2038
        %v2041 = vadd.f32 %v2029, %v2039
        %v2042 = vmul.f32 %v2040, 0.7978846
        %v2043 = vmul.f32 %v2041, 0.7978846
        %v2044 = vtanh.pop %v2042
        %v2045 = vtanh.pop %v2043
        %v2046 = vadd.f32 %v2044, 1.0
        %v2047 = vadd.f32 %v2045, 1.0
        %v2048 = vmul.f32 %v2032, %v2046
        %v2049 = vmul.f32 %v2033, %v2047
        %v2050 = vpack.c.bf16 %v2049, %v2048
        %v2052 = vlaneseq
        %v2053 = vshrl.u32 %v2052, 7
        %v2054 = vsub.s32 0, %v2053
        %v2055 = vrot.slane %v1968, %v2054
        %v2065 = vunpack.c.l.b16 %v1960
        %v2066 = vunpack.c.l.b16 %v1961
        %v2067 = vunpack.c.l.b16 %v1962
        %v2068 = vunpack.c.l.b16 %v1963
        %v2069 = vunpack.c.l.b16 %v1964
        %v2070 = vunpack.c.l.b16 %v1965
        %v2071 = vunpack.c.l.b16 %v1966
        %v2072 = vunpack.c.l.b16 %v1967
        %v2073 = vpack.c.b16 %v2066, %v2065
        %v2074 = vpack.c.b16 %v2068, %v2067
        %v2075 = vpack.c.b16 %v2070, %v2069
        %v2076 = vpack.c.b16 %v2072, %v2071
        %vm2081 = vcmask 523264
        %v2083 = vsel %vm2081, %v2050, 0
        %2085 = vmatprep.subr.bf16.mxu0 0
        %2086 = vmatpush1.bf16.msra.mxu0 %v2073
        %2087 = vmatprep.subr.bf16.mxu0 0
        %2088 = vmatpush1.bf16.msra.mxu0 %v2074
        %2089 = vmatprep.subr.bf16.mxu0 0
        %2090 = vmatpush1.bf16.msra.mxu0 %v2075
        %2091 = vmatprep.subr.bf16.mxu0 0
        %2092 = vmatpush1.bf16.msra.mxu0 %v2076
        %2093 = vmatprep.subr.bf16.mxu0 0
        %2094 = vmatpush1.bf16.msra.mxu0 0
        %2095 = vmatprep.subr.bf16.mxu0 0
        %2096 = vmatpush1.bf16.msra.mxu0 0
        %2097 = vmatprep.subr.bf16.mxu0 0
        %2098 = vmatpush1.bf16.msra.mxu0 0
        %2099 = vmatprep.subr.bf16.mxu0 0
        %2100 = vmatpush1.bf16.msra.mxu0 0
        %2101 = vmatprep.subr.bf16.mxu0 0
        %2102 = vmatpush1.bf16.msra.mxu0 0
        %2103 = vmatprep.subr.bf16.mxu0 0
        %2104 = vmatpush1.bf16.msra.mxu0 0
        %2105 = vmatprep.subr.bf16.mxu0 0
        %2106 = vmatpush1.bf16.msra.mxu0 0
        %2107 = vmatprep.subr.bf16.mxu0 0
        %2108 = vmatpush1.bf16.msra.mxu0 0
        %2109 = vmatprep.subr.bf16.mxu0 0
        %2110 = vmatpush1.bf16.msra.mxu0 0
        %2111 = vmatprep.subr.bf16.mxu0 0
        %2112 = vmatpush1.bf16.msra.mxu0 0
        %2113 = vmatprep.subr.bf16.mxu0 0
        %2114 = vmatpush1.bf16.msra.mxu0 0
        %2115 = vmatprep.subr.bf16.mxu0 0
        %2116 = vmatpush1.bf16.msra.mxu0 0
        %2117 = vmatprep.mubr.bf16.mxu0 0
        %2118 = vmatmul.mubr.bf16.gmra.mrb[0].mxu0 %v2083
        %v2119 = vpop.f32.mrb[0].mxu0
        %v2120 = vadd.f32 %v2055, %v2119
        %v2121 = vpop.f32.mrb[0].mxu0
        %v2122 = vpop.f32.mrb[0].mxu0
        %v2123 = vadd.f32 %v2055, %v2122
        %v2124 = vpop.f32.mrb[0].mxu0
        %2125 = vdwg.mxu0
        %v2126 = vadd.f32 %v1909, %v2120
        %v2127 = vadd.f32 %v1910, %v2123
        %2128 = vst.msk [vmem:[#allocation18] sm:$0xff] %vm794, %v2126
        %2129 = vst.msk [vmem:[#allocation18 + $0x8] sm:$0xff] %vm794, %v2127
        // Predicated region
        $region121: #{transformer_forward.3} parent=67 // pred_check
          %p2130 = pneg %p368
        $region122: #{transformer_forward.3} parent=67 // pred_check_branch
          %2132 = sbr.rel (%p2130) target = $region124
        $region123: #{transformer_forward.3} parent=67 // pred_region
          %s2133 = smul.u32 2, %s30
          %s2135 = ssub.s32 256, 256
          %2136 = vsyncadd [#allocation5], %s2135
          %s2137 = smul.addr %s2133, 128
          %s2138 = scalar_lea.hbm %s12, %s2137
          %s2139 = sshll.u32 [#allocation18], 4
          %s2140 = int_to_ptr.vmem [resolvable:$true] %s2139
          %2145 = dma.vmem_to_hbm [thread:$0]  %s2140, 256, %s2138, [#allocation5], 128, 128, 8
        $region124: #{transformer_forward.3} parent=67 // pred_fallthru
          _
        // Predicated region
        $region125: #{transformer_forward.3} parent=67 // pred_check
          %p2146 = pneg %p368
        $region126: #{transformer_forward.3} parent=67 // pred_check_branch
          %2148 = sbr.rel (%p2146) target = $region128
        $region127: #{transformer_forward.3} parent=67 // pred_region
          %2149 = dma.done [#allocation5], 256
        $region128: #{transformer_forward.3} parent=67 // pred_fallthru
          _
      $region68: #{transformer_forward.3} parent=5 // pred_fallthru
        _
      %p2150 = scmp.le.s32.totalorder 2, %s21
      // Predicated region
      $region129: #{transformer_forward.3} parent=5 // pred_check
        %p2151 = pneg %p2150
      $region130: #{transformer_forward.3} parent=5 // pred_check_branch
        %2153 = sbr.rel (%p2151) target = $region132
      $region131: #{transformer_forward.3} parent=5 // pred_region
        %s2154 = ssub.s32 %s21, 2
      $region132: #{transformer_forward.3} parent=5 // pred_fallthru
        _
    $region6: #{transformer_forward.3} parent=1 // loop_footer
      %s25 = sadd.s32 1, %s21
    $region7: #{transformer_forward.3} parent=1 // loop_footer_branch
      %20 = sbr.rel target = $region3
    $region8: #{transformer_forward.3} parent=1 // loop_exit
      _
    %2155 = vsyncpa [#allocation4], 1
    %s2156 = scalar_lea.sflag [#allocation4], 1
    %2157 = vsyncpa %s2156, 1
    %2158 = vsyncpa [#allocation7], 1
    %2159 = vsyncpa [#allocation5], 1
    %s2160 = scalar_lea.sflag [#allocation5], 1
    %2161 = vsyncpa %s2160, 1

// kernel: transformer_forward.4
$region0: #{transformer_forward.4}
  #allocation0 [shape = 'u32[]', space=smem, size = 0x4, offset = 0x4, fixed_abs, tag = 'smem constant byte address 0x4 - core index']
  #allocation1 [shape = 'u32[144,128]{1,0:T(1,128)}', space=vmem, size = 0x12000, scoped, tag = 'internal scratch']
  #allocation2 [shape = 'f32[16,32]{1,0:T(8,128)}', space=vmem, size = 0x2000, scoped, tag = 'scratch operand']
  %s0 = inlined_call_operand.hbm [shape: f32[2,8,32], index: 0, kind: input, shape index: {}, may-alias: {0,19}]
  %s1 = inlined_call_operand.hbm [shape: f32[2,8,32], index: 1, kind: input, shape index: {}]
  %s2 = inlined_call_operand.hbm [shape: f32[2,8,8], index: 2, kind: input, shape index: {}]
  %s3 = inlined_call_operand.hbm [shape: f32[2,1,8], index: 3, kind: input, shape index: {}]
  %s4 = inlined_call_operand.hbm [shape: f32[2,1,32], index: 4, kind: input, shape index: {}]
  %s5 = inlined_call_operand.hbm [shape: f32[2,1,32], index: 5, kind: input, shape index: {}]
  %s6 = inlined_call_operand.hbm [shape: bf16[2,32,96], index: 6, kind: input, shape index: {}]
  %s7 = inlined_call_operand.hbm [shape: bf16[2,32,32], index: 7, kind: input, shape index: {}]
  %s8 = inlined_call_operand.hbm [shape: f32[2,1,32], index: 8, kind: input, shape index: {}]
  %s9 = inlined_call_operand.hbm [shape: f32[2,1,32], index: 9, kind: input, shape index: {}]
  %s10 = inlined_call_operand.hbm [shape: bf16[2,32,32], index: 10, kind: input, shape index: {}]
  %s11 = inlined_call_operand.hbm [shape: bf16[2,32,64], index: 11, kind: input, shape index: {}]
  %s12 = inlined_call_operand.hbm [shape: bf16[2,32,32], index: 12, kind: input, shape index: {}]
  %s13 = inlined_call_operand.hbm [shape: f32[2,1,32], index: 13, kind: input, shape index: {}]
  %s14 = inlined_call_operand.hbm [shape: f32[2,1,32], index: 14, kind: input, shape index: {}]
  %s15 = inlined_call_operand.hbm [shape: bf16[2,32,64], index: 15, kind: input, shape index: {}]
  %s16 = inlined_call_operand.hbm [shape: f32[2,1,64], index: 16, kind: input, shape index: {}]
  %s17 = inlined_call_operand.hbm [shape: bf16[2,64,32], index: 17, kind: input, shape index: {}]
  %s18 = inlined_call_operand.hbm [shape: f32[2,1,32], index: 18, kind: input, shape index: {}]
  %s19 = inlined_call_operand.hbm [shape: f32[2,8,32], index: 19, kind: output, shape index: {}, may-alias: {0,19}]
  %s20 = sld [smem:[#allocation0]]
  $region189: #{transformer_forward.4} parent=0
    _
  %s22 = ssub.s32 1, %s20
  %s23 = scalar_select 0, %s22, %s20
  $region1: #{transformer_forward.4} parent=0
    #allocation3 [shape = 'u8[8192]{0}', space=vmem, size = 0x2000, scoped, tag = 'input window, operand 0, single buffered']
    #allocation4 [shape = 's32[2]{0}', space=sflag, size = 0x8, scoped, tag = 'scoped memory for transformer_forward.4']
    #allocation5 [shape = 's32[2]{0}', space=sflag, size = 0x8, scoped, tag = 'scoped memory for transformer_forward.4']
    #allocation6 [shape = 'u8[8192]{0}', space=vmem, size = 0x2000, scoped, tag = 'input window, operand 1, single buffered']
    #allocation7 [shape = 's32[1]{0}', space=sflag, size = 0x4, scoped, tag = 'scoped memory for transformer_forward.4']
    #allocation8 [shape = 'u8[8192]{0}', space=vmem, size = 0x2000, scoped, tag = 'input window, operand 2, single buffered']
    #allocation9 [shape = 'u8[1024]{0}', space=vmem, size = 0x400, scoped, tag = 'input window, operand 3, single buffered']
    #allocation10 [shape = 's32[1]{0}', space=sflag, size = 0x4, scoped, tag = 'scoped memory for transformer_forward.4']
    #allocation11 [shape = 'u8[1024]{0}', space=vmem, size = 0x400, scoped, tag = 'input window, operand 4']
    #allocation12 [shape = 'u8[1024]{0}', space=vmem, size = 0x400, scoped, tag = 'input window, operand 5']
    #allocation13 [shape = 'u8[16384]{0}', space=vmem, size = 0x4000, scoped, tag = 'input window, operand 6']
    #allocation14 [shape = 'u8[16384]{0}', space=vmem, size = 0x4000, scoped, tag = 'input window, operand 7']
    #allocation15 [shape = 'u8[1024]{0}', space=vmem, size = 0x400, scoped, tag = 'input window, operand 8']
    #allocation16 [shape = 'u8[1024]{0}', space=vmem, size = 0x400, scoped, tag = 'input window, operand 9']
    #allocation17 [shape = 'u8[16384]{0}', space=vmem, size = 0x4000, scoped, tag = 'input window, operand 10']
    #allocation18 [shape = 'u8[16384]{0}', space=vmem, size = 0x4000, scoped, tag = 'input window, operand 11']
    #allocation19 [shape = 'u8[16384]{0}', space=vmem, size = 0x4000, scoped, tag = 'input window, operand 12']
    #allocation20 [shape = 'u8[1024]{0}', space=vmem, size = 0x400, scoped, tag = 'input window, operand 13']
    #allocation21 [shape = 'u8[1024]{0}', space=vmem, size = 0x400, scoped, tag = 'input window, operand 14']
    #allocation22 [shape = 'u8[16384]{0}', space=vmem, size = 0x4000, scoped, tag = 'input window, operand 15']
    #allocation23 [shape = 'u8[1024]{0}', space=vmem, size = 0x400, scoped, tag = 'input window, operand 16']
    #allocation24 [shape = 'u8[32768]{0}', space=vmem, size = 0x8000, scoped, tag = 'input window, operand 17']
    #allocation25 [shape = 'u8[1024]{0}', space=vmem, size = 0x400, scoped, tag = 'input window, operand 18']
    #allocation26 [shape = 'u8[8192]{0}', space=vmem, size = 0x2000, scoped, tag = 'output window, operand 0, single buffered']
    %24 = vsyncpa [#allocation4], 0
    %25 = vsyncpa [#allocation7], 0
    %26 = vsyncpa [#allocation10], 0
    %27 = vsyncpa [#allocation5], 0
    loop: start=0, step=1, limit=4
    $region2: #{transformer_forward.4} parent=1 // loop_pre_header
      _
    $region3: #{transformer_forward.4} parent=1 // loop_header
      %s29 = sphi 0, %s33
      %p30 = scmp.ge.s32.totalorder %s29, 4
      %s36 = sphi 0, %s48
      %s37 = sphi 0, %s44
      %s38 = sphi 0, %s36
      %s39 = sphi 0, %s37
      %s40 = sphi 0, %s38
      %s41 = sphi 0, %s39
      %s51 = sphi 0, %s53
      %s54 = sphi 0, %s51
      %s55 = sphi 0, %s54
      %s71 = sphi 0, %s55
      %s77 = sphi 0, %s79
      %s80 = sphi 0, %s77
      %s81 = sphi 0, %s80
      %s97 = sphi 0, %s81
      %s103 = sphi 0, %s105
      %s106 = sphi 0, %s103
      %s107 = sphi 0, %s106
      %s123 = sphi 0, %s107
      %s129 = sphi 0, %s131
      %s132 = sphi 0, %s129
      %s133 = sphi 0, %s132
      %s149 = sphi 0, %s133
      %s155 = sphi 0, %s157
      %s158 = sphi 0, %s155
      %s159 = sphi 0, %s158
      %s175 = sphi 0, %s159
      %s181 = sphi 0, %s183
      %s184 = sphi 0, %s181
      %s185 = sphi 0, %s184
      %s201 = sphi 0, %s185
      %s207 = sphi 0, %s209
      %s210 = sphi 0, %s207
      %s211 = sphi 0, %s210
      %s227 = sphi 0, %s211
      %s233 = sphi 0, %s235
      %s236 = sphi 0, %s233
      %s237 = sphi 0, %s236
      %s253 = sphi 0, %s237
      %s259 = sphi 0, %s261
      %s262 = sphi 0, %s259
      %s263 = sphi 0, %s262
      %s279 = sphi 0, %s263
      %s285 = sphi 0, %s287
      %s288 = sphi 0, %s285
      %s289 = sphi 0, %s288
      %s305 = sphi 0, %s289
      %s311 = sphi 0, %s313
      %s314 = sphi 0, %s311
      %s315 = sphi 0, %s314
      %s331 = sphi 0, %s315
      %s337 = sphi 0, %s339
      %s340 = sphi 0, %s337
      %s341 = sphi 0, %s340
      %s357 = sphi 0, %s341
      %s363 = sphi 0, %s365
      %s366 = sphi 0, %s363
      %s367 = sphi 0, %s366
      %s383 = sphi 0, %s367
      %s389 = sphi 0, %s391
      %s392 = sphi 0, %s389
      %s393 = sphi 0, %s392
      %s409 = sphi 0, %s393
      %s415 = sphi 0, %s417
      %s418 = sphi 0, %s415
      %s419 = sphi 0, %s418
      %s435 = sphi 0, %s419
      %s441 = sphi 0, %s443
      %s444 = sphi 0, %s441
      %s445 = sphi 0, %s444
      %s461 = sphi 0, %s445
      %s467 = sphi 0, %s469
      %s470 = sphi 0, %s467
      %s471 = sphi 0, %s470
      %s487 = sphi 0, %s471
      %s493 = sphi 0, %s495
      %s496 = sphi 0, %s493
      %s497 = sphi 0, %s496
      %s513 = sphi 0, %s497
      %s519 = sphi 0, %s521
      %s522 = sphi 0, %s519
      %s523 = sphi 0, %s522
      %s539 = sphi 0, %s523
      %s545 = sphi 0, %s547
      %s548 = sphi 0, %s545
      %s549 = sphi 0, %s548
      %s565 = sphi 0, %s549
    $region4: #{transformer_forward.4} parent=1 // loop_header_branch
      %32 = sbr.rel (%p30) target = $region8
    $region5: #{transformer_forward.4} parent=1 // loop_body
      %s34 = ssub.s32 %s29, 1
      %s35 = ssub.s32 %s29, 2
      %s42 = sadd.s32 1, %s37
      %p43 = scmp.ge.s32.totalorder %s42, 2
      %s44 = scalar_select %p43, 0, %s42
      %s45 = sadd.s32 1, %s36
      %s46 = scalar_select %p43, %s45, %s36
      %p47 = scmp.ge.s32.totalorder %s46, 1
      %s48 = scalar_select %p47, 0, %s46
      %s49 = ssub.s32 %s36, %s48
      %p50 = scmp.eq.s32.totalorder %s49, 0
      %s52 = sadd.s32 %s51, 1
      %s53 = scalar_select %p50, %s51, %s52
      %p56 = pneg %p50
      %p57 = scmp.eq.s32.totalorder %s29, 1
      %p58 = por %p56, %p57
      %p59 = scmp.ne.s32.totalorder %s51, %s54
      %p60 = scmp.eq.s32.totalorder %s29, 0
      %p61 = por %p59, %p60
      %p62 = scmp.ne.s32.totalorder %s51, %s54
      %p63 = scmp.eq.s32.totalorder %s34, 1
      %p64 = por %p62, %p63
      %p65 = scmp.ne.s32.totalorder %s54, %s55
      %p66 = scmp.eq.s32.totalorder %s34, 0
      %p67 = por %p65, %p66
      %p68 = scmp.ne.s32.totalorder %s54, %s55
      %p69 = scmp.eq.s32.totalorder %s35, 1
      %p70 = por %p68, %p69
      %p72 = scmp.ne.s32.totalorder %s55, %s71
      %p73 = scmp.eq.s32.totalorder %s35, 0
      %p74 = por %p72, %p73
      %s75 = ssub.s32 %s36, %s48
      %p76 = scmp.eq.s32.totalorder %s75, 0
      %s78 = sadd.s32 %s77, 1
      %s79 = scalar_select %p76, %s77, %s78
      %p82 = pneg %p76
      %p83 = scmp.eq.s32.totalorder %s29, 1
      %p84 = por %p82, %p83
      %p85 = scmp.ne.s32.totalorder %s77, %s80
      %p86 = scmp.eq.s32.totalorder %s29, 0
      %p87 = por %p85, %p86
      %p88 = scmp.ne.s32.totalorder %s77, %s80
      %p89 = scmp.eq.s32.totalorder %s34, 1
      %p90 = por %p88, %p89
      %p91 = scmp.ne.s32.totalorder %s80, %s81
      %p92 = scmp.eq.s32.totalorder %s34, 0
      %p93 = por %p91, %p92
      %p94 = scmp.ne.s32.totalorder %s80, %s81
      %p95 = scmp.eq.s32.totalorder %s35, 1
      %p96 = por %p94, %p95
      %p98 = scmp.ne.s32.totalorder %s81, %s97
      %p99 = scmp.eq.s32.totalorder %s35, 0
      %p100 = por %p98, %p99
      %s101 = ssub.s32 %s36, %s48
      %p102 = scmp.eq.s32.totalorder %s101, 0
      %s104 = sadd.s32 %s103, 1
      %s105 = scalar_select %p102, %s103, %s104
      %p108 = pneg %p102
      %p109 = scmp.eq.s32.totalorder %s29, 1
      %p110 = por %p108, %p109
      %p111 = scmp.ne.s32.totalorder %s103, %s106
      %p112 = scmp.eq.s32.totalorder %s29, 0
      %p113 = por %p111, %p112
      %p114 = scmp.ne.s32.totalorder %s103, %s106
      %p115 = scmp.eq.s32.totalorder %s34, 1
      %p116 = por %p114, %p115
      %p117 = scmp.ne.s32.totalorder %s106, %s107
      %p118 = scmp.eq.s32.totalorder %s34, 0
      %p119 = por %p117, %p118
      %p120 = scmp.ne.s32.totalorder %s106, %s107
      %p121 = scmp.eq.s32.totalorder %s35, 1
      %p122 = por %p120, %p121
      %p124 = scmp.ne.s32.totalorder %s107, %s123
      %p125 = scmp.eq.s32.totalorder %s35, 0
      %p126 = por %p124, %p125
      %s127 = ssub.s32 %s36, %s48
      %p128 = scmp.eq.s32.totalorder %s127, 0
      %s130 = sadd.s32 %s129, 1
      %s131 = scalar_select %p128, %s129, %s130
      %p134 = pneg %p128
      %p135 = scmp.eq.s32.totalorder %s29, 1
      %p136 = por %p134, %p135
      %p137 = scmp.ne.s32.totalorder %s129, %s132
      %p138 = scmp.eq.s32.totalorder %s29, 0
      %p139 = por %p137, %p138
      %p140 = scmp.ne.s32.totalorder %s129, %s132
      %p141 = scmp.eq.s32.totalorder %s34, 1
      %p142 = por %p140, %p141
      %p143 = scmp.ne.s32.totalorder %s132, %s133
      %p144 = scmp.eq.s32.totalorder %s34, 0
      %p145 = por %p143, %p144
      %p146 = scmp.ne.s32.totalorder %s132, %s133
      %p147 = scmp.eq.s32.totalorder %s35, 1
      %p148 = por %p146, %p147
      %p150 = scmp.ne.s32.totalorder %s133, %s149
      %p151 = scmp.eq.s32.totalorder %s35, 0
      %p152 = por %p150, %p151
      %s153 = ssub.s32 %s37, %s44
      %p154 = scmp.eq.s32.totalorder %s153, 0
      %s156 = sadd.s32 %s155, 1
      %s157 = scalar_select %p154, %s155, %s156
      %p160 = pneg %p154
      %p161 = scmp.eq.s32.totalorder %s29, 1
      %p162 = por %p160, %p161
      %p163 = scmp.ne.s32.totalorder %s155, %s158
      %p164 = scmp.eq.s32.totalorder %s29, 0
      %p165 = por %p163, %p164
      %p166 = scmp.ne.s32.totalorder %s155, %s158
      %p167 = scmp.eq.s32.totalorder %s34, 1
      %p168 = por %p166, %p167
      %p169 = scmp.ne.s32.totalorder %s158, %s159
      %p170 = scmp.eq.s32.totalorder %s34, 0
      %p171 = por %p169, %p170
      %p172 = scmp.ne.s32.totalorder %s158, %s159
      %p173 = scmp.eq.s32.totalorder %s35, 1
      %p174 = por %p172, %p173
      %p176 = scmp.ne.s32.totalorder %s159, %s175
      %p177 = scmp.eq.s32.totalorder %s35, 0
      %p178 = por %p176, %p177
      %s179 = ssub.s32 %s37, %s44
      %p180 = scmp.eq.s32.totalorder %s179, 0
      %s182 = sadd.s32 %s181, 1
      %s183 = scalar_select %p180, %s181, %s182
      %p186 = pneg %p180
      %p187 = scmp.eq.s32.totalorder %s29, 1
      %p188 = por %p186, %p187
      %p189 = scmp.ne.s32.totalorder %s181, %s184
      %p190 = scmp.eq.s32.totalorder %s29, 0
      %p191 = por %p189, %p190
      %p192 = scmp.ne.s32.totalorder %s181, %s184
      %p193 = scmp.eq.s32.totalorder %s34, 1
      %p194 = por %p192, %p193
      %p195 = scmp.ne.s32.totalorder %s184, %s185
      %p196 = scmp.eq.s32.totalorder %s34, 0
      %p197 = por %p195, %p196
      %p198 = scmp.ne.s32.totalorder %s184, %s185
      %p199 = scmp.eq.s32.totalorder %s35, 1
      %p200 = por %p198, %p199
      %p202 = scmp.ne.s32.totalorder %s185, %s201
      %p203 = scmp.eq.s32.totalorder %s35, 0
      %p204 = por %p202, %p203
      %s205 = ssub.s32 %s37, %s44
      %p206 = scmp.eq.s32.totalorder %s205, 0
      %s208 = sadd.s32 %s207, 1
      %s209 = scalar_select %p206, %s207, %s208
      %p212 = pneg %p206
      %p213 = scmp.eq.s32.totalorder %s29, 1
      %p214 = por %p212, %p213
      %p215 = scmp.ne.s32.totalorder %s207, %s210
      %p216 = scmp.eq.s32.totalorder %s29, 0
      %p217 = por %p215, %p216
      %p218 = scmp.ne.s32.totalorder %s207, %s210
      %p219 = scmp.eq.s32.totalorder %s34, 1
      %p220 = por %p218, %p219
      %p221 = scmp.ne.s32.totalorder %s210, %s211
      %p222 = scmp.eq.s32.totalorder %s34, 0
      %p223 = por %p221, %p222
      %p224 = scmp.ne.s32.totalorder %s210, %s211
      %p225 = scmp.eq.s32.totalorder %s35, 1
      %p226 = por %p224, %p225
      %p228 = scmp.ne.s32.totalorder %s211, %s227
      %p229 = scmp.eq.s32.totalorder %s35, 0
      %p230 = por %p228, %p229
      %s231 = ssub.s32 %s37, %s44
      %p232 = scmp.eq.s32.totalorder %s231, 0
      %s234 = sadd.s32 %s233, 1
      %s235 = scalar_select %p232, %s233, %s234
      %p238 = pneg %p232
      %p239 = scmp.eq.s32.totalorder %s29, 1
      %p240 = por %p238, %p239
      %p241 = scmp.ne.s32.totalorder %s233, %s236
      %p242 = scmp.eq.s32.totalorder %s29, 0
      %p243 = por %p241, %p242
      %p244 = scmp.ne.s32.totalorder %s233, %s236
      %p245 = scmp.eq.s32.totalorder %s34, 1
      %p246 = por %p244, %p245
      %p247 = scmp.ne.s32.totalorder %s236, %s237
      %p248 = scmp.eq.s32.totalorder %s34, 0
      %p249 = por %p247, %p248
      %p250 = scmp.ne.s32.totalorder %s236, %s237
      %p251 = scmp.eq.s32.totalorder %s35, 1
      %p252 = por %p250, %p251
      %p254 = scmp.ne.s32.totalorder %s237, %s253
      %p255 = scmp.eq.s32.totalorder %s35, 0
      %p256 = por %p254, %p255
      %s257 = ssub.s32 %s37, %s44
      %p258 = scmp.eq.s32.totalorder %s257, 0
      %s260 = sadd.s32 %s259, 1
      %s261 = scalar_select %p258, %s259, %s260
      %p264 = pneg %p258
      %p265 = scmp.eq.s32.totalorder %s29, 1
      %p266 = por %p264, %p265
      %p267 = scmp.ne.s32.totalorder %s259, %s262
      %p268 = scmp.eq.s32.totalorder %s29, 0
      %p269 = por %p267, %p268
      %p270 = scmp.ne.s32.totalorder %s259, %s262
      %p271 = scmp.eq.s32.totalorder %s34, 1
      %p272 = por %p270, %p271
      %p273 = scmp.ne.s32.totalorder %s262, %s263
      %p274 = scmp.eq.s32.totalorder %s34, 0
      %p275 = por %p273, %p274
      %p276 = scmp.ne.s32.totalorder %s262, %s263
      %p277 = scmp.eq.s32.totalorder %s35, 1
      %p278 = por %p276, %p277
      %p280 = scmp.ne.s32.totalorder %s263, %s279
      %p281 = scmp.eq.s32.totalorder %s35, 0
      %p282 = por %p280, %p281
      %s283 = ssub.s32 %s37, %s44
      %p284 = scmp.eq.s32.totalorder %s283, 0
      %s286 = sadd.s32 %s285, 1
      %s287 = scalar_select %p284, %s285, %s286
      %p290 = pneg %p284
      %p291 = scmp.eq.s32.totalorder %s29, 1
      %p292 = por %p290, %p291
      %p293 = scmp.ne.s32.totalorder %s285, %s288
      %p294 = scmp.eq.s32.totalorder %s29, 0
      %p295 = por %p293, %p294
      %p296 = scmp.ne.s32.totalorder %s285, %s288
      %p297 = scmp.eq.s32.totalorder %s34, 1
      %p298 = por %p296, %p297
      %p299 = scmp.ne.s32.totalorder %s288, %s289
      %p300 = scmp.eq.s32.totalorder %s34, 0
      %p301 = por %p299, %p300
      %p302 = scmp.ne.s32.totalorder %s288, %s289
      %p303 = scmp.eq.s32.totalorder %s35, 1
      %p304 = por %p302, %p303
      %p306 = scmp.ne.s32.totalorder %s289, %s305
      %p307 = scmp.eq.s32.totalorder %s35, 0
      %p308 = por %p306, %p307
      %s309 = ssub.s32 %s37, %s44
      %p310 = scmp.eq.s32.totalorder %s309, 0
      %s312 = sadd.s32 %s311, 1
      %s313 = scalar_select %p310, %s311, %s312
      %p316 = pneg %p310
      %p317 = scmp.eq.s32.totalorder %s29, 1
      %p318 = por %p316, %p317
      %p319 = scmp.ne.s32.totalorder %s311, %s314
      %p320 = scmp.eq.s32.totalorder %s29, 0
      %p321 = por %p319, %p320
      %p322 = scmp.ne.s32.totalorder %s311, %s314
      %p323 = scmp.eq.s32.totalorder %s34, 1
      %p324 = por %p322, %p323
      %p325 = scmp.ne.s32.totalorder %s314, %s315
      %p326 = scmp.eq.s32.totalorder %s34, 0
      %p327 = por %p325, %p326
      %p328 = scmp.ne.s32.totalorder %s314, %s315
      %p329 = scmp.eq.s32.totalorder %s35, 1
      %p330 = por %p328, %p329
      %p332 = scmp.ne.s32.totalorder %s315, %s331
      %p333 = scmp.eq.s32.totalorder %s35, 0
      %p334 = por %p332, %p333
      %s335 = ssub.s32 %s37, %s44
      %p336 = scmp.eq.s32.totalorder %s335, 0
      %s338 = sadd.s32 %s337, 1
      %s339 = scalar_select %p336, %s337, %s338
      %p342 = pneg %p336
      %p343 = scmp.eq.s32.totalorder %s29, 1
      %p344 = por %p342, %p343
      %p345 = scmp.ne.s32.totalorder %s337, %s340
      %p346 = scmp.eq.s32.totalorder %s29, 0
      %p347 = por %p345, %p346
      %p348 = scmp.ne.s32.totalorder %s337, %s340
      %p349 = scmp.eq.s32.totalorder %s34, 1
      %p350 = por %p348, %p349
      %p351 = scmp.ne.s32.totalorder %s340, %s341
      %p352 = scmp.eq.s32.totalorder %s34, 0
      %p353 = por %p351, %p352
      %p354 = scmp.ne.s32.totalorder %s340, %s341
      %p355 = scmp.eq.s32.totalorder %s35, 1
      %p356 = por %p354, %p355
      %p358 = scmp.ne.s32.totalorder %s341, %s357
      %p359 = scmp.eq.s32.totalorder %s35, 0
      %p360 = por %p358, %p359
      %s361 = ssub.s32 %s37, %s44
      %p362 = scmp.eq.s32.totalorder %s361, 0
      %s364 = sadd.s32 %s363, 1
      %s365 = scalar_select %p362, %s363, %s364
      %p368 = pneg %p362
      %p369 = scmp.eq.s32.totalorder %s29, 1
      %p370 = por %p368, %p369
      %p371 = scmp.ne.s32.totalorder %s363, %s366
      %p372 = scmp.eq.s32.totalorder %s29, 0
      %p373 = por %p371, %p372
      %p374 = scmp.ne.s32.totalorder %s363, %s366
      %p375 = scmp.eq.s32.totalorder %s34, 1
      %p376 = por %p374, %p375
      %p377 = scmp.ne.s32.totalorder %s366, %s367
      %p378 = scmp.eq.s32.totalorder %s34, 0
      %p379 = por %p377, %p378
      %p380 = scmp.ne.s32.totalorder %s366, %s367
      %p381 = scmp.eq.s32.totalorder %s35, 1
      %p382 = por %p380, %p381
      %p384 = scmp.ne.s32.totalorder %s367, %s383
      %p385 = scmp.eq.s32.totalorder %s35, 0
      %p386 = por %p384, %p385
      %s387 = ssub.s32 %s37, %s44
      %p388 = scmp.eq.s32.totalorder %s387, 0
      %s390 = sadd.s32 %s389, 1
      %s391 = scalar_select %p388, %s389, %s390
      %p394 = pneg %p388
      %p395 = scmp.eq.s32.totalorder %s29, 1
      %p396 = por %p394, %p395
      %p397 = scmp.ne.s32.totalorder %s389, %s392
      %p398 = scmp.eq.s32.totalorder %s29, 0
      %p399 = por %p397, %p398
      %p400 = scmp.ne.s32.totalorder %s389, %s392
      %p401 = scmp.eq.s32.totalorder %s34, 1
      %p402 = por %p400, %p401
      %p403 = scmp.ne.s32.totalorder %s392, %s393
      %p404 = scmp.eq.s32.totalorder %s34, 0
      %p405 = por %p403, %p404
      %p406 = scmp.ne.s32.totalorder %s392, %s393
      %p407 = scmp.eq.s32.totalorder %s35, 1
      %p408 = por %p406, %p407
      %p410 = scmp.ne.s32.totalorder %s393, %s409
      %p411 = scmp.eq.s32.totalorder %s35, 0
      %p412 = por %p410, %p411
      %s413 = ssub.s32 %s37, %s44
      %p414 = scmp.eq.s32.totalorder %s413, 0
      %s416 = sadd.s32 %s415, 1
      %s417 = scalar_select %p414, %s415, %s416
      %p420 = pneg %p414
      %p421 = scmp.eq.s32.totalorder %s29, 1
      %p422 = por %p420, %p421
      %p423 = scmp.ne.s32.totalorder %s415, %s418
      %p424 = scmp.eq.s32.totalorder %s29, 0
      %p425 = por %p423, %p424
      %p426 = scmp.ne.s32.totalorder %s415, %s418
      %p427 = scmp.eq.s32.totalorder %s34, 1
      %p428 = por %p426, %p427
      %p429 = scmp.ne.s32.totalorder %s418, %s419
      %p430 = scmp.eq.s32.totalorder %s34, 0
      %p431 = por %p429, %p430
      %p432 = scmp.ne.s32.totalorder %s418, %s419
      %p433 = scmp.eq.s32.totalorder %s35, 1
      %p434 = por %p432, %p433
      %p436 = scmp.ne.s32.totalorder %s419, %s435
      %p437 = scmp.eq.s32.totalorder %s35, 0
      %p438 = por %p436, %p437
      %s439 = ssub.s32 %s37, %s44
      %p440 = scmp.eq.s32.totalorder %s439, 0
      %s442 = sadd.s32 %s441, 1
      %s443 = scalar_select %p440, %s441, %s442
      %p446 = pneg %p440
      %p447 = scmp.eq.s32.totalorder %s29, 1
      %p448 = por %p446, %p447
      %p449 = scmp.ne.s32.totalorder %s441, %s444
      %p450 = scmp.eq.s32.totalorder %s29, 0
      %p451 = por %p449, %p450
      %p452 = scmp.ne.s32.totalorder %s441, %s444
      %p453 = scmp.eq.s32.totalorder %s34, 1
      %p454 = por %p452, %p453
      %p455 = scmp.ne.s32.totalorder %s444, %s445
      %p456 = scmp.eq.s32.totalorder %s34, 0
      %p457 = por %p455, %p456
      %p458 = scmp.ne.s32.totalorder %s444, %s445
      %p459 = scmp.eq.s32.totalorder %s35, 1
      %p460 = por %p458, %p459
      %p462 = scmp.ne.s32.totalorder %s445, %s461
      %p463 = scmp.eq.s32.totalorder %s35, 0
      %p464 = por %p462, %p463
      %s465 = ssub.s32 %s37, %s44
      %p466 = scmp.eq.s32.totalorder %s465, 0
      %s468 = sadd.s32 %s467, 1
      %s469 = scalar_select %p466, %s467, %s468
      %p472 = pneg %p466
      %p473 = scmp.eq.s32.totalorder %s29, 1
      %p474 = por %p472, %p473
      %p475 = scmp.ne.s32.totalorder %s467, %s470
      %p476 = scmp.eq.s32.totalorder %s29, 0
      %p477 = por %p475, %p476
      %p478 = scmp.ne.s32.totalorder %s467, %s470
      %p479 = scmp.eq.s32.totalorder %s34, 1
      %p480 = por %p478, %p479
      %p481 = scmp.ne.s32.totalorder %s470, %s471
      %p482 = scmp.eq.s32.totalorder %s34, 0
      %p483 = por %p481, %p482
      %p484 = scmp.ne.s32.totalorder %s470, %s471
      %p485 = scmp.eq.s32.totalorder %s35, 1
      %p486 = por %p484, %p485
      %p488 = scmp.ne.s32.totalorder %s471, %s487
      %p489 = scmp.eq.s32.totalorder %s35, 0
      %p490 = por %p488, %p489
      %s491 = ssub.s32 %s37, %s44
      %p492 = scmp.eq.s32.totalorder %s491, 0
      %s494 = sadd.s32 %s493, 1
      %s495 = scalar_select %p492, %s493, %s494
      %p498 = pneg %p492
      %p499 = scmp.eq.s32.totalorder %s29, 1
      %p500 = por %p498, %p499
      %p501 = scmp.ne.s32.totalorder %s493, %s496
      %p502 = scmp.eq.s32.totalorder %s29, 0
      %p503 = por %p501, %p502
      %p504 = scmp.ne.s32.totalorder %s493, %s496
      %p505 = scmp.eq.s32.totalorder %s34, 1
      %p506 = por %p504, %p505
      %p507 = scmp.ne.s32.totalorder %s496, %s497
      %p508 = scmp.eq.s32.totalorder %s34, 0
      %p509 = por %p507, %p508
      %p510 = scmp.ne.s32.totalorder %s496, %s497
      %p511 = scmp.eq.s32.totalorder %s35, 1
      %p512 = por %p510, %p511
      %p514 = scmp.ne.s32.totalorder %s497, %s513
      %p515 = scmp.eq.s32.totalorder %s35, 0
      %p516 = por %p514, %p515
      %s517 = ssub.s32 %s37, %s44
      %p518 = scmp.eq.s32.totalorder %s517, 0
      %s520 = sadd.s32 %s519, 1
      %s521 = scalar_select %p518, %s519, %s520
      %p524 = pneg %p518
      %p525 = scmp.eq.s32.totalorder %s29, 1
      %p526 = por %p524, %p525
      %p527 = scmp.ne.s32.totalorder %s519, %s522
      %p528 = scmp.eq.s32.totalorder %s29, 0
      %p529 = por %p527, %p528
      %p530 = scmp.ne.s32.totalorder %s519, %s522
      %p531 = scmp.eq.s32.totalorder %s34, 1
      %p532 = por %p530, %p531
      %p533 = scmp.ne.s32.totalorder %s522, %s523
      %p534 = scmp.eq.s32.totalorder %s34, 0
      %p535 = por %p533, %p534
      %p536 = scmp.ne.s32.totalorder %s522, %s523
      %p537 = scmp.eq.s32.totalorder %s35, 1
      %p538 = por %p536, %p537
      %p540 = scmp.ne.s32.totalorder %s523, %s539
      %p541 = scmp.eq.s32.totalorder %s35, 0
      %p542 = por %p540, %p541
      %s543 = ssub.s32 %s36, %s48
      %p544 = scmp.eq.s32.totalorder %s543, 0
      %s546 = sadd.s32 %s545, 1
      %s547 = scalar_select %p544, %s545, %s546
      %p550 = pneg %p544
      %p551 = scmp.eq.s32.totalorder %s29, 1
      %p552 = por %p550, %p551
      %p553 = scmp.ne.s32.totalorder %s545, %s548
      %p554 = scmp.eq.s32.totalorder %s29, 0
      %p555 = por %p553, %p554
      %p556 = scmp.ne.s32.totalorder %s545, %s548
      %p557 = scmp.eq.s32.totalorder %s34, 1
      %p558 = por %p556, %p557
      %p559 = scmp.ne.s32.totalorder %s548, %s549
      %p560 = scmp.eq.s32.totalorder %s34, 0
      %p561 = por %p559, %p560
      %p562 = scmp.ne.s32.totalorder %s548, %s549
      %p563 = scmp.eq.s32.totalorder %s35, 1
      %p564 = por %p562, %p563
      %p566 = scmp.ne.s32.totalorder %s549, %s565
      %p567 = scmp.eq.s32.totalorder %s35, 0
      %p568 = por %p566, %p567
      %p569 = scmp.le.s32.totalorder 1, %s29
      %p570 = scmp.lt.s32.totalorder %s29, 3
      %p571 = pnand %p569, %p570
      %p572 = pneg %p571
      // Predicated region
      $region9: #{transformer_forward.4} parent=5 // pred_check
        _
      $region10: #{transformer_forward.4} parent=5 // pred_check_branch
        %574 = sbr.rel (%p571) target = $region12
      $region11: #{transformer_forward.4} parent=5 // pred_region
        %s575 = ssub.s32 %s29, 1
        // Predicated region
        $region13: #{transformer_forward.4} parent=11 // pred_check
          %p576 = pneg %p67
        $region14: #{transformer_forward.4} parent=11 // pred_check_branch
          %578 = sbr.rel (%p576) target = $region16
        $region15: #{transformer_forward.4} parent=11 // pred_region
          %s579 = smul.u32 2, %s38
          %s581 = ssub.s32 256, 256
          %582 = vsyncadd [#allocation4], %s581
          %s583 = smul.addr %s579, 128
          %s584 = scalar_lea.hbm %s0, %s583
          %s585 = sshll.u32 [#allocation3], 4
          %s586 = int_to_ptr.vmem [resolvable:$true] %s585
          %591 = dma.hbm_to_vmem [thread:$0]  %s584, 256, %s586, [#allocation4], 128, 128, 8
        $region16: #{transformer_forward.4} parent=11 // pred_fallthru
          _
        // Predicated region
        $region17: #{transformer_forward.4} parent=11 // pred_check
          %p592 = pneg %p93
        $region18: #{transformer_forward.4} parent=11 // pred_check_branch
          %594 = sbr.rel (%p592) target = $region20
        $region19: #{transformer_forward.4} parent=11 // pred_region
          %s595 = smul.u32 2, %s38
          %s597 = ssub.s32 256, 256
          %598 = vsyncadd [#allocation7], %s597
          %s599 = smul.addr %s595, 128
          %s600 = scalar_lea.hbm %s1, %s599
          %s601 = sshll.u32 [#allocation6], 4
          %s602 = int_to_ptr.vmem [resolvable:$true] %s601
          %607 = dma.hbm_to_vmem [thread:$0]  %s600, 256, %s602, [#allocation7], 128, 128, 8
        $region20: #{transformer_forward.4} parent=11 // pred_fallthru
          _
        // Predicated region
        $region21: #{transformer_forward.4} parent=11 // pred_check
          %p608 = pneg %p119
        $region22: #{transformer_forward.4} parent=11 // pred_check_branch
          %610 = sbr.rel (%p608) target = $region24
        $region23: #{transformer_forward.4} parent=11 // pred_region
          %s611 = smul.u32 2, %s38
          %s613 = ssub.s32 256, 256
          %614 = vsyncadd [#allocation7], %s613
          %s615 = smul.addr %s611, 128
          %s616 = scalar_lea.hbm %s2, %s615
          %s617 = sshll.u32 [#allocation8], 4
          %s618 = int_to_ptr.vmem [resolvable:$true] %s617
          %623 = dma.hbm_to_vmem [thread:$0]  %s616, 256, %s618, [#allocation7], 128, 128, 8
        $region24: #{transformer_forward.4} parent=11 // pred_fallthru
          _
        // Predicated region
        $region25: #{transformer_forward.4} parent=11 // pred_check
          %p624 = pneg %p145
        $region26: #{transformer_forward.4} parent=11 // pred_check_branch
          %626 = sbr.rel (%p624) target = $region28
        $region27: #{transformer_forward.4} parent=11 // pred_region
          %s627 = smul.u32 2, %s38
          %s629 = ssub.s32 32, 32
          %630 = vsyncadd [#allocation10], %s629
          %s631 = smul.addr %s627, 16
          %s632 = scalar_lea.hbm %s3, %s631
          %s633 = sshll.u32 [#allocation9], 4
          %s634 = int_to_ptr.vmem [resolvable:$true] %s633
          %639 = dma.hbm_to_vmem [thread:$0]  %s632, 32, %s634, [#allocation10], 16, 16, 1
        $region28: #{transformer_forward.4} parent=11 // pred_fallthru
          _
      $region12: #{transformer_forward.4} parent=5 // pred_fallthru
        _
      %p640 = scmp.lt.s32.totalorder %s29, 2
      // Predicated region
      $region29: #{transformer_forward.4} parent=5 // pred_check
        %p641 = pneg %p640
      $region30: #{transformer_forward.4} parent=5 // pred_check_branch
        %643 = sbr.rel (%p641) target = $region32
      $region31: #{transformer_forward.4} parent=5 // pred_region
        // Predicated region
        $region33: #{transformer_forward.4} parent=31 // pred_check
          %p644 = pneg %p165
        $region34: #{transformer_forward.4} parent=31 // pred_check_branch
          %646 = sbr.rel (%p644) target = $region36
        $region35: #{transformer_forward.4} parent=31 // pred_region
          %s647 = sand.u32 %s29, 1
          %s648 = scalar_lea.sflag [#allocation4], %s647
          %s649 = sand.u32 %s155, 1
          %s650 = scalar_lea.vmem [#allocation11], %s649
          %s652 = ssub.s32 16, 16
          %653 = vsyncadd %s648, %s652
          %s654 = smul.addr %s37, 16
          %s655 = scalar_lea.hbm %s4, %s654
          %s657 = sshll.u32 %s650, 4
          %s658 = int_to_ptr.vmem [resolvable:$true] %s657
          %660 = dma.hbm_to_vmem [thread:$0]  %s655, 16, %s658, %s648
        $region36: #{transformer_forward.4} parent=31 // pred_fallthru
          _
        // Predicated region
        $region37: #{transformer_forward.4} parent=31 // pred_check
          %p661 = pneg %p191
        $region38: #{transformer_forward.4} parent=31 // pred_check_branch
          %663 = sbr.rel (%p661) target = $region40
        $region39: #{transformer_forward.4} parent=31 // pred_region
          %s664 = sand.u32 %s29, 1
          %s665 = scalar_lea.sflag [#allocation4], %s664
          %s666 = sand.u32 %s181, 1
          %s667 = scalar_lea.vmem [#allocation12], %s666
          %s669 = ssub.s32 16, 16
          %670 = vsyncadd %s665, %s669
          %s671 = smul.addr %s37, 16
          %s672 = scalar_lea.hbm %s5, %s671
          %s674 = sshll.u32 %s667, 4
          %s675 = int_to_ptr.vmem [resolvable:$true] %s674
          %677 = dma.hbm_to_vmem [thread:$0]  %s672, 16, %s675, %s665
        $region40: #{transformer_forward.4} parent=31 // pred_fallthru
          _
        // Predicated region
        $region41: #{transformer_forward.4} parent=31 // pred_check
          %p678 = pneg %p217
        $region42: #{transformer_forward.4} parent=31 // pred_check_branch
          %680 = sbr.rel (%p678) target = $region44
        $region43: #{transformer_forward.4} parent=31 // pred_region
          %s681 = sand.u32 %s29, 1
          %s682 = scalar_lea.sflag [#allocation4], %s681
          %s683 = sand.u32 %s207, 1
          %s684 = smul.addr %s683, 16
          %s685 = scalar_lea.vmem [#allocation13], %s684
          %s687 = ssub.s32 256, 256
          %688 = vsyncadd %s682, %s687
          %s689 = smul.addr %s37, 4
          %s690 = smul.addr %s689, 64
          %s691 = scalar_lea.hbm %s6, %s690
          %s692 = sshll.u32 %s685, 4
          %s693 = int_to_ptr.vmem [resolvable:$true] %s692
          %698 = dma.hbm_to_vmem [thread:$0]  %s691, 256, %s693, %s682, 64, 64, 4
        $region44: #{transformer_forward.4} parent=31 // pred_fallthru
          _
        // Predicated region
        $region45: #{transformer_forward.4} parent=31 // pred_check
          %p699 = pneg %p243
        $region46: #{transformer_forward.4} parent=31 // pred_check_branch
          %701 = sbr.rel (%p699) target = $region48
        $region47: #{transformer_forward.4} parent=31 // pred_region
          %s702 = sand.u32 %s29, 1
          %s703 = scalar_lea.sflag [#allocation4], %s702
          %s704 = sand.u32 %s233, 1
          %s705 = smul.addr %s704, 16
          %s706 = scalar_lea.vmem [#allocation14], %s705
          %s708 = ssub.s32 256, 256
          %709 = vsyncadd %s703, %s708
          %s710 = smul.addr %s37, 4
          %s711 = smul.addr %s710, 64
          %s712 = scalar_lea.hbm %s7, %s711
          %s713 = sshll.u32 %s706, 4
          %s714 = int_to_ptr.vmem [resolvable:$true] %s713
          %719 = dma.hbm_to_vmem [thread:$0]  %s712, 256, %s714, %s703, 64, 64, 4
        $region48: #{transformer_forward.4} parent=31 // pred_fallthru
          _
        // Predicated region
        $region49: #{transformer_forward.4} parent=31 // pred_check
          %p720 = pneg %p269
        $region50: #{transformer_forward.4} parent=31 // pred_check_branch
          %722 = sbr.rel (%p720) target = $region52
        $region51: #{transformer_forward.4} parent=31 // pred_region
          %s723 = sand.u32 %s29, 1
          %s724 = scalar_lea.sflag [#allocation4], %s723
          %s725 = sand.u32 %s259, 1
          %s726 = scalar_lea.vmem [#allocation15], %s725
          %s728 = ssub.s32 16, 16
          %729 = vsyncadd %s724, %s728
          %s730 = smul.addr %s37, 16
          %s731 = scalar_lea.hbm %s8, %s730
          %s733 = sshll.u32 %s726, 4
          %s734 = int_to_ptr.vmem [resolvable:$true] %s733
          %736 = dma.hbm_to_vmem [thread:$0]  %s731, 16, %s734, %s724
        $region52: #{transformer_forward.4} parent=31 // pred_fallthru
          _
        // Predicated region
        $region53: #{transformer_forward.4} parent=31 // pred_check
          %p737 = pneg %p295
        $region54: #{transformer_forward.4} parent=31 // pred_check_branch
          %739 = sbr.rel (%p737) target = $region56
        $region55: #{transformer_forward.4} parent=31 // pred_region
          %s740 = sand.u32 %s29, 1
          %s741 = scalar_lea.sflag [#allocation4], %s740
          %s742 = sand.u32 %s285, 1
          %s743 = scalar_lea.vmem [#allocation16], %s742
          %s745 = ssub.s32 16, 16
          %746 = vsyncadd %s741, %s745
          %s747 = smul.addr %s37, 16
          %s748 = scalar_lea.hbm %s9, %s747
          %s750 = sshll.u32 %s743, 4
          %s751 = int_to_ptr.vmem [resolvable:$true] %s750
          %753 = dma.hbm_to_vmem [thread:$0]  %s748, 16, %s751, %s741
        $region56: #{transformer_forward.4} parent=31 // pred_fallthru
          _
        // Predicated region
        $region57: #{transformer_forward.4} parent=31 // pred_check
          %p754 = pneg %p321
        $region58: #{transformer_forward.4} parent=31 // pred_check_branch
          %756 = sbr.rel (%p754) target = $region60
        $region59: #{transformer_forward.4} parent=31 // pred_region
          %s757 = sand.u32 %s29, 1
          %s758 = scalar_lea.sflag [#allocation4], %s757
          %s759 = sand.u32 %s311, 1
          %s760 = smul.addr %s759, 16
          %s761 = scalar_lea.vmem [#allocation17], %s760
          %s763 = ssub.s32 256, 256
          %764 = vsyncadd %s758, %s763
          %s765 = smul.addr %s37, 4
          %s766 = smul.addr %s765, 64
          %s767 = scalar_lea.hbm %s10, %s766
          %s768 = sshll.u32 %s761, 4
          %s769 = int_to_ptr.vmem [resolvable:$true] %s768
          %774 = dma.hbm_to_vmem [thread:$0]  %s767, 256, %s769, %s758, 64, 64, 4
        $region60: #{transformer_forward.4} parent=31 // pred_fallthru
          _
        // Predicated region
        $region61: #{transformer_forward.4} parent=31 // pred_check
          %p775 = pneg %p347
        $region62: #{transformer_forward.4} parent=31 // pred_check_branch
          %777 = sbr.rel (%p775) target = $region64
        $region63: #{transformer_forward.4} parent=31 // pred_region
          %s778 = sand.u32 %s29, 1
          %s779 = scalar_lea.sflag [#allocation4], %s778
          %s780 = sand.u32 %s337, 1
          %s781 = smul.addr %s780, 16
          %s782 = scalar_lea.vmem [#allocation18], %s781
          %s784 = ssub.s32 256, 256
          %785 = vsyncadd %s779, %s784
          %s786 = smul.addr %s37, 4
          %s787 = smul.addr %s786, 64
          %s788 = scalar_lea.hbm %s11, %s787
          %s789 = sshll.u32 %s782, 4
          %s790 = int_to_ptr.vmem [resolvable:$true] %s789
          %795 = dma.hbm_to_vmem [thread:$0]  %s788, 256, %s790, %s779, 64, 64, 4
        $region64: #{transformer_forward.4} parent=31 // pred_fallthru
          _
        // Predicated region
        $region65: #{transformer_forward.4} parent=31 // pred_check
          %p796 = pneg %p373
        $region66: #{transformer_forward.4} parent=31 // pred_check_branch
          %798 = sbr.rel (%p796) target = $region68
        $region67: #{transformer_forward.4} parent=31 // pred_region
          %s799 = sand.u32 %s29, 1
          %s800 = scalar_lea.sflag [#allocation4], %s799
          %s801 = sand.u32 %s363, 1
          %s802 = smul.addr %s801, 16
          %s803 = scalar_lea.vmem [#allocation19], %s802
          %s805 = ssub.s32 256, 256
          %806 = vsyncadd %s800, %s805
          %s807 = smul.addr %s37, 4
          %s808 = smul.addr %s807, 64
          %s809 = scalar_lea.hbm %s12, %s808
          %s810 = sshll.u32 %s803, 4
          %s811 = int_to_ptr.vmem [resolvable:$true] %s810
          %816 = dma.hbm_to_vmem [thread:$0]  %s809, 256, %s811, %s800, 64, 64, 4
        $region68: #{transformer_forward.4} parent=31 // pred_fallthru
          _
        // Predicated region
        $region69: #{transformer_forward.4} parent=31 // pred_check
          %p817 = pneg %p399
        $region70: #{transformer_forward.4} parent=31 // pred_check_branch
          %819 = sbr.rel (%p817) target = $region72
        $region71: #{transformer_forward.4} parent=31 // pred_region
          %s820 = sand.u32 %s29, 1
          %s821 = scalar_lea.sflag [#allocation4], %s820
          %s822 = sand.u32 %s389, 1
          %s823 = scalar_lea.vmem [#allocation20], %s822
          %s825 = ssub.s32 16, 16
          %826 = vsyncadd %s821, %s825
          %s827 = smul.addr %s37, 16
          %s828 = scalar_lea.hbm %s13, %s827
          %s830 = sshll.u32 %s823, 4
          %s831 = int_to_ptr.vmem [resolvable:$true] %s830
          %833 = dma.hbm_to_vmem [thread:$0]  %s828, 16, %s831, %s821
        $region72: #{transformer_forward.4} parent=31 // pred_fallthru
          _
        // Predicated region
        $region73: #{transformer_forward.4} parent=31 // pred_check
          %p834 = pneg %p425
        $region74: #{transformer_forward.4} parent=31 // pred_check_branch
          %836 = sbr.rel (%p834) target = $region76
        $region75: #{transformer_forward.4} parent=31 // pred_region
          %s837 = sand.u32 %s29, 1
          %s838 = scalar_lea.sflag [#allocation4], %s837
          %s839 = sand.u32 %s415, 1
          %s840 = scalar_lea.vmem [#allocation21], %s839
          %s842 = ssub.s32 16, 16
          %843 = vsyncadd %s838, %s842
          %s844 = smul.addr %s37, 16
          %s845 = scalar_lea.hbm %s14, %s844
          %s847 = sshll.u32 %s840, 4
          %s848 = int_to_ptr.vmem [resolvable:$true] %s847
          %850 = dma.hbm_to_vmem [thread:$0]  %s845, 16, %s848, %s838
        $region76: #{transformer_forward.4} parent=31 // pred_fallthru
          _
        // Predicated region
        $region77: #{transformer_forward.4} parent=31 // pred_check
          %p851 = pneg %p451
        $region78: #{transformer_forward.4} parent=31 // pred_check_branch
          %853 = sbr.rel (%p851) target = $region80
        $region79: #{transformer_forward.4} parent=31 // pred_region
          %s854 = sand.u32 %s29, 1
          %s855 = scalar_lea.sflag [#allocation4], %s854
          %s856 = sand.u32 %s441, 1
          %s857 = smul.addr %s856, 16
          %s858 = scalar_lea.vmem [#allocation22], %s857
          %s860 = ssub.s32 256, 256
          %861 = vsyncadd %s855, %s860
          %s862 = smul.addr %s37, 4
          %s863 = smul.addr %s862, 64
          %s864 = scalar_lea.hbm %s15, %s863
          %s865 = sshll.u32 %s858, 4
          %s866 = int_to_ptr.vmem [resolvable:$true] %s865
          %871 = dma.hbm_to_vmem [thread:$0]  %s864, 256, %s866, %s855, 64, 64, 4
        $region80: #{transformer_forward.4} parent=31 // pred_fallthru
          _
        // Predicated region
        $region81: #{transformer_forward.4} parent=31 // pred_check
          %p872 = pneg %p477
        $region82: #{transformer_forward.4} parent=31 // pred_check_branch
          %874 = sbr.rel (%p872) target = $region84
        $region83: #{transformer_forward.4} parent=31 // pred_region
          %s875 = sand.u32 %s29, 1
          %s876 = scalar_lea.sflag [#allocation4], %s875
          %s877 = sand.u32 %s467, 1
          %s878 = scalar_lea.vmem [#allocation23], %s877
          %s880 = ssub.s32 16, 16
          %881 = vsyncadd %s876, %s880
          %s882 = smul.addr %s37, 16
          %s883 = scalar_lea.hbm %s16, %s882
          %s885 = sshll.u32 %s878, 4
          %s886 = int_to_ptr.vmem [resolvable:$true] %s885
          %888 = dma.hbm_to_vmem [thread:$0]  %s883, 16, %s886, %s876
        $region84: #{transformer_forward.4} parent=31 // pred_fallthru
          _
        // Predicated region
        $region85: #{transformer_forward.4} parent=31 // pred_check
          %p889 = pneg %p503
        $region86: #{transformer_forward.4} parent=31 // pred_check_branch
          %891 = sbr.rel (%p889) target = $region88
        $region87: #{transformer_forward.4} parent=31 // pred_region
          %s892 = sand.u32 %s29, 1
          %s893 = scalar_lea.sflag [#allocation4], %s892
          %s894 = sand.u32 %s493, 1
          %s895 = smul.addr %s894, 32
          %s896 = scalar_lea.vmem [#allocation24], %s895
          %s898 = ssub.s32 512, 512
          %899 = vsyncadd %s893, %s898
          %s900 = smul.addr %s37, 8
          %s901 = smul.addr %s900, 64
          %s902 = scalar_lea.hbm %s17, %s901
          %s903 = sshll.u32 %s896, 4
          %s904 = int_to_ptr.vmem [resolvable:$true] %s903
          %909 = dma.hbm_to_vmem [thread:$0]  %s902, 512, %s904, %s893, 64, 64, 4
        $region88: #{transformer_forward.4} parent=31 // pred_fallthru
          _
        // Predicated region
        $region89: #{transformer_forward.4} parent=31 // pred_check
          %p910 = pneg %p529
        $region90: #{transformer_forward.4} parent=31 // pred_check_branch
          %912 = sbr.rel (%p910) target = $region92
        $region91: #{transformer_forward.4} parent=31 // pred_region
          %s913 = sand.u32 %s29, 1
          %s914 = scalar_lea.sflag [#allocation4], %s913
          %s915 = sand.u32 %s519, 1
          %s916 = scalar_lea.vmem [#allocation25], %s915
          %s918 = ssub.s32 16, 16
          %919 = vsyncadd %s914, %s918
          %s920 = smul.addr %s37, 16
          %s921 = scalar_lea.hbm %s18, %s920
          %s923 = sshll.u32 %s916, 4
          %s924 = int_to_ptr.vmem [resolvable:$true] %s923
          %926 = dma.hbm_to_vmem [thread:$0]  %s921, 16, %s924, %s914
        $region92: #{transformer_forward.4} parent=31 // pred_fallthru
          _
      $region32: #{transformer_forward.4} parent=5 // pred_fallthru
        _
      %p927 = scmp.le.s32.totalorder 1, %s29
      %p928 = scmp.lt.s32.totalorder %s29, 3
      %p929 = pnand %p927, %p928
      %p930 = pneg %p929
      // Predicated region
      $region93: #{transformer_forward.4} parent=5 // pred_check
        _
      $region94: #{transformer_forward.4} parent=5 // pred_check_branch
        %932 = sbr.rel (%p929) target = $region96
      $region95: #{transformer_forward.4} parent=5 // pred_region
        %s933 = ssub.s32 %s29, 1
        // Predicated region
        $region97: #{transformer_forward.4} parent=95 // pred_check
          %p934 = pneg %p67
        $region98: #{transformer_forward.4} parent=95 // pred_check_branch
          %936 = sbr.rel (%p934) target = $region100
        $region99: #{transformer_forward.4} parent=95 // pred_region
          %937 = dma.done [#allocation4], 256
        $region100: #{transformer_forward.4} parent=95 // pred_fallthru
          _
        // Predicated region
        $region101: #{transformer_forward.4} parent=95 // pred_check
          %p938 = pneg %p93
        $region102: #{transformer_forward.4} parent=95 // pred_check_branch
          %940 = sbr.rel (%p938) target = $region104
        $region103: #{transformer_forward.4} parent=95 // pred_region
          %941 = dma.done [#allocation7], 256
        $region104: #{transformer_forward.4} parent=95 // pred_fallthru
          _
        // Predicated region
        $region105: #{transformer_forward.4} parent=95 // pred_check
          %p942 = pneg %p119
        $region106: #{transformer_forward.4} parent=95 // pred_check_branch
          %944 = sbr.rel (%p942) target = $region108
        $region107: #{transformer_forward.4} parent=95 // pred_region
          %945 = dma.done [#allocation7], 256
        $region108: #{transformer_forward.4} parent=95 // pred_fallthru
          _
        // Predicated region
        $region109: #{transformer_forward.4} parent=95 // pred_check
          %p946 = pneg %p145
        $region110: #{transformer_forward.4} parent=95 // pred_check_branch
          %948 = sbr.rel (%p946) target = $region112
        $region111: #{transformer_forward.4} parent=95 // pred_region
          %949 = dma.done [#allocation10], 32
        $region112: #{transformer_forward.4} parent=95 // pred_fallthru
          _
        %s950 = sand.u32 %s34, 1
        %s951 = scalar_lea.sflag [#allocation4], %s950
        %s952 = sand.u32 %s158, 1
        %s953 = scalar_lea.vmem [#allocation11], %s952
        // Predicated region
        $region113: #{transformer_forward.4} parent=95 // pred_check
          %p954 = pneg %p171
        $region114: #{transformer_forward.4} parent=95 // pred_check_branch
          %956 = sbr.rel (%p954) target = $region116
        $region115: #{transformer_forward.4} parent=95 // pred_region
          %957 = dma.done %s951, 16
        $region116: #{transformer_forward.4} parent=95 // pred_fallthru
          _
        %s958 = sand.u32 %s34, 1
        %s959 = scalar_lea.sflag [#allocation4], %s958
        %s960 = sand.u32 %s184, 1
        %s961 = scalar_lea.vmem [#allocation12], %s960
        // Predicated region
        $region117: #{transformer_forward.4} parent=95 // pred_check
          %p962 = pneg %p197
        $region118: #{transformer_forward.4} parent=95 // pred_check_branch
          %964 = sbr.rel (%p962) target = $region120
        $region119: #{transformer_forward.4} parent=95 // pred_region
          %965 = dma.done %s959, 16
        $region120: #{transformer_forward.4} parent=95 // pred_fallthru
          _
        %s966 = sand.u32 %s34, 1
        %s967 = scalar_lea.sflag [#allocation4], %s966
        %s968 = sand.u32 %s210, 1
        %s969 = smul.addr %s968, 16
        %s970 = scalar_lea.vmem [#allocation13], %s969
        // Predicated region
        $region121: #{transformer_forward.4} parent=95 // pred_check
          %p971 = pneg %p223
        $region122: #{transformer_forward.4} parent=95 // pred_check_branch
          %973 = sbr.rel (%p971) target = $region124
        $region123: #{transformer_forward.4} parent=95 // pred_region
          %974 = dma.done %s967, 256
        $region124: #{transformer_forward.4} parent=95 // pred_fallthru
          _
        %s975 = sand.u32 %s34, 1
        %s976 = scalar_lea.sflag [#allocation4], %s975
        %s977 = sand.u32 %s236, 1
        %s978 = smul.addr %s977, 16
        %s979 = scalar_lea.vmem [#allocation14], %s978
        // Predicated region
        $region125: #{transformer_forward.4} parent=95 // pred_check
          %p980 = pneg %p249
        $region126: #{transformer_forward.4} parent=95 // pred_check_branch
          %982 = sbr.rel (%p980) target = $region128
        $region127: #{transformer_forward.4} parent=95 // pred_region
          %983 = dma.done %s976, 256
        $region128: #{transformer_forward.4} parent=95 // pred_fallthru
          _
        %s984 = sand.u32 %s34, 1
        %s985 = scalar_lea.sflag [#allocation4], %s984
        %s986 = sand.u32 %s262, 1
        %s987 = scalar_lea.vmem [#allocation15], %s986
        // Predicated region
        $region129: #{transformer_forward.4} parent=95 // pred_check
          %p988 = pneg %p275
        $region130: #{transformer_forward.4} parent=95 // pred_check_branch
          %990 = sbr.rel (%p988) target = $region132
        $region131: #{transformer_forward.4} parent=95 // pred_region
          %991 = dma.done %s985, 16
        $region132: #{transformer_forward.4} parent=95 // pred_fallthru
          _
        %s992 = sand.u32 %s34, 1
        %s993 = scalar_lea.sflag [#allocation4], %s992
        %s994 = sand.u32 %s288, 1
        %s995 = scalar_lea.vmem [#allocation16], %s994
        // Predicated region
        $region133: #{transformer_forward.4} parent=95 // pred_check
          %p996 = pneg %p301
        $region134: #{transformer_forward.4} parent=95 // pred_check_branch
          %998 = sbr.rel (%p996) target = $region136
        $region135: #{transformer_forward.4} parent=95 // pred_region
          %999 = dma.done %s993, 16
        $region136: #{transformer_forward.4} parent=95 // pred_fallthru
          _
        %s1000 = sand.u32 %s34, 1
        %s1001 = scalar_lea.sflag [#allocation4], %s1000
        %s1002 = sand.u32 %s314, 1
        %s1003 = smul.addr %s1002, 16
        %s1004 = scalar_lea.vmem [#allocation17], %s1003
        // Predicated region
        $region137: #{transformer_forward.4} parent=95 // pred_check
          %p1005 = pneg %p327
        $region138: #{transformer_forward.4} parent=95 // pred_check_branch
          %1007 = sbr.rel (%p1005) target = $region140
        $region139: #{transformer_forward.4} parent=95 // pred_region
          %1008 = dma.done %s1001, 256
        $region140: #{transformer_forward.4} parent=95 // pred_fallthru
          _
        %s1009 = sand.u32 %s34, 1
        %s1010 = scalar_lea.sflag [#allocation4], %s1009
        %s1011 = sand.u32 %s340, 1
        %s1012 = smul.addr %s1011, 16
        %s1013 = scalar_lea.vmem [#allocation18], %s1012
        // Predicated region
        $region141: #{transformer_forward.4} parent=95 // pred_check
          %p1014 = pneg %p353
        $region142: #{transformer_forward.4} parent=95 // pred_check_branch
          %1016 = sbr.rel (%p1014) target = $region144
        $region143: #{transformer_forward.4} parent=95 // pred_region
          %1017 = dma.done %s1010, 256
        $region144: #{transformer_forward.4} parent=95 // pred_fallthru
          _
        %s1018 = sand.u32 %s34, 1
        %s1019 = scalar_lea.sflag [#allocation4], %s1018
        %s1020 = sand.u32 %s366, 1
        %s1021 = smul.addr %s1020, 16
        %s1022 = scalar_lea.vmem [#allocation19], %s1021
        // Predicated region
        $region145: #{transformer_forward.4} parent=95 // pred_check
          %p1023 = pneg %p379
        $region146: #{transformer_forward.4} parent=95 // pred_check_branch
          %1025 = sbr.rel (%p1023) target = $region148
        $region147: #{transformer_forward.4} parent=95 // pred_region
          %1026 = dma.done %s1019, 256
        $region148: #{transformer_forward.4} parent=95 // pred_fallthru
          _
        %s1027 = sand.u32 %s34, 1
        %s1028 = scalar_lea.sflag [#allocation4], %s1027
        %s1029 = sand.u32 %s392, 1
        %s1030 = scalar_lea.vmem [#allocation20], %s1029
        // Predicated region
        $region149: #{transformer_forward.4} parent=95 // pred_check
          %p1031 = pneg %p405
        $region150: #{transformer_forward.4} parent=95 // pred_check_branch
          %1033 = sbr.rel (%p1031) target = $region152
        $region151: #{transformer_forward.4} parent=95 // pred_region
          %1034 = dma.done %s1028, 16
        $region152: #{transformer_forward.4} parent=95 // pred_fallthru
          _
        %s1035 = sand.u32 %s34, 1
        %s1036 = scalar_lea.sflag [#allocation4], %s1035
        %s1037 = sand.u32 %s418, 1
        %s1038 = scalar_lea.vmem [#allocation21], %s1037
        // Predicated region
        $region153: #{transformer_forward.4} parent=95 // pred_check
          %p1039 = pneg %p431
        $region154: #{transformer_forward.4} parent=95 // pred_check_branch
          %1041 = sbr.rel (%p1039) target = $region156
        $region155: #{transformer_forward.4} parent=95 // pred_region
          %1042 = dma.done %s1036, 16
        $region156: #{transformer_forward.4} parent=95 // pred_fallthru
          _
        %s1043 = sand.u32 %s34, 1
        %s1044 = scalar_lea.sflag [#allocation4], %s1043
        %s1045 = sand.u32 %s444, 1
        %s1046 = smul.addr %s1045, 16
        %s1047 = scalar_lea.vmem [#allocation22], %s1046
        // Predicated region
        $region157: #{transformer_forward.4} parent=95 // pred_check
          %p1048 = pneg %p457
        $region158: #{transformer_forward.4} parent=95 // pred_check_branch
          %1050 = sbr.rel (%p1048) target = $region160
        $region159: #{transformer_forward.4} parent=95 // pred_region
          %1051 = dma.done %s1044, 256
        $region160: #{transformer_forward.4} parent=95 // pred_fallthru
          _
        %s1052 = sand.u32 %s34, 1
        %s1053 = scalar_lea.sflag [#allocation4], %s1052
        %s1054 = sand.u32 %s470, 1
        %s1055 = scalar_lea.vmem [#allocation23], %s1054
        // Predicated region
        $region161: #{transformer_forward.4} parent=95 // pred_check
          %p1056 = pneg %p483
        $region162: #{transformer_forward.4} parent=95 // pred_check_branch
          %1058 = sbr.rel (%p1056) target = $region164
        $region163: #{transformer_forward.4} parent=95 // pred_region
          %1059 = dma.done %s1053, 16
        $region164: #{transformer_forward.4} parent=95 // pred_fallthru
          _
        %s1060 = sand.u32 %s34, 1
        %s1061 = scalar_lea.sflag [#allocation4], %s1060
        %s1062 = sand.u32 %s496, 1
        %s1063 = smul.addr %s1062, 32
        %s1064 = scalar_lea.vmem [#allocation24], %s1063
        // Predicated region
        $region165: #{transformer_forward.4} parent=95 // pred_check
          %p1065 = pneg %p509
        $region166: #{transformer_forward.4} parent=95 // pred_check_branch
          %1067 = sbr.rel (%p1065) target = $region168
        $region167: #{transformer_forward.4} parent=95 // pred_region
          %1068 = dma.done %s1061, 512
        $region168: #{transformer_forward.4} parent=95 // pred_fallthru
          _
        %s1069 = sand.u32 %s34, 1
        %s1070 = scalar_lea.sflag [#allocation4], %s1069
        %s1071 = sand.u32 %s522, 1
        %s1072 = scalar_lea.vmem [#allocation25], %s1071
        // Predicated region
        $region169: #{transformer_forward.4} parent=95 // pred_check
          %p1073 = pneg %p535
        $region170: #{transformer_forward.4} parent=95 // pred_check_branch
          %1075 = sbr.rel (%p1073) target = $region172
        $region171: #{transformer_forward.4} parent=95 // pred_region
          %1076 = dma.done %s1070, 16
        $region172: #{transformer_forward.4} parent=95 // pred_fallthru
          _
        %p1077 = pneg %p67
        %p1078 = pneg %p64
        %p1079 = pneg %p93
        %p1080 = pneg %p90
        %p1081 = pneg %p119
        %p1082 = pneg %p116
        %p1083 = pneg %p145
        %p1084 = pneg %p142
        %s1085 = sand.u32 %s34, 1
        %s1086 = scalar_lea.sflag [#allocation4], %s1085
        %s1087 = sand.u32 %s158, 1
        %s1088 = scalar_lea.vmem [#allocation11], %s1087
        %p1089 = pneg %p171
        %p1090 = pneg %p168
        %s1091 = sand.u32 %s34, 1
        %s1092 = scalar_lea.sflag [#allocation4], %s1091
        %s1093 = sand.u32 %s184, 1
        %s1094 = scalar_lea.vmem [#allocation12], %s1093
        %p1095 = pneg %p197
        %p1096 = pneg %p194
        %s1097 = sand.u32 %s34, 1
        %s1098 = scalar_lea.sflag [#allocation4], %s1097
        %s1099 = sand.u32 %s210, 1
        %s1100 = smul.addr %s1099, 16
        %s1101 = scalar_lea.vmem [#allocation13], %s1100
        %p1102 = pneg %p223
        %p1103 = pneg %p220
        %s1104 = sand.u32 %s34, 1
        %s1105 = scalar_lea.sflag [#allocation4], %s1104
        %s1106 = sand.u32 %s236, 1
        %s1107 = smul.addr %s1106, 16
        %s1108 = scalar_lea.vmem [#allocation14], %s1107
        %p1109 = pneg %p249
        %p1110 = pneg %p246
        %s1111 = sand.u32 %s34, 1
        %s1112 = scalar_lea.sflag [#allocation4], %s1111
        %s1113 = sand.u32 %s262, 1
        %s1114 = scalar_lea.vmem [#allocation15], %s1113
        %p1115 = pneg %p275
        %p1116 = pneg %p272
        %s1117 = sand.u32 %s34, 1
        %s1118 = scalar_lea.sflag [#allocation4], %s1117
        %s1119 = sand.u32 %s288, 1
        %s1120 = scalar_lea.vmem [#allocation16], %s1119
        %p1121 = pneg %p301
        %p1122 = pneg %p298
        %s1123 = sand.u32 %s34, 1
        %s1124 = scalar_lea.sflag [#allocation4], %s1123
        %s1125 = sand.u32 %s314, 1
        %s1126 = smul.addr %s1125, 16
        %s1127 = scalar_lea.vmem [#allocation17], %s1126
        %p1128 = pneg %p327
        %p1129 = pneg %p324
        %s1130 = sand.u32 %s34, 1
        %s1131 = scalar_lea.sflag [#allocation4], %s1130
        %s1132 = sand.u32 %s340, 1
        %s1133 = smul.addr %s1132, 16
        %s1134 = scalar_lea.vmem [#allocation18], %s1133
        %p1135 = pneg %p353
        %p1136 = pneg %p350
        %s1137 = sand.u32 %s34, 1
        %s1138 = scalar_lea.sflag [#allocation4], %s1137
        %s1139 = sand.u32 %s366, 1
        %s1140 = smul.addr %s1139, 16
        %s1141 = scalar_lea.vmem [#allocation19], %s1140
        %p1142 = pneg %p379
        %p1143 = pneg %p376
        %s1144 = sand.u32 %s34, 1
        %s1145 = scalar_lea.sflag [#allocation4], %s1144
        %s1146 = sand.u32 %s392, 1
        %s1147 = scalar_lea.vmem [#allocation20], %s1146
        %p1148 = pneg %p405
        %p1149 = pneg %p402
        %s1150 = sand.u32 %s34, 1
        %s1151 = scalar_lea.sflag [#allocation4], %s1150
        %s1152 = sand.u32 %s418, 1
        %s1153 = scalar_lea.vmem [#allocation21], %s1152
        %p1154 = pneg %p431
        %p1155 = pneg %p428
        %s1156 = sand.u32 %s34, 1
        %s1157 = scalar_lea.sflag [#allocation4], %s1156
        %s1158 = sand.u32 %s444, 1
        %s1159 = smul.addr %s1158, 16
        %s1160 = scalar_lea.vmem [#allocation22], %s1159
        %p1161 = pneg %p457
        %p1162 = pneg %p454
        %s1163 = sand.u32 %s34, 1
        %s1164 = scalar_lea.sflag [#allocation4], %s1163
        %s1165 = sand.u32 %s470, 1
        %s1166 = scalar_lea.vmem [#allocation23], %s1165
        %p1167 = pneg %p483
        %p1168 = pneg %p480
        %s1169 = sand.u32 %s34, 1
        %s1170 = scalar_lea.sflag [#allocation4], %s1169
        %s1171 = sand.u32 %s496, 1
        %s1172 = smul.addr %s1171, 32
        %s1173 = scalar_lea.vmem [#allocation24], %s1172
        %p1174 = pneg %p509
        %p1175 = pneg %p506
        %s1176 = sand.u32 %s34, 1
        %s1177 = scalar_lea.sflag [#allocation4], %s1176
        %s1178 = sand.u32 %s522, 1
        %s1179 = scalar_lea.vmem [#allocation25], %s1178
        %p1180 = pneg %p535
        %p1181 = pneg %p532
        %p1182 = pneg %p561
        %p1183 = pneg %p558
        %s1184 = smul.u32 2, %s38
        %s1185 = smul.u32 2, %s38
        %s1186 = smul.u32 2, %s38
        %s1187 = smul.u32 2, %s38
        %s1188 = smul.u32 2, %s38
        %p1190 = scmp.eq.s32.totalorder %s39, 0
        // Predicated region
        $region173: #{transformer_forward.4} parent=95 // pred_check
          %p1191 = pneg %p1190
        $region174: #{transformer_forward.4} parent=95 // pred_check_branch
          %1193 = sbr.rel (%p1191) target = $region176
        $region175: #{transformer_forward.4} parent=95 // pred_region
          %v1194 = vld [vmem:[#allocation3] sm:$0xff]
          %v1195 = vld [vmem:[#allocation3 + $0x8] sm:$0xff]
          %vm1196 = vcmask 261120
          %1197 = vst.msk [vmem:[#allocation26] sm:$0xff] %vm1196, %v1194
          %1198 = vst.msk [vmem:[#allocation26 + $0x8] sm:$0xff] %vm1196, %v1195
        $region176: #{transformer_forward.4} parent=95 // pred_fallthru
          _
        %v1199 = vld [vmem:[#allocation26] sm:$0xff]
        %v1200 = vld [vmem:[#allocation26 + $0x8] sm:$0xff]
        %v1201 = vld [vmem:[#allocation6] sm:$0xff]
        %v1202 = vld [vmem:[#allocation6 + $0x8] sm:$0xff]
        %v1203 = vld [vmem:[%s953] sm:$0x1]
        %v1204 = vld [vmem:[%s961] sm:$0x1]
        %vm1205 = vcmask 261120
        %v1206 = vsel %vm1205, %v1199, 0.0
        %1207 = vadd.xlane.f32.xlu0 %v1206
        %v1208 = vpop.xlane.xlu0 %1207
        %v1209 = vsel %vm1205, %v1200, 0.0
        %1210 = vadd.xlane.f32.xlu0 %v1209
        %v1211 = vpop.xlane.xlu0 %1210
        %v1212 = vrcp.pop 32.0
        %v1213 = vmul.f32 %v1208, %v1212
        %v1214 = vmul.f32 %v1211, %v1212
        %v1215 = vsub.f32 %v1199, %v1213
        %v1216 = vsub.f32 %v1200, %v1214
        %v1217 = vmul.f32 %v1215, %v1215
        %v1218 = vmul.f32 %v1216, %v1216
        %v1219 = vsel %vm1205, %v1217, 0.0
        %1220 = vadd.xlane.f32.xlu0 %v1219
        %v1221 = vpop.xlane.xlu0 %1220
        %v1222 = vsel %vm1205, %v1218, 0.0
        %1223 = vadd.xlane.f32.xlu0 %v1222
        %v1224 = vpop.xlane.xlu0 %1223
        %v1225 = vmul.f32 %v1221, %v1212
        %v1226 = vmul.f32 %v1224, %v1212
        %v1227 = vadd.f32 %v1225, 1e-05
        %v1228 = vadd.f32 %v1226, 1e-05
        %v1229 = vrsqrt.pop %v1227
        %v1230 = vrsqrt.pop %v1228
        %v1231 = vmul.f32 %v1215, %v1229
        %v1232 = vmul.f32 %v1216, %v1230
        %v1234 = vlaneseq
        %v1235 = vshrl.u32 %v1234, 7
        %v1236 = vsub.s32 0, %v1235
        %v1237 = vrot.slane %v1203, %v1236
        %v1239 = vmul.f32 %v1231, %v1237
        %v1240 = vmul.f32 %v1232, %v1237
        %v1242 = vlaneseq
        %v1243 = vshrl.u32 %v1242, 7
        %v1244 = vsub.s32 0, %v1243
        %v1245 = vrot.slane %v1204, %v1244
        %v1247 = vadd.f32 %v1239, %v1245
        %v1248 = vadd.f32 %v1240, %v1245
        %v1249 = vpack.c.bf16 %v1248, %v1247
        %v1250 = vld [vmem:[%s970] sm:$0xf]
        %v1251 = vld [vmem:[%s970 + $0x4] sm:$0xf]
        %v1252 = vld [vmem:[%s970 + $0x8] sm:$0xf]
        %v1253 = vld [vmem:[%s970 + $0xc] sm:$0xf]
        %v1258 = vunpack.c.l.b16 %v1250
        %v1259 = vunpack.c.l.b16 %v1251
        %v1260 = vunpack.c.l.b16 %v1252
        %v1261 = vunpack.c.l.b16 %v1253
        %v1262 = vpack.c.b16 %v1259, %v1258
        %v1263 = vpack.c.b16 %v1261, %v1260
        %v1267 = vsel %vm1205, %v1249, 0
        %1269 = vmatprep.subr.bf16.mxu0 0
        %1270 = vmatpush1.bf16.msra.mxu0 %v1262
        %1271 = vmatprep.subr.bf16.mxu0 0
        %1272 = vmatpush1.bf16.msra.mxu0 %v1263
        %1273 = vmatprep.subr.bf16.mxu0 0
        %1274 = vmatpush1.bf16.msra.mxu0 0
        %1275 = vmatprep.subr.bf16.mxu0 0
        %1276 = vmatpush1.bf16.msra.mxu0 0
        %1277 = vmatprep.subr.bf16.mxu0 0
        %1278 = vmatpush1.bf16.msra.mxu0 0
        %1279 = vmatprep.subr.bf16.mxu0 0
        %1280 = vmatpush1.bf16.msra.mxu0 0
        %1281 = vmatprep.subr.bf16.mxu0 0
        %1282 = vmatpush1.bf16.msra.mxu0 0
        %1283 = vmatprep.subr.bf16.mxu0 0
        %1284 = vmatpush1.bf16.msra.mxu0 0
        %1285 = vmatprep.subr.bf16.mxu0 0
        %1286 = vmatpush1.bf16.msra.mxu0 0
        %1287 = vmatprep.subr.bf16.mxu0 0
        %1288 = vmatpush1.bf16.msra.mxu0 0
        %1289 = vmatprep.subr.bf16.mxu0 0
        %1290 = vmatpush1.bf16.msra.mxu0 0
        %1291 = vmatprep.subr.bf16.mxu0 0
        %1292 = vmatpush1.bf16.msra.mxu0 0
        %1293 = vmatprep.subr.bf16.mxu0 0
        %1294 = vmatpush1.bf16.msra.mxu0 0
        %1295 = vmatprep.subr.bf16.mxu0 0
        %1296 = vmatpush1.bf16.msra.mxu0 0
        %1297 = vmatprep.subr.bf16.mxu0 0
        %1298 = vmatpush1.bf16.msra.mxu0 0
        %1299 = vmatprep.subr.bf16.mxu0 0
        %1300 = vmatpush1.bf16.msra.mxu0 0
        %1301 = vmatprep.mubr.bf16.mxu0 0
        %1302 = vmatmul.mubr.bf16.gmra.mrb[0].mxu0 %v1267
        %v1303 = vpop.f32.mrb[0].mxu0
        %v1304 = vadd.f32 0.0, %v1303
        %v1305 = vpop.f32.mrb[0].mxu0
        %v1306 = vpop.f32.mrb[0].mxu0
        %v1307 = vadd.f32 0.0, %v1306
        %v1308 = vpop.f32.mrb[0].mxu0
        %1309 = vdwg.mxu0
        %v1310 = vpack.c.bf16 %v1307, %v1304
        %v1311 = vld [vmem:[#allocation8] sm:$0xff]
        %1313 = vrot.lane.b32.xlu0 %v1310, 96
        %v1314 = vpop.permute.xlu0 %1313
        %vm1315 = vcmask 64512
        %v1317 = vsel %vm1315, %v1310, 0
        %v1320 = vsel %vm1315, %v1314, 0
        %1322 = vmatprep.subr.bf16.mxu0 0
        %1323 = vmatpush1.bf16.xpose.msra.mxu0 %v1320
        %1324 = vmatprep.subr.bf16.mxu0 0
        %1325 = vmatpush1.bf16.xpose.msra.mxu0 0
        %1326 = vmatprep.subr.bf16.mxu0 0
        %1327 = vmatpush1.bf16.xpose.msra.mxu0 0
        %1328 = vmatprep.subr.bf16.mxu0 0
        %1329 = vmatpush1.bf16.xpose.msra.mxu0 0
        %1330 = vmatprep.subr.bf16.mxu0 0
        %1331 = vmatpush1.bf16.xpose.msra.mxu0 0
        %1332 = vmatprep.subr.bf16.mxu0 0
        %1333 = vmatpush1.bf16.xpose.msra.mxu0 0
        %1334 = vmatprep.subr.bf16.mxu0 0
        %1335 = vmatpush1.bf16.xpose.msra.mxu0 0
        %1336 = vmatprep.subr.bf16.mxu0 0
        %1337 = vmatpush1.bf16.xpose.msra.mxu0 0
        %1338 = vmatprep.subr.bf16.mxu0 0
        %1339 = vmatpush1.bf16.xpose.msra.mxu0 0
        %1340 = vmatprep.subr.bf16.mxu0 0
        %1341 = vmatpush1.bf16.xpose.msra.mxu0 0
        %1342 = vmatprep.subr.bf16.mxu0 0
        %1343 = vmatpush1.bf16.xpose.msra.mxu0 0
        %1344 = vmatprep.subr.bf16.mxu0 0
        %1345 = vmatpush1.bf16.xpose.msra.mxu0 0
        %1346 = vmatprep.subr.bf16.mxu0 0
        %1347 = vmatpush1.bf16.xpose.msra.mxu0 0
        %1348 = vmatprep.subr.bf16.mxu0 0
        %1349 = vmatpush1.bf16.xpose.msra.mxu0 0
        %1350 = vmatprep.subr.bf16.mxu0 0
        %1351 = vmatpush1.bf16.xpose.msra.mxu0 0
        %1352 = vmatprep.subr.bf16.mxu0 0
        %1353 = vmatpush1.bf16.xpose.msra.mxu0 0
        %1354 = vmatprep.mubr.bf16.mxu0 0
        %1355 = vmatmul.mubr.bf16.gmra.mrb[0].mxu0 %v1317
        %v1356 = vpop.f32.mrb[0].mxu0
        %v1357 = vadd.f32 0.0, %v1356
        %v1358 = vpop.f32.mrb[0].mxu0
        %v1359 = vpop.f32.mrb[0].mxu0
        %v1360 = vpop.f32.mrb[0].mxu0
        %1361 = vdwg.mxu0
        %v1362 = vmul.f32 %v1357, 0.35355338
        %v1363 = vadd.f32 %v1362, %v1311
        %v1364 = vsel %vm1315, %v1363, -inf
        %1365 = vmax.xlane.f32.xlu0 %v1364
        %v1366 = vpop.xlane.xlu0 %1365
        %v1367 = vsub.f32 %v1363, %v1366
        %v1368 = vmul.f32 %v1367, 1.442695
        %v1369 = vpow.pop %v1368
        %v1370 = vsel %vm1315, %v1369, 0.0
        %1371 = vadd.xlane.f32.xlu0 %v1370
        %v1372 = vpop.xlane.xlu0 %1371
        %v1373 = vrcp.pop %v1372
        %v1374 = vmul.f32 %v1369, %v1373
        %v1375 = vpack.c.bf16 %v1374, %v1374
        %1376 = vrot.lane.b32.xlu0 %v1310, 64
        %v1377 = vpop.permute.xlu0 %1376
        %v1379 = vsel %vm1315, %v1375, 0
        %vm1381 = vcmask 1043456
        %v1383 = vsel %vm1381, %v1377, 0
        %1385 = vmatprep.subr.bf16.mxu0 0
        %1386 = vmatpush1.bf16.msra.mxu0 %v1383
        %1387 = vmatprep.subr.bf16.mxu0 0
        %1388 = vmatpush1.bf16.msra.mxu0 0
        %1389 = vmatprep.subr.bf16.mxu0 0
        %1390 = vmatpush1.bf16.msra.mxu0 0
        %1391 = vmatprep.subr.bf16.mxu0 0
        %1392 = vmatpush1.bf16.msra.mxu0 0
        %1393 = vmatprep.subr.bf16.mxu0 0
        %1394 = vmatpush1.bf16.msra.mxu0 0
        %1395 = vmatprep.subr.bf16.mxu0 0
        %1396 = vmatpush1.bf16.msra.mxu0 0
        %1397 = vmatprep.subr.bf16.mxu0 0
        %1398 = vmatpush1.bf16.msra.mxu0 0
        %1399 = vmatprep.subr.bf16.mxu0 0
        %1400 = vmatpush1.bf16.msra.mxu0 0
        %1401 = vmatprep.subr.bf16.mxu0 0
        %1402 = vmatpush1.bf16.msra.mxu0 0
        %1403 = vmatprep.subr.bf16.mxu0 0
        %1404 = vmatpush1.bf16.msra.mxu0 0
        %1405 = vmatprep.subr.bf16.mxu0 0
        %1406 = vmatpush1.bf16.msra.mxu0 0
        %1407 = vmatprep.subr.bf16.mxu0 0
        %1408 = vmatpush1.bf16.msra.mxu0 0
        %1409 = vmatprep.subr.bf16.mxu0 0
        %1410 = vmatpush1.bf16.msra.mxu0 0
        %1411 = vmatprep.subr.bf16.mxu0 0
        %1412 = vmatpush1.bf16.msra.mxu0 0
        %1413 = vmatprep.subr.bf16.mxu0 0
        %1414 = vmatpush1.bf16.msra.mxu0 0
        %1415 = vmatprep.subr.bf16.mxu0 0
        %1416 = vmatpush1.bf16.msra.mxu0 0
        %1417 = vmatprep.mubr.bf16.mxu0 0
        %1418 = vmatmul.mubr.bf16.gmra.mrb[0].mxu0 %v1379
        %v1419 = vpop.f32.mrb[0].mxu0
        %v1420 = vadd.f32 0.0, %v1419
        %v1421 = vpop.f32.mrb[0].mxu0
        %v1422 = vpop.f32.mrb[0].mxu0
        %v1423 = vpop.f32.mrb[0].mxu0
        %1424 = vdwg.mxu0
        %1425 = vst.msk [vmem:[#allocation2] sm:$0xff] %vm1315, %v1420
        %1426 = vrot.lane.b32.xlu0 %v1310, 120
        %v1427 = vpop.permute.xlu0 %1426
        %1428 = vrot.lane.b32.xlu0 %v1310, 88
        %v1429 = vpop.permute.xlu0 %1428
        %v1431 = vsel %vm1315, %v1427, 0
        %v1434 = vsel %vm1315, %v1429, 0
        %1436 = vmatprep.subr.bf16.mxu0 0
        %1437 = vmatpush1.bf16.xpose.msra.mxu0 %v1434
        %1438 = vmatprep.subr.bf16.mxu0 0
        %1439 = vmatpush1.bf16.xpose.msra.mxu0 0
        %1440 = vmatprep.subr.bf16.mxu0 0
        %1441 = vmatpush1.bf16.xpose.msra.mxu0 0
        %1442 = vmatprep.subr.bf16.mxu0 0
        %1443 = vmatpush1.bf16.xpose.msra.mxu0 0
        %1444 = vmatprep.subr.bf16.mxu0 0
        %1445 = vmatpush1.bf16.xpose.msra.mxu0 0
        %1446 = vmatprep.subr.bf16.mxu0 0
        %1447 = vmatpush1.bf16.xpose.msra.mxu0 0
        %1448 = vmatprep.subr.bf16.mxu0 0
        %1449 = vmatpush1.bf16.xpose.msra.mxu0 0
        %1450 = vmatprep.subr.bf16.mxu0 0
        %1451 = vmatpush1.bf16.xpose.msra.mxu0 0
        %1452 = vmatprep.subr.bf16.mxu0 0
        %1453 = vmatpush1.bf16.xpose.msra.mxu0 0
        %1454 = vmatprep.subr.bf16.mxu0 0
        %1455 = vmatpush1.bf16.xpose.msra.mxu0 0
        %1456 = vmatprep.subr.bf16.mxu0 0
        %1457 = vmatpush1.bf16.xpose.msra.mxu0 0
        %1458 = vmatprep.subr.bf16.mxu0 0
        %1459 = vmatpush1.bf16.xpose.msra.mxu0 0
        %1460 = vmatprep.subr.bf16.mxu0 0
        %1461 = vmatpush1.bf16.xpose.msra.mxu0 0
        %1462 = vmatprep.subr.bf16.mxu0 0
        %1463 = vmatpush1.bf16.xpose.msra.mxu0 0
        %1464 = vmatprep.subr.bf16.mxu0 0
        %1465 = vmatpush1.bf16.xpose.msra.mxu0 0
        %1466 = vmatprep.subr.bf16.mxu0 0
        %1467 = vmatpush1.bf16.xpose.msra.mxu0 0
        %1468 = vmatprep.mubr.bf16.mxu0 0
        %1469 = vmatmul.mubr.bf16.gmra.mrb[0].mxu0 %v1431
        %v1470 = vpop.f32.mrb[0].mxu0
        %v1471 = vadd.f32 0.0, %v1470
        %v1472 = vpop.f32.mrb[0].mxu0
        %v1473 = vpop.f32.mrb[0].mxu0
        %v1474 = vpop.f32.mrb[0].mxu0
        %1475 = vdwg.mxu0
        %v1476 = vmul.f32 %v1471, 0.35355338
        %v1477 = vadd.f32 %v1476, %v1311
        %v1478 = vsel %vm1315, %v1477, -inf
        %1479 = vmax.xlane.f32.xlu0 %v1478
        %v1480 = vpop.xlane.xlu0 %1479
        %v1481 = vsub.f32 %v1477, %v1480
        %v1482 = vmul.f32 %v1481, 1.442695
        %v1483 = vpow.pop %v1482
        %v1484 = vsel %vm1315, %v1483, 0.0
        %1485 = vadd.xlane.f32.xlu0 %v1484
        %v1486 = vpop.xlane.xlu0 %1485
        %v1487 = vrcp.pop %v1486
        %v1488 = vmul.f32 %v1483, %v1487
        %v1489 = vpack.c.bf16 %v1488, %v1488
        %1490 = vrot.lane.b32.xlu0 %v1310, 56
        %v1491 = vpop.permute.xlu0 %1490
        %v1493 = vsel %vm1315, %v1489, 0
        %v1496 = vsel %vm1381, %v1491, 0
        %1498 = vmatprep.subr.bf16.mxu0 0
        %1499 = vmatpush1.bf16.msra.mxu0 %v1496
        %1500 = vmatprep.subr.bf16.mxu0 0
        %1501 = vmatpush1.bf16.msra.mxu0 0
        %1502 = vmatprep.subr.bf16.mxu0 0
        %1503 = vmatpush1.bf16.msra.mxu0 0
        %1504 = vmatprep.subr.bf16.mxu0 0
        %1505 = vmatpush1.bf16.msra.mxu0 0
        %1506 = vmatprep.subr.bf16.mxu0 0
        %1507 = vmatpush1.bf16.msra.mxu0 0
        %1508 = vmatprep.subr.bf16.mxu0 0
        %1509 = vmatpush1.bf16.msra.mxu0 0
        %1510 = vmatprep.subr.bf16.mxu0 0
        %1511 = vmatpush1.bf16.msra.mxu0 0
        %1512 = vmatprep.subr.bf16.mxu0 0
        %1513 = vmatpush1.bf16.msra.mxu0 0
        %1514 = vmatprep.subr.bf16.mxu0 0
        %1515 = vmatpush1.bf16.msra.mxu0 0
        %1516 = vmatprep.subr.bf16.mxu0 0
        %1517 = vmatpush1.bf16.msra.mxu0 0
        %1518 = vmatprep.subr.bf16.mxu0 0
        %1519 = vmatpush1.bf16.msra.mxu0 0
        %1520 = vmatprep.subr.bf16.mxu0 0
        %1521 = vmatpush1.bf16.msra.mxu0 0
        %1522 = vmatprep.subr.bf16.mxu0 0
        %1523 = vmatpush1.bf16.msra.mxu0 0
        %1524 = vmatprep.subr.bf16.mxu0 0
        %1525 = vmatpush1.bf16.msra.mxu0 0
        %1526 = vmatprep.subr.bf16.mxu0 0
        %1527 = vmatpush1.bf16.msra.mxu0 0
        %1528 = vmatprep.subr.bf16.mxu0 0
        %1529 = vmatpush1.bf16.msra.mxu0 0
        %1530 = vmatprep.mubr.bf16.mxu0 0
        %1531 = vmatmul.mubr.bf16.gmra.mrb[0].mxu0 %v1493
        %v1532 = vpop.f32.mrb[0].mxu0
        %v1533 = vadd.f32 0.0, %v1532
        %v1534 = vpop.f32.mrb[0].mxu0
        %v1535 = vpop.f32.mrb[0].mxu0
        %v1536 = vpop.f32.mrb[0].mxu0
        %1537 = vdwg.mxu0
        %1539 = vrot.lane.b32.xlu0 %v1533, 8
        %v1540 = vpop.permute.xlu0 %1539
        %vm1542 = vcmask 130112
        %1543 = vst.msk [vmem:[#allocation2] sm:$0xff] %vm1542, %v1540
        %1544 = vrot.lane.b32.xlu0 %v1310, 112
        %v1545 = vpop.permute.xlu0 %1544
        %1546 = vrot.lane.b32.xlu0 %v1310, 80
        %v1547 = vpop.permute.xlu0 %1546
        %v1549 = vsel %vm1315, %v1545, 0
        %v1552 = vsel %vm1315, %v1547, 0
        %1554 = vmatprep.subr.bf16.mxu0 0
        %1555 = vmatpush1.bf16.xpose.msra.mxu0 %v1552
        %1556 = vmatprep.subr.bf16.mxu0 0
        %1557 = vmatpush1.bf16.xpose.msra.mxu0 0
        %1558 = vmatprep.subr.bf16.mxu0 0
        %1559 = vmatpush1.bf16.xpose.msra.mxu0 0
        %1560 = vmatprep.subr.bf16.mxu0 0
        %1561 = vmatpush1.bf16.xpose.msra.mxu0 0
        %1562 = vmatprep.subr.bf16.mxu0 0
        %1563 = vmatpush1.bf16.xpose.msra.mxu0 0
        %1564 = vmatprep.subr.bf16.mxu0 0
        %1565 = vmatpush1.bf16.xpose.msra.mxu0 0
        %1566 = vmatprep.subr.bf16.mxu0 0
        %1567 = vmatpush1.bf16.xpose.msra.mxu0 0
        %1568 = vmatprep.subr.bf16.mxu0 0
        %1569 = vmatpush1.bf16.xpose.msra.mxu0 0
        %1570 = vmatprep.subr.bf16.mxu0 0
        %1571 = vmatpush1.bf16.xpose.msra.mxu0 0
        %1572 = vmatprep.subr.bf16.mxu0 0
        %1573 = vmatpush1.bf16.xpose.msra.mxu0 0
        %1574 = vmatprep.subr.bf16.mxu0 0
        %1575 = vmatpush1.bf16.xpose.msra.mxu0 0
        %1576 = vmatprep.subr.bf16.mxu0 0
        %1577 = vmatpush1.bf16.xpose.msra.mxu0 0
        %1578 = vmatprep.subr.bf16.mxu0 0
        %1579 = vmatpush1.bf16.xpose.msra.mxu0 0
        %1580 = vmatprep.subr.bf16.mxu0 0
        %1581 = vmatpush1.bf16.xpose.msra.mxu0 0
        %1582 = vmatprep.subr.bf16.mxu0 0
        %1583 = vmatpush1.bf16.xpose.msra.mxu0 0
        %1584 = vmatprep.subr.bf16.mxu0 0
        %1585 = vmatpush1.bf16.xpose.msra.mxu0 0
        %1586 = vmatprep.mubr.bf16.mxu0 0
        %1587 = vmatmul.mubr.bf16.gmra.mrb[0].mxu0 %v1549
        %v1588 = vpop.f32.mrb[0].mxu0
        %v1589 = vadd.f32 0.0, %v1588
        %v1590 = vpop.f32.mrb[0].mxu0
        %v1591 = vpop.f32.mrb[0].mxu0
        %v1592 = vpop.f32.mrb[0].mxu0
        %1593 = vdwg.mxu0
        %v1594 = vmul.f32 %v1589, 0.35355338
        %v1595 = vadd.f32 %v1594, %v1311
        %v1596 = vsel %vm1315, %v1595, -inf
        %1597 = vmax.xlane.f32.xlu0 %v1596
        %v1598 = vpop.xlane.xlu0 %1597
        %v1599 = vsub.f32 %v1595, %v1598
        %v1600 = vmul.f32 %v1599, 1.442695
        %v1601 = vpow.pop %v1600
        %v1602 = vsel %vm1315, %v1601, 0.0
        %1603 = vadd.xlane.f32.xlu0 %v1602
        %v1604 = vpop.xlane.xlu0 %1603
        %v1605 = vrcp.pop %v1604
        %v1606 = vmul.f32 %v1601, %v1605
        %v1607 = vpack.c.bf16 %v1606, %v1606
        %1608 = vrot.lane.b32.xlu0 %v1310, 48
        %v1609 = vpop.permute.xlu0 %1608
        %v1611 = vsel %vm1315, %v1607, 0
        %v1614 = vsel %vm1381, %v1609, 0
        %1616 = vmatprep.subr.bf16.mxu0 0
        %1617 = vmatpush1.bf16.msra.mxu0 %v1614
        %1618 = vmatprep.subr.bf16.mxu0 0
        %1619 = vmatpush1.bf16.msra.mxu0 0
        %1620 = vmatprep.subr.bf16.mxu0 0
        %1621 = vmatpush1.bf16.msra.mxu0 0
        %1622 = vmatprep.subr.bf16.mxu0 0
        %1623 = vmatpush1.bf16.msra.mxu0 0
        %1624 = vmatprep.subr.bf16.mxu0 0
        %1625 = vmatpush1.bf16.msra.mxu0 0
        %1626 = vmatprep.subr.bf16.mxu0 0
        %1627 = vmatpush1.bf16.msra.mxu0 0
        %1628 = vmatprep.subr.bf16.mxu0 0
        %1629 = vmatpush1.bf16.msra.mxu0 0
        %1630 = vmatprep.subr.bf16.mxu0 0
        %1631 = vmatpush1.bf16.msra.mxu0 0
        %1632 = vmatprep.subr.bf16.mxu0 0
        %1633 = vmatpush1.bf16.msra.mxu0 0
        %1634 = vmatprep.subr.bf16.mxu0 0
        %1635 = vmatpush1.bf16.msra.mxu0 0
        %1636 = vmatprep.subr.bf16.mxu0 0
        %1637 = vmatpush1.bf16.msra.mxu0 0
        %1638 = vmatprep.subr.bf16.mxu0 0
        %1639 = vmatpush1.bf16.msra.mxu0 0
        %1640 = vmatprep.subr.bf16.mxu0 0
        %1641 = vmatpush1.bf16.msra.mxu0 0
        %1642 = vmatprep.subr.bf16.mxu0 0
        %1643 = vmatpush1.bf16.msra.mxu0 0
        %1644 = vmatprep.subr.bf16.mxu0 0
        %1645 = vmatpush1.bf16.msra.mxu0 0
        %1646 = vmatprep.subr.bf16.mxu0 0
        %1647 = vmatpush1.bf16.msra.mxu0 0
        %1648 = vmatprep.mubr.bf16.mxu0 0
        %1649 = vmatmul.mubr.bf16.gmra.mrb[0].mxu0 %v1611
        %v1650 = vpop.f32.mrb[0].mxu0
        %v1651 = vadd.f32 0.0, %v1650
        %v1652 = vpop.f32.mrb[0].mxu0
        %v1653 = vpop.f32.mrb[0].mxu0
        %v1654 = vpop.f32.mrb[0].mxu0
        %1655 = vdwg.mxu0
        %1657 = vrot.lane.b32.xlu0 %v1651, 16
        %v1658 = vpop.permute.xlu0 %1657
        %vm1660 = vcmask 195712
        %1661 = vst.msk [vmem:[#allocation2] sm:$0xff] %vm1660, %v1658
        %1662 = vrot.lane.b32.xlu0 %v1310, 104
        %v1663 = vpop.permute.xlu0 %1662
        %1664 = vrot.lane.b32.xlu0 %v1310, 72
        %v1665 = vpop.permute.xlu0 %1664
        %v1667 = vsel %vm1315, %v1663, 0
        %v1670 = vsel %vm1315, %v1665, 0
        %1672 = vmatprep.subr.bf16.mxu0 0
        %1673 = vmatpush1.bf16.xpose.msra.mxu0 %v1670
        %1674 = vmatprep.subr.bf16.mxu0 0
        %1675 = vmatpush1.bf16.xpose.msra.mxu0 0
        %1676 = vmatprep.subr.bf16.mxu0 0
        %1677 = vmatpush1.bf16.xpose.msra.mxu0 0
        %1678 = vmatprep.subr.bf16.mxu0 0
        %1679 = vmatpush1.bf16.xpose.msra.mxu0 0
        %1680 = vmatprep.subr.bf16.mxu0 0
        %1681 = vmatpush1.bf16.xpose.msra.mxu0 0
        %1682 = vmatprep.subr.bf16.mxu0 0
        %1683 = vmatpush1.bf16.xpose.msra.mxu0 0
        %1684 = vmatprep.subr.bf16.mxu0 0
        %1685 = vmatpush1.bf16.xpose.msra.mxu0 0
        %1686 = vmatprep.subr.bf16.mxu0 0
        %1687 = vmatpush1.bf16.xpose.msra.mxu0 0
        %1688 = vmatprep.subr.bf16.mxu0 0
        %1689 = vmatpush1.bf16.xpose.msra.mxu0 0
        %1690 = vmatprep.subr.bf16.mxu0 0
        %1691 = vmatpush1.bf16.xpose.msra.mxu0 0
        %1692 = vmatprep.subr.bf16.mxu0 0
        %1693 = vmatpush1.bf16.xpose.msra.mxu0 0
        %1694 = vmatprep.subr.bf16.mxu0 0
        %1695 = vmatpush1.bf16.xpose.msra.mxu0 0
        %1696 = vmatprep.subr.bf16.mxu0 0
        %1697 = vmatpush1.bf16.xpose.msra.mxu0 0
        %1698 = vmatprep.subr.bf16.mxu0 0
        %1699 = vmatpush1.bf16.xpose.msra.mxu0 0
        %1700 = vmatprep.subr.bf16.mxu0 0
        %1701 = vmatpush1.bf16.xpose.msra.mxu0 0
        %1702 = vmatprep.subr.bf16.mxu0 0
        %1703 = vmatpush1.bf16.xpose.msra.mxu0 0
        %1704 = vmatprep.mubr.bf16.mxu0 0
        %1705 = vmatmul.mubr.bf16.gmra.mrb[0].mxu0 %v1667
        %v1706 = vpop.f32.mrb[0].mxu0
        %v1707 = vadd.f32 0.0, %v1706
        %v1708 = vpop.f32.mrb[0].mxu0
        %v1709 = vpop.f32.mrb[0].mxu0
        %v1710 = vpop.f32.mrb[0].mxu0
        %1711 = vdwg.mxu0
        %v1712 = vmul.f32 %v1707, 0.35355338
        %v1713 = vadd.f32 %v1712, %v1311
        %v1714 = vsel %vm1315, %v1713, -inf
        %1715 = vmax.xlane.f32.xlu0 %v1714
        %v1716 = vpop.xlane.xlu0 %1715
        %v1717 = vsub.f32 %v1713, %v1716
        %v1718 = vmul.f32 %v1717, 1.442695
        %v1719 = vpow.pop %v1718
        %v1720 = vsel %vm1315, %v1719, 0.0
        %1721 = vadd.xlane.f32.xlu0 %v1720
        %v1722 = vpop.xlane.xlu0 %1721
        %v1723 = vrcp.pop %v1722
        %v1724 = vmul.f32 %v1719, %v1723
        %v1725 = vpack.c.bf16 %v1724, %v1724
        %1726 = vrot.lane.b32.xlu0 %v1310, 40
        %v1727 = vpop.permute.xlu0 %1726
        %v1729 = vsel %vm1315, %v1725, 0
        %v1732 = vsel %vm1381, %v1727, 0
        %1734 = vmatprep.subr.bf16.mxu0 0
        %1735 = vmatpush1.bf16.msra.mxu0 %v1732
        %1736 = vmatprep.subr.bf16.mxu0 0
        %1737 = vmatpush1.bf16.msra.mxu0 0
        %1738 = vmatprep.subr.bf16.mxu0 0
        %1739 = vmatpush1.bf16.msra.mxu0 0
        %1740 = vmatprep.subr.bf16.mxu0 0
        %1741 = vmatpush1.bf16.msra.mxu0 0
        %1742 = vmatprep.subr.bf16.mxu0 0
        %1743 = vmatpush1.bf16.msra.mxu0 0
        %1744 = vmatprep.subr.bf16.mxu0 0
        %1745 = vmatpush1.bf16.msra.mxu0 0
        %1746 = vmatprep.subr.bf16.mxu0 0
        %1747 = vmatpush1.bf16.msra.mxu0 0
        %1748 = vmatprep.subr.bf16.mxu0 0
        %1749 = vmatpush1.bf16.msra.mxu0 0
        %1750 = vmatprep.subr.bf16.mxu0 0
        %1751 = vmatpush1.bf16.msra.mxu0 0
        %1752 = vmatprep.subr.bf16.mxu0 0
        %1753 = vmatpush1.bf16.msra.mxu0 0
        %1754 = vmatprep.subr.bf16.mxu0 0
        %1755 = vmatpush1.bf16.msra.mxu0 0
        %1756 = vmatprep.subr.bf16.mxu0 0
        %1757 = vmatpush1.bf16.msra.mxu0 0
        %1758 = vmatprep.subr.bf16.mxu0 0
        %1759 = vmatpush1.bf16.msra.mxu0 0
        %1760 = vmatprep.subr.bf16.mxu0 0
        %1761 = vmatpush1.bf16.msra.mxu0 0
        %1762 = vmatprep.subr.bf16.mxu0 0
        %1763 = vmatpush1.bf16.msra.mxu0 0
        %1764 = vmatprep.subr.bf16.mxu0 0
        %1765 = vmatpush1.bf16.msra.mxu0 0
        %1766 = vmatprep.mubr.bf16.mxu0 0
        %1767 = vmatmul.mubr.bf16.gmra.mrb[0].mxu0 %v1729
        %v1768 = vpop.f32.mrb[0].mxu0
        %v1769 = vadd.f32 0.0, %v1768
        %v1770 = vpop.f32.mrb[0].mxu0
        %v1771 = vpop.f32.mrb[0].mxu0
        %v1772 = vpop.f32.mrb[0].mxu0
        %1773 = vdwg.mxu0
        %1775 = vrot.lane.b32.xlu0 %v1769, 24
        %v1776 = vpop.permute.xlu0 %1775
        %vm1778 = vcmask 261312
        %1779 = vst.msk [vmem:[#allocation2] sm:$0xff] %vm1778, %v1776
        %s1780 = scalar_lea.vmem [#allocation8], 8
        %v1781 = vld [vmem:[%s1780] sm:$0xff]
        %v1782 = vrot.slane %v1310, 4
        %1783 = vrot.lane.b32.xlu0 %v1782, 96
        %v1784 = vpop.permute.xlu0 %1783
        %v1786 = vsel %vm1315, %v1782, 0
        %v1789 = vsel %vm1315, %v1784, 0
        %1791 = vmatprep.subr.bf16.mxu0 0
        %1792 = vmatpush1.bf16.xpose.msra.mxu0 %v1789
        %1793 = vmatprep.subr.bf16.mxu0 0
        %1794 = vmatpush1.bf16.xpose.msra.mxu0 0
        %1795 = vmatprep.subr.bf16.mxu0 0
        %1796 = vmatpush1.bf16.xpose.msra.mxu0 0
        %1797 = vmatprep.subr.bf16.mxu0 0
        %1798 = vmatpush1.bf16.xpose.msra.mxu0 0
        %1799 = vmatprep.subr.bf16.mxu0 0
        %1800 = vmatpush1.bf16.xpose.msra.mxu0 0
        %1801 = vmatprep.subr.bf16.mxu0 0
        %1802 = vmatpush1.bf16.xpose.msra.mxu0 0
        %1803 = vmatprep.subr.bf16.mxu0 0
        %1804 = vmatpush1.bf16.xpose.msra.mxu0 0
        %1805 = vmatprep.subr.bf16.mxu0 0
        %1806 = vmatpush1.bf16.xpose.msra.mxu0 0
        %1807 = vmatprep.subr.bf16.mxu0 0
        %1808 = vmatpush1.bf16.xpose.msra.mxu0 0
        %1809 = vmatprep.subr.bf16.mxu0 0
        %1810 = vmatpush1.bf16.xpose.msra.mxu0 0
        %1811 = vmatprep.subr.bf16.mxu0 0
        %1812 = vmatpush1.bf16.xpose.msra.mxu0 0
        %1813 = vmatprep.subr.bf16.mxu0 0
        %1814 = vmatpush1.bf16.xpose.msra.mxu0 0
        %1815 = vmatprep.subr.bf16.mxu0 0
        %1816 = vmatpush1.bf16.xpose.msra.mxu0 0
        %1817 = vmatprep.subr.bf16.mxu0 0
        %1818 = vmatpush1.bf16.xpose.msra.mxu0 0
        %1819 = vmatprep.subr.bf16.mxu0 0
        %1820 = vmatpush1.bf16.xpose.msra.mxu0 0
        %1821 = vmatprep.subr.bf16.mxu0 0
        %1822 = vmatpush1.bf16.xpose.msra.mxu0 0
        %1823 = vmatprep.mubr.bf16.mxu0 0
        %1824 = vmatmul.mubr.bf16.gmra.mrb[0].mxu0 %v1786
        %v1825 = vpop.f32.mrb[0].mxu0
        %v1826 = vadd.f32 0.0, %v1825
        %v1827 = vpop.f32.mrb[0].mxu0
        %v1828 = vpop.f32.mrb[0].mxu0
        %v1829 = vpop.f32.mrb[0].mxu0
        %1830 = vdwg.mxu0
        %v1831 = vmul.f32 %v1826, 0.35355338
        %v1832 = vadd.f32 %v1831, %v1781
        %v1833 = vsel %vm1315, %v1832, -inf
        %1834 = vmax.xlane.f32.xlu0 %v1833
        %v1835 = vpop.xlane.xlu0 %1834
        %v1836 = vsub.f32 %v1832, %v1835
        %v1837 = vmul.f32 %v1836, 1.442695
        %v1838 = vpow.pop %v1837
        %v1839 = vsel %vm1315, %v1838, 0.0
        %1840 = vadd.xlane.f32.xlu0 %v1839
        %v1841 = vpop.xlane.xlu0 %1840
        %v1842 = vrcp.pop %v1841
        %v1843 = vmul.f32 %v1838, %v1842
        %v1844 = vpack.c.bf16 %v1843, %v1843
        %1845 = vrot.lane.b32.xlu0 %v1782, 64
        %v1846 = vpop.permute.xlu0 %1845
        %v1848 = vsel %vm1315, %v1844, 0
        %v1851 = vsel %vm1381, %v1846, 0
        %1853 = vmatprep.subr.bf16.mxu0 0
        %1854 = vmatpush1.bf16.msra.mxu0 %v1851
        %1855 = vmatprep.subr.bf16.mxu0 0
        %1856 = vmatpush1.bf16.msra.mxu0 0
        %1857 = vmatprep.subr.bf16.mxu0 0
        %1858 = vmatpush1.bf16.msra.mxu0 0
        %1859 = vmatprep.subr.bf16.mxu0 0
        %1860 = vmatpush1.bf16.msra.mxu0 0
        %1861 = vmatprep.subr.bf16.mxu0 0
        %1862 = vmatpush1.bf16.msra.mxu0 0
        %1863 = vmatprep.subr.bf16.mxu0 0
        %1864 = vmatpush1.bf16.msra.mxu0 0
        %1865 = vmatprep.subr.bf16.mxu0 0
        %1866 = vmatpush1.bf16.msra.mxu0 0
        %1867 = vmatprep.subr.bf16.mxu0 0
        %1868 = vmatpush1.bf16.msra.mxu0 0
        %1869 = vmatprep.subr.bf16.mxu0 0
        %1870 = vmatpush1.bf16.msra.mxu0 0
        %1871 = vmatprep.subr.bf16.mxu0 0
        %1872 = vmatpush1.bf16.msra.mxu0 0
        %1873 = vmatprep.subr.bf16.mxu0 0
        %1874 = vmatpush1.bf16.msra.mxu0 0
        %1875 = vmatprep.subr.bf16.mxu0 0
        %1876 = vmatpush1.bf16.msra.mxu0 0
        %1877 = vmatprep.subr.bf16.mxu0 0
        %1878 = vmatpush1.bf16.msra.mxu0 0
        %1879 = vmatprep.subr.bf16.mxu0 0
        %1880 = vmatpush1.bf16.msra.mxu0 0
        %1881 = vmatprep.subr.bf16.mxu0 0
        %1882 = vmatpush1.bf16.msra.mxu0 0
        %1883 = vmatprep.subr.bf16.mxu0 0
        %1884 = vmatpush1.bf16.msra.mxu0 0
        %1885 = vmatprep.mubr.bf16.mxu0 0
        %1886 = vmatmul.mubr.bf16.gmra.mrb[0].mxu0 %v1848
        %v1887 = vpop.f32.mrb[0].mxu0
        %v1888 = vadd.f32 0.0, %v1887
        %v1889 = vpop.f32.mrb[0].mxu0
        %v1890 = vpop.f32.mrb[0].mxu0
        %v1891 = vpop.f32.mrb[0].mxu0
        %1892 = vdwg.mxu0
        %1893 = vst.msk [vmem:[#allocation2 + $0x8] sm:$0xff] %vm1315, %v1888
        %1894 = vrot.lane.b32.xlu0 %v1782, 120
        %v1895 = vpop.permute.xlu0 %1894
        %1896 = vrot.lane.b32.xlu0 %v1782, 88
        %v1897 = vpop.permute.xlu0 %1896
        %v1899 = vsel %vm1315, %v1895, 0
        %v1902 = vsel %vm1315, %v1897, 0
        %1904 = vmatprep.subr.bf16.mxu0 0
        %1905 = vmatpush1.bf16.xpose.msra.mxu0 %v1902
        %1906 = vmatprep.subr.bf16.mxu0 0
        %1907 = vmatpush1.bf16.xpose.msra.mxu0 0
        %1908 = vmatprep.subr.bf16.mxu0 0
        %1909 = vmatpush1.bf16.xpose.msra.mxu0 0
        %1910 = vmatprep.subr.bf16.mxu0 0
        %1911 = vmatpush1.bf16.xpose.msra.mxu0 0
        %1912 = vmatprep.subr.bf16.mxu0 0
        %1913 = vmatpush1.bf16.xpose.msra.mxu0 0
        %1914 = vmatprep.subr.bf16.mxu0 0
        %1915 = vmatpush1.bf16.xpose.msra.mxu0 0
        %1916 = vmatprep.subr.bf16.mxu0 0
        %1917 = vmatpush1.bf16.xpose.msra.mxu0 0
        %1918 = vmatprep.subr.bf16.mxu0 0
        %1919 = vmatpush1.bf16.xpose.msra.mxu0 0
        %1920 = vmatprep.subr.bf16.mxu0 0
        %1921 = vmatpush1.bf16.xpose.msra.mxu0 0
        %1922 = vmatprep.subr.bf16.mxu0 0
        %1923 = vmatpush1.bf16.xpose.msra.mxu0 0
        %1924 = vmatprep.subr.bf16.mxu0 0
        %1925 = vmatpush1.bf16.xpose.msra.mxu0 0
        %1926 = vmatprep.subr.bf16.mxu0 0
        %1927 = vmatpush1.bf16.xpose.msra.mxu0 0
        %1928 = vmatprep.subr.bf16.mxu0 0
        %1929 = vmatpush1.bf16.xpose.msra.mxu0 0
        %1930 = vmatprep.subr.bf16.mxu0 0
        %1931 = vmatpush1.bf16.xpose.msra.mxu0 0
        %1932 = vmatprep.subr.bf16.mxu0 0
        %1933 = vmatpush1.bf16.xpose.msra.mxu0 0
        %1934 = vmatprep.subr.bf16.mxu0 0
        %1935 = vmatpush1.bf16.xpose.msra.mxu0 0
        %1936 = vmatprep.mubr.bf16.mxu0 0
        %1937 = vmatmul.mubr.bf16.gmra.mrb[0].mxu0 %v1899
        %v1938 = vpop.f32.mrb[0].mxu0
        %v1939 = vadd.f32 0.0, %v1938
        %v1940 = vpop.f32.mrb[0].mxu0
        %v1941 = vpop.f32.mrb[0].mxu0
        %v1942 = vpop.f32.mrb[0].mxu0
        %1943 = vdwg.mxu0
        %v1944 = vmul.f32 %v1939, 0.35355338
        %v1945 = vadd.f32 %v1944, %v1781
        %v1946 = vsel %vm1315, %v1945, -inf
        %1947 = vmax.xlane.f32.xlu0 %v1946
        %v1948 = vpop.xlane.xlu0 %1947
        %v1949 = vsub.f32 %v1945, %v1948
        %v1950 = vmul.f32 %v1949, 1.442695
        %v1951 = vpow.pop %v1950
        %v1952 = vsel %vm1315, %v1951, 0.0
        %1953 = vadd.xlane.f32.xlu0 %v1952
        %v1954 = vpop.xlane.xlu0 %1953
        %v1955 = vrcp.pop %v1954
        %v1956 = vmul.f32 %v1951, %v1955
        %v1957 = vpack.c.bf16 %v1956, %v1956
        %1958 = vrot.lane.b32.xlu0 %v1782, 56
        %v1959 = vpop.permute.xlu0 %1958
        %v1961 = vsel %vm1315, %v1957, 0
        %v1964 = vsel %vm1381, %v1959, 0
        %1966 = vmatprep.subr.bf16.mxu0 0
        %1967 = vmatpush1.bf16.msra.mxu0 %v1964
        %1968 = vmatprep.subr.bf16.mxu0 0
        %1969 = vmatpush1.bf16.msra.mxu0 0
        %1970 = vmatprep.subr.bf16.mxu0 0
        %1971 = vmatpush1.bf16.msra.mxu0 0
        %1972 = vmatprep.subr.bf16.mxu0 0
        %1973 = vmatpush1.bf16.msra.mxu0 0
        %1974 = vmatprep.subr.bf16.mxu0 0
        %1975 = vmatpush1.bf16.msra.mxu0 0
        %1976 = vmatprep.subr.bf16.mxu0 0
        %1977 = vmatpush1.bf16.msra.mxu0 0
        %1978 = vmatprep.subr.bf16.mxu0 0
        %1979 = vmatpush1.bf16.msra.mxu0 0
        %1980 = vmatprep.subr.bf16.mxu0 0
        %1981 = vmatpush1.bf16.msra.mxu0 0
        %1982 = vmatprep.subr.bf16.mxu0 0
        %1983 = vmatpush1.bf16.msra.mxu0 0
        %1984 = vmatprep.subr.bf16.mxu0 0
        %1985 = vmatpush1.bf16.msra.mxu0 0
        %1986 = vmatprep.subr.bf16.mxu0 0
        %1987 = vmatpush1.bf16.msra.mxu0 0
        %1988 = vmatprep.subr.bf16.mxu0 0
        %1989 = vmatpush1.bf16.msra.mxu0 0
        %1990 = vmatprep.subr.bf16.mxu0 0
        %1991 = vmatpush1.bf16.msra.mxu0 0
        %1992 = vmatprep.subr.bf16.mxu0 0
        %1993 = vmatpush1.bf16.msra.mxu0 0
        %1994 = vmatprep.subr.bf16.mxu0 0
        %1995 = vmatpush1.bf16.msra.mxu0 0
        %1996 = vmatprep.subr.bf16.mxu0 0
        %1997 = vmatpush1.bf16.msra.mxu0 0
        %1998 = vmatprep.mubr.bf16.mxu0 0
        %1999 = vmatmul.mubr.bf16.gmra.mrb[0].mxu0 %v1961
        %v2000 = vpop.f32.mrb[0].mxu0
        %v2001 = vadd.f32 0.0, %v2000
        %v2002 = vpop.f32.mrb[0].mxu0
        %v2003 = vpop.f32.mrb[0].mxu0
        %v2004 = vpop.f32.mrb[0].mxu0
        %2005 = vdwg.mxu0
        %2007 = vrot.lane.b32.xlu0 %v2001, 8
        %v2008 = vpop.permute.xlu0 %2007
        %2010 = vst.msk [vmem:[#allocation2 + $0x8] sm:$0xff] %vm1542, %v2008
        %2011 = vrot.lane.b32.xlu0 %v1782, 112
        %v2012 = vpop.permute.xlu0 %2011
        %2013 = vrot.lane.b32.xlu0 %v1782, 80
        %v2014 = vpop.permute.xlu0 %2013
        %v2016 = vsel %vm1315, %v2012, 0
        %v2019 = vsel %vm1315, %v2014, 0
        %2021 = vmatprep.subr.bf16.mxu0 0
        %2022 = vmatpush1.bf16.xpose.msra.mxu0 %v2019
        %2023 = vmatprep.subr.bf16.mxu0 0
        %2024 = vmatpush1.bf16.xpose.msra.mxu0 0
        %2025 = vmatprep.subr.bf16.mxu0 0
        %2026 = vmatpush1.bf16.xpose.msra.mxu0 0
        %2027 = vmatprep.subr.bf16.mxu0 0
        %2028 = vmatpush1.bf16.xpose.msra.mxu0 0
        %2029 = vmatprep.subr.bf16.mxu0 0
        %2030 = vmatpush1.bf16.xpose.msra.mxu0 0
        %2031 = vmatprep.subr.bf16.mxu0 0
        %2032 = vmatpush1.bf16.xpose.msra.mxu0 0
        %2033 = vmatprep.subr.bf16.mxu0 0
        %2034 = vmatpush1.bf16.xpose.msra.mxu0 0
        %2035 = vmatprep.subr.bf16.mxu0 0
        %2036 = vmatpush1.bf16.xpose.msra.mxu0 0
        %2037 = vmatprep.subr.bf16.mxu0 0
        %2038 = vmatpush1.bf16.xpose.msra.mxu0 0
        %2039 = vmatprep.subr.bf16.mxu0 0
        %2040 = vmatpush1.bf16.xpose.msra.mxu0 0
        %2041 = vmatprep.subr.bf16.mxu0 0
        %2042 = vmatpush1.bf16.xpose.msra.mxu0 0
        %2043 = vmatprep.subr.bf16.mxu0 0
        %2044 = vmatpush1.bf16.xpose.msra.mxu0 0
        %2045 = vmatprep.subr.bf16.mxu0 0
        %2046 = vmatpush1.bf16.xpose.msra.mxu0 0
        %2047 = vmatprep.subr.bf16.mxu0 0
        %2048 = vmatpush1.bf16.xpose.msra.mxu0 0
        %2049 = vmatprep.subr.bf16.mxu0 0
        %2050 = vmatpush1.bf16.xpose.msra.mxu0 0
        %2051 = vmatprep.subr.bf16.mxu0 0
        %2052 = vmatpush1.bf16.xpose.msra.mxu0 0
        %2053 = vmatprep.mubr.bf16.mxu0 0
        %2054 = vmatmul.mubr.bf16.gmra.mrb[0].mxu0 %v2016
        %v2055 = vpop.f32.mrb[0].mxu0
        %v2056 = vadd.f32 0.0, %v2055
        %v2057 = vpop.f32.mrb[0].mxu0
        %v2058 = vpop.f32.mrb[0].mxu0
        %v2059 = vpop.f32.mrb[0].mxu0
        %2060 = vdwg.mxu0
        %v2061 = vmul.f32 %v2056, 0.35355338
        %v2062 = vadd.f32 %v2061, %v1781
        %v2063 = vsel %vm1315, %v2062, -inf
        %2064 = vmax.xlane.f32.xlu0 %v2063
        %v2065 = vpop.xlane.xlu0 %2064
        %v2066 = vsub.f32 %v2062, %v2065
        %v2067 = vmul.f32 %v2066, 1.442695
        %v2068 = vpow.pop %v2067
        %v2069 = vsel %vm1315, %v2068, 0.0
        %2070 = vadd.xlane.f32.xlu0 %v2069
        %v2071 = vpop.xlane.xlu0 %2070
        %v2072 = vrcp.pop %v2071
        %v2073 = vmul.f32 %v2068, %v2072
        %v2074 = vpack.c.bf16 %v2073, %v2073
        %2075 = vrot.lane.b32.xlu0 %v1782, 48
        %v2076 = vpop.permute.xlu0 %2075
        %v2078 = vsel %vm1315, %v2074, 0
        %v2081 = vsel %vm1381, %v2076, 0
        %2083 = vmatprep.subr.bf16.mxu0 0
        %2084 = vmatpush1.bf16.msra.mxu0 %v2081
        %2085 = vmatprep.subr.bf16.mxu0 0
        %2086 = vmatpush1.bf16.msra.mxu0 0
        %2087 = vmatprep.subr.bf16.mxu0 0
        %2088 = vmatpush1.bf16.msra.mxu0 0
        %2089 = vmatprep.subr.bf16.mxu0 0
        %2090 = vmatpush1.bf16.msra.mxu0 0
        %2091 = vmatprep.subr.bf16.mxu0 0
        %2092 = vmatpush1.bf16.msra.mxu0 0
        %2093 = vmatprep.subr.bf16.mxu0 0
        %2094 = vmatpush1.bf16.msra.mxu0 0
        %2095 = vmatprep.subr.bf16.mxu0 0
        %2096 = vmatpush1.bf16.msra.mxu0 0
        %2097 = vmatprep.subr.bf16.mxu0 0
        %2098 = vmatpush1.bf16.msra.mxu0 0
        %2099 = vmatprep.subr.bf16.mxu0 0
        %2100 = vmatpush1.bf16.msra.mxu0 0
        %2101 = vmatprep.subr.bf16.mxu0 0
        %2102 = vmatpush1.bf16.msra.mxu0 0
        %2103 = vmatprep.subr.bf16.mxu0 0
        %2104 = vmatpush1.bf16.msra.mxu0 0
        %2105 = vmatprep.subr.bf16.mxu0 0
        %2106 = vmatpush1.bf16.msra.mxu0 0
        %2107 = vmatprep.subr.bf16.mxu0 0
        %2108 = vmatpush1.bf16.msra.mxu0 0
        %2109 = vmatprep.subr.bf16.mxu0 0
        %2110 = vmatpush1.bf16.msra.mxu0 0
        %2111 = vmatprep.subr.bf16.mxu0 0
        %2112 = vmatpush1.bf16.msra.mxu0 0
        %2113 = vmatprep.subr.bf16.mxu0 0
        %2114 = vmatpush1.bf16.msra.mxu0 0
        %2115 = vmatprep.mubr.bf16.mxu0 0
        %2116 = vmatmul.mubr.bf16.gmra.mrb[0].mxu0 %v2078
        %v2117 = vpop.f32.mrb[0].mxu0
        %v2118 = vadd.f32 0.0, %v2117
        %v2119 = vpop.f32.mrb[0].mxu0
        %v2120 = vpop.f32.mrb[0].mxu0
        %v2121 = vpop.f32.mrb[0].mxu0
        %2122 = vdwg.mxu0
        %2124 = vrot.lane.b32.xlu0 %v2118, 16
        %v2125 = vpop.permute.xlu0 %2124
        %2127 = vst.msk [vmem:[#allocation2 + $0x8] sm:$0xff] %vm1660, %v2125
        %2128 = vrot.lane.b32.xlu0 %v1782, 104
        %v2129 = vpop.permute.xlu0 %2128
        %2130 = vrot.lane.b32.xlu0 %v1782, 72
        %v2131 = vpop.permute.xlu0 %2130
        %v2133 = vsel %vm1315, %v2129, 0
        %v2136 = vsel %vm1315, %v2131, 0
        %2138 = vmatprep.subr.bf16.mxu0 0
        %2139 = vmatpush1.bf16.xpose.msra.mxu0 %v2136
        %2140 = vmatprep.subr.bf16.mxu0 0
        %2141 = vmatpush1.bf16.xpose.msra.mxu0 0
        %2142 = vmatprep.subr.bf16.mxu0 0
        %2143 = vmatpush1.bf16.xpose.msra.mxu0 0
        %2144 = vmatprep.subr.bf16.mxu0 0
        %2145 = vmatpush1.bf16.xpose.msra.mxu0 0
        %2146 = vmatprep.subr.bf16.mxu0 0
        %2147 = vmatpush1.bf16.xpose.msra.mxu0 0
        %2148 = vmatprep.subr.bf16.mxu0 0
        %2149 = vmatpush1.bf16.xpose.msra.mxu0 0
        %2150 = vmatprep.subr.bf16.mxu0 0
        %2151 = vmatpush1.bf16.xpose.msra.mxu0 0
        %2152 = vmatprep.subr.bf16.mxu0 0
        %2153 = vmatpush1.bf16.xpose.msra.mxu0 0
        %2154 = vmatprep.subr.bf16.mxu0 0
        %2155 = vmatpush1.bf16.xpose.msra.mxu0 0
        %2156 = vmatprep.subr.bf16.mxu0 0
        %2157 = vmatpush1.bf16.xpose.msra.mxu0 0
        %2158 = vmatprep.subr.bf16.mxu0 0
        %2159 = vmatpush1.bf16.xpose.msra.mxu0 0
        %2160 = vmatprep.subr.bf16.mxu0 0
        %2161 = vmatpush1.bf16.xpose.msra.mxu0 0
        %2162 = vmatprep.subr.bf16.mxu0 0
        %2163 = vmatpush1.bf16.xpose.msra.mxu0 0
        %2164 = vmatprep.subr.bf16.mxu0 0
        %2165 = vmatpush1.bf16.xpose.msra.mxu0 0
        %2166 = vmatprep.subr.bf16.mxu0 0
        %2167 = vmatpush1.bf16.xpose.msra.mxu0 0
        %2168 = vmatprep.subr.bf16.mxu0 0
        %2169 = vmatpush1.bf16.xpose.msra.mxu0 0
        %2170 = vmatprep.mubr.bf16.mxu0 0
        %2171 = vmatmul.mubr.bf16.gmra.mrb[0].mxu0 %v2133
        %v2172 = vpop.f32.mrb[0].mxu0
        %v2173 = vadd.f32 0.0, %v2172
        %v2174 = vpop.f32.mrb[0].mxu0
        %v2175 = vpop.f32.mrb[0].mxu0
        %v2176 = vpop.f32.mrb[0].mxu0
        %2177 = vdwg.mxu0
        %v2178 = vmul.f32 %v2173, 0.35355338
        %v2179 = vadd.f32 %v2178, %v1781
        %v2180 = vsel %vm1315, %v2179, -inf
        %2181 = vmax.xlane.f32.xlu0 %v2180
        %v2182 = vpop.xlane.xlu0 %2181
        %v2183 = vsub.f32 %v2179, %v2182
        %v2184 = vmul.f32 %v2183, 1.442695
        %v2185 = vpow.pop %v2184
        %v2186 = vsel %vm1315, %v2185, 0.0
        %2187 = vadd.xlane.f32.xlu0 %v2186
        %v2188 = vpop.xlane.xlu0 %2187
        %v2189 = vrcp.pop %v2188
        %v2190 = vmul.f32 %v2185, %v2189
        %v2191 = vpack.c.bf16 %v2190, %v2190
        %2192 = vrot.lane.b32.xlu0 %v1782, 40
        %v2193 = vpop.permute.xlu0 %2192
        %v2195 = vsel %vm1315, %v2191, 0
        %v2198 = vsel %vm1381, %v2193, 0
        %2200 = vmatprep.subr.bf16.mxu0 0
        %2201 = vmatpush1.bf16.msra.mxu0 %v2198
        %2202 = vmatprep.subr.bf16.mxu0 0
        %2203 = vmatpush1.bf16.msra.mxu0 0
        %2204 = vmatprep.subr.bf16.mxu0 0
        %2205 = vmatpush1.bf16.msra.mxu0 0
        %2206 = vmatprep.subr.bf16.mxu0 0
        %2207 = vmatpush1.bf16.msra.mxu0 0
        %2208 = vmatprep.subr.bf16.mxu0 0
        %2209 = vmatpush1.bf16.msra.mxu0 0
        %2210 = vmatprep.subr.bf16.mxu0 0
        %2211 = vmatpush1.bf16.msra.mxu0 0
        %2212 = vmatprep.subr.bf16.mxu0 0
        %2213 = vmatpush1.bf16.msra.mxu0 0
        %2214 = vmatprep.subr.bf16.mxu0 0
        %2215 = vmatpush1.bf16.msra.mxu0 0
        %2216 = vmatprep.subr.bf16.mxu0 0
        %2217 = vmatpush1.bf16.msra.mxu0 0
        %2218 = vmatprep.subr.bf16.mxu0 0
        %2219 = vmatpush1.bf16.msra.mxu0 0
        %2220 = vmatprep.subr.bf16.mxu0 0
        %2221 = vmatpush1.bf16.msra.mxu0 0
        %2222 = vmatprep.subr.bf16.mxu0 0
        %2223 = vmatpush1.bf16.msra.mxu0 0
        %2224 = vmatprep.subr.bf16.mxu0 0
        %2225 = vmatpush1.bf16.msra.mxu0 0
        %2226 = vmatprep.subr.bf16.mxu0 0
        %2227 = vmatpush1.bf16.msra.mxu0 0
        %2228 = vmatprep.subr.bf16.mxu0 0
        %2229 = vmatpush1.bf16.msra.mxu0 0
        %2230 = vmatprep.subr.bf16.mxu0 0
        %2231 = vmatpush1.bf16.msra.mxu0 0
        %2232 = vmatprep.mubr.bf16.mxu0 0
        %2233 = vmatmul.mubr.bf16.gmra.mrb[0].mxu0 %v2195
        %v2234 = vpop.f32.mrb[0].mxu0
        %v2235 = vadd.f32 0.0, %v2234
        %v2236 = vpop.f32.mrb[0].mxu0
        %v2237 = vpop.f32.mrb[0].mxu0
        %v2238 = vpop.f32.mrb[0].mxu0
        %2239 = vdwg.mxu0
        %2241 = vrot.lane.b32.xlu0 %v2235, 24
        %v2242 = vpop.permute.xlu0 %2241
        %2244 = vst.msk [vmem:[#allocation2 + $0x8] sm:$0xff] %vm1778, %v2242
        %v2245 = vld [vmem:[#allocation2] sm:$0xff]
        %v2246 = vld [vmem:[#allocation2 + $0x8] sm:$0xff]
        %v2247 = vpack.c.bf16 %v2246, %v2245
        %v2248 = vld [vmem:[%s979] sm:$0xf]
        %v2249 = vld [vmem:[%s979 + $0x4] sm:$0xf]
        %v2250 = vld [vmem:[%s979 + $0x8] sm:$0xf]
        %v2251 = vld [vmem:[%s979 + $0xc] sm:$0xf]
        %v2256 = vunpack.c.l.b16 %v2248
        %v2257 = vunpack.c.l.b16 %v2249
        %v2258 = vunpack.c.l.b16 %v2250
        %v2259 = vunpack.c.l.b16 %v2251
        %v2260 = vpack.c.b16 %v2257, %v2256
        %v2261 = vpack.c.b16 %v2259, %v2258
        %v2265 = vsel %vm1205, %v2247, 0
        %2267 = vmatprep.subr.bf16.mxu0 0
        %2268 = vmatpush1.bf16.msra.mxu0 %v2260
        %2269 = vmatprep.subr.bf16.mxu0 0
        %2270 = vmatpush1.bf16.msra.mxu0 %v2261
        %2271 = vmatprep.subr.bf16.mxu0 0
        %2272 = vmatpush1.bf16.msra.mxu0 0
        %2273 = vmatprep.subr.bf16.mxu0 0
        %2274 = vmatpush1.bf16.msra.mxu0 0
        %2275 = vmatprep.subr.bf16.mxu0 0
        %2276 = vmatpush1.bf16.msra.mxu0 0
        %2277 = vmatprep.subr.bf16.mxu0 0
        %2278 = vmatpush1.bf16.msra.mxu0 0
        %2279 = vmatprep.subr.bf16.mxu0 0
        %2280 = vmatpush1.bf16.msra.mxu0 0
        %2281 = vmatprep.subr.bf16.mxu0 0
        %2282 = vmatpush1.bf16.msra.mxu0 0
        %2283 = vmatprep.subr.bf16.mxu0 0
        %2284 = vmatpush1.bf16.msra.mxu0 0
        %2285 = vmatprep.subr.bf16.mxu0 0
        %2286 = vmatpush1.bf16.msra.mxu0 0
        %2287 = vmatprep.subr.bf16.mxu0 0
        %2288 = vmatpush1.bf16.msra.mxu0 0
        %2289 = vmatprep.subr.bf16.mxu0 0
        %2290 = vmatpush1.bf16.msra.mxu0 0
        %2291 = vmatprep.subr.bf16.mxu0 0
        %2292 = vmatpush1.bf16.msra.mxu0 0
        %2293 = vmatprep.subr.bf16.mxu0 0
        %2294 = vmatpush1.bf16.msra.mxu0 0
        %2295 = vmatprep.subr.bf16.mxu0 0
        %2296 = vmatpush1.bf16.msra.mxu0 0
        %2297 = vmatprep.subr.bf16.mxu0 0
        %2298 = vmatpush1.bf16.msra.mxu0 0
        %2299 = vmatprep.mubr.bf16.mxu0 0
        %2300 = vmatmul.mubr.bf16.gmra.mrb[0].mxu0 %v2265
        %v2301 = vpop.f32.mrb[0].mxu0
        %v2302 = vadd.f32 0.0, %v2301
        %v2303 = vpop.f32.mrb[0].mxu0
        %v2304 = vpop.f32.mrb[0].mxu0
        %v2305 = vadd.f32 0.0, %v2304
        %v2306 = vpop.f32.mrb[0].mxu0
        %2307 = vdwg.mxu0
        %v2308 = vadd.f32 %v1199, %v2302
        %v2309 = vadd.f32 %v1200, %v2305
        %v2310 = vld [vmem:[%s987] sm:$0x1]
        %v2311 = vld [vmem:[%s995] sm:$0x1]
        %v2312 = vsel %vm1205, %v2308, 0.0
        %2313 = vadd.xlane.f32.xlu0 %v2312
        %v2314 = vpop.xlane.xlu0 %2313
        %v2315 = vsel %vm1205, %v2309, 0.0
        %2316 = vadd.xlane.f32.xlu0 %v2315
        %v2317 = vpop.xlane.xlu0 %2316
        %v2318 = vmul.f32 %v2314, %v1212
        %v2319 = vmul.f32 %v2317, %v1212
        %v2320 = vsub.f32 %v2308, %v2318
        %v2321 = vsub.f32 %v2309, %v2319
        %v2322 = vmul.f32 %v2320, %v2320
        %v2323 = vmul.f32 %v2321, %v2321
        %v2324 = vsel %vm1205, %v2322, 0.0
        %2325 = vadd.xlane.f32.xlu0 %v2324
        %v2326 = vpop.xlane.xlu0 %2325
        %v2327 = vsel %vm1205, %v2323, 0.0
        %2328 = vadd.xlane.f32.xlu0 %v2327
        %v2329 = vpop.xlane.xlu0 %2328
        %v2330 = vmul.f32 %v2326, %v1212
        %v2331 = vmul.f32 %v2329, %v1212
        %v2332 = vadd.f32 %v2330, 1e-05
        %v2333 = vadd.f32 %v2331, 1e-05
        %v2334 = vrsqrt.pop %v2332
        %v2335 = vrsqrt.pop %v2333
        %v2336 = vmul.f32 %v2320, %v2334
        %v2337 = vmul.f32 %v2321, %v2335
        %v2339 = vlaneseq
        %v2340 = vshrl.u32 %v2339, 7
        %v2341 = vsub.s32 0, %v2340
        %v2342 = vrot.slane %v2310, %v2341
        %v2344 = vmul.f32 %v2336, %v2342
        %v2345 = vmul.f32 %v2337, %v2342
        %v2347 = vlaneseq
        %v2348 = vshrl.u32 %v2347, 7
        %v2349 = vsub.s32 0, %v2348
        %v2350 = vrot.slane %v2311, %v2349
        %v2352 = vadd.f32 %v2344, %v2350
        %v2353 = vadd.f32 %v2345, %v2350
        %v2354 = vpack.c.bf16 %v2353, %v2352
        %v2355 = vld [vmem:[%s1004] sm:$0xf]
        %v2356 = vld [vmem:[%s1004 + $0x4] sm:$0xf]
        %v2357 = vld [vmem:[%s1004 + $0x8] sm:$0xf]
        %v2358 = vld [vmem:[%s1004 + $0xc] sm:$0xf]
        %v2363 = vunpack.c.l.b16 %v2355
        %v2364 = vunpack.c.l.b16 %v2356
        %v2365 = vunpack.c.l.b16 %v2357
        %v2366 = vunpack.c.l.b16 %v2358
        %v2367 = vpack.c.b16 %v2364, %v2363
        %v2368 = vpack.c.b16 %v2366, %v2365
        %v2372 = vsel %vm1205, %v2354, 0
        %2374 = vmatprep.subr.bf16.mxu0 0
        %2375 = vmatpush1.bf16.msra.mxu0 %v2367
        %2376 = vmatprep.subr.bf16.mxu0 0
        %2377 = vmatpush1.bf16.msra.mxu0 %v2368
        %2378 = vmatprep.subr.bf16.mxu0 0
        %2379 = vmatpush1.bf16.msra.mxu0 0
        %2380 = vmatprep.subr.bf16.mxu0 0
        %2381 = vmatpush1.bf16.msra.mxu0 0
        %2382 = vmatprep.subr.bf16.mxu0 0
        %2383 = vmatpush1.bf16.msra.mxu0 0
        %2384 = vmatprep.subr.bf16.mxu0 0
        %2385 = vmatpush1.bf16.msra.mxu0 0
        %2386 = vmatprep.subr.bf16.mxu0 0
        %2387 = vmatpush1.bf16.msra.mxu0 0
        %2388 = vmatprep.subr.bf16.mxu0 0
        %2389 = vmatpush1.bf16.msra.mxu0 0
        %2390 = vmatprep.subr.bf16.mxu0 0
        %2391 = vmatpush1.bf16.msra.mxu0 0
        %2392 = vmatprep.subr.bf16.mxu0 0
        %2393 = vmatpush1.bf16.msra.mxu0 0
        %2394 = vmatprep.subr.bf16.mxu0 0
        %2395 = vmatpush1.bf16.msra.mxu0 0
        %2396 = vmatprep.subr.bf16.mxu0 0
        %2397 = vmatpush1.bf16.msra.mxu0 0
        %2398 = vmatprep.subr.bf16.mxu0 0
        %2399 = vmatpush1.bf16.msra.mxu0 0
        %2400 = vmatprep.subr.bf16.mxu0 0
        %2401 = vmatpush1.bf16.msra.mxu0 0
        %2402 = vmatprep.subr.bf16.mxu0 0
        %2403 = vmatpush1.bf16.msra.mxu0 0
        %2404 = vmatprep.subr.bf16.mxu0 0
        %2405 = vmatpush1.bf16.msra.mxu0 0
        %2406 = vmatprep.mubr.bf16.mxu0 0
        %2407 = vmatmul.mubr.bf16.gmra.mrb[0].mxu0 %v2372
        %v2408 = vpop.f32.mrb[0].mxu0
        %v2409 = vadd.f32 0.0, %v2408
        %v2410 = vpop.f32.mrb[0].mxu0
        %v2411 = vpop.f32.mrb[0].mxu0
        %v2412 = vadd.f32 0.0, %v2411
        %v2413 = vpop.f32.mrb[0].mxu0
        %2414 = vdwg.mxu0
        %v2415 = vpack.c.bf16 %v2412, %v2409
        %v2416 = vpack.c.bf16 %v1202, %v1201
        %v2417 = vld [vmem:[%s1013] sm:$0xf]
        %v2418 = vld [vmem:[%s1013 + $0x4] sm:$0xf]
        %v2419 = vld [vmem:[%s1013 + $0x8] sm:$0xf]
        %v2420 = vld [vmem:[%s1013 + $0xc] sm:$0xf]
        %v2425 = vunpack.c.l.b16 %v2417
        %v2426 = vunpack.c.l.b16 %v2418
        %v2427 = vunpack.c.l.b16 %v2419
        %v2428 = vunpack.c.l.b16 %v2420
        %v2429 = vpack.c.b16 %v2426, %v2425
        %v2430 = vpack.c.b16 %v2428, %v2427
        %v2434 = vsel %vm1205, %v2416, 0
        %2436 = vmatprep.subr.bf16.mxu0 0
        %2437 = vmatpush1.bf16.msra.mxu0 %v2429
        %2438 = vmatprep.subr.bf16.mxu0 0
        %2439 = vmatpush1.bf16.msra.mxu0 %v2430
        %2440 = vmatprep.subr.bf16.mxu0 0
        %2441 = vmatpush1.bf16.msra.mxu0 0
        %2442 = vmatprep.subr.bf16.mxu0 0
        %2443 = vmatpush1.bf16.msra.mxu0 0
        %2444 = vmatprep.subr.bf16.mxu0 0
        %2445 = vmatpush1.bf16.msra.mxu0 0
        %2446 = vmatprep.subr.bf16.mxu0 0
        %2447 = vmatpush1.bf16.msra.mxu0 0
        %2448 = vmatprep.subr.bf16.mxu0 0
        %2449 = vmatpush1.bf16.msra.mxu0 0
        %2450 = vmatprep.subr.bf16.mxu0 0
        %2451 = vmatpush1.bf16.msra.mxu0 0
        %2452 = vmatprep.subr.bf16.mxu0 0
        %2453 = vmatpush1.bf16.msra.mxu0 0
        %2454 = vmatprep.subr.bf16.mxu0 0
        %2455 = vmatpush1.bf16.msra.mxu0 0
        %2456 = vmatprep.subr.bf16.mxu0 0
        %2457 = vmatpush1.bf16.msra.mxu0 0
        %2458 = vmatprep.subr.bf16.mxu0 0
        %2459 = vmatpush1.bf16.msra.mxu0 0
        %2460 = vmatprep.subr.bf16.mxu0 0
        %2461 = vmatpush1.bf16.msra.mxu0 0
        %2462 = vmatprep.subr.bf16.mxu0 0
        %2463 = vmatpush1.bf16.msra.mxu0 0
        %2464 = vmatprep.subr.bf16.mxu0 0
        %2465 = vmatpush1.bf16.msra.mxu0 0
        %2466 = vmatprep.subr.bf16.mxu0 0
        %2467 = vmatpush1.bf16.msra.mxu0 0
        %2468 = vmatprep.mubr.bf16.mxu0 0
        %2469 = vmatmul.mubr.bf16.gmra.mrb[0].mxu0 %v2434
        %v2470 = vpop.f32.mrb[0].mxu0
        %v2471 = vadd.f32 0.0, %v2470
        %v2472 = vpop.f32.mrb[0].mxu0
        %v2473 = vpop.f32.mrb[0].mxu0
        %v2474 = vadd.f32 0.0, %v2473
        %v2475 = vpop.f32.mrb[0].mxu0
        %2476 = vdwg.mxu0
        %v2477 = vpack.c.bf16 %v2474, %v2471
        %v2478 = vld [vmem:[#allocation9] sm:$0x1]
        %v2480 = vsel %vm1315, %v2415, 0
        %v2483 = vsel %vm1315, %v2477, 0
        %2485 = vmatprep.subr.bf16.mxu0 0
        %2486 = vmatpush1.bf16.xpose.msra.mxu0 %v2483
        %2487 = vmatprep.subr.bf16.mxu0 0
        %2488 = vmatpush1.bf16.xpose.msra.mxu0 0
        %2489 = vmatprep.subr.bf16.mxu0 0
        %2490 = vmatpush1.bf16.xpose.msra.mxu0 0
        %2491 = vmatprep.subr.bf16.mxu0 0
        %2492 = vmatpush1.bf16.xpose.msra.mxu0 0
        %2493 = vmatprep.subr.bf16.mxu0 0
        %2494 = vmatpush1.bf16.xpose.msra.mxu0 0
        %2495 = vmatprep.subr.bf16.mxu0 0
        %2496 = vmatpush1.bf16.xpose.msra.mxu0 0
        %2497 = vmatprep.subr.bf16.mxu0 0
        %2498 = vmatpush1.bf16.xpose.msra.mxu0 0
        %2499 = vmatprep.subr.bf16.mxu0 0
        %2500 = vmatpush1.bf16.xpose.msra.mxu0 0
        %2501 = vmatprep.subr.bf16.mxu0 0
        %2502 = vmatpush1.bf16.xpose.msra.mxu0 0
        %2503 = vmatprep.subr.bf16.mxu0 0
        %2504 = vmatpush1.bf16.xpose.msra.mxu0 0
        %2505 = vmatprep.subr.bf16.mxu0 0
        %2506 = vmatpush1.bf16.xpose.msra.mxu0 0
        %2507 = vmatprep.subr.bf16.mxu0 0
        %2508 = vmatpush1.bf16.xpose.msra.mxu0 0
        %2509 = vmatprep.subr.bf16.mxu0 0
        %2510 = vmatpush1.bf16.xpose.msra.mxu0 0
        %2511 = vmatprep.subr.bf16.mxu0 0
        %2512 = vmatpush1.bf16.xpose.msra.mxu0 0
        %2513 = vmatprep.subr.bf16.mxu0 0
        %2514 = vmatpush1.bf16.xpose.msra.mxu0 0
        %2515 = vmatprep.subr.bf16.mxu0 0
        %2516 = vmatpush1.bf16.xpose.msra.mxu0 0
        %2517 = vmatprep.mubr.bf16.mxu0 0
        %2518 = vmatmul.mubr.bf16.gmra.mrb[0].mxu0 %v2480
        %v2519 = vpop.f32.mrb[0].mxu0
        %v2520 = vadd.f32 0.0, %v2519
        %v2521 = vpop.f32.mrb[0].mxu0
        %v2522 = vpop.f32.mrb[0].mxu0
        %v2523 = vpop.f32.mrb[0].mxu0
        %2524 = vdwg.mxu0
        %v2525 = vmul.f32 %v2520, 0.35355338
        %v2527 = vlaneseq
        %v2528 = vshrl.u32 %v2527, 7
        %v2529 = vsub.s32 0, %v2528
        %v2530 = vrot.slane %v2478, %v2529
        %v2532 = vadd.f32 %v2525, %v2530
        %v2533 = vsel %vm1315, %v2532, -inf
        %2534 = vmax.xlane.f32.xlu0 %v2533
        %v2535 = vpop.xlane.xlu0 %2534
        %v2536 = vsub.f32 %v2532, %v2535
        %v2537 = vmul.f32 %v2536, 1.442695
        %v2538 = vpow.pop %v2537
        %v2539 = vsel %vm1315, %v2538, 0.0
        %2540 = vadd.xlane.f32.xlu0 %v2539
        %v2541 = vpop.xlane.xlu0 %2540
        %v2542 = vrcp.pop %v2541
        %v2543 = vmul.f32 %v2538, %v2542
        %v2544 = vpack.c.bf16 %v2543, %v2543
        %2546 = vrot.lane.b32.xlu0 %v2477, 96
        %v2547 = vpop.permute.xlu0 %2546
        %v2549 = vsel %vm1315, %v2544, 0
        %v2552 = vsel %vm1381, %v2547, 0
        %2554 = vmatprep.subr.bf16.mxu0 0
        %2555 = vmatpush1.bf16.msra.mxu0 %v2552
        %2556 = vmatprep.subr.bf16.mxu0 0
        %2557 = vmatpush1.bf16.msra.mxu0 0
        %2558 = vmatprep.subr.bf16.mxu0 0
        %2559 = vmatpush1.bf16.msra.mxu0 0
        %2560 = vmatprep.subr.bf16.mxu0 0
        %2561 = vmatpush1.bf16.msra.mxu0 0
        %2562 = vmatprep.subr.bf16.mxu0 0
        %2563 = vmatpush1.bf16.msra.mxu0 0
        %2564 = vmatprep.subr.bf16.mxu0 0
        %2565 = vmatpush1.bf16.msra.mxu0 0
        %2566 = vmatprep.subr.bf16.mxu0 0
        %2567 = vmatpush1.bf16.msra.mxu0 0
        %2568 = vmatprep.subr.bf16.mxu0 0
        %2569 = vmatpush1.bf16.msra.mxu0 0
        %2570 = vmatprep.subr.bf16.mxu0 0
        %2571 = vmatpush1.bf16.msra.mxu0 0
        %2572 = vmatprep.subr.bf16.mxu0 0
        %2573 = vmatpush1.bf16.msra.mxu0 0
        %2574 = vmatprep.subr.bf16.mxu0 0
        %2575 = vmatpush1.bf16.msra.mxu0 0
        %2576 = vmatprep.subr.bf16.mxu0 0
        %2577 = vmatpush1.bf16.msra.mxu0 0
        %2578 = vmatprep.subr.bf16.mxu0 0
        %2579 = vmatpush1.bf16.msra.mxu0 0
        %2580 = vmatprep.subr.bf16.mxu0 0
        %2581 = vmatpush1.bf16.msra.mxu0 0
        %2582 = vmatprep.subr.bf16.mxu0 0
        %2583 = vmatpush1.bf16.msra.mxu0 0
        %2584 = vmatprep.subr.bf16.mxu0 0
        %2585 = vmatpush1.bf16.msra.mxu0 0
        %2586 = vmatprep.mubr.bf16.mxu0 0
        %2587 = vmatmul.mubr.bf16.gmra.mrb[0].mxu0 %v2549
        %v2588 = vpop.f32.mrb[0].mxu0
        %v2589 = vadd.f32 0.0, %v2588
        %v2590 = vpop.f32.mrb[0].mxu0
        %v2591 = vpop.f32.mrb[0].mxu0
        %v2592 = vpop.f32.mrb[0].mxu0
        %2593 = vdwg.mxu0
        %2594 = vst.msk [vmem:[#allocation2] sm:$0xff] %vm1315, %v2589
        %2596 = vrot.lane.b32.xlu0 %v2415, 120
        %v2597 = vpop.permute.xlu0 %2596
        %2598 = vrot.lane.b32.xlu0 %v2477, 120
        %v2599 = vpop.permute.xlu0 %2598
        %v2601 = vsel %vm1315, %v2597, 0
        %v2604 = vsel %vm1315, %v2599, 0
        %2606 = vmatprep.subr.bf16.mxu0 0
        %2607 = vmatpush1.bf16.xpose.msra.mxu0 %v2604
        %2608 = vmatprep.subr.bf16.mxu0 0
        %2609 = vmatpush1.bf16.xpose.msra.mxu0 0
        %2610 = vmatprep.subr.bf16.mxu0 0
        %2611 = vmatpush1.bf16.xpose.msra.mxu0 0
        %2612 = vmatprep.subr.bf16.mxu0 0
        %2613 = vmatpush1.bf16.xpose.msra.mxu0 0
        %2614 = vmatprep.subr.bf16.mxu0 0
        %2615 = vmatpush1.bf16.xpose.msra.mxu0 0
        %2616 = vmatprep.subr.bf16.mxu0 0
        %2617 = vmatpush1.bf16.xpose.msra.mxu0 0
        %2618 = vmatprep.subr.bf16.mxu0 0
        %2619 = vmatpush1.bf16.xpose.msra.mxu0 0
        %2620 = vmatprep.subr.bf16.mxu0 0
        %2621 = vmatpush1.bf16.xpose.msra.mxu0 0
        %2622 = vmatprep.subr.bf16.mxu0 0
        %2623 = vmatpush1.bf16.xpose.msra.mxu0 0
        %2624 = vmatprep.subr.bf16.mxu0 0
        %2625 = vmatpush1.bf16.xpose.msra.mxu0 0
        %2626 = vmatprep.subr.bf16.mxu0 0
        %2627 = vmatpush1.bf16.xpose.msra.mxu0 0
        %2628 = vmatprep.subr.bf16.mxu0 0
        %2629 = vmatpush1.bf16.xpose.msra.mxu0 0
        %2630 = vmatprep.subr.bf16.mxu0 0
        %2631 = vmatpush1.bf16.xpose.msra.mxu0 0
        %2632 = vmatprep.subr.bf16.mxu0 0
        %2633 = vmatpush1.bf16.xpose.msra.mxu0 0
        %2634 = vmatprep.subr.bf16.mxu0 0
        %2635 = vmatpush1.bf16.xpose.msra.mxu0 0
        %2636 = vmatprep.subr.bf16.mxu0 0
        %2637 = vmatpush1.bf16.xpose.msra.mxu0 0
        %2638 = vmatprep.mubr.bf16.mxu0 0
        %2639 = vmatmul.mubr.bf16.gmra.mrb[0].mxu0 %v2601
        %v2640 = vpop.f32.mrb[0].mxu0
        %v2641 = vadd.f32 0.0, %v2640
        %v2642 = vpop.f32.mrb[0].mxu0
        %v2643 = vpop.f32.mrb[0].mxu0
        %v2644 = vpop.f32.mrb[0].mxu0
        %2645 = vdwg.mxu0
        %v2646 = vmul.f32 %v2641, 0.35355338
        %v2647 = vadd.f32 %v2646, %v2530
        %v2648 = vsel %vm1315, %v2647, -inf
        %2649 = vmax.xlane.f32.xlu0 %v2648
        %v2650 = vpop.xlane.xlu0 %2649
        %v2651 = vsub.f32 %v2647, %v2650
        %v2652 = vmul.f32 %v2651, 1.442695
        %v2653 = vpow.pop %v2652
        %v2654 = vsel %vm1315, %v2653, 0.0
        %2655 = vadd.xlane.f32.xlu0 %v2654
        %v2656 = vpop.xlane.xlu0 %2655
        %v2657 = vrcp.pop %v2656
        %v2658 = vmul.f32 %v2653, %v2657
        %v2659 = vpack.c.bf16 %v2658, %v2658
        %2660 = vrot.lane.b32.xlu0 %v2477, 88
        %v2661 = vpop.permute.xlu0 %2660
        %v2663 = vsel %vm1315, %v2659, 0
        %v2666 = vsel %vm1381, %v2661, 0
        %2668 = vmatprep.subr.bf16.mxu0 0
        %2669 = vmatpush1.bf16.msra.mxu0 %v2666
        %2670 = vmatprep.subr.bf16.mxu0 0
        %2671 = vmatpush1.bf16.msra.mxu0 0
        %2672 = vmatprep.subr.bf16.mxu0 0
        %2673 = vmatpush1.bf16.msra.mxu0 0
        %2674 = vmatprep.subr.bf16.mxu0 0
        %2675 = vmatpush1.bf16.msra.mxu0 0
        %2676 = vmatprep.subr.bf16.mxu0 0
        %2677 = vmatpush1.bf16.msra.mxu0 0
        %2678 = vmatprep.subr.bf16.mxu0 0
        %2679 = vmatpush1.bf16.msra.mxu0 0
        %2680 = vmatprep.subr.bf16.mxu0 0
        %2681 = vmatpush1.bf16.msra.mxu0 0
        %2682 = vmatprep.subr.bf16.mxu0 0
        %2683 = vmatpush1.bf16.msra.mxu0 0
        %2684 = vmatprep.subr.bf16.mxu0 0
        %2685 = vmatpush1.bf16.msra.mxu0 0
        %2686 = vmatprep.subr.bf16.mxu0 0
        %2687 = vmatpush1.bf16.msra.mxu0 0
        %2688 = vmatprep.subr.bf16.mxu0 0
        %2689 = vmatpush1.bf16.msra.mxu0 0
        %2690 = vmatprep.subr.bf16.mxu0 0
        %2691 = vmatpush1.bf16.msra.mxu0 0
        %2692 = vmatprep.subr.bf16.mxu0 0
        %2693 = vmatpush1.bf16.msra.mxu0 0
        %2694 = vmatprep.subr.bf16.mxu0 0
        %2695 = vmatpush1.bf16.msra.mxu0 0
        %2696 = vmatprep.subr.bf16.mxu0 0
        %2697 = vmatpush1.bf16.msra.mxu0 0
        %2698 = vmatprep.subr.bf16.mxu0 0
        %2699 = vmatpush1.bf16.msra.mxu0 0
        %2700 = vmatprep.mubr.bf16.mxu0 0
        %2701 = vmatmul.mubr.bf16.gmra.mrb[0].mxu0 %v2663
        %v2702 = vpop.f32.mrb[0].mxu0
        %v2703 = vadd.f32 0.0, %v2702
        %v2704 = vpop.f32.mrb[0].mxu0
        %v2705 = vpop.f32.mrb[0].mxu0
        %v2706 = vpop.f32.mrb[0].mxu0
        %2707 = vdwg.mxu0
        %2709 = vrot.lane.b32.xlu0 %v2703, 8
        %v2710 = vpop.permute.xlu0 %2709
        %2712 = vst.msk [vmem:[#allocation2] sm:$0xff] %vm1542, %v2710
        %2713 = vrot.lane.b32.xlu0 %v2415, 112
        %v2714 = vpop.permute.xlu0 %2713
        %2715 = vrot.lane.b32.xlu0 %v2477, 112
        %v2716 = vpop.permute.xlu0 %2715
        %v2718 = vsel %vm1315, %v2714, 0
        %v2721 = vsel %vm1315, %v2716, 0
        %2723 = vmatprep.subr.bf16.mxu0 0
        %2724 = vmatpush1.bf16.xpose.msra.mxu0 %v2721
        %2725 = vmatprep.subr.bf16.mxu0 0
        %2726 = vmatpush1.bf16.xpose.msra.mxu0 0
        %2727 = vmatprep.subr.bf16.mxu0 0
        %2728 = vmatpush1.bf16.xpose.msra.mxu0 0
        %2729 = vmatprep.subr.bf16.mxu0 0
        %2730 = vmatpush1.bf16.xpose.msra.mxu0 0
        %2731 = vmatprep.subr.bf16.mxu0 0
        %2732 = vmatpush1.bf16.xpose.msra.mxu0 0
        %2733 = vmatprep.subr.bf16.mxu0 0
        %2734 = vmatpush1.bf16.xpose.msra.mxu0 0
        %2735 = vmatprep.subr.bf16.mxu0 0
        %2736 = vmatpush1.bf16.xpose.msra.mxu0 0
        %2737 = vmatprep.subr.bf16.mxu0 0
        %2738 = vmatpush1.bf16.xpose.msra.mxu0 0
        %2739 = vmatprep.subr.bf16.mxu0 0
        %2740 = vmatpush1.bf16.xpose.msra.mxu0 0
        %2741 = vmatprep.subr.bf16.mxu0 0
        %2742 = vmatpush1.bf16.xpose.msra.mxu0 0
        %2743 = vmatprep.subr.bf16.mxu0 0
        %2744 = vmatpush1.bf16.xpose.msra.mxu0 0
        %2745 = vmatprep.subr.bf16.mxu0 0
        %2746 = vmatpush1.bf16.xpose.msra.mxu0 0
        %2747 = vmatprep.subr.bf16.mxu0 0
        %2748 = vmatpush1.bf16.xpose.msra.mxu0 0
        %2749 = vmatprep.subr.bf16.mxu0 0
        %2750 = vmatpush1.bf16.xpose.msra.mxu0 0
        %2751 = vmatprep.subr.bf16.mxu0 0
        %2752 = vmatpush1.bf16.xpose.msra.mxu0 0
        %2753 = vmatprep.subr.bf16.mxu0 0
        %2754 = vmatpush1.bf16.xpose.msra.mxu0 0
        %2755 = vmatprep.mubr.bf16.mxu0 0
        %2756 = vmatmul.mubr.bf16.gmra.mrb[0].mxu0 %v2718
        %v2757 = vpop.f32.mrb[0].mxu0
        %v2758 = vadd.f32 0.0, %v2757
        %v2759 = vpop.f32.mrb[0].mxu0
        %v2760 = vpop.f32.mrb[0].mxu0
        %v2761 = vpop.f32.mrb[0].mxu0
        %2762 = vdwg.mxu0
        %v2763 = vmul.f32 %v2758, 0.35355338
        %v2764 = vadd.f32 %v2763, %v2530
        %v2765 = vsel %vm1315, %v2764, -inf
        %2766 = vmax.xlane.f32.xlu0 %v2765
        %v2767 = vpop.xlane.xlu0 %2766
        %v2768 = vsub.f32 %v2764, %v2767
        %v2769 = vmul.f32 %v2768, 1.442695
        %v2770 = vpow.pop %v2769
        %v2771 = vsel %vm1315, %v2770, 0.0
        %2772 = vadd.xlane.f32.xlu0 %v2771
        %v2773 = vpop.xlane.xlu0 %2772
        %v2774 = vrcp.pop %v2773
        %v2775 = vmul.f32 %v2770, %v2774
        %v2776 = vpack.c.bf16 %v2775, %v2775
        %2777 = vrot.lane.b32.xlu0 %v2477, 80
        %v2778 = vpop.permute.xlu0 %2777
        %v2780 = vsel %vm1315, %v2776, 0
        %v2783 = vsel %vm1381, %v2778, 0
        %2785 = vmatprep.subr.bf16.mxu0 0
        %2786 = vmatpush1.bf16.msra.mxu0 %v2783
        %2787 = vmatprep.subr.bf16.mxu0 0
        %2788 = vmatpush1.bf16.msra.mxu0 0
        %2789 = vmatprep.subr.bf16.mxu0 0
        %2790 = vmatpush1.bf16.msra.mxu0 0
        %2791 = vmatprep.subr.bf16.mxu0 0
        %2792 = vmatpush1.bf16.msra.mxu0 0
        %2793 = vmatprep.subr.bf16.mxu0 0
        %2794 = vmatpush1.bf16.msra.mxu0 0
        %2795 = vmatprep.subr.bf16.mxu0 0
        %2796 = vmatpush1.bf16.msra.mxu0 0
        %2797 = vmatprep.subr.bf16.mxu0 0
        %2798 = vmatpush1.bf16.msra.mxu0 0
        %2799 = vmatprep.subr.bf16.mxu0 0
        %2800 = vmatpush1.bf16.msra.mxu0 0
        %2801 = vmatprep.subr.bf16.mxu0 0
        %2802 = vmatpush1.bf16.msra.mxu0 0
        %2803 = vmatprep.subr.bf16.mxu0 0
        %2804 = vmatpush1.bf16.msra.mxu0 0
        %2805 = vmatprep.subr.bf16.mxu0 0
        %2806 = vmatpush1.bf16.msra.mxu0 0
        %2807 = vmatprep.subr.bf16.mxu0 0
        %2808 = vmatpush1.bf16.msra.mxu0 0
        %2809 = vmatprep.subr.bf16.mxu0 0
        %2810 = vmatpush1.bf16.msra.mxu0 0
        %2811 = vmatprep.subr.bf16.mxu0 0
        %2812 = vmatpush1.bf16.msra.mxu0 0
        %2813 = vmatprep.subr.bf16.mxu0 0
        %2814 = vmatpush1.bf16.msra.mxu0 0
        %2815 = vmatprep.subr.bf16.mxu0 0
        %2816 = vmatpush1.bf16.msra.mxu0 0
        %2817 = vmatprep.mubr.bf16.mxu0 0
        %2818 = vmatmul.mubr.bf16.gmra.mrb[0].mxu0 %v2780
        %v2819 = vpop.f32.mrb[0].mxu0
        %v2820 = vadd.f32 0.0, %v2819
        %v2821 = vpop.f32.mrb[0].mxu0
        %v2822 = vpop.f32.mrb[0].mxu0
        %v2823 = vpop.f32.mrb[0].mxu0
        %2824 = vdwg.mxu0
        %2826 = vrot.lane.b32.xlu0 %v2820, 16
        %v2827 = vpop.permute.xlu0 %2826
        %2829 = vst.msk [vmem:[#allocation2] sm:$0xff] %vm1660, %v2827
        %2830 = vrot.lane.b32.xlu0 %v2415, 104
        %v2831 = vpop.permute.xlu0 %2830
        %2832 = vrot.lane.b32.xlu0 %v2477, 104
        %v2833 = vpop.permute.xlu0 %2832
        %v2835 = vsel %vm1315, %v2831, 0
        %v2838 = vsel %vm1315, %v2833, 0
        %2840 = vmatprep.subr.bf16.mxu0 0
        %2841 = vmatpush1.bf16.xpose.msra.mxu0 %v2838
        %2842 = vmatprep.subr.bf16.mxu0 0
        %2843 = vmatpush1.bf16.xpose.msra.mxu0 0
        %2844 = vmatprep.subr.bf16.mxu0 0
        %2845 = vmatpush1.bf16.xpose.msra.mxu0 0
        %2846 = vmatprep.subr.bf16.mxu0 0
        %2847 = vmatpush1.bf16.xpose.msra.mxu0 0
        %2848 = vmatprep.subr.bf16.mxu0 0
        %2849 = vmatpush1.bf16.xpose.msra.mxu0 0
        %2850 = vmatprep.subr.bf16.mxu0 0
        %2851 = vmatpush1.bf16.xpose.msra.mxu0 0
        %2852 = vmatprep.subr.bf16.mxu0 0
        %2853 = vmatpush1.bf16.xpose.msra.mxu0 0
        %2854 = vmatprep.subr.bf16.mxu0 0
        %2855 = vmatpush1.bf16.xpose.msra.mxu0 0
        %2856 = vmatprep.subr.bf16.mxu0 0
        %2857 = vmatpush1.bf16.xpose.msra.mxu0 0
        %2858 = vmatprep.subr.bf16.mxu0 0
        %2859 = vmatpush1.bf16.xpose.msra.mxu0 0
        %2860 = vmatprep.subr.bf16.mxu0 0
        %2861 = vmatpush1.bf16.xpose.msra.mxu0 0
        %2862 = vmatprep.subr.bf16.mxu0 0
        %2863 = vmatpush1.bf16.xpose.msra.mxu0 0
        %2864 = vmatprep.subr.bf16.mxu0 0
        %2865 = vmatpush1.bf16.xpose.msra.mxu0 0
        %2866 = vmatprep.subr.bf16.mxu0 0
        %2867 = vmatpush1.bf16.xpose.msra.mxu0 0
        %2868 = vmatprep.subr.bf16.mxu0 0
        %2869 = vmatpush1.bf16.xpose.msra.mxu0 0
        %2870 = vmatprep.subr.bf16.mxu0 0
        %2871 = vmatpush1.bf16.xpose.msra.mxu0 0
        %2872 = vmatprep.mubr.bf16.mxu0 0
        %2873 = vmatmul.mubr.bf16.gmra.mrb[0].mxu0 %v2835
        %v2874 = vpop.f32.mrb[0].mxu0
        %v2875 = vadd.f32 0.0, %v2874
        %v2876 = vpop.f32.mrb[0].mxu0
        %v2877 = vpop.f32.mrb[0].mxu0
        %v2878 = vpop.f32.mrb[0].mxu0
        %2879 = vdwg.mxu0
        %v2880 = vmul.f32 %v2875, 0.35355338
        %v2881 = vadd.f32 %v2880, %v2530
        %v2882 = vsel %vm1315, %v2881, -inf
        %2883 = vmax.xlane.f32.xlu0 %v2882
        %v2884 = vpop.xlane.xlu0 %2883
        %v2885 = vsub.f32 %v2881, %v2884
        %v2886 = vmul.f32 %v2885, 1.442695
        %v2887 = vpow.pop %v2886
        %v2888 = vsel %vm1315, %v2887, 0.0
        %2889 = vadd.xlane.f32.xlu0 %v2888
        %v2890 = vpop.xlane.xlu0 %2889
        %v2891 = vrcp.pop %v2890
        %v2892 = vmul.f32 %v2887, %v2891
        %v2893 = vpack.c.bf16 %v2892, %v2892
        %2894 = vrot.lane.b32.xlu0 %v2477, 72
        %v2895 = vpop.permute.xlu0 %2894
        %v2897 = vsel %vm1315, %v2893, 0
        %v2900 = vsel %vm1381, %v2895, 0
        %2902 = vmatprep.subr.bf16.mxu0 0
        %2903 = vmatpush1.bf16.msra.mxu0 %v2900
        %2904 = vmatprep.subr.bf16.mxu0 0
        %2905 = vmatpush1.bf16.msra.mxu0 0
        %2906 = vmatprep.subr.bf16.mxu0 0
        %2907 = vmatpush1.bf16.msra.mxu0 0
        %2908 = vmatprep.subr.bf16.mxu0 0
        %2909 = vmatpush1.bf16.msra.mxu0 0
        %2910 = vmatprep.subr.bf16.mxu0 0
        %2911 = vmatpush1.bf16.msra.mxu0 0
        %2912 = vmatprep.subr.bf16.mxu0 0
        %2913 = vmatpush1.bf16.msra.mxu0 0
        %2914 = vmatprep.subr.bf16.mxu0 0
        %2915 = vmatpush1.bf16.msra.mxu0 0
        %2916 = vmatprep.subr.bf16.mxu0 0
        %2917 = vmatpush1.bf16.msra.mxu0 0
        %2918 = vmatprep.subr.bf16.mxu0 0
        %2919 = vmatpush1.bf16.msra.mxu0 0
        %2920 = vmatprep.subr.bf16.mxu0 0
        %2921 = vmatpush1.bf16.msra.mxu0 0
        %2922 = vmatprep.subr.bf16.mxu0 0
        %2923 = vmatpush1.bf16.msra.mxu0 0
        %2924 = vmatprep.subr.bf16.mxu0 0
        %2925 = vmatpush1.bf16.msra.mxu0 0
        %2926 = vmatprep.subr.bf16.mxu0 0
        %2927 = vmatpush1.bf16.msra.mxu0 0
        %2928 = vmatprep.subr.bf16.mxu0 0
        %2929 = vmatpush1.bf16.msra.mxu0 0
        %2930 = vmatprep.subr.bf16.mxu0 0
        %2931 = vmatpush1.bf16.msra.mxu0 0
        %2932 = vmatprep.subr.bf16.mxu0 0
        %2933 = vmatpush1.bf16.msra.mxu0 0
        %2934 = vmatprep.mubr.bf16.mxu0 0
        %2935 = vmatmul.mubr.bf16.gmra.mrb[0].mxu0 %v2897
        %v2936 = vpop.f32.mrb[0].mxu0
        %v2937 = vadd.f32 0.0, %v2936
        %v2938 = vpop.f32.mrb[0].mxu0
        %v2939 = vpop.f32.mrb[0].mxu0
        %v2940 = vpop.f32.mrb[0].mxu0
        %2941 = vdwg.mxu0
        %2943 = vrot.lane.b32.xlu0 %v2937, 24
        %v2944 = vpop.permute.xlu0 %2943
        %2946 = vst.msk [vmem:[#allocation2] sm:$0xff] %vm1778, %v2944
        %s2947 = scalar_lea.vmem [#allocation9], 1
        %v2948 = vld [vmem:[%s2947] sm:$0x1]
        %v2949 = vrot.slane %v2415, 4
        %v2950 = vrot.slane %v2477, 4
        %v2952 = vsel %vm1315, %v2949, 0
        %v2955 = vsel %vm1315, %v2950, 0
        %2957 = vmatprep.subr.bf16.mxu0 0
        %2958 = vmatpush1.bf16.xpose.msra.mxu0 %v2955
        %2959 = vmatprep.subr.bf16.mxu0 0
        %2960 = vmatpush1.bf16.xpose.msra.mxu0 0
        %2961 = vmatprep.subr.bf16.mxu0 0
        %2962 = vmatpush1.bf16.xpose.msra.mxu0 0
        %2963 = vmatprep.subr.bf16.mxu0 0
        %2964 = vmatpush1.bf16.xpose.msra.mxu0 0
        %2965 = vmatprep.subr.bf16.mxu0 0
        %2966 = vmatpush1.bf16.xpose.msra.mxu0 0
        %2967 = vmatprep.subr.bf16.mxu0 0
        %2968 = vmatpush1.bf16.xpose.msra.mxu0 0
        %2969 = vmatprep.subr.bf16.mxu0 0
        %2970 = vmatpush1.bf16.xpose.msra.mxu0 0
        %2971 = vmatprep.subr.bf16.mxu0 0
        %2972 = vmatpush1.bf16.xpose.msra.mxu0 0
        %2973 = vmatprep.subr.bf16.mxu0 0
        %2974 = vmatpush1.bf16.xpose.msra.mxu0 0
        %2975 = vmatprep.subr.bf16.mxu0 0
        %2976 = vmatpush1.bf16.xpose.msra.mxu0 0
        %2977 = vmatprep.subr.bf16.mxu0 0
        %2978 = vmatpush1.bf16.xpose.msra.mxu0 0
        %2979 = vmatprep.subr.bf16.mxu0 0
        %2980 = vmatpush1.bf16.xpose.msra.mxu0 0
        %2981 = vmatprep.subr.bf16.mxu0 0
        %2982 = vmatpush1.bf16.xpose.msra.mxu0 0
        %2983 = vmatprep.subr.bf16.mxu0 0
        %2984 = vmatpush1.bf16.xpose.msra.mxu0 0
        %2985 = vmatprep.subr.bf16.mxu0 0
        %2986 = vmatpush1.bf16.xpose.msra.mxu0 0
        %2987 = vmatprep.subr.bf16.mxu0 0
        %2988 = vmatpush1.bf16.xpose.msra.mxu0 0
        %2989 = vmatprep.mubr.bf16.mxu0 0
        %2990 = vmatmul.mubr.bf16.gmra.mrb[0].mxu0 %v2952
        %v2991 = vpop.f32.mrb[0].mxu0
        %v2992 = vadd.f32 0.0, %v2991
        %v2993 = vpop.f32.mrb[0].mxu0
        %v2994 = vpop.f32.mrb[0].mxu0
        %v2995 = vpop.f32.mrb[0].mxu0
        %2996 = vdwg.mxu0
        %v2997 = vmul.f32 %v2992, 0.35355338
        %v2999 = vlaneseq
        %v3000 = vshrl.u32 %v2999, 7
        %v3001 = vsub.s32 0, %v3000
        %v3002 = vrot.slane %v2948, %v3001
        %v3004 = vadd.f32 %v2997, %v3002
        %v3005 = vsel %vm1315, %v3004, -inf
        %3006 = vmax.xlane.f32.xlu0 %v3005
        %v3007 = vpop.xlane.xlu0 %3006
        %v3008 = vsub.f32 %v3004, %v3007
        %v3009 = vmul.f32 %v3008, 1.442695
        %v3010 = vpow.pop %v3009
        %v3011 = vsel %vm1315, %v3010, 0.0
        %3012 = vadd.xlane.f32.xlu0 %v3011
        %v3013 = vpop.xlane.xlu0 %3012
        %v3014 = vrcp.pop %v3013
        %v3015 = vmul.f32 %v3010, %v3014
        %v3016 = vpack.c.bf16 %v3015, %v3015
        %3017 = vrot.lane.b32.xlu0 %v2950, 96
        %v3018 = vpop.permute.xlu0 %3017
        %v3020 = vsel %vm1315, %v3016, 0
        %v3023 = vsel %vm1381, %v3018, 0
        %3025 = vmatprep.subr.bf16.mxu0 0
        %3026 = vmatpush1.bf16.msra.mxu0 %v3023
        %3027 = vmatprep.subr.bf16.mxu0 0
        %3028 = vmatpush1.bf16.msra.mxu0 0
        %3029 = vmatprep.subr.bf16.mxu0 0
        %3030 = vmatpush1.bf16.msra.mxu0 0
        %3031 = vmatprep.subr.bf16.mxu0 0
        %3032 = vmatpush1.bf16.msra.mxu0 0
        %3033 = vmatprep.subr.bf16.mxu0 0
        %3034 = vmatpush1.bf16.msra.mxu0 0
        %3035 = vmatprep.subr.bf16.mxu0 0
        %3036 = vmatpush1.bf16.msra.mxu0 0
        %3037 = vmatprep.subr.bf16.mxu0 0
        %3038 = vmatpush1.bf16.msra.mxu0 0
        %3039 = vmatprep.subr.bf16.mxu0 0
        %3040 = vmatpush1.bf16.msra.mxu0 0
        %3041 = vmatprep.subr.bf16.mxu0 0
        %3042 = vmatpush1.bf16.msra.mxu0 0
        %3043 = vmatprep.subr.bf16.mxu0 0
        %3044 = vmatpush1.bf16.msra.mxu0 0
        %3045 = vmatprep.subr.bf16.mxu0 0
        %3046 = vmatpush1.bf16.msra.mxu0 0
        %3047 = vmatprep.subr.bf16.mxu0 0
        %3048 = vmatpush1.bf16.msra.mxu0 0
        %3049 = vmatprep.subr.bf16.mxu0 0
        %3050 = vmatpush1.bf16.msra.mxu0 0
        %3051 = vmatprep.subr.bf16.mxu0 0
        %3052 = vmatpush1.bf16.msra.mxu0 0
        %3053 = vmatprep.subr.bf16.mxu0 0
        %3054 = vmatpush1.bf16.msra.mxu0 0
        %3055 = vmatprep.subr.bf16.mxu0 0
        %3056 = vmatpush1.bf16.msra.mxu0 0
        %3057 = vmatprep.mubr.bf16.mxu0 0
        %3058 = vmatmul.mubr.bf16.gmra.mrb[0].mxu0 %v3020
        %v3059 = vpop.f32.mrb[0].mxu0
        %v3060 = vadd.f32 0.0, %v3059
        %v3061 = vpop.f32.mrb[0].mxu0
        %v3062 = vpop.f32.mrb[0].mxu0
        %v3063 = vpop.f32.mrb[0].mxu0
        %3064 = vdwg.mxu0
        %3065 = vst.msk [vmem:[#allocation2 + $0x8] sm:$0xff] %vm1315, %v3060
        %3066 = vrot.lane.b32.xlu0 %v2949, 120
        %v3067 = vpop.permute.xlu0 %3066
        %3068 = vrot.lane.b32.xlu0 %v2950, 120
        %v3069 = vpop.permute.xlu0 %3068
        %v3071 = vsel %vm1315, %v3067, 0
        %v3074 = vsel %vm1315, %v3069, 0
        %3076 = vmatprep.subr.bf16.mxu0 0
        %3077 = vmatpush1.bf16.xpose.msra.mxu0 %v3074
        %3078 = vmatprep.subr.bf16.mxu0 0
        %3079 = vmatpush1.bf16.xpose.msra.mxu0 0
        %3080 = vmatprep.subr.bf16.mxu0 0
        %3081 = vmatpush1.bf16.xpose.msra.mxu0 0
        %3082 = vmatprep.subr.bf16.mxu0 0
        %3083 = vmatpush1.bf16.xpose.msra.mxu0 0
        %3084 = vmatprep.subr.bf16.mxu0 0
        %3085 = vmatpush1.bf16.xpose.msra.mxu0 0
        %3086 = vmatprep.subr.bf16.mxu0 0
        %3087 = vmatpush1.bf16.xpose.msra.mxu0 0
        %3088 = vmatprep.subr.bf16.mxu0 0
        %3089 = vmatpush1.bf16.xpose.msra.mxu0 0
        %3090 = vmatprep.subr.bf16.mxu0 0
        %3091 = vmatpush1.bf16.xpose.msra.mxu0 0
        %3092 = vmatprep.subr.bf16.mxu0 0
        %3093 = vmatpush1.bf16.xpose.msra.mxu0 0
        %3094 = vmatprep.subr.bf16.mxu0 0
        %3095 = vmatpush1.bf16.xpose.msra.mxu0 0
        %3096 = vmatprep.subr.bf16.mxu0 0
        %3097 = vmatpush1.bf16.xpose.msra.mxu0 0
        %3098 = vmatprep.subr.bf16.mxu0 0
        %3099 = vmatpush1.bf16.xpose.msra.mxu0 0
        %3100 = vmatprep.subr.bf16.mxu0 0
        %3101 = vmatpush1.bf16.xpose.msra.mxu0 0
        %3102 = vmatprep.subr.bf16.mxu0 0
        %3103 = vmatpush1.bf16.xpose.msra.mxu0 0
        %3104 = vmatprep.subr.bf16.mxu0 0
        %3105 = vmatpush1.bf16.xpose.msra.mxu0 0
        %3106 = vmatprep.subr.bf16.mxu0 0
        %3107 = vmatpush1.bf16.xpose.msra.mxu0 0
        %3108 = vmatprep.mubr.bf16.mxu0 0
        %3109 = vmatmul.mubr.bf16.gmra.mrb[0].mxu0 %v3071
        %v3110 = vpop.f32.mrb[0].mxu0
        %v3111 = vadd.f32 0.0, %v3110
        %v3112 = vpop.f32.mrb[0].mxu0
        %v3113 = vpop.f32.mrb[0].mxu0
        %v3114 = vpop.f32.mrb[0].mxu0
        %3115 = vdwg.mxu0
        %v3116 = vmul.f32 %v3111, 0.35355338
        %v3117 = vadd.f32 %v3116, %v3002
        %v3118 = vsel %vm1315, %v3117, -inf
        %3119 = vmax.xlane.f32.xlu0 %v3118
        %v3120 = vpop.xlane.xlu0 %3119
        %v3121 = vsub.f32 %v3117, %v3120
        %v3122 = vmul.f32 %v3121, 1.442695
        %v3123 = vpow.pop %v3122
        %v3124 = vsel %vm1315, %v3123, 0.0
        %3125 = vadd.xlane.f32.xlu0 %v3124
        %v3126 = vpop.xlane.xlu0 %3125
        %v3127 = vrcp.pop %v3126
        %v3128 = vmul.f32 %v3123, %v3127
        %v3129 = vpack.c.bf16 %v3128, %v3128
        %3130 = vrot.lane.b32.xlu0 %v2950, 88
        %v3131 = vpop.permute.xlu0 %3130
        %v3133 = vsel %vm1315, %v3129, 0
        %v3136 = vsel %vm1381, %v3131, 0
        %3138 = vmatprep.subr.bf16.mxu0 0
        %3139 = vmatpush1.bf16.msra.mxu0 %v3136
        %3140 = vmatprep.subr.bf16.mxu0 0
        %3141 = vmatpush1.bf16.msra.mxu0 0
        %3142 = vmatprep.subr.bf16.mxu0 0
        %3143 = vmatpush1.bf16.msra.mxu0 0
        %3144 = vmatprep.subr.bf16.mxu0 0
        %3145 = vmatpush1.bf16.msra.mxu0 0
        %3146 = vmatprep.subr.bf16.mxu0 0
        %3147 = vmatpush1.bf16.msra.mxu0 0
        %3148 = vmatprep.subr.bf16.mxu0 0
        %3149 = vmatpush1.bf16.msra.mxu0 0
        %3150 = vmatprep.subr.bf16.mxu0 0
        %3151 = vmatpush1.bf16.msra.mxu0 0
        %3152 = vmatprep.subr.bf16.mxu0 0
        %3153 = vmatpush1.bf16.msra.mxu0 0
        %3154 = vmatprep.subr.bf16.mxu0 0
        %3155 = vmatpush1.bf16.msra.mxu0 0
        %3156 = vmatprep.subr.bf16.mxu0 0
        %3157 = vmatpush1.bf16.msra.mxu0 0
        %3158 = vmatprep.subr.bf16.mxu0 0
        %3159 = vmatpush1.bf16.msra.mxu0 0
        %3160 = vmatprep.subr.bf16.mxu0 0
        %3161 = vmatpush1.bf16.msra.mxu0 0
        %3162 = vmatprep.subr.bf16.mxu0 0
        %3163 = vmatpush1.bf16.msra.mxu0 0
        %3164 = vmatprep.subr.bf16.mxu0 0
        %3165 = vmatpush1.bf16.msra.mxu0 0
        %3166 = vmatprep.subr.bf16.mxu0 0
        %3167 = vmatpush1.bf16.msra.mxu0 0
        %3168 = vmatprep.subr.bf16.mxu0 0
        %3169 = vmatpush1.bf16.msra.mxu0 0
        %3170 = vmatprep.mubr.bf16.mxu0 0
        %3171 = vmatmul.mubr.bf16.gmra.mrb[0].mxu0 %v3133
        %v3172 = vpop.f32.mrb[0].mxu0
        %v3173 = vadd.f32 0.0, %v3172
        %v3174 = vpop.f32.mrb[0].mxu0
        %v3175 = vpop.f32.mrb[0].mxu0
        %v3176 = vpop.f32.mrb[0].mxu0
        %3177 = vdwg.mxu0
        %3179 = vrot.lane.b32.xlu0 %v3173, 8
        %v3180 = vpop.permute.xlu0 %3179
        %3182 = vst.msk [vmem:[#allocation2 + $0x8] sm:$0xff] %vm1542, %v3180
        %3183 = vrot.lane.b32.xlu0 %v2949, 112
        %v3184 = vpop.permute.xlu0 %3183
        %3185 = vrot.lane.b32.xlu0 %v2950, 112
        %v3186 = vpop.permute.xlu0 %3185
        %v3188 = vsel %vm1315, %v3184, 0
        %v3191 = vsel %vm1315, %v3186, 0
        %3193 = vmatprep.subr.bf16.mxu0 0
        %3194 = vmatpush1.bf16.xpose.msra.mxu0 %v3191
        %3195 = vmatprep.subr.bf16.mxu0 0
        %3196 = vmatpush1.bf16.xpose.msra.mxu0 0
        %3197 = vmatprep.subr.bf16.mxu0 0
        %3198 = vmatpush1.bf16.xpose.msra.mxu0 0
        %3199 = vmatprep.subr.bf16.mxu0 0
        %3200 = vmatpush1.bf16.xpose.msra.mxu0 0
        %3201 = vmatprep.subr.bf16.mxu0 0
        %3202 = vmatpush1.bf16.xpose.msra.mxu0 0
        %3203 = vmatprep.subr.bf16.mxu0 0
        %3204 = vmatpush1.bf16.xpose.msra.mxu0 0
        %3205 = vmatprep.subr.bf16.mxu0 0
        %3206 = vmatpush1.bf16.xpose.msra.mxu0 0
        %3207 = vmatprep.subr.bf16.mxu0 0
        %3208 = vmatpush1.bf16.xpose.msra.mxu0 0
        %3209 = vmatprep.subr.bf16.mxu0 0
        %3210 = vmatpush1.bf16.xpose.msra.mxu0 0
        %3211 = vmatprep.subr.bf16.mxu0 0
        %3212 = vmatpush1.bf16.xpose.msra.mxu0 0
        %3213 = vmatprep.subr.bf16.mxu0 0
        %3214 = vmatpush1.bf16.xpose.msra.mxu0 0
        %3215 = vmatprep.subr.bf16.mxu0 0
        %3216 = vmatpush1.bf16.xpose.msra.mxu0 0
        %3217 = vmatprep.subr.bf16.mxu0 0
        %3218 = vmatpush1.bf16.xpose.msra.mxu0 0
        %3219 = vmatprep.subr.bf16.mxu0 0
        %3220 = vmatpush1.bf16.xpose.msra.mxu0 0
        %3221 = vmatprep.subr.bf16.mxu0 0
        %3222 = vmatpush1.bf16.xpose.msra.mxu0 0
        %3223 = vmatprep.subr.bf16.mxu0 0
        %3224 = vmatpush1.bf16.xpose.msra.mxu0 0
        %3225 = vmatprep.mubr.bf16.mxu0 0
        %3226 = vmatmul.mubr.bf16.gmra.mrb[0].mxu0 %v3188
        %v3227 = vpop.f32.mrb[0].mxu0
        %v3228 = vadd.f32 0.0, %v3227
        %v3229 = vpop.f32.mrb[0].mxu0
        %v3230 = vpop.f32.mrb[0].mxu0
        %v3231 = vpop.f32.mrb[0].mxu0
        %3232 = vdwg.mxu0
        %v3233 = vmul.f32 %v3228, 0.35355338
        %v3234 = vadd.f32 %v3233, %v3002
        %v3235 = vsel %vm1315, %v3234, -inf
        %3236 = vmax.xlane.f32.xlu0 %v3235
        %v3237 = vpop.xlane.xlu0 %3236
        %v3238 = vsub.f32 %v3234, %v3237
        %v3239 = vmul.f32 %v3238, 1.442695
        %v3240 = vpow.pop %v3239
        %v3241 = vsel %vm1315, %v3240, 0.0
        %3242 = vadd.xlane.f32.xlu0 %v3241
        %v3243 = vpop.xlane.xlu0 %3242
        %v3244 = vrcp.pop %v3243
        %v3245 = vmul.f32 %v3240, %v3244
        %v3246 = vpack.c.bf16 %v3245, %v3245
        %3247 = vrot.lane.b32.xlu0 %v2950, 80
        %v3248 = vpop.permute.xlu0 %3247
        %v3250 = vsel %vm1315, %v3246, 0
        %v3253 = vsel %vm1381, %v3248, 0
        %3255 = vmatprep.subr.bf16.mxu0 0
        %3256 = vmatpush1.bf16.msra.mxu0 %v3253
        %3257 = vmatprep.subr.bf16.mxu0 0
        %3258 = vmatpush1.bf16.msra.mxu0 0
        %3259 = vmatprep.subr.bf16.mxu0 0
        %3260 = vmatpush1.bf16.msra.mxu0 0
        %3261 = vmatprep.subr.bf16.mxu0 0
        %3262 = vmatpush1.bf16.msra.mxu0 0
        %3263 = vmatprep.subr.bf16.mxu0 0
        %3264 = vmatpush1.bf16.msra.mxu0 0
        %3265 = vmatprep.subr.bf16.mxu0 0
        %3266 = vmatpush1.bf16.msra.mxu0 0
        %3267 = vmatprep.subr.bf16.mxu0 0
        %3268 = vmatpush1.bf16.msra.mxu0 0
        %3269 = vmatprep.subr.bf16.mxu0 0
        %3270 = vmatpush1.bf16.msra.mxu0 0
        %3271 = vmatprep.subr.bf16.mxu0 0
        %3272 = vmatpush1.bf16.msra.mxu0 0
        %3273 = vmatprep.subr.bf16.mxu0 0
        %3274 = vmatpush1.bf16.msra.mxu0 0
        %3275 = vmatprep.subr.bf16.mxu0 0
        %3276 = vmatpush1.bf16.msra.mxu0 0
        %3277 = vmatprep.subr.bf16.mxu0 0
        %3278 = vmatpush1.bf16.msra.mxu0 0
        %3279 = vmatprep.subr.bf16.mxu0 0
        %3280 = vmatpush1.bf16.msra.mxu0 0
        %3281 = vmatprep.subr.bf16.mxu0 0
        %3282 = vmatpush1.bf16.msra.mxu0 0
        %3283 = vmatprep.subr.bf16.mxu0 0
        %3284 = vmatpush1.bf16.msra.mxu0 0
        %3285 = vmatprep.subr.bf16.mxu0 0
        %3286 = vmatpush1.bf16.msra.mxu0 0
        %3287 = vmatprep.mubr.bf16.mxu0 0
        %3288 = vmatmul.mubr.bf16.gmra.mrb[0].mxu0 %v3250
        %v3289 = vpop.f32.mrb[0].mxu0
        %v3290 = vadd.f32 0.0, %v3289
        %v3291 = vpop.f32.mrb[0].mxu0
        %v3292 = vpop.f32.mrb[0].mxu0
        %v3293 = vpop.f32.mrb[0].mxu0
        %3294 = vdwg.mxu0
        %3296 = vrot.lane.b32.xlu0 %v3290, 16
        %v3297 = vpop.permute.xlu0 %3296
        %3299 = vst.msk [vmem:[#allocation2 + $0x8] sm:$0xff] %vm1660, %v3297
        %3300 = vrot.lane.b32.xlu0 %v2949, 104
        %v3301 = vpop.permute.xlu0 %3300
        %3302 = vrot.lane.b32.xlu0 %v2950, 104
        %v3303 = vpop.permute.xlu0 %3302
        %v3305 = vsel %vm1315, %v3301, 0
        %v3308 = vsel %vm1315, %v3303, 0
        %3310 = vmatprep.subr.bf16.mxu0 0
        %3311 = vmatpush1.bf16.xpose.msra.mxu0 %v3308
        %3312 = vmatprep.subr.bf16.mxu0 0
        %3313 = vmatpush1.bf16.xpose.msra.mxu0 0
        %3314 = vmatprep.subr.bf16.mxu0 0
        %3315 = vmatpush1.bf16.xpose.msra.mxu0 0
        %3316 = vmatprep.subr.bf16.mxu0 0
        %3317 = vmatpush1.bf16.xpose.msra.mxu0 0
        %3318 = vmatprep.subr.bf16.mxu0 0
        %3319 = vmatpush1.bf16.xpose.msra.mxu0 0
        %3320 = vmatprep.subr.bf16.mxu0 0
        %3321 = vmatpush1.bf16.xpose.msra.mxu0 0
        %3322 = vmatprep.subr.bf16.mxu0 0
        %3323 = vmatpush1.bf16.xpose.msra.mxu0 0
        %3324 = vmatprep.subr.bf16.mxu0 0
        %3325 = vmatpush1.bf16.xpose.msra.mxu0 0
        %3326 = vmatprep.subr.bf16.mxu0 0
        %3327 = vmatpush1.bf16.xpose.msra.mxu0 0
        %3328 = vmatprep.subr.bf16.mxu0 0
        %3329 = vmatpush1.bf16.xpose.msra.mxu0 0
        %3330 = vmatprep.subr.bf16.mxu0 0
        %3331 = vmatpush1.bf16.xpose.msra.mxu0 0
        %3332 = vmatprep.subr.bf16.mxu0 0
        %3333 = vmatpush1.bf16.xpose.msra.mxu0 0
        %3334 = vmatprep.subr.bf16.mxu0 0
        %3335 = vmatpush1.bf16.xpose.msra.mxu0 0
        %3336 = vmatprep.subr.bf16.mxu0 0
        %3337 = vmatpush1.bf16.xpose.msra.mxu0 0
        %3338 = vmatprep.subr.bf16.mxu0 0
        %3339 = vmatpush1.bf16.xpose.msra.mxu0 0
        %3340 = vmatprep.subr.bf16.mxu0 0
        %3341 = vmatpush1.bf16.xpose.msra.mxu0 0
        %3342 = vmatprep.mubr.bf16.mxu0 0
        %3343 = vmatmul.mubr.bf16.gmra.mrb[0].mxu0 %v3305
        %v3344 = vpop.f32.mrb[0].mxu0
        %v3345 = vadd.f32 0.0, %v3344
        %v3346 = vpop.f32.mrb[0].mxu0
        %v3347 = vpop.f32.mrb[0].mxu0
        %v3348 = vpop.f32.mrb[0].mxu0
        %3349 = vdwg.mxu0
        %v3350 = vmul.f32 %v3345, 0.35355338
        %v3351 = vadd.f32 %v3350, %v3002
        %v3352 = vsel %vm1315, %v3351, -inf
        %3353 = vmax.xlane.f32.xlu0 %v3352
        %v3354 = vpop.xlane.xlu0 %3353
        %v3355 = vsub.f32 %v3351, %v3354
        %v3356 = vmul.f32 %v3355, 1.442695
        %v3357 = vpow.pop %v3356
        %v3358 = vsel %vm1315, %v3357, 0.0
        %3359 = vadd.xlane.f32.xlu0 %v3358
        %v3360 = vpop.xlane.xlu0 %3359
        %v3361 = vrcp.pop %v3360
        %v3362 = vmul.f32 %v3357, %v3361
        %v3363 = vpack.c.bf16 %v3362, %v3362
        %3364 = vrot.lane.b32.xlu0 %v2950, 72
        %v3365 = vpop.permute.xlu0 %3364
        %v3367 = vsel %vm1315, %v3363, 0
        %v3370 = vsel %vm1381, %v3365, 0
        %3372 = vmatprep.subr.bf16.mxu0 0
        %3373 = vmatpush1.bf16.msra.mxu0 %v3370
        %3374 = vmatprep.subr.bf16.mxu0 0
        %3375 = vmatpush1.bf16.msra.mxu0 0
        %3376 = vmatprep.subr.bf16.mxu0 0
        %3377 = vmatpush1.bf16.msra.mxu0 0
        %3378 = vmatprep.subr.bf16.mxu0 0
        %3379 = vmatpush1.bf16.msra.mxu0 0
        %3380 = vmatprep.subr.bf16.mxu0 0
        %3381 = vmatpush1.bf16.msra.mxu0 0
        %3382 = vmatprep.subr.bf16.mxu0 0
        %3383 = vmatpush1.bf16.msra.mxu0 0
        %3384 = vmatprep.subr.bf16.mxu0 0
        %3385 = vmatpush1.bf16.msra.mxu0 0
        %3386 = vmatprep.subr.bf16.mxu0 0
        %3387 = vmatpush1.bf16.msra.mxu0 0
        %3388 = vmatprep.subr.bf16.mxu0 0
        %3389 = vmatpush1.bf16.msra.mxu0 0
        %3390 = vmatprep.subr.bf16.mxu0 0
        %3391 = vmatpush1.bf16.msra.mxu0 0
        %3392 = vmatprep.subr.bf16.mxu0 0
        %3393 = vmatpush1.bf16.msra.mxu0 0
        %3394 = vmatprep.subr.bf16.mxu0 0
        %3395 = vmatpush1.bf16.msra.mxu0 0
        %3396 = vmatprep.subr.bf16.mxu0 0
        %3397 = vmatpush1.bf16.msra.mxu0 0
        %3398 = vmatprep.subr.bf16.mxu0 0
        %3399 = vmatpush1.bf16.msra.mxu0 0
        %3400 = vmatprep.subr.bf16.mxu0 0
        %3401 = vmatpush1.bf16.msra.mxu0 0
        %3402 = vmatprep.subr.bf16.mxu0 0
        %3403 = vmatpush1.bf16.msra.mxu0 0
        %3404 = vmatprep.mubr.bf16.mxu0 0
        %3405 = vmatmul.mubr.bf16.gmra.mrb[0].mxu0 %v3367
        %v3406 = vpop.f32.mrb[0].mxu0
        %v3407 = vadd.f32 0.0, %v3406
        %v3408 = vpop.f32.mrb[0].mxu0
        %v3409 = vpop.f32.mrb[0].mxu0
        %v3410 = vpop.f32.mrb[0].mxu0
        %3411 = vdwg.mxu0
        %3413 = vrot.lane.b32.xlu0 %v3407, 24
        %v3414 = vpop.permute.xlu0 %3413
        %3416 = vst.msk [vmem:[#allocation2 + $0x8] sm:$0xff] %vm1778, %v3414
        %v3417 = vld [vmem:[#allocation2] sm:$0xff]
        %v3418 = vld [vmem:[#allocation2 + $0x8] sm:$0xff]
        %v3419 = vpack.c.bf16 %v3418, %v3417
        %v3420 = vld [vmem:[%s1022] sm:$0xf]
        %v3421 = vld [vmem:[%s1022 + $0x4] sm:$0xf]
        %v3422 = vld [vmem:[%s1022 + $0x8] sm:$0xf]
        %v3423 = vld [vmem:[%s1022 + $0xc] sm:$0xf]
        %v3428 = vunpack.c.l.b16 %v3420
        %v3429 = vunpack.c.l.b16 %v3421
        %v3430 = vunpack.c.l.b16 %v3422
        %v3431 = vunpack.c.l.b16 %v3423
        %v3432 = vpack.c.b16 %v3429, %v3428
        %v3433 = vpack.c.b16 %v3431, %v3430
        %v3437 = vsel %vm1205, %v3419, 0
        %3439 = vmatprep.subr.bf16.mxu0 0
        %3440 = vmatpush1.bf16.msra.mxu0 %v3432
        %3441 = vmatprep.subr.bf16.mxu0 0
        %3442 = vmatpush1.bf16.msra.mxu0 %v3433
        %3443 = vmatprep.subr.bf16.mxu0 0
        %3444 = vmatpush1.bf16.msra.mxu0 0
        %3445 = vmatprep.subr.bf16.mxu0 0
        %3446 = vmatpush1.bf16.msra.mxu0 0
        %3447 = vmatprep.subr.bf16.mxu0 0
        %3448 = vmatpush1.bf16.msra.mxu0 0
        %3449 = vmatprep.subr.bf16.mxu0 0
        %3450 = vmatpush1.bf16.msra.mxu0 0
        %3451 = vmatprep.subr.bf16.mxu0 0
        %3452 = vmatpush1.bf16.msra.mxu0 0
        %3453 = vmatprep.subr.bf16.mxu0 0
        %3454 = vmatpush1.bf16.msra.mxu0 0
        %3455 = vmatprep.subr.bf16.mxu0 0
        %3456 = vmatpush1.bf16.msra.mxu0 0
        %3457 = vmatprep.subr.bf16.mxu0 0
        %3458 = vmatpush1.bf16.msra.mxu0 0
        %3459 = vmatprep.subr.bf16.mxu0 0
        %3460 = vmatpush1.bf16.msra.mxu0 0
        %3461 = vmatprep.subr.bf16.mxu0 0
        %3462 = vmatpush1.bf16.msra.mxu0 0
        %3463 = vmatprep.subr.bf16.mxu0 0
        %3464 = vmatpush1.bf16.msra.mxu0 0
        %3465 = vmatprep.subr.bf16.mxu0 0
        %3466 = vmatpush1.bf16.msra.mxu0 0
        %3467 = vmatprep.subr.bf16.mxu0 0
        %3468 = vmatpush1.bf16.msra.mxu0 0
        %3469 = vmatprep.subr.bf16.mxu0 0
        %3470 = vmatpush1.bf16.msra.mxu0 0
        %3471 = vmatprep.mubr.bf16.mxu0 0
        %3472 = vmatmul.mubr.bf16.gmra.mrb[0].mxu0 %v3437
        %v3473 = vpop.f32.mrb[0].mxu0
        %v3474 = vadd.f32 0.0, %v3473
        %v3475 = vpop.f32.mrb[0].mxu0
        %v3476 = vpop.f32.mrb[0].mxu0
        %v3477 = vadd.f32 0.0, %v3476
        %v3478 = vpop.f32.mrb[0].mxu0
        %3479 = vdwg.mxu0
        %v3480 = vadd.f32 %v2308, %v3474
        %v3481 = vadd.f32 %v2309, %v3477
        %v3482 = vld [vmem:[%s1030] sm:$0x1]
        %v3483 = vld [vmem:[%s1038] sm:$0x1]
        %v3484 = vsel %vm1205, %v3480, 0.0
        %3485 = vadd.xlane.f32.xlu0 %v3484
        %v3486 = vpop.xlane.xlu0 %3485
        %v3487 = vsel %vm1205, %v3481, 0.0
        %3488 = vadd.xlane.f32.xlu0 %v3487
        %v3489 = vpop.xlane.xlu0 %3488
        %v3490 = vmul.f32 %v3486, %v1212
        %v3491 = vmul.f32 %v3489, %v1212
        %v3492 = vsub.f32 %v3480, %v3490
        %v3493 = vsub.f32 %v3481, %v3491
        %v3494 = vmul.f32 %v3492, %v3492
        %v3495 = vmul.f32 %v3493, %v3493
        %v3496 = vsel %vm1205, %v3494, 0.0
        %3497 = vadd.xlane.f32.xlu0 %v3496
        %v3498 = vpop.xlane.xlu0 %3497
        %v3499 = vsel %vm1205, %v3495, 0.0
        %3500 = vadd.xlane.f32.xlu0 %v3499
        %v3501 = vpop.xlane.xlu0 %3500
        %v3502 = vmul.f32 %v3498, %v1212
        %v3503 = vmul.f32 %v3501, %v1212
        %v3504 = vadd.f32 %v3502, 1e-05
        %v3505 = vadd.f32 %v3503, 1e-05
        %v3506 = vrsqrt.pop %v3504
        %v3507 = vrsqrt.pop %v3505
        %v3508 = vmul.f32 %v3492, %v3506
        %v3509 = vmul.f32 %v3493, %v3507
        %v3511 = vlaneseq
        %v3512 = vshrl.u32 %v3511, 7
        %v3513 = vsub.s32 0, %v3512
        %v3514 = vrot.slane %v3482, %v3513
        %v3516 = vmul.f32 %v3508, %v3514
        %v3517 = vmul.f32 %v3509, %v3514
        %v3519 = vlaneseq
        %v3520 = vshrl.u32 %v3519, 7
        %v3521 = vsub.s32 0, %v3520
        %v3522 = vrot.slane %v3483, %v3521
        %v3524 = vadd.f32 %v3516, %v3522
        %v3525 = vadd.f32 %v3517, %v3522
        %v3526 = vld [vmem:[%s1047] sm:$0xf]
        %v3527 = vld [vmem:[%s1047 + $0x4] sm:$0xf]
        %v3528 = vld [vmem:[%s1047 + $0x8] sm:$0xf]
        %v3529 = vld [vmem:[%s1047 + $0xc] sm:$0xf]
        %v3530 = vld [vmem:[%s1055] sm:$0x1]
        %v3531 = vld [vmem:[%s1064] sm:$0xf]
        %v3532 = vld [vmem:[%s1064 + $0x4] sm:$0xf]
        %v3533 = vld [vmem:[%s1064 + $0x8] sm:$0xf]
        %v3534 = vld [vmem:[%s1064 + $0xc] sm:$0xf]
        %v3535 = vld [vmem:[%s1064 + $0x10] sm:$0xf]
        %v3536 = vld [vmem:[%s1064 + $0x14] sm:$0xf]
        %v3537 = vld [vmem:[%s1064 + $0x18] sm:$0xf]
        %v3538 = vld [vmem:[%s1064 + $0x1c] sm:$0xf]
        %v3539 = vld [vmem:[%s1072] sm:$0x1]
        %v3540 = vpack.c.bf16 %v3525, %v3524
        %v3542 = vlaneseq
        %v3543 = vshrl.u32 %v3542, 7
        %v3544 = vsub.s32 0, %v3543
        %v3545 = vrot.slane %v3530, %v3544
        %v3551 = vunpack.c.l.b16 %v3526
        %v3552 = vunpack.c.l.b16 %v3527
        %v3553 = vunpack.c.l.b16 %v3528
        %v3554 = vunpack.c.l.b16 %v3529
        %v3555 = vpack.c.b16 %v3552, %v3551
        %v3556 = vpack.c.b16 %v3554, %v3553
        %v3560 = vsel %vm1205, %v3540, 0
        %3562 = vmatprep.subr.bf16.mxu0 0
        %3563 = vmatpush1.bf16.msra.mxu0 %v3555
        %3564 = vmatprep.subr.bf16.mxu0 0
        %3565 = vmatpush1.bf16.msra.mxu0 %v3556
        %3566 = vmatprep.subr.bf16.mxu0 0
        %3567 = vmatpush1.bf16.msra.mxu0 0
        %3568 = vmatprep.subr.bf16.mxu0 0
        %3569 = vmatpush1.bf16.msra.mxu0 0
        %3570 = vmatprep.subr.bf16.mxu0 0
        %3571 = vmatpush1.bf16.msra.mxu0 0
        %3572 = vmatprep.subr.bf16.mxu0 0
        %3573 = vmatpush1.bf16.msra.mxu0 0
        %3574 = vmatprep.subr.bf16.mxu0 0
        %3575 = vmatpush1.bf16.msra.mxu0 0
        %3576 = vmatprep.subr.bf16.mxu0 0
        %3577 = vmatpush1.bf16.msra.mxu0 0
        %3578 = vmatprep.subr.bf16.mxu0 0
        %3579 = vmatpush1.bf16.msra.mxu0 0
        %3580 = vmatprep.subr.bf16.mxu0 0
        %3581 = vmatpush1.bf16.msra.mxu0 0
        %3582 = vmatprep.subr.bf16.mxu0 0
        %3583 = vmatpush1.bf16.msra.mxu0 0
        %3584 = vmatprep.subr.bf16.mxu0 0
        %3585 = vmatpush1.bf16.msra.mxu0 0
        %3586 = vmatprep.subr.bf16.mxu0 0
        %3587 = vmatpush1.bf16.msra.mxu0 0
        %3588 = vmatprep.subr.bf16.mxu0 0
        %3589 = vmatpush1.bf16.msra.mxu0 0
        %3590 = vmatprep.subr.bf16.mxu0 0
        %3591 = vmatpush1.bf16.msra.mxu0 0
        %3592 = vmatprep.subr.bf16.mxu0 0
        %3593 = vmatpush1.bf16.msra.mxu0 0
        %3594 = vmatprep.mubr.bf16.mxu0 0
        %3595 = vmatmul.mubr.bf16.gmra.mrb[0].mxu0 %v3560
        %v3596 = vpop.f32.mrb[0].mxu0
        %v3597 = vadd.f32 %v3545, %v3596
        %v3598 = vpop.f32.mrb[0].mxu0
        %v3599 = vpop.f32.mrb[0].mxu0
        %v3600 = vadd.f32 %v3545, %v3599
        %v3601 = vpop.f32.mrb[0].mxu0
        %3602 = vdwg.mxu0
        %v3603 = vmul.f32 %v3597, 0.5
        %v3604 = vmul.f32 %v3600, 0.5
        %v3605 = vmul.f32 %v3597, 0.044715
        %v3606 = vmul.f32 %v3600, 0.044715
        %v3607 = vmul.f32 %v3605, %v3597
        %v3608 = vmul.f32 %v3606, %v3600
        %v3609 = vmul.f32 %v3607, %v3597
        %v3610 = vmul.f32 %v3608, %v3600
        %v3611 = vadd.f32 %v3597, %v3609
        %v3612 = vadd.f32 %v3600, %v3610
        %v3613 = vmul.f32 %v3611, 0.7978846
        %v3614 = vmul.f32 %v3612, 0.7978846
        %v3615 = vtanh.pop %v3613
        %v3616 = vtanh.pop %v3614
        %v3617 = vadd.f32 %v3615, 1.0
        %v3618 = vadd.f32 %v3616, 1.0
        %v3619 = vmul.f32 %v3603, %v3617
        %v3620 = vmul.f32 %v3604, %v3618
        %v3621 = vpack.c.bf16 %v3620, %v3619
        %v3623 = vlaneseq
        %v3624 = vshrl.u32 %v3623, 7
        %v3625 = vsub.s32 0, %v3624
        %v3626 = vrot.slane %v3539, %v3625
        %v3636 = vunpack.c.l.b16 %v3531
        %v3637 = vunpack.c.l.b16 %v3532
        %v3638 = vunpack.c.l.b16 %v3533
        %v3639 = vunpack.c.l.b16 %v3534
        %v3640 = vunpack.c.l.b16 %v3535
        %v3641 = vunpack.c.l.b16 %v3536
        %v3642 = vunpack.c.l.b16 %v3537
        %v3643 = vunpack.c.l.b16 %v3538
        %v3644 = vpack.c.b16 %v3637, %v3636
        %v3645 = vpack.c.b16 %v3639, %v3638
        %v3646 = vpack.c.b16 %v3641, %v3640
        %v3647 = vpack.c.b16 %v3643, %v3642
        %vm3652 = vcmask 523264
        %v3654 = vsel %vm3652, %v3621, 0
        %3656 = vmatprep.subr.bf16.mxu0 0
        %3657 = vmatpush1.bf16.msra.mxu0 %v3644
        %3658 = vmatprep.subr.bf16.mxu0 0
        %3659 = vmatpush1.bf16.msra.mxu0 %v3645
        %3660 = vmatprep.subr.bf16.mxu0 0
        %3661 = vmatpush1.bf16.msra.mxu0 %v3646
        %3662 = vmatprep.subr.bf16.mxu0 0
        %3663 = vmatpush1.bf16.msra.mxu0 %v3647
        %3664 = vmatprep.subr.bf16.mxu0 0
        %3665 = vmatpush1.bf16.msra.mxu0 0
        %3666 = vmatprep.subr.bf16.mxu0 0
        %3667 = vmatpush1.bf16.msra.mxu0 0
        %3668 = vmatprep.subr.bf16.mxu0 0
        %3669 = vmatpush1.bf16.msra.mxu0 0
        %3670 = vmatprep.subr.bf16.mxu0 0
        %3671 = vmatpush1.bf16.msra.mxu0 0
        %3672 = vmatprep.subr.bf16.mxu0 0
        %3673 = vmatpush1.bf16.msra.mxu0 0
        %3674 = vmatprep.subr.bf16.mxu0 0
        %3675 = vmatpush1.bf16.msra.mxu0 0
        %3676 = vmatprep.subr.bf16.mxu0 0
        %3677 = vmatpush1.bf16.msra.mxu0 0
        %3678 = vmatprep.subr.bf16.mxu0 0
        %3679 = vmatpush1.bf16.msra.mxu0 0
        %3680 = vmatprep.subr.bf16.mxu0 0
        %3681 = vmatpush1.bf16.msra.mxu0 0
        %3682 = vmatprep.subr.bf16.mxu0 0
        %3683 = vmatpush1.bf16.msra.mxu0 0
        %3684 = vmatprep.subr.bf16.mxu0 0
        %3685 = vmatpush1.bf16.msra.mxu0 0
        %3686 = vmatprep.subr.bf16.mxu0 0
        %3687 = vmatpush1.bf16.msra.mxu0 0
        %3688 = vmatprep.mubr.bf16.mxu0 0
        %3689 = vmatmul.mubr.bf16.gmra.mrb[0].mxu0 %v3654
        %v3690 = vpop.f32.mrb[0].mxu0
        %v3691 = vadd.f32 %v3626, %v3690
        %v3692 = vpop.f32.mrb[0].mxu0
        %v3693 = vpop.f32.mrb[0].mxu0
        %v3694 = vadd.f32 %v3626, %v3693
        %v3695 = vpop.f32.mrb[0].mxu0
        %3696 = vdwg.mxu0
        %v3697 = vadd.f32 %v3480, %v3691
        %v3698 = vadd.f32 %v3481, %v3694
        %3699 = vst.msk [vmem:[#allocation26] sm:$0xff] %vm1205, %v3697
        %3700 = vst.msk [vmem:[#allocation26 + $0x8] sm:$0xff] %vm1205, %v3698
        // Predicated region
        $region177: #{transformer_forward.4} parent=95 // pred_check
          %p3701 = pneg %p558
        $region178: #{transformer_forward.4} parent=95 // pred_check_branch
          %3703 = sbr.rel (%p3701) target = $region180
        $region179: #{transformer_forward.4} parent=95 // pred_region
          %s3704 = smul.u32 2, %s38
          %s3706 = ssub.s32 256, 256
          %3707 = vsyncadd [#allocation5], %s3706
          %s3708 = smul.addr %s3704, 128
          %s3709 = scalar_lea.hbm %s19, %s3708
          %s3710 = sshll.u32 [#allocation26], 4
          %s3711 = int_to_ptr.vmem [resolvable:$true] %s3710
          %3716 = dma.vmem_to_hbm [thread:$0]  %s3711, 256, %s3709, [#allocation5], 128, 128, 8
        $region180: #{transformer_forward.4} parent=95 // pred_fallthru
          _
        // Predicated region
        $region181: #{transformer_forward.4} parent=95 // pred_check
          %p3717 = pneg %p558
        $region182: #{transformer_forward.4} parent=95 // pred_check_branch
          %3719 = sbr.rel (%p3717) target = $region184
        $region183: #{transformer_forward.4} parent=95 // pred_region
          %3720 = dma.done [#allocation5], 256
        $region184: #{transformer_forward.4} parent=95 // pred_fallthru
          _
      $region96: #{transformer_forward.4} parent=5 // pred_fallthru
        _
      %p3721 = scmp.le.s32.totalorder 2, %s29
      // Predicated region
      $region185: #{transformer_forward.4} parent=5 // pred_check
        %p3722 = pneg %p3721
      $region186: #{transformer_forward.4} parent=5 // pred_check_branch
        %3724 = sbr.rel (%p3722) target = $region188
      $region187: #{transformer_forward.4} parent=5 // pred_region
        %s3725 = ssub.s32 %s29, 2
      $region188: #{transformer_forward.4} parent=5 // pred_fallthru
        _
    $region6: #{transformer_forward.4} parent=1 // loop_footer
      %s33 = sadd.s32 1, %s29
    $region7: #{transformer_forward.4} parent=1 // loop_footer_branch
      %28 = sbr.rel target = $region3
    $region8: #{transformer_forward.4} parent=1 // loop_exit
      _
    %3726 = vsyncpa [#allocation4], 1
    %s3727 = scalar_lea.sflag [#allocation4], 1
    %3728 = vsyncpa %s3727, 1
    %3729 = vsyncpa [#allocation7], 1
    %3730 = vsyncpa [#allocation10], 1
    %3731 = vsyncpa [#allocation5], 1
    %s3732 = scalar_lea.sflag [#allocation5], 1
    %3733 = vsyncpa %s3732, 1

</llo_original>
